<compile_context>
chip_gen: v7x
topology: tpu7x:2x2x1
jax: 0.10.0
libtpu: 0.0.40
codegen_flags: <defaults>
</compile_context>

<pallas_src>
import functools

import jax
import jax.numpy as jnp
from jax import lax
from jax.experimental import pallas as pl
from jax.experimental.pallas import tpu as pltpu


C_XYZ = 16  # 3 coords + 1 constant-one (bias) channel + 12 zero pad -> layer-1 K = 16


# ----------------------------------------------------------------------------
# VMEM planning (generation aware)
# ----------------------------------------------------------------------------
@functools.lru_cache(maxsize=1)
def _vmem_plan():
    """Returns (tile-sizing budget, vmem_limit_bytes) derived from chip VMEM."""
    try:
        cap = int(pltpu.get_tpu_info().vmem_capacity_bytes)
    except Exception:
        cap = 64 * 1024 * 1024  # conservative fallback (v7x per-core VMEM)
    limit = min(cap * 3 // 4, cap - 8 * 1024 * 1024)  # ~48 MiB v7x, ~96 MiB v5e/v6e
    budget = limit * 4 // 5                           # headroom for compiler scratch
    return budget, limit


def _choose_tile_m(M, ns, c_feat, couts, vmem_budget_bytes):
    """Largest tile_m that divides M, keeps block layouts legal (bf16 sublane
    packing), fits the VMEM budget and, when possible, leaves an EVEN grid
    length (keeps both v7x TensorCores busy; harmless on 1-TC chips)."""
    c1, c2, c3 = couts
    cmax = max(couts)
    bytes_per_m = (
        ns * C_XYZ * 2 * 2            # bf16 xyz tile, double-buffered
        + ns * c_feat * 2 * 2         # bf16 feature tile, double-buffered
        + 2 * ns * cmax * 4           # live f32 intermediates
        + ns * cmax * 2               # bf16 re-cast staging
        + c3 * 2 * 2                  # bf16 output tile, double-buffered
    )
    weight_bytes = (2 * 2 * (C_XYZ * c1 + c_feat * c1 + c1 * c2 + c2 * c3)
                    + 2 * 4 * (c2 + c3))   # bf16 weights + f32 biases, x2 buffers
    cap = max((vmem_budget_bytes - weight_bytes) // bytes_per_m, 1)

    candidates = [t for t in range(1, M + 1)
                  if M % t == 0 and t <= cap
                  and t % 8 == 0 and (t * ns) % 16 == 0]
    even_grid = [t for t in candidates if M // t >= 2 and (M // t) % 2 == 0]
    multi_step = [t for t in candidates if M // t >= 2]
    for pool in (even_grid, multi_step, candidates):
        if pool:
            return max(pool)
    return M  # full-extent block is always layout-legal


# ----------------------------------------------------------------------------
# Pallas kernel: shared MLP (3 x [1x1 conv(+folded BN) -> bias -> ReLU]) + max
# ----------------------------------------------------------------------------
def sa_mlp_kernel(ns, has_feat, *refs):
    if has_feat:
        (xyz_ref, feat_ref, w1x_ref, w1f_ref,
         w2_ref, b2_ref, w3_ref, b3_ref, o_ref) = refs
    else:
        (xyz_ref, w1x_ref, w2_ref, b2_ref, w3_ref, b3_ref, o_ref) = refs

    # Layer 1: lane-aligned feature matmul + small padded xyz matmul, f32 acc.
    # The layer-1 bias rides the constant-1.0 xyz channel (folded weight row),
    # so the only per-element epilogue here is ReLU + bf16 cast.
    h = jnp.dot(xyz_ref[...], w1x_ref[...], preferred_element_type=jnp.float32)
    if has_feat:
        h = h + jnp.dot(feat_ref[...], w1f_ref[...],
                        preferred_element_type=jnp.float32)
    h = jnp.maximum(h, 0.0)

    h = jnp.dot(h.astype(jnp.bfloat16), w2_ref[...],
                preferred_element_type=jnp.float32)
    h = jnp.maximum(h + b2_ref[...], 0.0)

    h = jnp.dot(h.astype(jnp.bfloat16), w3_ref[...],
                preferred_element_type=jnp.float32)
    h = jnp.maximum(h + b3_ref[...], 0.0)

    # max-pool over the nsample (neighbour) axis; emit bf16 (halves writeback)
    tile_m, c_out = o_ref.shape
    o_ref[...] = jnp.max(h.reshape(tile_m, ns, c_out), axis=1).astype(o_ref.dtype)


def sa_mlp_pallas(xyz_flat, feat_flat, ns, params, tile_m, vmem_limit_bytes):
    """xyz_flat: (M*ns, C_XYZ) bf16, feat_flat: (M*ns, Cf) bf16 or None
    -> (M, C_out) bf16."""
    rows, c_xyz = xyz_flat.shape
    M = rows // ns
    has_feat = feat_flat is not None
    w1x, w1f = params['w1_xyz'], params['w1_feat']
    w2, b2 = params['w2'], params['b2']
    w3, b3 = params['w3'], params['b3']
    c1, c2, c3 = w1x.shape[1], w2.shape[1], w3.shape[1]
    c_feat = feat_flat.shape[1] if has_feat else 0
    assert M % tile_m == 0

    def const_spec(shape):
        nd = len(shape)
        return pl.BlockSpec(shape, lambda i, _nd=nd: (0,) * _nd)

    in_specs = [pl.BlockSpec((tile_m * ns, c_xyz), lambda i: (i, 0))]
    inputs = [xyz_flat]
    if has_feat:
        in_specs.append(pl.BlockSpec((tile_m * ns, c_feat), lambda i: (i, 0)))
        inputs.append(feat_flat)
    in_specs.append(const_spec(w1x.shape)); inputs.append(w1x)
    if has_feat:
        in_specs.append(const_spec(w1f.shape)); inputs.append(w1f)
    for a in (w2, b2, w3, b3):
        in_specs.append(const_spec(a.shape)); inputs.append(a)

    weight_elems = C_XYZ * c1 + c_feat * c1 + c1 * c2 + c2 * c3
    flops = 2 * rows * (c_xyz * c1 + c_feat * c1 + c1 * c2 + c2 * c3)
    bytes_accessed = (rows * (c_xyz + c_feat) * 2    # bf16 inputs
                      + weight_elems * 2             # bf16 weights
                      + (c2 + c3) * 4                # f32 biases
                      + M * c3 * 2)                  # bf16 output

    return pl.pallas_call(
        functools.partial(sa_mlp_kernel, ns, has_feat),
        out_shape=jax.ShapeDtypeStruct((M, c3), jnp.bfloat16),
        grid=(M // tile_m,),
        in_specs=in_specs,
        out_specs=pl.BlockSpec((tile_m, c3), lambda i: (i, 0)),
        compiler_params=pltpu.CompilerParams(
            dimension_semantics=("parallel",),
            vmem_limit_bytes=int(vmem_limit_bytes)),
        cost_estimate=pl.CostEstimate(flops=flops, transcendentals=0,
                                      bytes_accessed=bytes_accessed),
    )(*inputs)


# ----------------------------------------------------------------------------
# Plain-JAX glue: farthest point sampling, ball query, grouping
# ----------------------------------------------------------------------------
def farthest_point_sample(xyz, npoint):
    """xyz: (B, N, 3) -> indices (B, npoint) int32 (matches CUDA FPS order)."""
    B, N, _ = xyz.shape

    def body(i, state):
        dist, farthest, idxs = state
        idxs = idxs.at[:, i].set(farthest)
        centroid = jnp.take_along_axis(xyz, farthest[:, None, None], axis=1)
        d = jnp.sum((xyz - centroid) ** 2, axis=-1)
        dist = jnp.minimum(dist, d)
        farthest = jnp.argmax(dist, axis=-1).astype(jnp.int32)
        return dist, farthest, idxs

    dist0 = jnp.full((B, N), 1e10, dtype=jnp.float32)
    far0 = jnp.zeros((B,), jnp.int32)
    idx0 = jnp.zeros((B, npoint), jnp.int32)
    _, _, idxs = lax.fori_loop(0, npoint, body, (dist0, far0, idx0))
    return idxs


def ball_query(radius, nsample, xyz, new_xyz):
    """xyz: (B,N,3), new_xyz: (B,S,3) -> idx (B,S,nsample) int32.

    Matches pointnet2 ball_query: first `nsample` in-radius points in original
    order, padded with the first found index.
    """
    N = xyz.shape[1]
    d2 = jnp.sum((new_xyz[:, :, None, :] - xyz[:, None, :, :]) ** 2, axis=-1)
    in_ball = d2 < (radius ** 2)
    key = jnp.where(in_ball, jnp.arange(N, dtype=jnp.int32)[None, None, :], N)
    sorted_idx = jnp.sort(key, axis=-1)[:, :, :nsample]
    first = sorted_idx[:, :, :1]
    idx = jnp.where(sorted_idx >= N, first, sorted_idx)
    return idx.astype(jnp.int32)


def _batched_gather(x, idx):
    # x: (B, N, C), idx: (B, ...) -> (B, ..., C)
    return jax.vmap(lambda a, i: a[i])(x, idx)


def sa_module(xyz, features, params, npoint, radius, nsample):
    """One PointnetSAModuleVotes (use_xyz=True, normalize_xyz=True, max pool).

    xyz: (B, N, 3) f32.  features: (B, N, C) channel-last bf16/f32 or None.
    Returns new_xyz (B, npoint, 3), new_features (B, npoint, C_out) bf16, fps_inds.
    """
    fps_inds = farthest_point_sample(xyz, npoint)              # (B, npoint)
    new_xyz = _batched_gather(xyz, fps_inds)                    # (B, npoint, 3)
    idx = ball_query(radius, nsample, xyz, new_xyz)             # (B, np, ns)

    # TODO(synk): move this neighbourhood gather in-kernel (idx prefetched to
    # SMEM via PrefetchScalarGridSpec + manual make_async_copy row gather) to
    # avoid materializing the (B, npoint, nsample, C) slab in HBM.
    grouped_xyz = _batched_gather(xyz, idx)                     # (B, np, ns, 3)
    grouped_xyz = (grouped_xyz - new_xyz[:, :, None, :]) * (1.0 / radius)
    ones = jnp.ones(grouped_xyz.shape[:-1] + (1,), jnp.float32)  # bias channel
    zpad = jnp.zeros(grouped_xyz.shape[:-1] + (C_XYZ - 4,), jnp.float32)
    xyz_slab = jnp.concatenate([grouped_xyz, ones, zpad], axis=-1).astype(jnp.bfloat16)

    B, S, ns, _ = xyz_slab.shape
    M = B * S
    xyz_flat = xyz_slab.reshape(M * ns, C_XYZ)

    if features is not None:
        feat = features.astype(jnp.bfloat16)                    # no-op after SA1
        c_feat = feat.shape[-1]
        feat_flat = _batched_gather(feat, idx).reshape(M * ns, c_feat)
    else:
        feat_flat = None
        c_feat = 0

    couts = (params['w1_xyz'].shape[1], params['w2'].shape[1],
             params['w3'].shape[1])
    budget, limit = _vmem_plan()
    tile_m = _choose_tile_m(M, ns, c_feat, couts, budget)

    out = sa_mlp_pallas(xyz_flat, feat_flat, ns, params, tile_m, limit)
    new_features = out.reshape(B, S, couts[-1])                 # bf16, channel-last
    return new_xyz, new_features, fps_inds


# ----------------------------------------------------------------------------
# Parameter construction (deterministic, synthetic)
# ----------------------------------------------------------------------------
def make_sa_params(key, c_feat, couts, eps=1e-5):
    """Conv2d(1x1, no bias) weights with eval-mode BN folded in.  Layer 1 is
    split into an xyz part (padded to C_XYZ rows, with the bias folded into the
    constant-1 channel's weight row) and a lane-aligned feature part."""
    c1, c2, c3 = couts
    cins = (3 + c_feat, c1, c2)
    keys = jax.random.split(key, 3)
    folded = []
    for k, cin, cout in zip(keys, cins, couts):
        w = (jax.random.normal(k, (cin, cout), jnp.float32)
             / jnp.sqrt(jnp.float32(cin)))
        gamma = jnp.ones((cout,), jnp.float32)
        beta = jnp.zeros((cout,), jnp.float32)
        mean = jnp.zeros((cout,), jnp.float32)
        var = jnp.ones((cout,), jnp.float32)
        scale = gamma / jnp.sqrt(var + eps)
        folded.append((w * scale[None, :], beta - mean * scale))
    (w1, b1), (w2, b2), (w3, b3) = folded

    w1_xyz = jnp.concatenate(
        [w1[:3], b1[None, :], jnp.zeros((C_XYZ - 4, c1), jnp.float32)], axis=0)
    w1_feat = w1[3:] if c_feat > 0 else None
    return {
        'w1_xyz': w1_xyz.astype(jnp.bfloat16),
        'w1_feat': None if w1_feat is None else w1_feat.astype(jnp.bfloat16),
        'w2': w2.astype(jnp.bfloat16), 'b2': b2.reshape(1, c2),
        'w3': w3.astype(jnp.bfloat16), 'b3': b3.reshape(1, c3),
    }


# ----------------------------------------------------------------------------
# Pointnet2Encoder forward
# ----------------------------------------------------------------------------
def pointnet2_encoder_forward(pointcloud, all_params, npoints, radius, nsample):
    """pointcloud: (B, N, 3+input_feature_dim).  Returns end_points dict with
    sa{1..4}_xyz (B, np, 3) and sa{1..4}_features (B, C, np) f32."""
    end_points = {}
    xyz = pointcloud[..., 0:3]
    features = pointcloud[..., 3:] if pointcloud.shape[-1] > 3 else None
    end_points['org_xyz'] = xyz

    for li in range(4):
        xyz, features, _ = sa_module(xyz, features, all_params[li],
                                     npoints[li], radius[li], nsample[li])
        end_points[f'sa{li + 1}_xyz'] = xyz
        # PyTorch output layout (B, C, npoint), f32; features stay bf16
        # channel-last internally so the next level's gather reads half.
        end_points[f'sa{li + 1}_features'] = jnp.transpose(
            features, (0, 2, 1)).astype(jnp.float32)
    return end_points


if __name__ == "__main__":
    key = jax.random.PRNGKey(0)
    k_pc, k_params = jax.random.split(key)

    # Small shapes consistent with the module (input_feature_dim = 0).
    B, N = 2, 64
    npoints = (32, 16, 8, 8)
    radius = (0.2, 0.4, 0.6, 1.2)
    nsample = (16, 8, 8, 8)
    input_feature_dim = 0

    pointcloud = jax.random.uniform(
        k_pc, (B, N, 3 + input_feature_dim), jnp.float32, minval=-1.0, maxval=1.0)

    # use_xyz=True -> +3 xyz channels on each SA module's first MLP layer.
    mlp_cfg = [
        (input_feature_dim, (64, 64, 128)),
        (128, (128, 128, 256)),
        (256, (256, 256, 512)),
        (512, (512, 512, 512)),
    ]
    pkeys = jax.random.split(k_params, 4)
    all_params = [make_sa_params(pkeys[i], cf, couts)
                  for i, (cf, couts) in enumerate(mlp_cfg)]

    forward = jax.jit(functools.partial(
        pointnet2_encoder_forward,
        npoints=npoints, radius=radius, nsample=nsample))

    end_points = forward(pointcloud, all_params)
    end_points = jax.tree_util.tree_map(jax.block_until_ready, end_points)

    # Light sanity checks on shapes / values.
    assert end_points['sa1_features'].shape == (B, 128, npoints[0])
    assert end_points['sa4_features'].shape == (B, 512, npoints[3])
    assert end_points['sa4_xyz'].shape == (B, npoints[3], 3)
    assert bool(jnp.all(jnp.isfinite(end_points['sa4_features'])))

    # TODO(synk): BN is folded in eval-mode (identity running stats); PyTorch
    # training-mode batch statistics are not reproduced.
    print("KERNEL_OK")
</pallas_src>

<mosaic_0001>
module attributes {stable_mosaic.version = 11 : i64} {
  func.func @sa_mlp_kernel(%arg0: i32, %arg1: memref<512x16xbf16, #tpu.memory_space<vmem>>, %arg2: memref<16x64xbf16, #tpu.memory_space<vmem>>, %arg3: memref<64x64xbf16, #tpu.memory_space<vmem>>, %arg4: memref<1x64xf32, #tpu.memory_space<vmem>>, %arg5: memref<64x128xbf16, #tpu.memory_space<vmem>>, %arg6: memref<1x128xf32, #tpu.memory_space<vmem>>, %arg7: memref<32x128xbf16, #tpu.memory_space<vmem>>) attributes {dimension_semantics = [#tpu.dimension_semantics<parallel>], iteration_bounds = array<i64: 2>, scalar_prefetch = 0 : i64, scratch_operands = 0 : i64, tpu.core_type = #tpu.core_type<tc>, window_params = [{transform_indices = @transform_0, window_bounds = array<i64: 512, 16>}, {pipeline_mode = #tpu.pipeline_mode<synchronous>, transform_indices = @transform_1, window_bounds = array<i64: 16, 64>}, {pipeline_mode = #tpu.pipeline_mode<synchronous>, transform_indices = @transform_2, window_bounds = array<i64: 64, 64>}, {pipeline_mode = #tpu.pipeline_mode<synchronous>, transform_indices = @transform_3, window_bounds = array<i64: 1, 64>}, {pipeline_mode = #tpu.pipeline_mode<synchronous>, transform_indices = @transform_4, window_bounds = array<i64: 64, 128>}, {pipeline_mode = #tpu.pipeline_mode<synchronous>, transform_indices = @transform_5, window_bounds = array<i64: 1, 128>}, {transform_indices = @transform_6, window_bounds = array<i64: 32, 128>}]} {
    %c0 = arith.constant 0 : index
    %c0_0 = arith.constant 0 : index
    %0 = vector.load %arg1[%c0, %c0_0] : memref<512x16xbf16, #tpu.memory_space<vmem>>, vector<512x16xbf16>
    %c0_1 = arith.constant 0 : index
    %c0_2 = arith.constant 0 : index
    %1 = vector.load %arg2[%c0_1, %c0_2] : memref<16x64xbf16, #tpu.memory_space<vmem>>, vector<16x64xbf16>
    %cst = arith.constant dense<0.000000e+00> : vector<512x64xf32>
    %2 = tpu.matmul %0, %1, %cst {dimension_numbers = #tpu.dot_dimension_numbers<[1], [0], [0], [1], [0, 0, 1, 1], [], []>} : vector<512x16xbf16>, vector<16x64xbf16>, vector<512x64xf32> -> vector<512x64xf32>
    %cst_3 = arith.constant 0.000000e+00 : f32
    %3 = vector.broadcast %cst_3 : f32 to vector<512x64xf32>
    %4 = arith.maximumf %2, %3 : vector<512x64xf32>
    %5 = arith.truncf %4 : vector<512x64xf32> to vector<512x64xbf16>
    %c0_4 = arith.constant 0 : index
    %c0_5 = arith.constant 0 : index
    %6 = vector.load %arg3[%c0_4, %c0_5] : memref<64x64xbf16, #tpu.memory_space<vmem>>, vector<64x64xbf16>
    %cst_6 = arith.constant dense<0.000000e+00> : vector<512x64xf32>
    %7 = tpu.matmul %5, %6, %cst_6 {dimension_numbers = #tpu.dot_dimension_numbers<[1], [0], [0], [1], [0, 0, 1, 1], [], []>} : vector<512x64xbf16>, vector<64x64xbf16>, vector<512x64xf32> -> vector<512x64xf32>
    %c0_7 = arith.constant 0 : index
    %c0_8 = arith.constant 0 : index
    %8 = vector.load %arg4[%c0_7, %c0_8] : memref<1x64xf32, #tpu.memory_space<vmem>>, vector<1x64xf32>
    %9 = vector.broadcast %8 : vector<1x64xf32> to vector<512x64xf32>
    %10 = arith.addf %7, %9 : vector<512x64xf32>
    %cst_9 = arith.constant 0.000000e+00 : f32
    %11 = vector.broadcast %cst_9 : f32 to vector<512x64xf32>
    %12 = arith.maximumf %10, %11 : vector<512x64xf32>
    %13 = arith.truncf %12 : vector<512x64xf32> to vector<512x64xbf16>
    %c0_10 = arith.constant 0 : index
    %c0_11 = arith.constant 0 : index
    %14 = vector.load %arg5[%c0_10, %c0_11] : memref<64x128xbf16, #tpu.memory_space<vmem>>, vector<64x128xbf16>
    %cst_12 = arith.constant dense<0.000000e+00> : vector<512x128xf32>
    %15 = tpu.matmul %13, %14, %cst_12 {dimension_numbers = #tpu.dot_dimension_numbers<[1], [0], [0], [1], [0, 0, 1, 1], [], []>} : vector<512x64xbf16>, vector<64x128xbf16>, vector<512x128xf32> -> vector<512x128xf32>
    %c0_13 = arith.constant 0 : index
    %c0_14 = arith.constant 0 : index
    %16 = vector.load %arg6[%c0_13, %c0_14] : memref<1x128xf32, #tpu.memory_space<vmem>>, vector<1x128xf32>
    %17 = vector.broadcast %16 : vector<1x128xf32> to vector<512x128xf32>
    %18 = arith.addf %15, %17 : vector<512x128xf32>
    %cst_15 = arith.constant 0.000000e+00 : f32
    %19 = vector.broadcast %cst_15 : f32 to vector<512x128xf32>
    %20 = arith.maximumf %18, %19 : vector<512x128xf32>
    %21 = vector.shape_cast %20 : vector<512x128xf32> to vector<32x16x128xf32>
    %cst_16 = arith.constant dense<0xFF800000> : vector<32x128xf32>
    %22 = vector.multi_reduction <maximumf>, %21, %cst_16 [1] : vector<32x16x128xf32> to vector<32x128xf32>
    %23 = arith.truncf %22 : vector<32x128xf32> to vector<32x128xbf16>
    %c0_17 = arith.constant 0 : index
    %c0_18 = arith.constant 0 : index
    %24 = vector.load %arg7[%c0_17, %c0_18] : memref<32x128xbf16, #tpu.memory_space<vmem>>, vector<32x128xbf16>
    tpu.vector_store %arg7[%c0_17, %c0_18], %23 {strides = array<i32>} : memref<32x128xbf16, #tpu.memory_space<vmem>>, vector<32x128xbf16>,
    return
  }
  func.func @transform_0(%arg0: i32) -> (i32, i32) {
    %c0_i32 = arith.constant 0 : i32
    %c0_i32_0 = arith.constant 0 : i32
    return %arg0, %c0_i32 : i32, i32
  }
  func.func @transform_1(%arg0: i32) -> (i32, i32) {
    %c0_i32 = arith.constant 0 : i32
    %c0_i32_0 = arith.constant 0 : i32
    %c0_i32_1 = arith.constant 0 : i32
    return %c0_i32, %c0_i32_0 : i32, i32
  }
  func.func @transform_2(%arg0: i32) -> (i32, i32) {
    %c0_i32 = arith.constant 0 : i32
    %c0_i32_0 = arith.constant 0 : i32
    %c0_i32_1 = arith.constant 0 : i32
    return %c0_i32, %c0_i32_0 : i32, i32
  }
  func.func @transform_3(%arg0: i32) -> (i32, i32) {
    %c0_i32 = arith.constant 0 : i32
    %c0_i32_0 = arith.constant 0 : i32
    %c0_i32_1 = arith.constant 0 : i32
    return %c0_i32, %c0_i32_0 : i32, i32
  }
  func.func @transform_4(%arg0: i32) -> (i32, i32) {
    %c0_i32 = arith.constant 0 : i32
    %c0_i32_0 = arith.constant 0 : i32
    %c0_i32_1 = arith.constant 0 : i32
    return %c0_i32, %c0_i32_0 : i32, i32
  }
  func.func @transform_5(%arg0: i32) -> (i32, i32) {
    %c0_i32 = arith.constant 0 : i32
    %c0_i32_0 = arith.constant 0 : i32
    %c0_i32_1 = arith.constant 0 : i32
    return %c0_i32, %c0_i32_0 : i32, i32
  }
  func.func @transform_6(%arg0: i32) -> (i32, i32) {
    %c0_i32 = arith.constant 0 : i32
    %c0_i32_0 = arith.constant 0 : i32
    return %arg0, %c0_i32 : i32, i32
  }
}

module attributes {stable_mosaic.version = 11 : i64} {
  func.func @sa_mlp_kernel(%arg0: i32, %arg1: memref<128x16xbf16, #tpu.memory_space<vmem>>, %arg2: memref<128x128xbf16, #tpu.memory_space<vmem>>, %arg3: memref<16x128xbf16, #tpu.memory_space<vmem>>, %arg4: memref<128x128xbf16, #tpu.memory_space<vmem>>, %arg5: memref<128x128xbf16, #tpu.memory_space<vmem>>, %arg6: memref<1x128xf32, #tpu.memory_space<vmem>>, %arg7: memref<128x256xbf16, #tpu.memory_space<vmem>>, %arg8: memref<1x256xf32, #tpu.memory_space<vmem>>, %arg9: memref<16x256xbf16, #tpu.memory_space<vmem>>) attributes {dimension_semantics = [#tpu.dimension_semantics<parallel>], iteration_bounds = array<i64: 2>, scalar_prefetch = 0 : i64, scratch_operands = 0 : i64, tpu.core_type = #tpu.core_type<tc>, window_params = [{transform_indices = @transform_0, window_bounds = array<i64: 128, 16>}, {transform_indices = @transform_1, window_bounds = array<i64: 128, 128>}, {pipeline_mode = #tpu.pipeline_mode<synchronous>, transform_indices = @transform_2, window_bounds = array<i64: 16, 128>}, {pipeline_mode = #tpu.pipeline_mode<synchronous>, transform_indices = @transform_3, window_bounds = array<i64: 128, 128>}, {pipeline_mode = #tpu.pipeline_mode<synchronous>, transform_indices = @transform_4, window_bounds = array<i64: 128, 128>}, {pipeline_mode = #tpu.pipeline_mode<synchronous>, transform_indices = @transform_5, window_bounds = array<i64: 1, 128>}, {pipeline_mode = #tpu.pipeline_mode<synchronous>, transform_indices = @transform_6, window_bounds = array<i64: 128, 256>}, {pipeline_mode = #tpu.pipeline_mode<synchronous>, transform_indices = @transform_7, window_bounds = array<i64: 1, 256>}, {transform_indices = @transform_8, window_bounds = array<i64: 16, 256>}]} {
    %c0 = arith.constant 0 : index
    %c0_0 = arith.constant 0 : index
    %0 = vector.load %arg1[%c0, %c0_0] : memref<128x16xbf16, #tpu.memory_space<vmem>>, vector<128x16xbf16>
    %c0_1 = arith.constant 0 : index
    %c0_2 = arith.constant 0 : index
    %1 = vector.load %arg3[%c0_1, %c0_2] : memref<16x128xbf16, #tpu.memory_space<vmem>>, vector<16x128xbf16>
    %cst = arith.constant dense<0.000000e+00> : vector<128x128xf32>
    %2 = tpu.matmul %0, %1, %cst {dimension_numbers = #tpu.dot_dimension_numbers<[1], [0], [0], [1], [0, 0, 1, 1], [], []>} : vector<128x16xbf16>, vector<16x128xbf16>, vector<128x128xf32> -> vector<128x128xf32>
    %c0_3 = arith.constant 0 : index
    %c0_4 = arith.constant 0 : index
    %3 = vector.load %arg2[%c0_3, %c0_4] : memref<128x128xbf16, #tpu.memory_space<vmem>>, vector<128x128xbf16>
    %c0_5 = arith.constant 0 : index
    %c0_6 = arith.constant 0 : index
    %4 = vector.load %arg4[%c0_5, %c0_6] : memref<128x128xbf16, #tpu.memory_space<vmem>>, vector<128x128xbf16>
    %cst_7 = arith.constant dense<0.000000e+00> : vector<128x128xf32>
    %5 = tpu.matmul %3, %4, %cst_7 {dimension_numbers = #tpu.dot_dimension_numbers<[1], [0], [0], [1], [0, 0, 1, 1], [], []>} : vector<128x128xbf16>, vector<128x128xbf16>, vector<128x128xf32> -> vector<128x128xf32>
    %6 = arith.addf %2, %5 : vector<128x128xf32>
    %cst_8 = arith.constant 0.000000e+00 : f32
    %7 = vector.broadcast %cst_8 : f32 to vector<128x128xf32>
    %8 = arith.maximumf %6, %7 : vector<128x128xf32>
    %9 = arith.truncf %8 : vector<128x128xf32> to vector<128x128xbf16>
    %c0_9 = arith.constant 0 : index
    %c0_10 = arith.constant 0 : index
    %10 = vector.load %arg5[%c0_9, %c0_10] : memref<128x128xbf16, #tpu.memory_space<vmem>>, vector<128x128xbf16>
    %cst_11 = arith.constant dense<0.000000e+00> : vector<128x128xf32>
    %11 = tpu.matmul %9, %10, %cst_11 {dimension_numbers = #tpu.dot_dimension_numbers<[1], [0], [0], [1], [0, 0, 1, 1], [], []>} : vector<128x128xbf16>, vector<128x128xbf16>, vector<128x128xf32> -> vector<128x128xf32>
    %c0_12 = arith.constant 0 : index
    %c0_13 = arith.constant 0 : index
    %12 = vector.load %arg6[%c0_12, %c0_13] : memref<1x128xf32, #tpu.memory_space<vmem>>, vector<1x128xf32>
    %13 = vector.broadcast %12 : vector<1x128xf32> to vector<128x128xf32>
    %14 = arith.addf %11, %13 : vector<128x128xf32>
    %cst_14 = arith.constant 0.000000e+00 : f32
    %15 = vector.broadcast %cst_14 : f32 to vector<128x128xf32>
    %16 = arith.maximumf %14, %15 : vector<128x128xf32>
    %17 = arith.truncf %16 : vector<128x128xf32> to vector<128x128xbf16>
    %c0_15 = arith.constant 0 : index
    %c0_16 = arith.constant 0 : index
    %18 = vector.load %arg7[%c0_15, %c0_16] : memref<128x256xbf16, #tpu.memory_space<vmem>>, vector<128x256xbf16>
    %cst_17 = arith.constant dense<0.000000e+00> : vector<128x256xf32>
    %19 = tpu.matmul %17, %18, %cst_17 {dimension_numbers = #tpu.dot_dimension_numbers<[1], [0], [0], [1], [0, 0, 1, 1], [], []>} : vector<128x128xbf16>, vector<128x256xbf16>, vector<128x256xf32> -> vector<128x256xf32>
    %c0_18 = arith.constant 0 : index
    %c0_19 = arith.constant 0 : index
    %20 = vector.load %arg8[%c0_18, %c0_19] : memref<1x256xf32, #tpu.memory_space<vmem>>, vector<1x256xf32>
    %21 = vector.broadcast %20 : vector<1x256xf32> to vector<128x256xf32>
    %22 = arith.addf %19, %21 : vector<128x256xf32>
    %cst_20 = arith.constant 0.000000e+00 : f32
    %23 = vector.broadcast %cst_20 : f32 to vector<128x256xf32>
    %24 = arith.maximumf %22, %23 : vector<128x256xf32>
    %25 = vector.shape_cast %24 : vector<128x256xf32> to vector<16x8x256xf32>
    %cst_21 = arith.constant dense<0xFF800000> : vector<16x256xf32>
    %26 = vector.multi_reduction <maximumf>, %25, %cst_21 [1] : vector<16x8x256xf32> to vector<16x256xf32>
    %27 = arith.truncf %26 : vector<16x256xf32> to vector<16x256xbf16>
    %c0_22 = arith.constant 0 : index
    %c0_23 = arith.constant 0 : index
    %28 = vector.load %arg9[%c0_22, %c0_23] : memref<16x256xbf16, #tpu.memory_space<vmem>>, vector<16x256xbf16>
    tpu.vector_store %arg9[%c0_22, %c0_23], %27 {strides = array<i32>} : memref<16x256xbf16, #tpu.memory_space<vmem>>, vector<16x256xbf16>,
    return
  }
  func.func @transform_0(%arg0: i32) -> (i32, i32) {
    %c0_i32 = arith.constant 0 : i32
    %c0_i32_0 = arith.constant 0 : i32
    return %arg0, %c0_i32 : i32, i32
  }
  func.func @transform_1(%arg0: i32) -> (i32, i32) {
    %c0_i32 = arith.constant 0 : i32
    %c0_i32_0 = arith.constant 0 : i32
    return %arg0, %c0_i32 : i32, i32
  }
  func.func @transform_2(%arg0: i32) -> (i32, i32) {
    %c0_i32 = arith.constant 0 : i32
    %c0_i32_0 = arith.constant 0 : i32
    %c0_i32_1 = arith.constant 0 : i32
    return %c0_i32, %c0_i32_0 : i32, i32
  }
  func.func @transform_3(%arg0: i32) -> (i32, i32) {
    %c0_i32 = arith.constant 0 : i32
    %c0_i32_0 = arith.constant 0 : i32
    %c0_i32_1 = arith.constant 0 : i32
    return %c0_i32, %c0_i32_0 : i32, i32
  }
  func.func @transform_4(%arg0: i32) -> (i32, i32) {
    %c0_i32 = arith.constant 0 : i32
    %c0_i32_0 = arith.constant 0 : i32
    %c0_i32_1 = arith.constant 0 : i32
    return %c0_i32, %c0_i32_0 : i32, i32
  }
  func.func @transform_5(%arg0: i32) -> (i32, i32) {
    %c0_i32 = arith.constant 0 : i32
    %c0_i32_0 = arith.constant 0 : i32
    %c0_i32_1 = arith.constant 0 : i32
    return %c0_i32, %c0_i32_0 : i32, i32
  }
  func.func @transform_6(%arg0: i32) -> (i32, i32) {
    %c0_i32 = arith.constant 0 : i32
    %c0_i32_0 = arith.constant 0 : i32
    %c0_i32_1 = arith.constant 0 : i32
    return %c0_i32, %c0_i32_0 : i32, i32
  }
  func.func @transform_7(%arg0: i32) -> (i32, i32) {
    %c0_i32 = arith.constant 0 : i32
    %c0_i32_0 = arith.constant 0 : i32
    %c0_i32_1 = arith.constant 0 : i32
    return %c0_i32, %c0_i32_0 : i32, i32
  }
  func.func @transform_8(%arg0: i32) -> (i32, i32) {
    %c0_i32 = arith.constant 0 : i32
    %c0_i32_0 = arith.constant 0 : i32
    return %arg0, %c0_i32 : i32, i32
  }
}

module attributes {stable_mosaic.version = 11 : i64} {
  func.func @sa_mlp_kernel(%arg0: i32, %arg1: memref<64x16xbf16, #tpu.memory_space<vmem>>, %arg2: memref<64x256xbf16, #tpu.memory_space<vmem>>, %arg3: memref<16x256xbf16, #tpu.memory_space<vmem>>, %arg4: memref<256x256xbf16, #tpu.memory_space<vmem>>, %arg5: memref<256x256xbf16, #tpu.memory_space<vmem>>, %arg6: memref<1x256xf32, #tpu.memory_space<vmem>>, %arg7: memref<256x512xbf16, #tpu.memory_space<vmem>>, %arg8: memref<1x512xf32, #tpu.memory_space<vmem>>, %arg9: memref<8x512xbf16, #tpu.memory_space<vmem>>) attributes {dimension_semantics = [#tpu.dimension_semantics<parallel>], iteration_bounds = array<i64: 2>, scalar_prefetch = 0 : i64, scratch_operands = 0 : i64, tpu.core_type = #tpu.core_type<tc>, window_params = [{transform_indices = @transform_0, window_bounds = array<i64: 64, 16>}, {transform_indices = @transform_1, window_bounds = array<i64: 64, 256>}, {pipeline_mode = #tpu.pipeline_mode<synchronous>, transform_indices = @transform_2, window_bounds = array<i64: 16, 256>}, {pipeline_mode = #tpu.pipeline_mode<synchronous>, transform_indices = @transform_3, window_bounds = array<i64: 256, 256>}, {pipeline_mode = #tpu.pipeline_mode<synchronous>, transform_indices = @transform_4, window_bounds = array<i64: 256, 256>}, {pipeline_mode = #tpu.pipeline_mode<synchronous>, transform_indices = @transform_5, window_bounds = array<i64: 1, 256>}, {pipeline_mode = #tpu.pipeline_mode<synchronous>, transform_indices = @transform_6, window_bounds = array<i64: 256, 512>}, {pipeline_mode = #tpu.pipeline_mode<synchronous>, transform_indices = @transform_7, window_bounds = array<i64: 1, 512>}, {transform_indices = @transform_8, window_bounds = array<i64: 8, 512>}]} {
    %c0 = arith.constant 0 : index
    %c0_0 = arith.constant 0 : index
    %0 = vector.load %arg1[%c0, %c0_0] : memref<64x16xbf16, #tpu.memory_space<vmem>>, vector<64x16xbf16>
    %c0_1 = arith.constant 0 : index
    %c0_2 = arith.constant 0 : index
    %1 = vector.load %arg3[%c0_1, %c0_2] : memref<16x256xbf16, #tpu.memory_space<vmem>>, vector<16x256xbf16>
    %cst = arith.constant dense<0.000000e+00> : vector<64x256xf32>
    %2 = tpu.matmul %0, %1, %cst {dimension_numbers = #tpu.dot_dimension_numbers<[1], [0], [0], [1], [0, 0, 1, 1], [], []>} : vector<64x16xbf16>, vector<16x256xbf16>, vector<64x256xf32> -> vector<64x256xf32>
    %c0_3 = arith.constant 0 : index
    %c0_4 = arith.constant 0 : index
    %3 = vector.load %arg2[%c0_3, %c0_4] : memref<64x256xbf16, #tpu.memory_space<vmem>>, vector<64x256xbf16>
    %c0_5 = arith.constant 0 : index
    %c0_6 = arith.constant 0 : index
    %4 = vector.load %arg4[%c0_5, %c0_6] : memref<256x256xbf16, #tpu.memory_space<vmem>>, vector<256x256xbf16>
    %cst_7 = arith.constant dense<0.000000e+00> : vector<64x256xf32>
    %5 = tpu.matmul %3, %4, %cst_7 {dimension_numbers = #tpu.dot_dimension_numbers<[1], [0], [0], [1], [0, 0, 1, 1], [], []>} : vector<64x256xbf16>, vector<256x256xbf16>, vector<64x256xf32> -> vector<64x256xf32>
    %6 = arith.addf %2, %5 : vector<64x256xf32>
    %cst_8 = arith.constant 0.000000e+00 : f32
    %7 = vector.broadcast %cst_8 : f32 to vector<64x256xf32>
    %8 = arith.maximumf %6, %7 : vector<64x256xf32>
    %9 = arith.truncf %8 : vector<64x256xf32> to vector<64x256xbf16>
    %c0_9 = arith.constant 0 : index
    %c0_10 = arith.constant 0 : index
    %10 = vector.load %arg5[%c0_9, %c0_10] : memref<256x256xbf16, #tpu.memory_space<vmem>>, vector<256x256xbf16>
    %cst_11 = arith.constant dense<0.000000e+00> : vector<64x256xf32>
    %11 = tpu.matmul %9, %10, %cst_11 {dimension_numbers = #tpu.dot_dimension_numbers<[1], [0], [0], [1], [0, 0, 1, 1], [], []>} : vector<64x256xbf16>, vector<256x256xbf16>, vector<64x256xf32> -> vector<64x256xf32>
    %c0_12 = arith.constant 0 : index
    %c0_13 = arith.constant 0 : index
    %12 = vector.load %arg6[%c0_12, %c0_13] : memref<1x256xf32, #tpu.memory_space<vmem>>, vector<1x256xf32>
    %13 = vector.broadcast %12 : vector<1x256xf32> to vector<64x256xf32>
    %14 = arith.addf %11, %13 : vector<64x256xf32>
    %cst_14 = arith.constant 0.000000e+00 : f32
    %15 = vector.broadcast %cst_14 : f32 to vector<64x256xf32>
    %16 = arith.maximumf %14, %15 : vector<64x256xf32>
    %17 = arith.truncf %16 : vector<64x256xf32> to vector<64x256xbf16>
    %c0_15 = arith.constant 0 : index
    %c0_16 = arith.constant 0 : index
    %18 = vector.load %arg7[%c0_15, %c0_16] : memref<256x512xbf16, #tpu.memory_space<vmem>>, vector<256x512xbf16>
    %cst_17 = arith.constant dense<0.000000e+00> : vector<64x512xf32>
    %19 = tpu.matmul %17, %18, %cst_17 {dimension_numbers = #tpu.dot_dimension_numbers<[1], [0], [0], [1], [0, 0, 1, 1], [], []>} : vector<64x256xbf16>, vector<256x512xbf16>, vector<64x512xf32> -> vector<64x512xf32>
    %c0_18 = arith.constant 0 : index
    %c0_19 = arith.constant 0 : index
    %20 = vector.load %arg8[%c0_18, %c0_19] : memref<1x512xf32, #tpu.memory_space<vmem>>, vector<1x512xf32>
    %21 = vector.broadcast %20 : vector<1x512xf32> to vector<64x512xf32>
    %22 = arith.addf %19, %21 : vector<64x512xf32>
    %cst_20 = arith.constant 0.000000e+00 : f32
    %23 = vector.broadcast %cst_20 : f32 to vector<64x512xf32>
    %24 = arith.maximumf %22, %23 : vector<64x512xf32>
    %25 = vector.shape_cast %24 : vector<64x512xf32> to vector<8x8x512xf32>
    %cst_21 = arith.constant dense<0xFF800000> : vector<8x512xf32>
    %26 = vector.multi_reduction <maximumf>, %25, %cst_21 [1] : vector<8x8x512xf32> to vector<8x512xf32>
    %27 = arith.truncf %26 : vector<8x512xf32> to vector<8x512xbf16>
    %c0_22 = arith.constant 0 : index
    %c0_23 = arith.constant 0 : index
    %28 = vector.load %arg9[%c0_22, %c0_23] : memref<8x512xbf16, #tpu.memory_space<vmem>>, vector<8x512xbf16>
    tpu.vector_store %arg9[%c0_22, %c0_23], %27 {strides = array<i32>} : memref<8x512xbf16, #tpu.memory_space<vmem>>, vector<8x512xbf16>,
    return
  }
  func.func @transform_0(%arg0: i32) -> (i32, i32) {
    %c0_i32 = arith.constant 0 : i32
    %c0_i32_0 = arith.constant 0 : i32
    return %arg0, %c0_i32 : i32, i32
  }
  func.func @transform_1(%arg0: i32) -> (i32, i32) {
    %c0_i32 = arith.constant 0 : i32
    %c0_i32_0 = arith.constant 0 : i32
    return %arg0, %c0_i32 : i32, i32
  }
  func.func @transform_2(%arg0: i32) -> (i32, i32) {
    %c0_i32 = arith.constant 0 : i32
    %c0_i32_0 = arith.constant 0 : i32
    %c0_i32_1 = arith.constant 0 : i32
    return %c0_i32, %c0_i32_0 : i32, i32
  }
  func.func @transform_3(%arg0: i32) -> (i32, i32) {
    %c0_i32 = arith.constant 0 : i32
    %c0_i32_0 = arith.constant 0 : i32
    %c0_i32_1 = arith.constant 0 : i32
    return %c0_i32, %c0_i32_0 : i32, i32
  }
  func.func @transform_4(%arg0: i32) -> (i32, i32) {
    %c0_i32 = arith.constant 0 : i32
    %c0_i32_0 = arith.constant 0 : i32
    %c0_i32_1 = arith.constant 0 : i32
    return %c0_i32, %c0_i32_0 : i32, i32
  }
  func.func @transform_5(%arg0: i32) -> (i32, i32) {
    %c0_i32 = arith.constant 0 : i32
    %c0_i32_0 = arith.constant 0 : i32
    %c0_i32_1 = arith.constant 0 : i32
    return %c0_i32, %c0_i32_0 : i32, i32
  }
  func.func @transform_6(%arg0: i32) -> (i32, i32) {
    %c0_i32 = arith.constant 0 : i32
    %c0_i32_0 = arith.constant 0 : i32
    %c0_i32_1 = arith.constant 0 : i32
    return %c0_i32, %c0_i32_0 : i32, i32
  }
  func.func @transform_7(%arg0: i32) -> (i32, i32) {
    %c0_i32 = arith.constant 0 : i32
    %c0_i32_0 = arith.constant 0 : i32
    %c0_i32_1 = arith.constant 0 : i32
    return %c0_i32, %c0_i32_0 : i32, i32
  }
  func.func @transform_8(%arg0: i32) -> (i32, i32) {
    %c0_i32 = arith.constant 0 : i32
    %c0_i32_0 = arith.constant 0 : i32
    return %arg0, %c0_i32 : i32, i32
  }
}

module attributes {stable_mosaic.version = 11 : i64} {
  func.func @sa_mlp_kernel(%arg0: i32, %arg1: memref<64x16xbf16, #tpu.memory_space<vmem>>, %arg2: memref<64x512xbf16, #tpu.memory_space<vmem>>, %arg3: memref<16x512xbf16, #tpu.memory_space<vmem>>, %arg4: memref<512x512xbf16, #tpu.memory_space<vmem>>, %arg5: memref<512x512xbf16, #tpu.memory_space<vmem>>, %arg6: memref<1x512xf32, #tpu.memory_space<vmem>>, %arg7: memref<512x512xbf16, #tpu.memory_space<vmem>>, %arg8: memref<1x512xf32, #tpu.memory_space<vmem>>, %arg9: memref<8x512xbf16, #tpu.memory_space<vmem>>) attributes {dimension_semantics = [#tpu.dimension_semantics<parallel>], iteration_bounds = array<i64: 2>, scalar_prefetch = 0 : i64, scratch_operands = 0 : i64, tpu.core_type = #tpu.core_type<tc>, window_params = [{transform_indices = @transform_0, window_bounds = array<i64: 64, 16>}, {transform_indices = @transform_1, window_bounds = array<i64: 64, 512>}, {pipeline_mode = #tpu.pipeline_mode<synchronous>, transform_indices = @transform_2, window_bounds = array<i64: 16, 512>}, {pipeline_mode = #tpu.pipeline_mode<synchronous>, transform_indices = @transform_3, window_bounds = array<i64: 512, 512>}, {pipeline_mode = #tpu.pipeline_mode<synchronous>, transform_indices = @transform_4, window_bounds = array<i64: 512, 512>}, {pipeline_mode = #tpu.pipeline_mode<synchronous>, transform_indices = @transform_5, window_bounds = array<i64: 1, 512>}, {pipeline_mode = #tpu.pipeline_mode<synchronous>, transform_indices = @transform_6, window_bounds = array<i64: 512, 512>}, {pipeline_mode = #tpu.pipeline_mode<synchronous>, transform_indices = @transform_7, window_bounds = array<i64: 1, 512>}, {transform_indices = @transform_8, window_bounds = array<i64: 8, 512>}]} {
    %c0 = arith.constant 0 : index
    %c0_0 = arith.constant 0 : index
    %0 = vector.load %arg1[%c0, %c0_0] : memref<64x16xbf16, #tpu.memory_space<vmem>>, vector<64x16xbf16>
    %c0_1 = arith.constant 0 : index
    %c0_2 = arith.constant 0 : index
    %1 = vector.load %arg3[%c0_1, %c0_2] : memref<16x512xbf16, #tpu.memory_space<vmem>>, vector<16x512xbf16>
    %cst = arith.constant dense<0.000000e+00> : vector<64x512xf32>
    %2 = tpu.matmul %0, %1, %cst {dimension_numbers = #tpu.dot_dimension_numbers<[1], [0], [0], [1], [0, 0, 1, 1], [], []>} : vector<64x16xbf16>, vector<16x512xbf16>, vector<64x512xf32> -> vector<64x512xf32>
    %c0_3 = arith.constant 0 : index
    %c0_4 = arith.constant 0 : index
    %3 = vector.load %arg2[%c0_3, %c0_4] : memref<64x512xbf16, #tpu.memory_space<vmem>>, vector<64x512xbf16>
    %c0_5 = arith.constant 0 : index
    %c0_6 = arith.constant 0 : index
    %4 = vector.load %arg4[%c0_5, %c0_6] : memref<512x512xbf16, #tpu.memory_space<vmem>>, vector<512x512xbf16>
    %cst_7 = arith.constant dense<0.000000e+00> : vector<64x512xf32>
    %5 = tpu.matmul %3, %4, %cst_7 {dimension_numbers = #tpu.dot_dimension_numbers<[1], [0], [0], [1], [0, 0, 1, 1], [], []>} : vector<64x512xbf16>, vector<512x512xbf16>, vector<64x512xf32> -> vector<64x512xf32>
    %6 = arith.addf %2, %5 : vector<64x512xf32>
    %cst_8 = arith.constant 0.000000e+00 : f32
    %7 = vector.broadcast %cst_8 : f32 to vector<64x512xf32>
    %8 = arith.maximumf %6, %7 : vector<64x512xf32>
    %9 = arith.truncf %8 : vector<64x512xf32> to vector<64x512xbf16>
    %c0_9 = arith.constant 0 : index
    %c0_10 = arith.constant 0 : index
    %10 = vector.load %arg5[%c0_9, %c0_10] : memref<512x512xbf16, #tpu.memory_space<vmem>>, vector<512x512xbf16>
    %cst_11 = arith.constant dense<0.000000e+00> : vector<64x512xf32>
    %11 = tpu.matmul %9, %10, %cst_11 {dimension_numbers = #tpu.dot_dimension_numbers<[1], [0], [0], [1], [0, 0, 1, 1], [], []>} : vector<64x512xbf16>, vector<512x512xbf16>, vector<64x512xf32> -> vector<64x512xf32>
    %c0_12 = arith.constant 0 : index
    %c0_13 = arith.constant 0 : index
    %12 = vector.load %arg6[%c0_12, %c0_13] : memref<1x512xf32, #tpu.memory_space<vmem>>, vector<1x512xf32>
    %13 = vector.broadcast %12 : vector<1x512xf32> to vector<64x512xf32>
    %14 = arith.addf %11, %13 : vector<64x512xf32>
    %cst_14 = arith.constant 0.000000e+00 : f32
    %15 = vector.broadcast %cst_14 : f32 to vector<64x512xf32>
    %16 = arith.maximumf %14, %15 : vector<64x512xf32>
    %17 = arith.truncf %16 : vector<64x512xf32> to vector<64x512xbf16>
    %c0_15 = arith.constant 0 : index
    %c0_16 = arith.constant 0 : index
    %18 = vector.load %arg7[%c0_15, %c0_16] : memref<512x512xbf16, #tpu.memory_space<vmem>>, vector<512x512xbf16>
    %cst_17 = arith.constant dense<0.000000e+00> : vector<64x512xf32>
    %19 = tpu.matmul %17, %18, %cst_17 {dimension_numbers = #tpu.dot_dimension_numbers<[1], [0], [0], [1], [0, 0, 1, 1], [], []>} : vector<64x512xbf16>, vector<512x512xbf16>, vector<64x512xf32> -> vector<64x512xf32>
    %c0_18 = arith.constant 0 : index
    %c0_19 = arith.constant 0 : index
    %20 = vector.load %arg8[%c0_18, %c0_19] : memref<1x512xf32, #tpu.memory_space<vmem>>, vector<1x512xf32>
    %21 = vector.broadcast %20 : vector<1x512xf32> to vector<64x512xf32>
    %22 = arith.addf %19, %21 : vector<64x512xf32>
    %cst_20 = arith.constant 0.000000e+00 : f32
    %23 = vector.broadcast %cst_20 : f32 to vector<64x512xf32>
    %24 = arith.maximumf %22, %23 : vector<64x512xf32>
    %25 = vector.shape_cast %24 : vector<64x512xf32> to vector<8x8x512xf32>
    %cst_21 = arith.constant dense<0xFF800000> : vector<8x512xf32>
    %26 = vector.multi_reduction <maximumf>, %25, %cst_21 [1] : vector<8x8x512xf32> to vector<8x512xf32>
    %27 = arith.truncf %26 : vector<8x512xf32> to vector<8x512xbf16>
    %c0_22 = arith.constant 0 : index
    %c0_23 = arith.constant 0 : index
    %28 = vector.load %arg9[%c0_22, %c0_23] : memref<8x512xbf16, #tpu.memory_space<vmem>>, vector<8x512xbf16>
    tpu.vector_store %arg9[%c0_22, %c0_23], %27 {strides = array<i32>} : memref<8x512xbf16, #tpu.memory_space<vmem>>, vector<8x512xbf16>,
    return
  }
  func.func @transform_0(%arg0: i32) -> (i32, i32) {
    %c0_i32 = arith.constant 0 : i32
    %c0_i32_0 = arith.constant 0 : i32
    return %arg0, %c0_i32 : i32, i32
  }
  func.func @transform_1(%arg0: i32) -> (i32, i32) {
    %c0_i32 = arith.constant 0 : i32
    %c0_i32_0 = arith.constant 0 : i32
    return %arg0, %c0_i32 : i32, i32
  }
  func.func @transform_2(%arg0: i32) -> (i32, i32) {
    %c0_i32 = arith.constant 0 : i32
    %c0_i32_0 = arith.constant 0 : i32
    %c0_i32_1 = arith.constant 0 : i32
    return %c0_i32, %c0_i32_0 : i32, i32
  }
  func.func @transform_3(%arg0: i32) -> (i32, i32) {
    %c0_i32 = arith.constant 0 : i32
    %c0_i32_0 = arith.constant 0 : i32
    %c0_i32_1 = arith.constant 0 : i32
    return %c0_i32, %c0_i32_0 : i32, i32
  }
  func.func @transform_4(%arg0: i32) -> (i32, i32) {
    %c0_i32 = arith.constant 0 : i32
    %c0_i32_0 = arith.constant 0 : i32
    %c0_i32_1 = arith.constant 0 : i32
    return %c0_i32, %c0_i32_0 : i32, i32
  }
  func.func @transform_5(%arg0: i32) -> (i32, i32) {
    %c0_i32 = arith.constant 0 : i32
    %c0_i32_0 = arith.constant 0 : i32
    %c0_i32_1 = arith.constant 0 : i32
    return %c0_i32, %c0_i32_0 : i32, i32
  }
  func.func @transform_6(%arg0: i32) -> (i32, i32) {
    %c0_i32 = arith.constant 0 : i32
    %c0_i32_0 = arith.constant 0 : i32
    %c0_i32_1 = arith.constant 0 : i32
    return %c0_i32, %c0_i32_0 : i32, i32
  }
  func.func @transform_7(%arg0: i32) -> (i32, i32) {
    %c0_i32 = arith.constant 0 : i32
    %c0_i32_0 = arith.constant 0 : i32
    %c0_i32_1 = arith.constant 0 : i32
    return %c0_i32, %c0_i32_0 : i32, i32
  }
  func.func @transform_8(%arg0: i32) -> (i32, i32) {
    %c0_i32 = arith.constant 0 : i32
    %c0_i32_0 = arith.constant 0 : i32
    return %arg0, %c0_i32 : i32, i32
  }
}

</mosaic_0001>

<llo_original>
// kernel: custom-call.30
$region0: #{custom-call.30}
  %s0 = inlined_call_operand.vmem [shape: f32[2,64], index: 0, kind: output, shape index: {}]

// kernel: custom-call.31
$region0: #{custom-call.31}
  %s0 = inlined_call_operand.vmem [shape: f32[2,32], index: 0, kind: output, shape index: {}]

// kernel: pointnet2_encoder_forward.4
$region0: #{pointnet2_encoder_forward.4}
  #allocation0 [shape = 'u32[]', space=smem, size = 0x4, offset = 0x4, fixed_abs, tag = 'smem constant byte address 0x4 - core index']
  #allocation1 [shape = 'u32[144,128]{1,0:T(1,128)}', space=vmem, size = 0x12000, scoped, tag = 'internal scratch']
  %s0 = inlined_call_operand.vmem [shape: bf16[1024,16], index: 0, kind: input, shape index: {}]
  %s1 = inlined_call_operand.vmem [shape: bf16[16,64], index: 1, kind: input, shape index: {}]
  %s2 = inlined_call_operand.vmem [shape: bf16[64,64], index: 2, kind: input, shape index: {}]
  %s3 = inlined_call_operand.vmem [shape: f32[1,64], index: 3, kind: input, shape index: {}]
  %s4 = inlined_call_operand.vmem [shape: bf16[64,128], index: 4, kind: input, shape index: {}]
  %s5 = inlined_call_operand.vmem [shape: f32[1,128], index: 5, kind: input, shape index: {}]
  %s6 = inlined_call_operand.vmem [shape: bf16[64,128], index: 6, kind: output, shape index: {}]
  %s7 = sld [smem:[#allocation0]]
  $region57: #{pointnet2_encoder_forward.4} parent=0
    _
  %s9 = ssub.s32 1, %s7
  %s10 = scalar_select 0, %s9, %s7
  loop: start=0, step=1, limit=4
  $region2: #{pointnet2_encoder_forward.4} parent=0 // loop_pre_header
    _
  $region3: #{pointnet2_encoder_forward.4} parent=0 // loop_header
    %s12 = sphi 0, %s16
    %p13 = scmp.ge.s32.totalorder %s12, 4
    %s22 = sphi 0, %s24
    %s25 = sphi 0, %s22
    %s26 = sphi 0, %s25
    %s42 = sphi 0, %s26
    %s46 = sphi 0, %s46
    %s48 = sphi 0, %s46
    %s49 = sphi 0, %s48
    %s63 = sphi 0, %s49
    %s67 = sphi 0, %s67
    %s69 = sphi 0, %s67
    %s70 = sphi 0, %s69
    %s84 = sphi 0, %s70
    %s88 = sphi 0, %s88
    %s90 = sphi 0, %s88
    %s91 = sphi 0, %s90
    %s105 = sphi 0, %s91
    %s109 = sphi 0, %s109
    %s111 = sphi 0, %s109
    %s112 = sphi 0, %s111
    %s126 = sphi 0, %s112
    %s130 = sphi 0, %s130
    %s132 = sphi 0, %s130
    %s133 = sphi 0, %s132
    %s147 = sphi 0, %s133
    %s153 = sphi 0, %s155
    %s156 = sphi 0, %s153
    %s157 = sphi 0, %s156
    %s173 = sphi 0, %s157
  $region4: #{pointnet2_encoder_forward.4} parent=0 // loop_header_branch
    %15 = sbr.rel (%p13) target = $region8
  $region5: #{pointnet2_encoder_forward.4} parent=0 // loop_body
    %s17 = ssub.s32 %s12, 1
    %s18 = ssub.s32 %s12, 2
    %s19 = sadd.s32 %s12, 1
    %s20 = ssub.s32 %s12, %s19
    %p21 = scmp.eq.s32.totalorder %s20, 0
    %s23 = sadd.s32 %s22, 1
    %s24 = scalar_select %p21, %s22, %s23
    %p27 = pneg %p21
    %p28 = scmp.eq.s32.totalorder %s12, 1
    %p29 = por %p27, %p28
    %p30 = scmp.ne.s32.totalorder %s22, %s25
    %p31 = scmp.eq.s32.totalorder %s12, 0
    %p32 = por %p30, %p31
    %p33 = scmp.ne.s32.totalorder %s22, %s25
    %p34 = scmp.eq.s32.totalorder %s17, 1
    %p35 = por %p33, %p34
    %p36 = scmp.ne.s32.totalorder %s25, %s26
    %p37 = scmp.eq.s32.totalorder %s17, 0
    %p38 = por %p36, %p37
    %p39 = scmp.ne.s32.totalorder %s25, %s26
    %p40 = scmp.eq.s32.totalorder %s18, 1
    %p41 = por %p39, %p40
    %p43 = scmp.ne.s32.totalorder %s26, %s42
    %p44 = scmp.eq.s32.totalorder %s18, 0
    %p45 = por %p43, %p44
    %s47 = sadd.s32 %s46, 1
    %p50 = scmp.eq.s32.totalorder %s12, 1
    %p51 = scmp.ne.s32.totalorder %s46, %s48
    %p52 = scmp.eq.s32.totalorder %s12, 0
    %p53 = por %p51, %p52
    %p54 = scmp.ne.s32.totalorder %s46, %s48
    %p55 = scmp.eq.s32.totalorder %s17, 1
    %p56 = por %p54, %p55
    %p57 = scmp.ne.s32.totalorder %s48, %s49
    %p58 = scmp.eq.s32.totalorder %s17, 0
    %p59 = por %p57, %p58
    %p60 = scmp.ne.s32.totalorder %s48, %s49
    %p61 = scmp.eq.s32.totalorder %s18, 1
    %p62 = por %p60, %p61
    %p64 = scmp.ne.s32.totalorder %s49, %s63
    %p65 = scmp.eq.s32.totalorder %s18, 0
    %p66 = por %p64, %p65
    %s68 = sadd.s32 %s67, 1
    %p71 = scmp.eq.s32.totalorder %s12, 1
    %p72 = scmp.ne.s32.totalorder %s67, %s69
    %p73 = scmp.eq.s32.totalorder %s12, 0
    %p74 = por %p72, %p73
    %p75 = scmp.ne.s32.totalorder %s67, %s69
    %p76 = scmp.eq.s32.totalorder %s17, 1
    %p77 = por %p75, %p76
    %p78 = scmp.ne.s32.totalorder %s69, %s70
    %p79 = scmp.eq.s32.totalorder %s17, 0
    %p80 = por %p78, %p79
    %p81 = scmp.ne.s32.totalorder %s69, %s70
    %p82 = scmp.eq.s32.totalorder %s18, 1
    %p83 = por %p81, %p82
    %p85 = scmp.ne.s32.totalorder %s70, %s84
    %p86 = scmp.eq.s32.totalorder %s18, 0
    %p87 = por %p85, %p86
    %s89 = sadd.s32 %s88, 1
    %p92 = scmp.eq.s32.totalorder %s12, 1
    %p93 = scmp.ne.s32.totalorder %s88, %s90
    %p94 = scmp.eq.s32.totalorder %s12, 0
    %p95 = por %p93, %p94
    %p96 = scmp.ne.s32.totalorder %s88, %s90
    %p97 = scmp.eq.s32.totalorder %s17, 1
    %p98 = por %p96, %p97
    %p99 = scmp.ne.s32.totalorder %s90, %s91
    %p100 = scmp.eq.s32.totalorder %s17, 0
    %p101 = por %p99, %p100
    %p102 = scmp.ne.s32.totalorder %s90, %s91
    %p103 = scmp.eq.s32.totalorder %s18, 1
    %p104 = por %p102, %p103
    %p106 = scmp.ne.s32.totalorder %s91, %s105
    %p107 = scmp.eq.s32.totalorder %s18, 0
    %p108 = por %p106, %p107
    %s110 = sadd.s32 %s109, 1
    %p113 = scmp.eq.s32.totalorder %s12, 1
    %p114 = scmp.ne.s32.totalorder %s109, %s111
    %p115 = scmp.eq.s32.totalorder %s12, 0
    %p116 = por %p114, %p115
    %p117 = scmp.ne.s32.totalorder %s109, %s111
    %p118 = scmp.eq.s32.totalorder %s17, 1
    %p119 = por %p117, %p118
    %p120 = scmp.ne.s32.totalorder %s111, %s112
    %p121 = scmp.eq.s32.totalorder %s17, 0
    %p122 = por %p120, %p121
    %p123 = scmp.ne.s32.totalorder %s111, %s112
    %p124 = scmp.eq.s32.totalorder %s18, 1
    %p125 = por %p123, %p124
    %p127 = scmp.ne.s32.totalorder %s112, %s126
    %p128 = scmp.eq.s32.totalorder %s18, 0
    %p129 = por %p127, %p128
    %s131 = sadd.s32 %s130, 1
    %p134 = scmp.eq.s32.totalorder %s12, 1
    %p135 = scmp.ne.s32.totalorder %s130, %s132
    %p136 = scmp.eq.s32.totalorder %s12, 0
    %p137 = por %p135, %p136
    %p138 = scmp.ne.s32.totalorder %s130, %s132
    %p139 = scmp.eq.s32.totalorder %s17, 1
    %p140 = por %p138, %p139
    %p141 = scmp.ne.s32.totalorder %s132, %s133
    %p142 = scmp.eq.s32.totalorder %s17, 0
    %p143 = por %p141, %p142
    %p144 = scmp.ne.s32.totalorder %s132, %s133
    %p145 = scmp.eq.s32.totalorder %s18, 1
    %p146 = por %p144, %p145
    %p148 = scmp.ne.s32.totalorder %s133, %s147
    %p149 = scmp.eq.s32.totalorder %s18, 0
    %p150 = por %p148, %p149
    %s151 = ssub.s32 %s12, %s19
    %p152 = scmp.eq.s32.totalorder %s151, 0
    %s154 = sadd.s32 %s153, 1
    %s155 = scalar_select %p152, %s153, %s154
    %p158 = pneg %p152
    %p159 = scmp.eq.s32.totalorder %s12, 1
    %p160 = por %p158, %p159
    %p161 = scmp.ne.s32.totalorder %s153, %s156
    %p162 = scmp.eq.s32.totalorder %s12, 0
    %p163 = por %p161, %p162
    %p164 = scmp.ne.s32.totalorder %s153, %s156
    %p165 = scmp.eq.s32.totalorder %s17, 1
    %p166 = por %p164, %p165
    %p167 = scmp.ne.s32.totalorder %s156, %s157
    %p168 = scmp.eq.s32.totalorder %s17, 0
    %p169 = por %p167, %p168
    %p170 = scmp.ne.s32.totalorder %s156, %s157
    %p171 = scmp.eq.s32.totalorder %s18, 1
    %p172 = por %p170, %p171
    %p174 = scmp.ne.s32.totalorder %s157, %s173
    %p175 = scmp.eq.s32.totalorder %s18, 0
    %p176 = por %p174, %p175
    %p177 = scmp.le.s32.totalorder 1, %s12
    %p178 = scmp.lt.s32.totalorder %s12, 3
    %p179 = pnand %p177, %p178
    %p180 = pneg %p179
    // Predicated region
    $region9: #{pointnet2_encoder_forward.4} parent=5 // pred_check
      _
    $region10: #{pointnet2_encoder_forward.4} parent=5 // pred_check_branch
      %182 = sbr.rel (%p179) target = $region12
    $region11: #{pointnet2_encoder_forward.4} parent=5 // pred_region
      %s183 = ssub.s32 %s12, 1
      // Predicated region
      $region13: #{pointnet2_encoder_forward.4} parent=11 // pred_check
        %p184 = pneg %p59
      $region14: #{pointnet2_encoder_forward.4} parent=11 // pred_check_branch
        %186 = sbr.rel (%p184) target = $region16
      $region15: #{pointnet2_encoder_forward.4} parent=11 // pred_region
        _
      $region16: #{pointnet2_encoder_forward.4} parent=11 // pred_fallthru
        _
      // Predicated region
      $region17: #{pointnet2_encoder_forward.4} parent=11 // pred_check
        %p187 = pneg %p80
      $region18: #{pointnet2_encoder_forward.4} parent=11 // pred_check_branch
        %189 = sbr.rel (%p187) target = $region20
      $region19: #{pointnet2_encoder_forward.4} parent=11 // pred_region
        _
      $region20: #{pointnet2_encoder_forward.4} parent=11 // pred_fallthru
        _
      // Predicated region
      $region21: #{pointnet2_encoder_forward.4} parent=11 // pred_check
        %p190 = pneg %p101
      $region22: #{pointnet2_encoder_forward.4} parent=11 // pred_check_branch
        %192 = sbr.rel (%p190) target = $region24
      $region23: #{pointnet2_encoder_forward.4} parent=11 // pred_region
        _
      $region24: #{pointnet2_encoder_forward.4} parent=11 // pred_fallthru
        _
      // Predicated region
      $region25: #{pointnet2_encoder_forward.4} parent=11 // pred_check
        %p193 = pneg %p122
      $region26: #{pointnet2_encoder_forward.4} parent=11 // pred_check_branch
        %195 = sbr.rel (%p193) target = $region28
      $region27: #{pointnet2_encoder_forward.4} parent=11 // pred_region
        _
      $region28: #{pointnet2_encoder_forward.4} parent=11 // pred_fallthru
        _
      // Predicated region
      $region29: #{pointnet2_encoder_forward.4} parent=11 // pred_check
        %p196 = pneg %p143
      $region30: #{pointnet2_encoder_forward.4} parent=11 // pred_check_branch
        %198 = sbr.rel (%p196) target = $region32
      $region31: #{pointnet2_encoder_forward.4} parent=11 // pred_region
        _
      $region32: #{pointnet2_encoder_forward.4} parent=11 // pred_fallthru
        _
    $region12: #{pointnet2_encoder_forward.4} parent=5 // pred_fallthru
      _
    %p199 = scmp.lt.s32.totalorder %s12, 2
    // Predicated region
    $region33: #{pointnet2_encoder_forward.4} parent=5 // pred_check
      %p200 = pneg %p199
    $region34: #{pointnet2_encoder_forward.4} parent=5 // pred_check_branch
      %202 = sbr.rel (%p200) target = $region36
    $region35: #{pointnet2_encoder_forward.4} parent=5 // pred_region
      // Predicated region
      $region37: #{pointnet2_encoder_forward.4} parent=35 // pred_check
        %p203 = pneg %p32
      $region38: #{pointnet2_encoder_forward.4} parent=35 // pred_check_branch
        %205 = sbr.rel (%p203) target = $region40
      $region39: #{pointnet2_encoder_forward.4} parent=35 // pred_region
        %s206 = smul.u32 64, %s12
        %p207 = scmp.lt.s32.totalorder %s206, 127
        %s208 = scalar_select %p207, %s206, 127
        %s209 = smul.addr %s208, 4
        %s210 = scalar_lea.vmem %s0, %s209
        %s211 = smul.u32 64, %s12
      $region40: #{pointnet2_encoder_forward.4} parent=35 // pred_fallthru
        _
    $region36: #{pointnet2_encoder_forward.4} parent=5 // pred_fallthru
      _
    %p212 = scmp.le.s32.totalorder 1, %s12
    %p213 = scmp.lt.s32.totalorder %s12, 3
    %p214 = pnand %p212, %p213
    %p215 = pneg %p214
    // Predicated region
    $region41: #{pointnet2_encoder_forward.4} parent=5 // pred_check
      _
    $region42: #{pointnet2_encoder_forward.4} parent=5 // pred_check_branch
      %217 = sbr.rel (%p214) target = $region44
    $region43: #{pointnet2_encoder_forward.4} parent=5 // pred_region
      %s218 = ssub.s32 %s12, 1
      %s219 = smul.u32 64, %s17
      %p220 = scmp.lt.s32.totalorder %s219, 127
      %s221 = scalar_select %p220, %s219, 127
      %s222 = smul.addr %s221, 4
      %s223 = scalar_lea.vmem %s0, %s222
      %p224 = pneg %p38
      %p225 = pneg %p35
      %p226 = pneg %p59
      %p227 = pneg %p56
      %p228 = pneg %p80
      %p229 = pneg %p77
      %p230 = pneg %p101
      %p231 = pneg %p98
      %p232 = pneg %p122
      %p233 = pneg %p119
      %p234 = pneg %p143
      %p235 = pneg %p140
      %p236 = pneg %p169
      %p237 = pneg %p166
      %s238 = smul.u32 4, %s17
      %p239 = scmp.lt.s32.totalorder %s238, 7
      %s240 = scalar_select %p239, %s238, 7
      %s241 = smul.addr %s240, 4
      %s242 = scalar_lea.vmem %s6, %s241
      %s243 = smul.u32 64, %s17
      %p244 = scmp.lt.s32.totalorder %s243, 127
      %s245 = scalar_select %p244, %s243, 127
      %s246 = smul.addr %s245, 4
      %s247 = scalar_lea.vmem %s0, %s246
      %s248 = smul.u32 64, %s17
      %s249 = smul.u32 4, %s17
      %p250 = scmp.lt.s32.totalorder %s249, 7
      %s251 = scalar_select %p250, %s249, 7
      %s252 = smul.addr %s251, 4
      %s253 = scalar_lea.vmem %s6, %s252
      %s254 = smul.u32 4, %s17
      %v256 = vld [vmem:[%s247] sm:$0xf]
      %v257 = vld [vmem:[%s247 + $0x4] sm:$0xf]
      %v258 = vld [vmem:[%s247 + $0x8] sm:$0xf]
      %v259 = vld [vmem:[%s247 + $0xc] sm:$0xf]
      %v260 = vld [vmem:[%s247 + $0x10] sm:$0xf]
      %v261 = vld [vmem:[%s247 + $0x14] sm:$0xf]
      %v262 = vld [vmem:[%s247 + $0x18] sm:$0xf]
      %v263 = vld [vmem:[%s247 + $0x1c] sm:$0xf]
      %v264 = vld [vmem:[%s247 + $0x20] sm:$0xf]
      %v265 = vld [vmem:[%s247 + $0x24] sm:$0xf]
      %v266 = vld [vmem:[%s247 + $0x28] sm:$0xf]
      %v267 = vld [vmem:[%s247 + $0x2c] sm:$0xf]
      %v268 = vld [vmem:[%s247 + $0x30] sm:$0xf]
      %v269 = vld [vmem:[%s247 + $0x34] sm:$0xf]
      %v270 = vld [vmem:[%s247 + $0x38] sm:$0xf]
      %v271 = vld [vmem:[%s247 + $0x3c] sm:$0xf]
      %v272 = vld [vmem:[%s247 + $0x40] sm:$0xf]
      %v273 = vld [vmem:[%s247 + $0x44] sm:$0xf]
      %v274 = vld [vmem:[%s247 + $0x48] sm:$0xf]
      %v275 = vld [vmem:[%s247 + $0x4c] sm:$0xf]
      %v276 = vld [vmem:[%s247 + $0x50] sm:$0xf]
      %v277 = vld [vmem:[%s247 + $0x54] sm:$0xf]
      %v278 = vld [vmem:[%s247 + $0x58] sm:$0xf]
      %v279 = vld [vmem:[%s247 + $0x5c] sm:$0xf]
      %v280 = vld [vmem:[%s247 + $0x60] sm:$0xf]
      %v281 = vld [vmem:[%s247 + $0x64] sm:$0xf]
      %v282 = vld [vmem:[%s247 + $0x68] sm:$0xf]
      %v283 = vld [vmem:[%s247 + $0x6c] sm:$0xf]
      %v284 = vld [vmem:[%s247 + $0x70] sm:$0xf]
      %v285 = vld [vmem:[%s247 + $0x74] sm:$0xf]
      %v286 = vld [vmem:[%s247 + $0x78] sm:$0xf]
      %v287 = vld [vmem:[%s247 + $0x7c] sm:$0xf]
      %v288 = vld [vmem:[%s247 + $0x80] sm:$0xf]
      %v289 = vld [vmem:[%s247 + $0x84] sm:$0xf]
      %v290 = vld [vmem:[%s247 + $0x88] sm:$0xf]
      %v291 = vld [vmem:[%s247 + $0x8c] sm:$0xf]
      %v292 = vld [vmem:[%s247 + $0x90] sm:$0xf]
      %v293 = vld [vmem:[%s247 + $0x94] sm:$0xf]
      %v294 = vld [vmem:[%s247 + $0x98] sm:$0xf]
      %v295 = vld [vmem:[%s247 + $0x9c] sm:$0xf]
      %v296 = vld [vmem:[%s247 + $0xa0] sm:$0xf]
      %v297 = vld [vmem:[%s247 + $0xa4] sm:$0xf]
      %v298 = vld [vmem:[%s247 + $0xa8] sm:$0xf]
      %v299 = vld [vmem:[%s247 + $0xac] sm:$0xf]
      %v300 = vld [vmem:[%s247 + $0xb0] sm:$0xf]
      %v301 = vld [vmem:[%s247 + $0xb4] sm:$0xf]
      %v302 = vld [vmem:[%s247 + $0xb8] sm:$0xf]
      %v303 = vld [vmem:[%s247 + $0xbc] sm:$0xf]
      %v304 = vld [vmem:[%s247 + $0xc0] sm:$0xf]
      %v305 = vld [vmem:[%s247 + $0xc4] sm:$0xf]
      %v306 = vld [vmem:[%s247 + $0xc8] sm:$0xf]
      %v307 = vld [vmem:[%s247 + $0xcc] sm:$0xf]
      %v308 = vld [vmem:[%s247 + $0xd0] sm:$0xf]
      %v309 = vld [vmem:[%s247 + $0xd4] sm:$0xf]
      %v310 = vld [vmem:[%s247 + $0xd8] sm:$0xf]
      %v311 = vld [vmem:[%s247 + $0xdc] sm:$0xf]
      %v312 = vld [vmem:[%s247 + $0xe0] sm:$0xf]
      %v313 = vld [vmem:[%s247 + $0xe4] sm:$0xf]
      %v314 = vld [vmem:[%s247 + $0xe8] sm:$0xf]
      %v315 = vld [vmem:[%s247 + $0xec] sm:$0xf]
      %v316 = vld [vmem:[%s247 + $0xf0] sm:$0xf]
      %v317 = vld [vmem:[%s247 + $0xf4] sm:$0xf]
      %v318 = vld [vmem:[%s247 + $0xf8] sm:$0xf]
      %v319 = vld [vmem:[%s247 + $0xfc] sm:$0xf]
      %v320 = vld [vmem:[%s1] sm:$0xf]
      %v321 = vld [vmem:[%s1 + $0x4] sm:$0xf]
      %v386 = vunpack.c.l.b16 %v256
      %v387 = vunpack.c.l.b16 %v257
      %v388 = vunpack.c.l.b16 %v258
      %v389 = vunpack.c.l.b16 %v259
      %v390 = vunpack.c.l.b16 %v260
      %v391 = vunpack.c.l.b16 %v261
      %v392 = vunpack.c.l.b16 %v262
      %v393 = vunpack.c.l.b16 %v263
      %v394 = vunpack.c.l.b16 %v264
      %v395 = vunpack.c.l.b16 %v265
      %v396 = vunpack.c.l.b16 %v266
      %v397 = vunpack.c.l.b16 %v267
      %v398 = vunpack.c.l.b16 %v268
      %v399 = vunpack.c.l.b16 %v269
      %v400 = vunpack.c.l.b16 %v270
      %v401 = vunpack.c.l.b16 %v271
      %v402 = vunpack.c.l.b16 %v272
      %v403 = vunpack.c.l.b16 %v273
      %v404 = vunpack.c.l.b16 %v274
      %v405 = vunpack.c.l.b16 %v275
      %v406 = vunpack.c.l.b16 %v276
      %v407 = vunpack.c.l.b16 %v277
      %v408 = vunpack.c.l.b16 %v278
      %v409 = vunpack.c.l.b16 %v279
      %v410 = vunpack.c.l.b16 %v280
      %v411 = vunpack.c.l.b16 %v281
      %v412 = vunpack.c.l.b16 %v282
      %v413 = vunpack.c.l.b16 %v283
      %v414 = vunpack.c.l.b16 %v284
      %v415 = vunpack.c.l.b16 %v285
      %v416 = vunpack.c.l.b16 %v286
      %v417 = vunpack.c.l.b16 %v287
      %v418 = vunpack.c.l.b16 %v288
      %v419 = vunpack.c.l.b16 %v289
      %v420 = vunpack.c.l.b16 %v290
      %v421 = vunpack.c.l.b16 %v291
      %v422 = vunpack.c.l.b16 %v292
      %v423 = vunpack.c.l.b16 %v293
      %v424 = vunpack.c.l.b16 %v294
      %v425 = vunpack.c.l.b16 %v295
      %v426 = vunpack.c.l.b16 %v296
      %v427 = vunpack.c.l.b16 %v297
      %v428 = vunpack.c.l.b16 %v298
      %v429 = vunpack.c.l.b16 %v299
      %v430 = vunpack.c.l.b16 %v300
      %v431 = vunpack.c.l.b16 %v301
      %v432 = vunpack.c.l.b16 %v302
      %v433 = vunpack.c.l.b16 %v303
      %v434 = vunpack.c.l.b16 %v304
      %v435 = vunpack.c.l.b16 %v305
      %v436 = vunpack.c.l.b16 %v306
      %v437 = vunpack.c.l.b16 %v307
      %v438 = vunpack.c.l.b16 %v308
      %v439 = vunpack.c.l.b16 %v309
      %v440 = vunpack.c.l.b16 %v310
      %v441 = vunpack.c.l.b16 %v311
      %v442 = vunpack.c.l.b16 %v312
      %v443 = vunpack.c.l.b16 %v313
      %v444 = vunpack.c.l.b16 %v314
      %v445 = vunpack.c.l.b16 %v315
      %v446 = vunpack.c.l.b16 %v316
      %v447 = vunpack.c.l.b16 %v317
      %v448 = vunpack.c.l.b16 %v318
      %v449 = vunpack.c.l.b16 %v319
      %v450 = vpack.c.b16 %v387, %v386
      %v451 = vpack.c.b16 %v389, %v388
      %v452 = vpack.c.b16 %v391, %v390
      %v453 = vpack.c.b16 %v393, %v392
      %v454 = vpack.c.b16 %v395, %v394
      %v455 = vpack.c.b16 %v397, %v396
      %v456 = vpack.c.b16 %v399, %v398
      %v457 = vpack.c.b16 %v401, %v400
      %v458 = vpack.c.b16 %v403, %v402
      %v459 = vpack.c.b16 %v405, %v404
      %v460 = vpack.c.b16 %v407, %v406
      %v461 = vpack.c.b16 %v409, %v408
      %v462 = vpack.c.b16 %v411, %v410
      %v463 = vpack.c.b16 %v413, %v412
      %v464 = vpack.c.b16 %v415, %v414
      %v465 = vpack.c.b16 %v417, %v416
      %v466 = vpack.c.b16 %v419, %v418
      %v467 = vpack.c.b16 %v421, %v420
      %v468 = vpack.c.b16 %v423, %v422
      %v469 = vpack.c.b16 %v425, %v424
      %v470 = vpack.c.b16 %v427, %v426
      %v471 = vpack.c.b16 %v429, %v428
      %v472 = vpack.c.b16 %v431, %v430
      %v473 = vpack.c.b16 %v433, %v432
      %v474 = vpack.c.b16 %v435, %v434
      %v475 = vpack.c.b16 %v437, %v436
      %v476 = vpack.c.b16 %v439, %v438
      %v477 = vpack.c.b16 %v441, %v440
      %v478 = vpack.c.b16 %v443, %v442
      %v479 = vpack.c.b16 %v445, %v444
      %v480 = vpack.c.b16 %v447, %v446
      %v481 = vpack.c.b16 %v449, %v448
      %v484 = vunpack.c.l.b16 %v320
      %v485 = vunpack.c.l.b16 %v321
      %v486 = vpack.c.b16 %v485, %v484
      %vm488 = vcmask 130048
      %v490 = vsel %vm488, %v450, 0
      %v493 = vsel %vm488, %v451, 0
      %v496 = vsel %vm488, %v452, 0
      %v499 = vsel %vm488, %v453, 0
      %v502 = vsel %vm488, %v454, 0
      %v505 = vsel %vm488, %v455, 0
      %v508 = vsel %vm488, %v456, 0
      %v511 = vsel %vm488, %v457, 0
      %v514 = vsel %vm488, %v458, 0
      %v517 = vsel %vm488, %v459, 0
      %v520 = vsel %vm488, %v460, 0
      %v523 = vsel %vm488, %v461, 0
      %v526 = vsel %vm488, %v462, 0
      %v529 = vsel %vm488, %v463, 0
      %v532 = vsel %vm488, %v464, 0
      %v535 = vsel %vm488, %v465, 0
      %v538 = vsel %vm488, %v466, 0
      %v541 = vsel %vm488, %v467, 0
      %v544 = vsel %vm488, %v468, 0
      %v547 = vsel %vm488, %v469, 0
      %v550 = vsel %vm488, %v470, 0
      %v553 = vsel %vm488, %v471, 0
      %v556 = vsel %vm488, %v472, 0
      %v559 = vsel %vm488, %v473, 0
      %v562 = vsel %vm488, %v474, 0
      %v565 = vsel %vm488, %v475, 0
      %v568 = vsel %vm488, %v476, 0
      %v571 = vsel %vm488, %v477, 0
      %v574 = vsel %vm488, %v478, 0
      %v577 = vsel %vm488, %v479, 0
      %v580 = vsel %vm488, %v480, 0
      %v583 = vsel %vm488, %v481, 0
      %585 = vmatprep.subr.bf16.mxu0 0
      %586 = vmatpush1.bf16.msra.mxu0 %v486
      %587 = vmatprep.subr.bf16.mxu0 0
      %588 = vmatpush1.bf16.msra.mxu0 0
      %589 = vmatprep.subr.bf16.mxu0 0
      %590 = vmatpush1.bf16.msra.mxu0 0
      %591 = vmatprep.subr.bf16.mxu0 0
      %592 = vmatpush1.bf16.msra.mxu0 0
      %593 = vmatprep.subr.bf16.mxu0 0
      %594 = vmatpush1.bf16.msra.mxu0 0
      %595 = vmatprep.subr.bf16.mxu0 0
      %596 = vmatpush1.bf16.msra.mxu0 0
      %597 = vmatprep.subr.bf16.mxu0 0
      %598 = vmatpush1.bf16.msra.mxu0 0
      %599 = vmatprep.subr.bf16.mxu0 0
      %600 = vmatpush1.bf16.msra.mxu0 0
      %601 = vmatprep.subr.bf16.mxu0 0
      %602 = vmatpush1.bf16.msra.mxu0 0
      %603 = vmatprep.subr.bf16.mxu0 0
      %604 = vmatpush1.bf16.msra.mxu0 0
      %605 = vmatprep.subr.bf16.mxu0 0
      %606 = vmatpush1.bf16.msra.mxu0 0
      %607 = vmatprep.subr.bf16.mxu0 0
      %608 = vmatpush1.bf16.msra.mxu0 0
      %609 = vmatprep.subr.bf16.mxu0 0
      %610 = vmatpush1.bf16.msra.mxu0 0
      %611 = vmatprep.subr.bf16.mxu0 0
      %612 = vmatpush1.bf16.msra.mxu0 0
      %613 = vmatprep.subr.bf16.mxu0 0
      %614 = vmatpush1.bf16.msra.mxu0 0
      %615 = vmatprep.subr.bf16.mxu0 0
      %616 = vmatpush1.bf16.msra.mxu0 0
      %617 = vmatprep.mubr.bf16.mxu0 0
      %618 = vmatmul.mubr.bf16.gmra.mrb[0].mxu0 %v490
      %v619 = vpop.f32.mrb[0].mxu0
      %v620 = vadd.f32 0.0, %v619
      %v621 = vpop.f32.mrb[0].mxu0
      %v622 = vpop.f32.mrb[0].mxu0
      %v623 = vadd.f32 0.0, %v622
      %v624 = vpop.f32.mrb[0].mxu0
      %625 = vmatprep.mubr.bf16.mxu0 0
      %626 = vmatmul.mubr.bf16.gmra.mrb[0].mxu0 %v493
      %v627 = vpop.f32.mrb[0].mxu0
      %v628 = vadd.f32 0.0, %v627
      %v629 = vpop.f32.mrb[0].mxu0
      %v630 = vpop.f32.mrb[0].mxu0
      %v631 = vadd.f32 0.0, %v630
      %v632 = vpop.f32.mrb[0].mxu0
      %633 = vmatprep.mubr.bf16.mxu0 0
      %634 = vmatmul.mubr.bf16.gmra.mrb[0].mxu0 %v496
      %v635 = vpop.f32.mrb[0].mxu0
      %v636 = vadd.f32 0.0, %v635
      %v637 = vpop.f32.mrb[0].mxu0
      %v638 = vpop.f32.mrb[0].mxu0
      %v639 = vadd.f32 0.0, %v638
      %v640 = vpop.f32.mrb[0].mxu0
      %641 = vmatprep.mubr.bf16.mxu0 0
      %642 = vmatmul.mubr.bf16.gmra.mrb[0].mxu0 %v499
      %v643 = vpop.f32.mrb[0].mxu0
      %v644 = vadd.f32 0.0, %v643
      %v645 = vpop.f32.mrb[0].mxu0
      %v646 = vpop.f32.mrb[0].mxu0
      %v647 = vadd.f32 0.0, %v646
      %v648 = vpop.f32.mrb[0].mxu0
      %649 = vmatprep.mubr.bf16.mxu0 0
      %650 = vmatmul.mubr.bf16.gmra.mrb[0].mxu0 %v502
      %v651 = vpop.f32.mrb[0].mxu0
      %v652 = vadd.f32 0.0, %v651
      %v653 = vpop.f32.mrb[0].mxu0
      %v654 = vpop.f32.mrb[0].mxu0
      %v655 = vadd.f32 0.0, %v654
      %v656 = vpop.f32.mrb[0].mxu0
      %657 = vmatprep.mubr.bf16.mxu0 0
      %658 = vmatmul.mubr.bf16.gmra.mrb[0].mxu0 %v505
      %v659 = vpop.f32.mrb[0].mxu0
      %v660 = vadd.f32 0.0, %v659
      %v661 = vpop.f32.mrb[0].mxu0
      %v662 = vpop.f32.mrb[0].mxu0
      %v663 = vadd.f32 0.0, %v662
      %v664 = vpop.f32.mrb[0].mxu0
      %665 = vmatprep.mubr.bf16.mxu0 0
      %666 = vmatmul.mubr.bf16.gmra.mrb[0].mxu0 %v508
      %v667 = vpop.f32.mrb[0].mxu0
      %v668 = vadd.f32 0.0, %v667
      %v669 = vpop.f32.mrb[0].mxu0
      %v670 = vpop.f32.mrb[0].mxu0
      %v671 = vadd.f32 0.0, %v670
      %v672 = vpop.f32.mrb[0].mxu0
      %673 = vmatprep.mubr.bf16.mxu0 0
      %674 = vmatmul.mubr.bf16.gmra.mrb[0].mxu0 %v511
      %v675 = vpop.f32.mrb[0].mxu0
      %v676 = vadd.f32 0.0, %v675
      %v677 = vpop.f32.mrb[0].mxu0
      %v678 = vpop.f32.mrb[0].mxu0
      %v679 = vadd.f32 0.0, %v678
      %v680 = vpop.f32.mrb[0].mxu0
      %681 = vmatprep.mubr.bf16.mxu0 0
      %682 = vmatmul.mubr.bf16.gmra.mrb[0].mxu0 %v514
      %v683 = vpop.f32.mrb[0].mxu0
      %v684 = vadd.f32 0.0, %v683
      %v685 = vpop.f32.mrb[0].mxu0
      %v686 = vpop.f32.mrb[0].mxu0
      %v687 = vadd.f32 0.0, %v686
      %v688 = vpop.f32.mrb[0].mxu0
      %689 = vmatprep.mubr.bf16.mxu0 0
      %690 = vmatmul.mubr.bf16.gmra.mrb[0].mxu0 %v517
      %v691 = vpop.f32.mrb[0].mxu0
      %v692 = vadd.f32 0.0, %v691
      %v693 = vpop.f32.mrb[0].mxu0
      %v694 = vpop.f32.mrb[0].mxu0
      %v695 = vadd.f32 0.0, %v694
      %v696 = vpop.f32.mrb[0].mxu0
      %697 = vmatprep.mubr.bf16.mxu0 0
      %698 = vmatmul.mubr.bf16.gmra.mrb[0].mxu0 %v520
      %v699 = vpop.f32.mrb[0].mxu0
      %v700 = vadd.f32 0.0, %v699
      %v701 = vpop.f32.mrb[0].mxu0
      %v702 = vpop.f32.mrb[0].mxu0
      %v703 = vadd.f32 0.0, %v702
      %v704 = vpop.f32.mrb[0].mxu0
      %705 = vmatprep.mubr.bf16.mxu0 0
      %706 = vmatmul.mubr.bf16.gmra.mrb[0].mxu0 %v523
      %v707 = vpop.f32.mrb[0].mxu0
      %v708 = vadd.f32 0.0, %v707
      %v709 = vpop.f32.mrb[0].mxu0
      %v710 = vpop.f32.mrb[0].mxu0
      %v711 = vadd.f32 0.0, %v710
      %v712 = vpop.f32.mrb[0].mxu0
      %713 = vmatprep.mubr.bf16.mxu0 0
      %714 = vmatmul.mubr.bf16.gmra.mrb[0].mxu0 %v526
      %v715 = vpop.f32.mrb[0].mxu0
      %v716 = vadd.f32 0.0, %v715
      %v717 = vpop.f32.mrb[0].mxu0
      %v718 = vpop.f32.mrb[0].mxu0
      %v719 = vadd.f32 0.0, %v718
      %v720 = vpop.f32.mrb[0].mxu0
      %721 = vmatprep.mubr.bf16.mxu0 0
      %722 = vmatmul.mubr.bf16.gmra.mrb[0].mxu0 %v529
      %v723 = vpop.f32.mrb[0].mxu0
      %v724 = vadd.f32 0.0, %v723
      %v725 = vpop.f32.mrb[0].mxu0
      %v726 = vpop.f32.mrb[0].mxu0
      %v727 = vadd.f32 0.0, %v726
      %v728 = vpop.f32.mrb[0].mxu0
      %729 = vmatprep.mubr.bf16.mxu0 0
      %730 = vmatmul.mubr.bf16.gmra.mrb[0].mxu0 %v532
      %v731 = vpop.f32.mrb[0].mxu0
      %v732 = vadd.f32 0.0, %v731
      %v733 = vpop.f32.mrb[0].mxu0
      %v734 = vpop.f32.mrb[0].mxu0
      %v735 = vadd.f32 0.0, %v734
      %v736 = vpop.f32.mrb[0].mxu0
      %737 = vmatprep.mubr.bf16.mxu0 0
      %738 = vmatmul.mubr.bf16.gmra.mrb[0].mxu0 %v535
      %v739 = vpop.f32.mrb[0].mxu0
      %v740 = vadd.f32 0.0, %v739
      %v741 = vpop.f32.mrb[0].mxu0
      %v742 = vpop.f32.mrb[0].mxu0
      %v743 = vadd.f32 0.0, %v742
      %v744 = vpop.f32.mrb[0].mxu0
      %745 = vmatprep.mubr.bf16.mxu0 0
      %746 = vmatmul.mubr.bf16.gmra.mrb[0].mxu0 %v538
      %v747 = vpop.f32.mrb[0].mxu0
      %v748 = vadd.f32 0.0, %v747
      %v749 = vpop.f32.mrb[0].mxu0
      %v750 = vpop.f32.mrb[0].mxu0
      %v751 = vadd.f32 0.0, %v750
      %v752 = vpop.f32.mrb[0].mxu0
      %753 = vmatprep.mubr.bf16.mxu0 0
      %754 = vmatmul.mubr.bf16.gmra.mrb[0].mxu0 %v541
      %v755 = vpop.f32.mrb[0].mxu0
      %v756 = vadd.f32 0.0, %v755
      %v757 = vpop.f32.mrb[0].mxu0
      %v758 = vpop.f32.mrb[0].mxu0
      %v759 = vadd.f32 0.0, %v758
      %v760 = vpop.f32.mrb[0].mxu0
      %761 = vmatprep.mubr.bf16.mxu0 0
      %762 = vmatmul.mubr.bf16.gmra.mrb[0].mxu0 %v544
      %v763 = vpop.f32.mrb[0].mxu0
      %v764 = vadd.f32 0.0, %v763
      %v765 = vpop.f32.mrb[0].mxu0
      %v766 = vpop.f32.mrb[0].mxu0
      %v767 = vadd.f32 0.0, %v766
      %v768 = vpop.f32.mrb[0].mxu0
      %769 = vmatprep.mubr.bf16.mxu0 0
      %770 = vmatmul.mubr.bf16.gmra.mrb[0].mxu0 %v547
      %v771 = vpop.f32.mrb[0].mxu0
      %v772 = vadd.f32 0.0, %v771
      %v773 = vpop.f32.mrb[0].mxu0
      %v774 = vpop.f32.mrb[0].mxu0
      %v775 = vadd.f32 0.0, %v774
      %v776 = vpop.f32.mrb[0].mxu0
      %777 = vmatprep.mubr.bf16.mxu0 0
      %778 = vmatmul.mubr.bf16.gmra.mrb[0].mxu0 %v550
      %v779 = vpop.f32.mrb[0].mxu0
      %v780 = vadd.f32 0.0, %v779
      %v781 = vpop.f32.mrb[0].mxu0
      %v782 = vpop.f32.mrb[0].mxu0
      %v783 = vadd.f32 0.0, %v782
      %v784 = vpop.f32.mrb[0].mxu0
      %785 = vmatprep.mubr.bf16.mxu0 0
      %786 = vmatmul.mubr.bf16.gmra.mrb[0].mxu0 %v553
      %v787 = vpop.f32.mrb[0].mxu0
      %v788 = vadd.f32 0.0, %v787
      %v789 = vpop.f32.mrb[0].mxu0
      %v790 = vpop.f32.mrb[0].mxu0
      %v791 = vadd.f32 0.0, %v790
      %v792 = vpop.f32.mrb[0].mxu0
      %793 = vmatprep.mubr.bf16.mxu0 0
      %794 = vmatmul.mubr.bf16.gmra.mrb[0].mxu0 %v556
      %v795 = vpop.f32.mrb[0].mxu0
      %v796 = vadd.f32 0.0, %v795
      %v797 = vpop.f32.mrb[0].mxu0
      %v798 = vpop.f32.mrb[0].mxu0
      %v799 = vadd.f32 0.0, %v798
      %v800 = vpop.f32.mrb[0].mxu0
      %801 = vmatprep.mubr.bf16.mxu0 0
      %802 = vmatmul.mubr.bf16.gmra.mrb[0].mxu0 %v559
      %v803 = vpop.f32.mrb[0].mxu0
      %v804 = vadd.f32 0.0, %v803
      %v805 = vpop.f32.mrb[0].mxu0
      %v806 = vpop.f32.mrb[0].mxu0
      %v807 = vadd.f32 0.0, %v806
      %v808 = vpop.f32.mrb[0].mxu0
      %809 = vmatprep.mubr.bf16.mxu0 0
      %810 = vmatmul.mubr.bf16.gmra.mrb[0].mxu0 %v562
      %v811 = vpop.f32.mrb[0].mxu0
      %v812 = vadd.f32 0.0, %v811
      %v813 = vpop.f32.mrb[0].mxu0
      %v814 = vpop.f32.mrb[0].mxu0
      %v815 = vadd.f32 0.0, %v814
      %v816 = vpop.f32.mrb[0].mxu0
      %817 = vmatprep.mubr.bf16.mxu0 0
      %818 = vmatmul.mubr.bf16.gmra.mrb[0].mxu0 %v565
      %v819 = vpop.f32.mrb[0].mxu0
      %v820 = vadd.f32 0.0, %v819
      %v821 = vpop.f32.mrb[0].mxu0
      %v822 = vpop.f32.mrb[0].mxu0
      %v823 = vadd.f32 0.0, %v822
      %v824 = vpop.f32.mrb[0].mxu0
      %825 = vmatprep.mubr.bf16.mxu0 0
      %826 = vmatmul.mubr.bf16.gmra.mrb[0].mxu0 %v568
      %v827 = vpop.f32.mrb[0].mxu0
      %v828 = vadd.f32 0.0, %v827
      %v829 = vpop.f32.mrb[0].mxu0
      %v830 = vpop.f32.mrb[0].mxu0
      %v831 = vadd.f32 0.0, %v830
      %v832 = vpop.f32.mrb[0].mxu0
      %833 = vmatprep.mubr.bf16.mxu0 0
      %834 = vmatmul.mubr.bf16.gmra.mrb[0].mxu0 %v571
      %v835 = vpop.f32.mrb[0].mxu0
      %v836 = vadd.f32 0.0, %v835
      %v837 = vpop.f32.mrb[0].mxu0
      %v838 = vpop.f32.mrb[0].mxu0
      %v839 = vadd.f32 0.0, %v838
      %v840 = vpop.f32.mrb[0].mxu0
      %841 = vmatprep.mubr.bf16.mxu0 0
      %842 = vmatmul.mubr.bf16.gmra.mrb[0].mxu0 %v574
      %v843 = vpop.f32.mrb[0].mxu0
      %v844 = vadd.f32 0.0, %v843
      %v845 = vpop.f32.mrb[0].mxu0
      %v846 = vpop.f32.mrb[0].mxu0
      %v847 = vadd.f32 0.0, %v846
      %v848 = vpop.f32.mrb[0].mxu0
      %849 = vmatprep.mubr.bf16.mxu0 0
      %850 = vmatmul.mubr.bf16.gmra.mrb[0].mxu0 %v577
      %v851 = vpop.f32.mrb[0].mxu0
      %v852 = vadd.f32 0.0, %v851
      %v853 = vpop.f32.mrb[0].mxu0
      %v854 = vpop.f32.mrb[0].mxu0
      %v855 = vadd.f32 0.0, %v854
      %v856 = vpop.f32.mrb[0].mxu0
      %857 = vmatprep.mubr.bf16.mxu0 0
      %858 = vmatmul.mubr.bf16.gmra.mrb[0].mxu0 %v580
      %v859 = vpop.f32.mrb[0].mxu0
      %v860 = vadd.f32 0.0, %v859
      %v861 = vpop.f32.mrb[0].mxu0
      %v862 = vpop.f32.mrb[0].mxu0
      %v863 = vadd.f32 0.0, %v862
      %v864 = vpop.f32.mrb[0].mxu0
      %865 = vmatprep.mubr.bf16.mxu0 0
      %866 = vmatmul.mubr.bf16.gmra.mrb[0].mxu0 %v583
      %v867 = vpop.f32.mrb[0].mxu0
      %v868 = vadd.f32 0.0, %v867
      %v869 = vpop.f32.mrb[0].mxu0
      %v870 = vpop.f32.mrb[0].mxu0
      %v871 = vadd.f32 0.0, %v870
      %v872 = vpop.f32.mrb[0].mxu0
      %873 = vdwg.mxu0
      %v874 = vmax.f32 %v620, 0.0
      %v875 = vmax.f32 %v623, 0.0
      %v876 = vmax.f32 %v628, 0.0
      %v877 = vmax.f32 %v631, 0.0
      %v878 = vmax.f32 %v636, 0.0
      %v879 = vmax.f32 %v639, 0.0
      %v880 = vmax.f32 %v644, 0.0
      %v881 = vmax.f32 %v647, 0.0
      %v882 = vmax.f32 %v652, 0.0
      %v883 = vmax.f32 %v655, 0.0
      %v884 = vmax.f32 %v660, 0.0
      %v885 = vmax.f32 %v663, 0.0
      %v886 = vmax.f32 %v668, 0.0
      %v887 = vmax.f32 %v671, 0.0
      %v888 = vmax.f32 %v676, 0.0
      %v889 = vmax.f32 %v679, 0.0
      %v890 = vmax.f32 %v684, 0.0
      %v891 = vmax.f32 %v687, 0.0
      %v892 = vmax.f32 %v692, 0.0
      %v893 = vmax.f32 %v695, 0.0
      %v894 = vmax.f32 %v700, 0.0
      %v895 = vmax.f32 %v703, 0.0
      %v896 = vmax.f32 %v708, 0.0
      %v897 = vmax.f32 %v711, 0.0
      %v898 = vmax.f32 %v716, 0.0
      %v899 = vmax.f32 %v719, 0.0
      %v900 = vmax.f32 %v724, 0.0
      %v901 = vmax.f32 %v727, 0.0
      %v902 = vmax.f32 %v732, 0.0
      %v903 = vmax.f32 %v735, 0.0
      %v904 = vmax.f32 %v740, 0.0
      %v905 = vmax.f32 %v743, 0.0
      %v906 = vmax.f32 %v748, 0.0
      %v907 = vmax.f32 %v751, 0.0
      %v908 = vmax.f32 %v756, 0.0
      %v909 = vmax.f32 %v759, 0.0
      %v910 = vmax.f32 %v764, 0.0
      %v911 = vmax.f32 %v767, 0.0
      %v912 = vmax.f32 %v772, 0.0
      %v913 = vmax.f32 %v775, 0.0
      %v914 = vmax.f32 %v780, 0.0
      %v915 = vmax.f32 %v783, 0.0
      %v916 = vmax.f32 %v788, 0.0
      %v917 = vmax.f32 %v791, 0.0
      %v918 = vmax.f32 %v796, 0.0
      %v919 = vmax.f32 %v799, 0.0
      %v920 = vmax.f32 %v804, 0.0
      %v921 = vmax.f32 %v807, 0.0
      %v922 = vmax.f32 %v812, 0.0
      %v923 = vmax.f32 %v815, 0.0
      %v924 = vmax.f32 %v820, 0.0
      %v925 = vmax.f32 %v823, 0.0
      %v926 = vmax.f32 %v828, 0.0
      %v927 = vmax.f32 %v831, 0.0
      %v928 = vmax.f32 %v836, 0.0
      %v929 = vmax.f32 %v839, 0.0
      %v930 = vmax.f32 %v844, 0.0
      %v931 = vmax.f32 %v847, 0.0
      %v932 = vmax.f32 %v852, 0.0
      %v933 = vmax.f32 %v855, 0.0
      %v934 = vmax.f32 %v860, 0.0
      %v935 = vmax.f32 %v863, 0.0
      %v936 = vmax.f32 %v868, 0.0
      %v937 = vmax.f32 %v871, 0.0
      %v938 = vpack.c.bf16 %v875, %v874
      %v939 = vpack.c.bf16 %v877, %v876
      %v940 = vpack.c.bf16 %v879, %v878
      %v941 = vpack.c.bf16 %v881, %v880
      %v942 = vpack.c.bf16 %v883, %v882
      %v943 = vpack.c.bf16 %v885, %v884
      %v944 = vpack.c.bf16 %v887, %v886
      %v945 = vpack.c.bf16 %v889, %v888
      %v946 = vpack.c.bf16 %v891, %v890
      %v947 = vpack.c.bf16 %v893, %v892
      %v948 = vpack.c.bf16 %v895, %v894
      %v949 = vpack.c.bf16 %v897, %v896
      %v950 = vpack.c.bf16 %v899, %v898
      %v951 = vpack.c.bf16 %v901, %v900
      %v952 = vpack.c.bf16 %v903, %v902
      %v953 = vpack.c.bf16 %v905, %v904
      %v954 = vpack.c.bf16 %v907, %v906
      %v955 = vpack.c.bf16 %v909, %v908
      %v956 = vpack.c.bf16 %v911, %v910
      %v957 = vpack.c.bf16 %v913, %v912
      %v958 = vpack.c.bf16 %v915, %v914
      %v959 = vpack.c.bf16 %v917, %v916
      %v960 = vpack.c.bf16 %v919, %v918
      %v961 = vpack.c.bf16 %v921, %v920
      %v962 = vpack.c.bf16 %v923, %v922
      %v963 = vpack.c.bf16 %v925, %v924
      %v964 = vpack.c.bf16 %v927, %v926
      %v965 = vpack.c.bf16 %v929, %v928
      %v966 = vpack.c.bf16 %v931, %v930
      %v967 = vpack.c.bf16 %v933, %v932
      %v968 = vpack.c.bf16 %v935, %v934
      %v969 = vpack.c.bf16 %v937, %v936
      %v970 = vld [vmem:[%s2] sm:$0xf]
      %v971 = vld [vmem:[%s2 + $0x4] sm:$0xf]
      %v972 = vld [vmem:[%s2 + $0x8] sm:$0xf]
      %v973 = vld [vmem:[%s2 + $0xc] sm:$0xf]
      %v974 = vld [vmem:[%s2 + $0x10] sm:$0xf]
      %v975 = vld [vmem:[%s2 + $0x14] sm:$0xf]
      %v976 = vld [vmem:[%s2 + $0x18] sm:$0xf]
      %v977 = vld [vmem:[%s2 + $0x1c] sm:$0xf]
      %v978 = vld [vmem:[%s3] sm:$0x1]
      %v980 = vlaneseq
      %v981 = vshrl.u32 %v980, 7
      %v982 = vsub.s32 0, %v981
      %v983 = vrot.slane %v978, %v982
      %v993 = vunpack.c.l.b16 %v970
      %v994 = vunpack.c.l.b16 %v971
      %v995 = vunpack.c.l.b16 %v972
      %v996 = vunpack.c.l.b16 %v973
      %v997 = vunpack.c.l.b16 %v974
      %v998 = vunpack.c.l.b16 %v975
      %v999 = vunpack.c.l.b16 %v976
      %v1000 = vunpack.c.l.b16 %v977
      %v1001 = vpack.c.b16 %v994, %v993
      %v1002 = vpack.c.b16 %v996, %v995
      %v1003 = vpack.c.b16 %v998, %v997
      %v1004 = vpack.c.b16 %v1000, %v999
      %vm1009 = vcmask 523264
      %v1011 = vsel %vm1009, %v938, 0
      %v1014 = vsel %vm1009, %v939, 0
      %v1017 = vsel %vm1009, %v940, 0
      %v1020 = vsel %vm1009, %v941, 0
      %v1023 = vsel %vm1009, %v942, 0
      %v1026 = vsel %vm1009, %v943, 0
      %v1029 = vsel %vm1009, %v944, 0
      %v1032 = vsel %vm1009, %v945, 0
      %v1035 = vsel %vm1009, %v946, 0
      %v1038 = vsel %vm1009, %v947, 0
      %v1041 = vsel %vm1009, %v948, 0
      %v1044 = vsel %vm1009, %v949, 0
      %v1047 = vsel %vm1009, %v950, 0
      %v1050 = vsel %vm1009, %v951, 0
      %v1053 = vsel %vm1009, %v952, 0
      %v1056 = vsel %vm1009, %v953, 0
      %v1059 = vsel %vm1009, %v954, 0
      %v1062 = vsel %vm1009, %v955, 0
      %v1065 = vsel %vm1009, %v956, 0
      %v1068 = vsel %vm1009, %v957, 0
      %v1071 = vsel %vm1009, %v958, 0
      %v1074 = vsel %vm1009, %v959, 0
      %v1077 = vsel %vm1009, %v960, 0
      %v1080 = vsel %vm1009, %v961, 0
      %v1083 = vsel %vm1009, %v962, 0
      %v1086 = vsel %vm1009, %v963, 0
      %v1089 = vsel %vm1009, %v964, 0
      %v1092 = vsel %vm1009, %v965, 0
      %v1095 = vsel %vm1009, %v966, 0
      %v1098 = vsel %vm1009, %v967, 0
      %v1101 = vsel %vm1009, %v968, 0
      %v1104 = vsel %vm1009, %v969, 0
      %1106 = vmatprep.subr.bf16.mxu0 0
      %1107 = vmatpush1.bf16.msra.mxu0 %v1001
      %1108 = vmatprep.subr.bf16.mxu0 0
      %1109 = vmatpush1.bf16.msra.mxu0 %v1002
      %1110 = vmatprep.subr.bf16.mxu0 0
      %1111 = vmatpush1.bf16.msra.mxu0 %v1003
      %1112 = vmatprep.subr.bf16.mxu0 0
      %1113 = vmatpush1.bf16.msra.mxu0 %v1004
      %1114 = vmatprep.subr.bf16.mxu0 0
      %1115 = vmatpush1.bf16.msra.mxu0 0
      %1116 = vmatprep.subr.bf16.mxu0 0
      %1117 = vmatpush1.bf16.msra.mxu0 0
      %1118 = vmatprep.subr.bf16.mxu0 0
      %1119 = vmatpush1.bf16.msra.mxu0 0
      %1120 = vmatprep.subr.bf16.mxu0 0
      %1121 = vmatpush1.bf16.msra.mxu0 0
      %1122 = vmatprep.subr.bf16.mxu0 0
      %1123 = vmatpush1.bf16.msra.mxu0 0
      %1124 = vmatprep.subr.bf16.mxu0 0
      %1125 = vmatpush1.bf16.msra.mxu0 0
      %1126 = vmatprep.subr.bf16.mxu0 0
      %1127 = vmatpush1.bf16.msra.mxu0 0
      %1128 = vmatprep.subr.bf16.mxu0 0
      %1129 = vmatpush1.bf16.msra.mxu0 0
      %1130 = vmatprep.subr.bf16.mxu0 0
      %1131 = vmatpush1.bf16.msra.mxu0 0
      %1132 = vmatprep.subr.bf16.mxu0 0
      %1133 = vmatpush1.bf16.msra.mxu0 0
      %1134 = vmatprep.subr.bf16.mxu0 0
      %1135 = vmatpush1.bf16.msra.mxu0 0
      %1136 = vmatprep.subr.bf16.mxu0 0
      %1137 = vmatpush1.bf16.msra.mxu0 0
      %1138 = vmatprep.mubr.bf16.mxu0 0
      %1139 = vmatmul.mubr.bf16.gmra.mrb[0].mxu0 %v1011
      %v1140 = vpop.f32.mrb[0].mxu0
      %v1141 = vadd.f32 %v983, %v1140
      %v1142 = vpop.f32.mrb[0].mxu0
      %v1143 = vpop.f32.mrb[0].mxu0
      %v1144 = vadd.f32 %v983, %v1143
      %v1145 = vpop.f32.mrb[0].mxu0
      %1146 = vmatprep.mubr.bf16.mxu0 0
      %1147 = vmatmul.mubr.bf16.gmra.mrb[0].mxu0 %v1014
      %v1148 = vpop.f32.mrb[0].mxu0
      %v1149 = vadd.f32 %v983, %v1148
      %v1150 = vpop.f32.mrb[0].mxu0
      %v1151 = vpop.f32.mrb[0].mxu0
      %v1152 = vadd.f32 %v983, %v1151
      %v1153 = vpop.f32.mrb[0].mxu0
      %1154 = vmatprep.mubr.bf16.mxu0 0
      %1155 = vmatmul.mubr.bf16.gmra.mrb[0].mxu0 %v1017
      %v1156 = vpop.f32.mrb[0].mxu0
      %v1157 = vadd.f32 %v983, %v1156
      %v1158 = vpop.f32.mrb[0].mxu0
      %v1159 = vpop.f32.mrb[0].mxu0
      %v1160 = vadd.f32 %v983, %v1159
      %v1161 = vpop.f32.mrb[0].mxu0
      %1162 = vmatprep.mubr.bf16.mxu0 0
      %1163 = vmatmul.mubr.bf16.gmra.mrb[0].mxu0 %v1020
      %v1164 = vpop.f32.mrb[0].mxu0
      %v1165 = vadd.f32 %v983, %v1164
      %v1166 = vpop.f32.mrb[0].mxu0
      %v1167 = vpop.f32.mrb[0].mxu0
      %v1168 = vadd.f32 %v983, %v1167
      %v1169 = vpop.f32.mrb[0].mxu0
      %1170 = vmatprep.mubr.bf16.mxu0 0
      %1171 = vmatmul.mubr.bf16.gmra.mrb[0].mxu0 %v1023
      %v1172 = vpop.f32.mrb[0].mxu0
      %v1173 = vadd.f32 %v983, %v1172
      %v1174 = vpop.f32.mrb[0].mxu0
      %v1175 = vpop.f32.mrb[0].mxu0
      %v1176 = vadd.f32 %v983, %v1175
      %v1177 = vpop.f32.mrb[0].mxu0
      %1178 = vmatprep.mubr.bf16.mxu0 0
      %1179 = vmatmul.mubr.bf16.gmra.mrb[0].mxu0 %v1026
      %v1180 = vpop.f32.mrb[0].mxu0
      %v1181 = vadd.f32 %v983, %v1180
      %v1182 = vpop.f32.mrb[0].mxu0
      %v1183 = vpop.f32.mrb[0].mxu0
      %v1184 = vadd.f32 %v983, %v1183
      %v1185 = vpop.f32.mrb[0].mxu0
      %1186 = vmatprep.mubr.bf16.mxu0 0
      %1187 = vmatmul.mubr.bf16.gmra.mrb[0].mxu0 %v1029
      %v1188 = vpop.f32.mrb[0].mxu0
      %v1189 = vadd.f32 %v983, %v1188
      %v1190 = vpop.f32.mrb[0].mxu0
      %v1191 = vpop.f32.mrb[0].mxu0
      %v1192 = vadd.f32 %v983, %v1191
      %v1193 = vpop.f32.mrb[0].mxu0
      %1194 = vmatprep.mubr.bf16.mxu0 0
      %1195 = vmatmul.mubr.bf16.gmra.mrb[0].mxu0 %v1032
      %v1196 = vpop.f32.mrb[0].mxu0
      %v1197 = vadd.f32 %v983, %v1196
      %v1198 = vpop.f32.mrb[0].mxu0
      %v1199 = vpop.f32.mrb[0].mxu0
      %v1200 = vadd.f32 %v983, %v1199
      %v1201 = vpop.f32.mrb[0].mxu0
      %1202 = vmatprep.mubr.bf16.mxu0 0
      %1203 = vmatmul.mubr.bf16.gmra.mrb[0].mxu0 %v1035
      %v1204 = vpop.f32.mrb[0].mxu0
      %v1205 = vadd.f32 %v983, %v1204
      %v1206 = vpop.f32.mrb[0].mxu0
      %v1207 = vpop.f32.mrb[0].mxu0
      %v1208 = vadd.f32 %v983, %v1207
      %v1209 = vpop.f32.mrb[0].mxu0
      %1210 = vmatprep.mubr.bf16.mxu0 0
      %1211 = vmatmul.mubr.bf16.gmra.mrb[0].mxu0 %v1038
      %v1212 = vpop.f32.mrb[0].mxu0
      %v1213 = vadd.f32 %v983, %v1212
      %v1214 = vpop.f32.mrb[0].mxu0
      %v1215 = vpop.f32.mrb[0].mxu0
      %v1216 = vadd.f32 %v983, %v1215
      %v1217 = vpop.f32.mrb[0].mxu0
      %1218 = vmatprep.mubr.bf16.mxu0 0
      %1219 = vmatmul.mubr.bf16.gmra.mrb[0].mxu0 %v1041
      %v1220 = vpop.f32.mrb[0].mxu0
      %v1221 = vadd.f32 %v983, %v1220
      %v1222 = vpop.f32.mrb[0].mxu0
      %v1223 = vpop.f32.mrb[0].mxu0
      %v1224 = vadd.f32 %v983, %v1223
      %v1225 = vpop.f32.mrb[0].mxu0
      %1226 = vmatprep.mubr.bf16.mxu0 0
      %1227 = vmatmul.mubr.bf16.gmra.mrb[0].mxu0 %v1044
      %v1228 = vpop.f32.mrb[0].mxu0
      %v1229 = vadd.f32 %v983, %v1228
      %v1230 = vpop.f32.mrb[0].mxu0
      %v1231 = vpop.f32.mrb[0].mxu0
      %v1232 = vadd.f32 %v983, %v1231
      %v1233 = vpop.f32.mrb[0].mxu0
      %1234 = vmatprep.mubr.bf16.mxu0 0
      %1235 = vmatmul.mubr.bf16.gmra.mrb[0].mxu0 %v1047
      %v1236 = vpop.f32.mrb[0].mxu0
      %v1237 = vadd.f32 %v983, %v1236
      %v1238 = vpop.f32.mrb[0].mxu0
      %v1239 = vpop.f32.mrb[0].mxu0
      %v1240 = vadd.f32 %v983, %v1239
      %v1241 = vpop.f32.mrb[0].mxu0
      %1242 = vmatprep.mubr.bf16.mxu0 0
      %1243 = vmatmul.mubr.bf16.gmra.mrb[0].mxu0 %v1050
      %v1244 = vpop.f32.mrb[0].mxu0
      %v1245 = vadd.f32 %v983, %v1244
      %v1246 = vpop.f32.mrb[0].mxu0
      %v1247 = vpop.f32.mrb[0].mxu0
      %v1248 = vadd.f32 %v983, %v1247
      %v1249 = vpop.f32.mrb[0].mxu0
      %1250 = vmatprep.mubr.bf16.mxu0 0
      %1251 = vmatmul.mubr.bf16.gmra.mrb[0].mxu0 %v1053
      %v1252 = vpop.f32.mrb[0].mxu0
      %v1253 = vadd.f32 %v983, %v1252
      %v1254 = vpop.f32.mrb[0].mxu0
      %v1255 = vpop.f32.mrb[0].mxu0
      %v1256 = vadd.f32 %v983, %v1255
      %v1257 = vpop.f32.mrb[0].mxu0
      %1258 = vmatprep.mubr.bf16.mxu0 0
      %1259 = vmatmul.mubr.bf16.gmra.mrb[0].mxu0 %v1056
      %v1260 = vpop.f32.mrb[0].mxu0
      %v1261 = vadd.f32 %v983, %v1260
      %v1262 = vpop.f32.mrb[0].mxu0
      %v1263 = vpop.f32.mrb[0].mxu0
      %v1264 = vadd.f32 %v983, %v1263
      %v1265 = vpop.f32.mrb[0].mxu0
      %1266 = vmatprep.mubr.bf16.mxu0 0
      %1267 = vmatmul.mubr.bf16.gmra.mrb[0].mxu0 %v1059
      %v1268 = vpop.f32.mrb[0].mxu0
      %v1269 = vadd.f32 %v983, %v1268
      %v1270 = vpop.f32.mrb[0].mxu0
      %v1271 = vpop.f32.mrb[0].mxu0
      %v1272 = vadd.f32 %v983, %v1271
      %v1273 = vpop.f32.mrb[0].mxu0
      %1274 = vmatprep.mubr.bf16.mxu0 0
      %1275 = vmatmul.mubr.bf16.gmra.mrb[0].mxu0 %v1062
      %v1276 = vpop.f32.mrb[0].mxu0
      %v1277 = vadd.f32 %v983, %v1276
      %v1278 = vpop.f32.mrb[0].mxu0
      %v1279 = vpop.f32.mrb[0].mxu0
      %v1280 = vadd.f32 %v983, %v1279
      %v1281 = vpop.f32.mrb[0].mxu0
      %1282 = vmatprep.mubr.bf16.mxu0 0
      %1283 = vmatmul.mubr.bf16.gmra.mrb[0].mxu0 %v1065
      %v1284 = vpop.f32.mrb[0].mxu0
      %v1285 = vadd.f32 %v983, %v1284
      %v1286 = vpop.f32.mrb[0].mxu0
      %v1287 = vpop.f32.mrb[0].mxu0
      %v1288 = vadd.f32 %v983, %v1287
      %v1289 = vpop.f32.mrb[0].mxu0
      %1290 = vmatprep.mubr.bf16.mxu0 0
      %1291 = vmatmul.mubr.bf16.gmra.mrb[0].mxu0 %v1068
      %v1292 = vpop.f32.mrb[0].mxu0
      %v1293 = vadd.f32 %v983, %v1292
      %v1294 = vpop.f32.mrb[0].mxu0
      %v1295 = vpop.f32.mrb[0].mxu0
      %v1296 = vadd.f32 %v983, %v1295
      %v1297 = vpop.f32.mrb[0].mxu0
      %1298 = vmatprep.mubr.bf16.mxu0 0
      %1299 = vmatmul.mubr.bf16.gmra.mrb[0].mxu0 %v1071
      %v1300 = vpop.f32.mrb[0].mxu0
      %v1301 = vadd.f32 %v983, %v1300
      %v1302 = vpop.f32.mrb[0].mxu0
      %v1303 = vpop.f32.mrb[0].mxu0
      %v1304 = vadd.f32 %v983, %v1303
      %v1305 = vpop.f32.mrb[0].mxu0
      %1306 = vmatprep.mubr.bf16.mxu0 0
      %1307 = vmatmul.mubr.bf16.gmra.mrb[0].mxu0 %v1074
      %v1308 = vpop.f32.mrb[0].mxu0
      %v1309 = vadd.f32 %v983, %v1308
      %v1310 = vpop.f32.mrb[0].mxu0
      %v1311 = vpop.f32.mrb[0].mxu0
      %v1312 = vadd.f32 %v983, %v1311
      %v1313 = vpop.f32.mrb[0].mxu0
      %1314 = vmatprep.mubr.bf16.mxu0 0
      %1315 = vmatmul.mubr.bf16.gmra.mrb[0].mxu0 %v1077
      %v1316 = vpop.f32.mrb[0].mxu0
      %v1317 = vadd.f32 %v983, %v1316
      %v1318 = vpop.f32.mrb[0].mxu0
      %v1319 = vpop.f32.mrb[0].mxu0
      %v1320 = vadd.f32 %v983, %v1319
      %v1321 = vpop.f32.mrb[0].mxu0
      %1322 = vmatprep.mubr.bf16.mxu0 0
      %1323 = vmatmul.mubr.bf16.gmra.mrb[0].mxu0 %v1080
      %v1324 = vpop.f32.mrb[0].mxu0
      %v1325 = vadd.f32 %v983, %v1324
      %v1326 = vpop.f32.mrb[0].mxu0
      %v1327 = vpop.f32.mrb[0].mxu0
      %v1328 = vadd.f32 %v983, %v1327
      %v1329 = vpop.f32.mrb[0].mxu0
      %1330 = vmatprep.mubr.bf16.mxu0 0
      %1331 = vmatmul.mubr.bf16.gmra.mrb[0].mxu0 %v1083
      %v1332 = vpop.f32.mrb[0].mxu0
      %v1333 = vadd.f32 %v983, %v1332
      %v1334 = vpop.f32.mrb[0].mxu0
      %v1335 = vpop.f32.mrb[0].mxu0
      %v1336 = vadd.f32 %v983, %v1335
      %v1337 = vpop.f32.mrb[0].mxu0
      %1338 = vmatprep.mubr.bf16.mxu0 0
      %1339 = vmatmul.mubr.bf16.gmra.mrb[0].mxu0 %v1086
      %v1340 = vpop.f32.mrb[0].mxu0
      %v1341 = vadd.f32 %v983, %v1340
      %v1342 = vpop.f32.mrb[0].mxu0
      %v1343 = vpop.f32.mrb[0].mxu0
      %v1344 = vadd.f32 %v983, %v1343
      %v1345 = vpop.f32.mrb[0].mxu0
      %1346 = vmatprep.mubr.bf16.mxu0 0
      %1347 = vmatmul.mubr.bf16.gmra.mrb[0].mxu0 %v1089
      %v1348 = vpop.f32.mrb[0].mxu0
      %v1349 = vadd.f32 %v983, %v1348
      %v1350 = vpop.f32.mrb[0].mxu0
      %v1351 = vpop.f32.mrb[0].mxu0
      %v1352 = vadd.f32 %v983, %v1351
      %v1353 = vpop.f32.mrb[0].mxu0
      %1354 = vmatprep.mubr.bf16.mxu0 0
      %1355 = vmatmul.mubr.bf16.gmra.mrb[0].mxu0 %v1092
      %v1356 = vpop.f32.mrb[0].mxu0
      %v1357 = vadd.f32 %v983, %v1356
      %v1358 = vpop.f32.mrb[0].mxu0
      %v1359 = vpop.f32.mrb[0].mxu0
      %v1360 = vadd.f32 %v983, %v1359
      %v1361 = vpop.f32.mrb[0].mxu0
      %1362 = vmatprep.mubr.bf16.mxu0 0
      %1363 = vmatmul.mubr.bf16.gmra.mrb[0].mxu0 %v1095
      %v1364 = vpop.f32.mrb[0].mxu0
      %v1365 = vadd.f32 %v983, %v1364
      %v1366 = vpop.f32.mrb[0].mxu0
      %v1367 = vpop.f32.mrb[0].mxu0
      %v1368 = vadd.f32 %v983, %v1367
      %v1369 = vpop.f32.mrb[0].mxu0
      %1370 = vmatprep.mubr.bf16.mxu0 0
      %1371 = vmatmul.mubr.bf16.gmra.mrb[0].mxu0 %v1098
      %v1372 = vpop.f32.mrb[0].mxu0
      %v1373 = vadd.f32 %v983, %v1372
      %v1374 = vpop.f32.mrb[0].mxu0
      %v1375 = vpop.f32.mrb[0].mxu0
      %v1376 = vadd.f32 %v983, %v1375
      %v1377 = vpop.f32.mrb[0].mxu0
      %1378 = vmatprep.mubr.bf16.mxu0 0
      %1379 = vmatmul.mubr.bf16.gmra.mrb[0].mxu0 %v1101
      %v1380 = vpop.f32.mrb[0].mxu0
      %v1381 = vadd.f32 %v983, %v1380
      %v1382 = vpop.f32.mrb[0].mxu0
      %v1383 = vpop.f32.mrb[0].mxu0
      %v1384 = vadd.f32 %v983, %v1383
      %v1385 = vpop.f32.mrb[0].mxu0
      %1386 = vmatprep.mubr.bf16.mxu0 0
      %1387 = vmatmul.mubr.bf16.gmra.mrb[0].mxu0 %v1104
      %v1388 = vpop.f32.mrb[0].mxu0
      %v1389 = vadd.f32 %v983, %v1388
      %v1390 = vpop.f32.mrb[0].mxu0
      %v1391 = vpop.f32.mrb[0].mxu0
      %v1392 = vadd.f32 %v983, %v1391
      %v1393 = vpop.f32.mrb[0].mxu0
      %1394 = vdwg.mxu0
      %v1395 = vmax.f32 %v1141, 0.0
      %v1396 = vmax.f32 %v1144, 0.0
      %v1397 = vmax.f32 %v1149, 0.0
      %v1398 = vmax.f32 %v1152, 0.0
      %v1399 = vmax.f32 %v1157, 0.0
      %v1400 = vmax.f32 %v1160, 0.0
      %v1401 = vmax.f32 %v1165, 0.0
      %v1402 = vmax.f32 %v1168, 0.0
      %v1403 = vmax.f32 %v1173, 0.0
      %v1404 = vmax.f32 %v1176, 0.0
      %v1405 = vmax.f32 %v1181, 0.0
      %v1406 = vmax.f32 %v1184, 0.0
      %v1407 = vmax.f32 %v1189, 0.0
      %v1408 = vmax.f32 %v1192, 0.0
      %v1409 = vmax.f32 %v1197, 0.0
      %v1410 = vmax.f32 %v1200, 0.0
      %v1411 = vmax.f32 %v1205, 0.0
      %v1412 = vmax.f32 %v1208, 0.0
      %v1413 = vmax.f32 %v1213, 0.0
      %v1414 = vmax.f32 %v1216, 0.0
      %v1415 = vmax.f32 %v1221, 0.0
      %v1416 = vmax.f32 %v1224, 0.0
      %v1417 = vmax.f32 %v1229, 0.0
      %v1418 = vmax.f32 %v1232, 0.0
      %v1419 = vmax.f32 %v1237, 0.0
      %v1420 = vmax.f32 %v1240, 0.0
      %v1421 = vmax.f32 %v1245, 0.0
      %v1422 = vmax.f32 %v1248, 0.0
      %v1423 = vmax.f32 %v1253, 0.0
      %v1424 = vmax.f32 %v1256, 0.0
      %v1425 = vmax.f32 %v1261, 0.0
      %v1426 = vmax.f32 %v1264, 0.0
      %v1427 = vmax.f32 %v1269, 0.0
      %v1428 = vmax.f32 %v1272, 0.0
      %v1429 = vmax.f32 %v1277, 0.0
      %v1430 = vmax.f32 %v1280, 0.0
      %v1431 = vmax.f32 %v1285, 0.0
      %v1432 = vmax.f32 %v1288, 0.0
      %v1433 = vmax.f32 %v1293, 0.0
      %v1434 = vmax.f32 %v1296, 0.0
      %v1435 = vmax.f32 %v1301, 0.0
      %v1436 = vmax.f32 %v1304, 0.0
      %v1437 = vmax.f32 %v1309, 0.0
      %v1438 = vmax.f32 %v1312, 0.0
      %v1439 = vmax.f32 %v1317, 0.0
      %v1440 = vmax.f32 %v1320, 0.0
      %v1441 = vmax.f32 %v1325, 0.0
      %v1442 = vmax.f32 %v1328, 0.0
      %v1443 = vmax.f32 %v1333, 0.0
      %v1444 = vmax.f32 %v1336, 0.0
      %v1445 = vmax.f32 %v1341, 0.0
      %v1446 = vmax.f32 %v1344, 0.0
      %v1447 = vmax.f32 %v1349, 0.0
      %v1448 = vmax.f32 %v1352, 0.0
      %v1449 = vmax.f32 %v1357, 0.0
      %v1450 = vmax.f32 %v1360, 0.0
      %v1451 = vmax.f32 %v1365, 0.0
      %v1452 = vmax.f32 %v1368, 0.0
      %v1453 = vmax.f32 %v1373, 0.0
      %v1454 = vmax.f32 %v1376, 0.0
      %v1455 = vmax.f32 %v1381, 0.0
      %v1456 = vmax.f32 %v1384, 0.0
      %v1457 = vmax.f32 %v1389, 0.0
      %v1458 = vmax.f32 %v1392, 0.0
      %v1459 = vpack.c.bf16 %v1396, %v1395
      %v1460 = vpack.c.bf16 %v1398, %v1397
      %v1461 = vpack.c.bf16 %v1400, %v1399
      %v1462 = vpack.c.bf16 %v1402, %v1401
      %v1463 = vpack.c.bf16 %v1404, %v1403
      %v1464 = vpack.c.bf16 %v1406, %v1405
      %v1465 = vpack.c.bf16 %v1408, %v1407
      %v1466 = vpack.c.bf16 %v1410, %v1409
      %v1467 = vpack.c.bf16 %v1412, %v1411
      %v1468 = vpack.c.bf16 %v1414, %v1413
      %v1469 = vpack.c.bf16 %v1416, %v1415
      %v1470 = vpack.c.bf16 %v1418, %v1417
      %v1471 = vpack.c.bf16 %v1420, %v1419
      %v1472 = vpack.c.bf16 %v1422, %v1421
      %v1473 = vpack.c.bf16 %v1424, %v1423
      %v1474 = vpack.c.bf16 %v1426, %v1425
      %v1475 = vpack.c.bf16 %v1428, %v1427
      %v1476 = vpack.c.bf16 %v1430, %v1429
      %v1477 = vpack.c.bf16 %v1432, %v1431
      %v1478 = vpack.c.bf16 %v1434, %v1433
      %v1479 = vpack.c.bf16 %v1436, %v1435
      %v1480 = vpack.c.bf16 %v1438, %v1437
      %v1481 = vpack.c.bf16 %v1440, %v1439
      %v1482 = vpack.c.bf16 %v1442, %v1441
      %v1483 = vpack.c.bf16 %v1444, %v1443
      %v1484 = vpack.c.bf16 %v1446, %v1445
      %v1485 = vpack.c.bf16 %v1448, %v1447
      %v1486 = vpack.c.bf16 %v1450, %v1449
      %v1487 = vpack.c.bf16 %v1452, %v1451
      %v1488 = vpack.c.bf16 %v1454, %v1453
      %v1489 = vpack.c.bf16 %v1456, %v1455
      %v1490 = vpack.c.bf16 %v1458, %v1457
      %v1491 = vld [vmem:[%s4] sm:$0xf]
      %v1492 = vld [vmem:[%s4 + $0x4] sm:$0xf]
      %v1493 = vld [vmem:[%s4 + $0x8] sm:$0xf]
      %v1494 = vld [vmem:[%s4 + $0xc] sm:$0xf]
      %v1495 = vld [vmem:[%s4 + $0x10] sm:$0xf]
      %v1496 = vld [vmem:[%s4 + $0x14] sm:$0xf]
      %v1497 = vld [vmem:[%s4 + $0x18] sm:$0xf]
      %v1498 = vld [vmem:[%s4 + $0x1c] sm:$0xf]
      %v1499 = vld [vmem:[%s5] sm:$0x1]
      %v1501 = vlaneseq
      %v1502 = vshrl.u32 %v1501, 7
      %v1503 = vsub.s32 0, %v1502
      %v1504 = vrot.slane %v1499, %v1503
      %v1514 = vunpack.c.l.b16 %v1491
      %v1515 = vunpack.c.l.b16 %v1492
      %v1516 = vunpack.c.l.b16 %v1493
      %v1517 = vunpack.c.l.b16 %v1494
      %v1518 = vunpack.c.l.b16 %v1495
      %v1519 = vunpack.c.l.b16 %v1496
      %v1520 = vunpack.c.l.b16 %v1497
      %v1521 = vunpack.c.l.b16 %v1498
      %v1522 = vpack.c.b16 %v1515, %v1514
      %v1523 = vpack.c.b16 %v1517, %v1516
      %v1524 = vpack.c.b16 %v1519, %v1518
      %v1525 = vpack.c.b16 %v1521, %v1520
      %v1531 = vsel %vm1009, %v1459, 0
      %v1534 = vsel %vm1009, %v1460, 0
      %v1537 = vsel %vm1009, %v1461, 0
      %v1540 = vsel %vm1009, %v1462, 0
      %v1543 = vsel %vm1009, %v1463, 0
      %v1546 = vsel %vm1009, %v1464, 0
      %v1549 = vsel %vm1009, %v1465, 0
      %v1552 = vsel %vm1009, %v1466, 0
      %v1555 = vsel %vm1009, %v1467, 0
      %v1558 = vsel %vm1009, %v1468, 0
      %v1561 = vsel %vm1009, %v1469, 0
      %v1564 = vsel %vm1009, %v1470, 0
      %v1567 = vsel %vm1009, %v1471, 0
      %v1570 = vsel %vm1009, %v1472, 0
      %v1573 = vsel %vm1009, %v1473, 0
      %v1576 = vsel %vm1009, %v1474, 0
      %v1579 = vsel %vm1009, %v1475, 0
      %v1582 = vsel %vm1009, %v1476, 0
      %v1585 = vsel %vm1009, %v1477, 0
      %v1588 = vsel %vm1009, %v1478, 0
      %v1591 = vsel %vm1009, %v1479, 0
      %v1594 = vsel %vm1009, %v1480, 0
      %v1597 = vsel %vm1009, %v1481, 0
      %v1600 = vsel %vm1009, %v1482, 0
      %v1603 = vsel %vm1009, %v1483, 0
      %v1606 = vsel %vm1009, %v1484, 0
      %v1609 = vsel %vm1009, %v1485, 0
      %v1612 = vsel %vm1009, %v1486, 0
      %v1615 = vsel %vm1009, %v1487, 0
      %v1618 = vsel %vm1009, %v1488, 0
      %v1621 = vsel %vm1009, %v1489, 0
      %v1624 = vsel %vm1009, %v1490, 0
      %1626 = vmatprep.subr.bf16.mxu0 0
      %1627 = vmatpush1.bf16.msra.mxu0 %v1522
      %1628 = vmatprep.subr.bf16.mxu0 0
      %1629 = vmatpush1.bf16.msra.mxu0 %v1523
      %1630 = vmatprep.subr.bf16.mxu0 0
      %1631 = vmatpush1.bf16.msra.mxu0 %v1524
      %1632 = vmatprep.subr.bf16.mxu0 0
      %1633 = vmatpush1.bf16.msra.mxu0 %v1525
      %1634 = vmatprep.subr.bf16.mxu0 0
      %1635 = vmatpush1.bf16.msra.mxu0 0
      %1636 = vmatprep.subr.bf16.mxu0 0
      %1637 = vmatpush1.bf16.msra.mxu0 0
      %1638 = vmatprep.subr.bf16.mxu0 0
      %1639 = vmatpush1.bf16.msra.mxu0 0
      %1640 = vmatprep.subr.bf16.mxu0 0
      %1641 = vmatpush1.bf16.msra.mxu0 0
      %1642 = vmatprep.subr.bf16.mxu0 0
      %1643 = vmatpush1.bf16.msra.mxu0 0
      %1644 = vmatprep.subr.bf16.mxu0 0
      %1645 = vmatpush1.bf16.msra.mxu0 0
      %1646 = vmatprep.subr.bf16.mxu0 0
      %1647 = vmatpush1.bf16.msra.mxu0 0
      %1648 = vmatprep.subr.bf16.mxu0 0
      %1649 = vmatpush1.bf16.msra.mxu0 0
      %1650 = vmatprep.subr.bf16.mxu0 0
      %1651 = vmatpush1.bf16.msra.mxu0 0
      %1652 = vmatprep.subr.bf16.mxu0 0
      %1653 = vmatpush1.bf16.msra.mxu0 0
      %1654 = vmatprep.subr.bf16.mxu0 0
      %1655 = vmatpush1.bf16.msra.mxu0 0
      %1656 = vmatprep.subr.bf16.mxu0 0
      %1657 = vmatpush1.bf16.msra.mxu0 0
      %1658 = vmatprep.mubr.bf16.mxu0 0
      %1659 = vmatmul.mubr.bf16.gmra.mrb[0].mxu0 %v1531
      %v1660 = vpop.f32.mrb[0].mxu0
      %v1661 = vadd.f32 %v1504, %v1660
      %v1662 = vpop.f32.mrb[0].mxu0
      %v1663 = vpop.f32.mrb[0].mxu0
      %v1664 = vadd.f32 %v1504, %v1663
      %v1665 = vpop.f32.mrb[0].mxu0
      %1666 = vmatprep.mubr.bf16.mxu0 0
      %1667 = vmatmul.mubr.bf16.gmra.mrb[0].mxu0 %v1534
      %v1668 = vpop.f32.mrb[0].mxu0
      %v1669 = vadd.f32 %v1504, %v1668
      %v1670 = vpop.f32.mrb[0].mxu0
      %v1671 = vpop.f32.mrb[0].mxu0
      %v1672 = vadd.f32 %v1504, %v1671
      %v1673 = vpop.f32.mrb[0].mxu0
      %1674 = vmatprep.mubr.bf16.mxu0 0
      %1675 = vmatmul.mubr.bf16.gmra.mrb[0].mxu0 %v1537
      %v1676 = vpop.f32.mrb[0].mxu0
      %v1677 = vadd.f32 %v1504, %v1676
      %v1678 = vpop.f32.mrb[0].mxu0
      %v1679 = vpop.f32.mrb[0].mxu0
      %v1680 = vadd.f32 %v1504, %v1679
      %v1681 = vpop.f32.mrb[0].mxu0
      %1682 = vmatprep.mubr.bf16.mxu0 0
      %1683 = vmatmul.mubr.bf16.gmra.mrb[0].mxu0 %v1540
      %v1684 = vpop.f32.mrb[0].mxu0
      %v1685 = vadd.f32 %v1504, %v1684
      %v1686 = vpop.f32.mrb[0].mxu0
      %v1687 = vpop.f32.mrb[0].mxu0
      %v1688 = vadd.f32 %v1504, %v1687
      %v1689 = vpop.f32.mrb[0].mxu0
      %1690 = vmatprep.mubr.bf16.mxu0 0
      %1691 = vmatmul.mubr.bf16.gmra.mrb[0].mxu0 %v1543
      %v1692 = vpop.f32.mrb[0].mxu0
      %v1693 = vadd.f32 %v1504, %v1692
      %v1694 = vpop.f32.mrb[0].mxu0
      %v1695 = vpop.f32.mrb[0].mxu0
      %v1696 = vadd.f32 %v1504, %v1695
      %v1697 = vpop.f32.mrb[0].mxu0
      %1698 = vmatprep.mubr.bf16.mxu0 0
      %1699 = vmatmul.mubr.bf16.gmra.mrb[0].mxu0 %v1546
      %v1700 = vpop.f32.mrb[0].mxu0
      %v1701 = vadd.f32 %v1504, %v1700
      %v1702 = vpop.f32.mrb[0].mxu0
      %v1703 = vpop.f32.mrb[0].mxu0
      %v1704 = vadd.f32 %v1504, %v1703
      %v1705 = vpop.f32.mrb[0].mxu0
      %1706 = vmatprep.mubr.bf16.mxu0 0
      %1707 = vmatmul.mubr.bf16.gmra.mrb[0].mxu0 %v1549
      %v1708 = vpop.f32.mrb[0].mxu0
      %v1709 = vadd.f32 %v1504, %v1708
      %v1710 = vpop.f32.mrb[0].mxu0
      %v1711 = vpop.f32.mrb[0].mxu0
      %v1712 = vadd.f32 %v1504, %v1711
      %v1713 = vpop.f32.mrb[0].mxu0
      %1714 = vmatprep.mubr.bf16.mxu0 0
      %1715 = vmatmul.mubr.bf16.gmra.mrb[0].mxu0 %v1552
      %v1716 = vpop.f32.mrb[0].mxu0
      %v1717 = vadd.f32 %v1504, %v1716
      %v1718 = vpop.f32.mrb[0].mxu0
      %v1719 = vpop.f32.mrb[0].mxu0
      %v1720 = vadd.f32 %v1504, %v1719
      %v1721 = vpop.f32.mrb[0].mxu0
      %1722 = vmatprep.mubr.bf16.mxu0 0
      %1723 = vmatmul.mubr.bf16.gmra.mrb[0].mxu0 %v1555
      %v1724 = vpop.f32.mrb[0].mxu0
      %v1725 = vadd.f32 %v1504, %v1724
      %v1726 = vpop.f32.mrb[0].mxu0
      %v1727 = vpop.f32.mrb[0].mxu0
      %v1728 = vadd.f32 %v1504, %v1727
      %v1729 = vpop.f32.mrb[0].mxu0
      %1730 = vmatprep.mubr.bf16.mxu0 0
      %1731 = vmatmul.mubr.bf16.gmra.mrb[0].mxu0 %v1558
      %v1732 = vpop.f32.mrb[0].mxu0
      %v1733 = vadd.f32 %v1504, %v1732
      %v1734 = vpop.f32.mrb[0].mxu0
      %v1735 = vpop.f32.mrb[0].mxu0
      %v1736 = vadd.f32 %v1504, %v1735
      %v1737 = vpop.f32.mrb[0].mxu0
      %1738 = vmatprep.mubr.bf16.mxu0 0
      %1739 = vmatmul.mubr.bf16.gmra.mrb[0].mxu0 %v1561
      %v1740 = vpop.f32.mrb[0].mxu0
      %v1741 = vadd.f32 %v1504, %v1740
      %v1742 = vpop.f32.mrb[0].mxu0
      %v1743 = vpop.f32.mrb[0].mxu0
      %v1744 = vadd.f32 %v1504, %v1743
      %v1745 = vpop.f32.mrb[0].mxu0
      %1746 = vmatprep.mubr.bf16.mxu0 0
      %1747 = vmatmul.mubr.bf16.gmra.mrb[0].mxu0 %v1564
      %v1748 = vpop.f32.mrb[0].mxu0
      %v1749 = vadd.f32 %v1504, %v1748
      %v1750 = vpop.f32.mrb[0].mxu0
      %v1751 = vpop.f32.mrb[0].mxu0
      %v1752 = vadd.f32 %v1504, %v1751
      %v1753 = vpop.f32.mrb[0].mxu0
      %1754 = vmatprep.mubr.bf16.mxu0 0
      %1755 = vmatmul.mubr.bf16.gmra.mrb[0].mxu0 %v1567
      %v1756 = vpop.f32.mrb[0].mxu0
      %v1757 = vadd.f32 %v1504, %v1756
      %v1758 = vpop.f32.mrb[0].mxu0
      %v1759 = vpop.f32.mrb[0].mxu0
      %v1760 = vadd.f32 %v1504, %v1759
      %v1761 = vpop.f32.mrb[0].mxu0
      %1762 = vmatprep.mubr.bf16.mxu0 0
      %1763 = vmatmul.mubr.bf16.gmra.mrb[0].mxu0 %v1570
      %v1764 = vpop.f32.mrb[0].mxu0
      %v1765 = vadd.f32 %v1504, %v1764
      %v1766 = vpop.f32.mrb[0].mxu0
      %v1767 = vpop.f32.mrb[0].mxu0
      %v1768 = vadd.f32 %v1504, %v1767
      %v1769 = vpop.f32.mrb[0].mxu0
      %1770 = vmatprep.mubr.bf16.mxu0 0
      %1771 = vmatmul.mubr.bf16.gmra.mrb[0].mxu0 %v1573
      %v1772 = vpop.f32.mrb[0].mxu0
      %v1773 = vadd.f32 %v1504, %v1772
      %v1774 = vpop.f32.mrb[0].mxu0
      %v1775 = vpop.f32.mrb[0].mxu0
      %v1776 = vadd.f32 %v1504, %v1775
      %v1777 = vpop.f32.mrb[0].mxu0
      %1778 = vmatprep.mubr.bf16.mxu0 0
      %1779 = vmatmul.mubr.bf16.gmra.mrb[0].mxu0 %v1576
      %v1780 = vpop.f32.mrb[0].mxu0
      %v1781 = vadd.f32 %v1504, %v1780
      %v1782 = vpop.f32.mrb[0].mxu0
      %v1783 = vpop.f32.mrb[0].mxu0
      %v1784 = vadd.f32 %v1504, %v1783
      %v1785 = vpop.f32.mrb[0].mxu0
      %1786 = vmatprep.mubr.bf16.mxu0 0
      %1787 = vmatmul.mubr.bf16.gmra.mrb[0].mxu0 %v1579
      %v1788 = vpop.f32.mrb[0].mxu0
      %v1789 = vadd.f32 %v1504, %v1788
      %v1790 = vpop.f32.mrb[0].mxu0
      %v1791 = vpop.f32.mrb[0].mxu0
      %v1792 = vadd.f32 %v1504, %v1791
      %v1793 = vpop.f32.mrb[0].mxu0
      %1794 = vmatprep.mubr.bf16.mxu0 0
      %1795 = vmatmul.mubr.bf16.gmra.mrb[0].mxu0 %v1582
      %v1796 = vpop.f32.mrb[0].mxu0
      %v1797 = vadd.f32 %v1504, %v1796
      %v1798 = vpop.f32.mrb[0].mxu0
      %v1799 = vpop.f32.mrb[0].mxu0
      %v1800 = vadd.f32 %v1504, %v1799
      %v1801 = vpop.f32.mrb[0].mxu0
      %1802 = vmatprep.mubr.bf16.mxu0 0
      %1803 = vmatmul.mubr.bf16.gmra.mrb[0].mxu0 %v1585
      %v1804 = vpop.f32.mrb[0].mxu0
      %v1805 = vadd.f32 %v1504, %v1804
      %v1806 = vpop.f32.mrb[0].mxu0
      %v1807 = vpop.f32.mrb[0].mxu0
      %v1808 = vadd.f32 %v1504, %v1807
      %v1809 = vpop.f32.mrb[0].mxu0
      %1810 = vmatprep.mubr.bf16.mxu0 0
      %1811 = vmatmul.mubr.bf16.gmra.mrb[0].mxu0 %v1588
      %v1812 = vpop.f32.mrb[0].mxu0
      %v1813 = vadd.f32 %v1504, %v1812
      %v1814 = vpop.f32.mrb[0].mxu0
      %v1815 = vpop.f32.mrb[0].mxu0
      %v1816 = vadd.f32 %v1504, %v1815
      %v1817 = vpop.f32.mrb[0].mxu0
      %1818 = vmatprep.mubr.bf16.mxu0 0
      %1819 = vmatmul.mubr.bf16.gmra.mrb[0].mxu0 %v1591
      %v1820 = vpop.f32.mrb[0].mxu0
      %v1821 = vadd.f32 %v1504, %v1820
      %v1822 = vpop.f32.mrb[0].mxu0
      %v1823 = vpop.f32.mrb[0].mxu0
      %v1824 = vadd.f32 %v1504, %v1823
      %v1825 = vpop.f32.mrb[0].mxu0
      %1826 = vmatprep.mubr.bf16.mxu0 0
      %1827 = vmatmul.mubr.bf16.gmra.mrb[0].mxu0 %v1594
      %v1828 = vpop.f32.mrb[0].mxu0
      %v1829 = vadd.f32 %v1504, %v1828
      %v1830 = vpop.f32.mrb[0].mxu0
      %v1831 = vpop.f32.mrb[0].mxu0
      %v1832 = vadd.f32 %v1504, %v1831
      %v1833 = vpop.f32.mrb[0].mxu0
      %1834 = vmatprep.mubr.bf16.mxu0 0
      %1835 = vmatmul.mubr.bf16.gmra.mrb[0].mxu0 %v1597
      %v1836 = vpop.f32.mrb[0].mxu0
      %v1837 = vadd.f32 %v1504, %v1836
      %v1838 = vpop.f32.mrb[0].mxu0
      %v1839 = vpop.f32.mrb[0].mxu0
      %v1840 = vadd.f32 %v1504, %v1839
      %v1841 = vpop.f32.mrb[0].mxu0
      %1842 = vmatprep.mubr.bf16.mxu0 0
      %1843 = vmatmul.mubr.bf16.gmra.mrb[0].mxu0 %v1600
      %v1844 = vpop.f32.mrb[0].mxu0
      %v1845 = vadd.f32 %v1504, %v1844
      %v1846 = vpop.f32.mrb[0].mxu0
      %v1847 = vpop.f32.mrb[0].mxu0
      %v1848 = vadd.f32 %v1504, %v1847
      %v1849 = vpop.f32.mrb[0].mxu0
      %1850 = vmatprep.mubr.bf16.mxu0 0
      %1851 = vmatmul.mubr.bf16.gmra.mrb[0].mxu0 %v1603
      %v1852 = vpop.f32.mrb[0].mxu0
      %v1853 = vadd.f32 %v1504, %v1852
      %v1854 = vpop.f32.mrb[0].mxu0
      %v1855 = vpop.f32.mrb[0].mxu0
      %v1856 = vadd.f32 %v1504, %v1855
      %v1857 = vpop.f32.mrb[0].mxu0
      %1858 = vmatprep.mubr.bf16.mxu0 0
      %1859 = vmatmul.mubr.bf16.gmra.mrb[0].mxu0 %v1606
      %v1860 = vpop.f32.mrb[0].mxu0
      %v1861 = vadd.f32 %v1504, %v1860
      %v1862 = vpop.f32.mrb[0].mxu0
      %v1863 = vpop.f32.mrb[0].mxu0
      %v1864 = vadd.f32 %v1504, %v1863
      %v1865 = vpop.f32.mrb[0].mxu0
      %1866 = vmatprep.mubr.bf16.mxu0 0
      %1867 = vmatmul.mubr.bf16.gmra.mrb[0].mxu0 %v1609
      %v1868 = vpop.f32.mrb[0].mxu0
      %v1869 = vadd.f32 %v1504, %v1868
      %v1870 = vpop.f32.mrb[0].mxu0
      %v1871 = vpop.f32.mrb[0].mxu0
      %v1872 = vadd.f32 %v1504, %v1871
      %v1873 = vpop.f32.mrb[0].mxu0
      %1874 = vmatprep.mubr.bf16.mxu0 0
      %1875 = vmatmul.mubr.bf16.gmra.mrb[0].mxu0 %v1612
      %v1876 = vpop.f32.mrb[0].mxu0
      %v1877 = vadd.f32 %v1504, %v1876
      %v1878 = vpop.f32.mrb[0].mxu0
      %v1879 = vpop.f32.mrb[0].mxu0
      %v1880 = vadd.f32 %v1504, %v1879
      %v1881 = vpop.f32.mrb[0].mxu0
      %1882 = vmatprep.mubr.bf16.mxu0 0
      %1883 = vmatmul.mubr.bf16.gmra.mrb[0].mxu0 %v1615
      %v1884 = vpop.f32.mrb[0].mxu0
      %v1885 = vadd.f32 %v1504, %v1884
      %v1886 = vpop.f32.mrb[0].mxu0
      %v1887 = vpop.f32.mrb[0].mxu0
      %v1888 = vadd.f32 %v1504, %v1887
      %v1889 = vpop.f32.mrb[0].mxu0
      %1890 = vmatprep.mubr.bf16.mxu0 0
      %1891 = vmatmul.mubr.bf16.gmra.mrb[0].mxu0 %v1618
      %v1892 = vpop.f32.mrb[0].mxu0
      %v1893 = vadd.f32 %v1504, %v1892
      %v1894 = vpop.f32.mrb[0].mxu0
      %v1895 = vpop.f32.mrb[0].mxu0
      %v1896 = vadd.f32 %v1504, %v1895
      %v1897 = vpop.f32.mrb[0].mxu0
      %1898 = vmatprep.mubr.bf16.mxu0 0
      %1899 = vmatmul.mubr.bf16.gmra.mrb[0].mxu0 %v1621
      %v1900 = vpop.f32.mrb[0].mxu0
      %v1901 = vadd.f32 %v1504, %v1900
      %v1902 = vpop.f32.mrb[0].mxu0
      %v1903 = vpop.f32.mrb[0].mxu0
      %v1904 = vadd.f32 %v1504, %v1903
      %v1905 = vpop.f32.mrb[0].mxu0
      %1906 = vmatprep.mubr.bf16.mxu0 0
      %1907 = vmatmul.mubr.bf16.gmra.mrb[0].mxu0 %v1624
      %v1908 = vpop.f32.mrb[0].mxu0
      %v1909 = vadd.f32 %v1504, %v1908
      %v1910 = vpop.f32.mrb[0].mxu0
      %v1911 = vpop.f32.mrb[0].mxu0
      %v1912 = vadd.f32 %v1504, %v1911
      %v1913 = vpop.f32.mrb[0].mxu0
      %1914 = vdwg.mxu0
      %v1915 = vmax.f32 %v1661, 0.0
      %v1916 = vmax.f32 %v1664, 0.0
      %v1917 = vmax.f32 %v1669, 0.0
      %v1918 = vmax.f32 %v1672, 0.0
      %v1919 = vmax.f32 %v1677, 0.0
      %v1920 = vmax.f32 %v1680, 0.0
      %v1921 = vmax.f32 %v1685, 0.0
      %v1922 = vmax.f32 %v1688, 0.0
      %v1923 = vmax.f32 %v1693, 0.0
      %v1924 = vmax.f32 %v1696, 0.0
      %v1925 = vmax.f32 %v1701, 0.0
      %v1926 = vmax.f32 %v1704, 0.0
      %v1927 = vmax.f32 %v1709, 0.0
      %v1928 = vmax.f32 %v1712, 0.0
      %v1929 = vmax.f32 %v1717, 0.0
      %v1930 = vmax.f32 %v1720, 0.0
      %v1931 = vmax.f32 %v1725, 0.0
      %v1932 = vmax.f32 %v1728, 0.0
      %v1933 = vmax.f32 %v1733, 0.0
      %v1934 = vmax.f32 %v1736, 0.0
      %v1935 = vmax.f32 %v1741, 0.0
      %v1936 = vmax.f32 %v1744, 0.0
      %v1937 = vmax.f32 %v1749, 0.0
      %v1938 = vmax.f32 %v1752, 0.0
      %v1939 = vmax.f32 %v1757, 0.0
      %v1940 = vmax.f32 %v1760, 0.0
      %v1941 = vmax.f32 %v1765, 0.0
      %v1942 = vmax.f32 %v1768, 0.0
      %v1943 = vmax.f32 %v1773, 0.0
      %v1944 = vmax.f32 %v1776, 0.0
      %v1945 = vmax.f32 %v1781, 0.0
      %v1946 = vmax.f32 %v1784, 0.0
      %v1947 = vmax.f32 %v1789, 0.0
      %v1948 = vmax.f32 %v1792, 0.0
      %v1949 = vmax.f32 %v1797, 0.0
      %v1950 = vmax.f32 %v1800, 0.0
      %v1951 = vmax.f32 %v1805, 0.0
      %v1952 = vmax.f32 %v1808, 0.0
      %v1953 = vmax.f32 %v1813, 0.0
      %v1954 = vmax.f32 %v1816, 0.0
      %v1955 = vmax.f32 %v1821, 0.0
      %v1956 = vmax.f32 %v1824, 0.0
      %v1957 = vmax.f32 %v1829, 0.0
      %v1958 = vmax.f32 %v1832, 0.0
      %v1959 = vmax.f32 %v1837, 0.0
      %v1960 = vmax.f32 %v1840, 0.0
      %v1961 = vmax.f32 %v1845, 0.0
      %v1962 = vmax.f32 %v1848, 0.0
      %v1963 = vmax.f32 %v1853, 0.0
      %v1964 = vmax.f32 %v1856, 0.0
      %v1965 = vmax.f32 %v1861, 0.0
      %v1966 = vmax.f32 %v1864, 0.0
      %v1967 = vmax.f32 %v1869, 0.0
      %v1968 = vmax.f32 %v1872, 0.0
      %v1969 = vmax.f32 %v1877, 0.0
      %v1970 = vmax.f32 %v1880, 0.0
      %v1971 = vmax.f32 %v1885, 0.0
      %v1972 = vmax.f32 %v1888, 0.0
      %v1973 = vmax.f32 %v1893, 0.0
      %v1974 = vmax.f32 %v1896, 0.0
      %v1975 = vmax.f32 %v1901, 0.0
      %v1976 = vmax.f32 %v1904, 0.0
      %v1977 = vmax.f32 %v1909, 0.0
      %v1978 = vmax.f32 %v1912, 0.0
      %v1979 = vmax.f32 %v1915, %v1916
      %v1980 = vrot.slane %v1979, 4
      %v1981 = vmax.f32 %v1979, %v1980
      %v1982 = vrot.slane %v1981, 2
      %v1983 = vmax.f32 %v1981, %v1982
      %v1984 = vrot.slane %v1983, 1
      %v1985 = vmax.f32 %v1983, %v1984
      %v1986 = vmax.f32 %v1917, %v1918
      %v1987 = vrot.slane %v1986, 4
      %v1988 = vmax.f32 %v1986, %v1987
      %v1989 = vrot.slane %v1988, 2
      %v1990 = vmax.f32 %v1988, %v1989
      %v1991 = vrot.slane %v1990, 1
      %v1992 = vmax.f32 %v1990, %v1991
      %v1993 = vmax.f32 %v1919, %v1920
      %v1994 = vrot.slane %v1993, 4
      %v1995 = vmax.f32 %v1993, %v1994
      %v1996 = vrot.slane %v1995, 2
      %v1997 = vmax.f32 %v1995, %v1996
      %v1998 = vrot.slane %v1997, 1
      %v1999 = vmax.f32 %v1997, %v1998
      %v2000 = vmax.f32 %v1921, %v1922
      %v2001 = vrot.slane %v2000, 4
      %v2002 = vmax.f32 %v2000, %v2001
      %v2003 = vrot.slane %v2002, 2
      %v2004 = vmax.f32 %v2002, %v2003
      %v2005 = vrot.slane %v2004, 1
      %v2006 = vmax.f32 %v2004, %v2005
      %v2007 = vmax.f32 %v1923, %v1924
      %v2008 = vrot.slane %v2007, 4
      %v2009 = vmax.f32 %v2007, %v2008
      %v2010 = vrot.slane %v2009, 2
      %v2011 = vmax.f32 %v2009, %v2010
      %v2012 = vrot.slane %v2011, 1
      %v2013 = vmax.f32 %v2011, %v2012
      %v2014 = vmax.f32 %v1925, %v1926
      %v2015 = vrot.slane %v2014, 4
      %v2016 = vmax.f32 %v2014, %v2015
      %v2017 = vrot.slane %v2016, 2
      %v2018 = vmax.f32 %v2016, %v2017
      %v2019 = vrot.slane %v2018, 1
      %v2020 = vmax.f32 %v2018, %v2019
      %v2021 = vmax.f32 %v1927, %v1928
      %v2022 = vrot.slane %v2021, 4
      %v2023 = vmax.f32 %v2021, %v2022
      %v2024 = vrot.slane %v2023, 2
      %v2025 = vmax.f32 %v2023, %v2024
      %v2026 = vrot.slane %v2025, 1
      %v2027 = vmax.f32 %v2025, %v2026
      %v2028 = vmax.f32 %v1929, %v1930
      %v2029 = vrot.slane %v2028, 4
      %v2030 = vmax.f32 %v2028, %v2029
      %v2031 = vrot.slane %v2030, 2
      %v2032 = vmax.f32 %v2030, %v2031
      %v2033 = vrot.slane %v2032, 1
      %v2034 = vmax.f32 %v2032, %v2033
      %v2035 = vmax.f32 %v1931, %v1932
      %v2036 = vrot.slane %v2035, 4
      %v2037 = vmax.f32 %v2035, %v2036
      %v2038 = vrot.slane %v2037, 2
      %v2039 = vmax.f32 %v2037, %v2038
      %v2040 = vrot.slane %v2039, 1
      %v2041 = vmax.f32 %v2039, %v2040
      %v2042 = vmax.f32 %v1933, %v1934
      %v2043 = vrot.slane %v2042, 4
      %v2044 = vmax.f32 %v2042, %v2043
      %v2045 = vrot.slane %v2044, 2
      %v2046 = vmax.f32 %v2044, %v2045
      %v2047 = vrot.slane %v2046, 1
      %v2048 = vmax.f32 %v2046, %v2047
      %v2049 = vmax.f32 %v1935, %v1936
      %v2050 = vrot.slane %v2049, 4
      %v2051 = vmax.f32 %v2049, %v2050
      %v2052 = vrot.slane %v2051, 2
      %v2053 = vmax.f32 %v2051, %v2052
      %v2054 = vrot.slane %v2053, 1
      %v2055 = vmax.f32 %v2053, %v2054
      %v2056 = vmax.f32 %v1937, %v1938
      %v2057 = vrot.slane %v2056, 4
      %v2058 = vmax.f32 %v2056, %v2057
      %v2059 = vrot.slane %v2058, 2
      %v2060 = vmax.f32 %v2058, %v2059
      %v2061 = vrot.slane %v2060, 1
      %v2062 = vmax.f32 %v2060, %v2061
      %v2063 = vmax.f32 %v1939, %v1940
      %v2064 = vrot.slane %v2063, 4
      %v2065 = vmax.f32 %v2063, %v2064
      %v2066 = vrot.slane %v2065, 2
      %v2067 = vmax.f32 %v2065, %v2066
      %v2068 = vrot.slane %v2067, 1
      %v2069 = vmax.f32 %v2067, %v2068
      %v2070 = vmax.f32 %v1941, %v1942
      %v2071 = vrot.slane %v2070, 4
      %v2072 = vmax.f32 %v2070, %v2071
      %v2073 = vrot.slane %v2072, 2
      %v2074 = vmax.f32 %v2072, %v2073
      %v2075 = vrot.slane %v2074, 1
      %v2076 = vmax.f32 %v2074, %v2075
      %v2077 = vmax.f32 %v1943, %v1944
      %v2078 = vrot.slane %v2077, 4
      %v2079 = vmax.f32 %v2077, %v2078
      %v2080 = vrot.slane %v2079, 2
      %v2081 = vmax.f32 %v2079, %v2080
      %v2082 = vrot.slane %v2081, 1
      %v2083 = vmax.f32 %v2081, %v2082
      %v2084 = vmax.f32 %v1945, %v1946
      %v2085 = vrot.slane %v2084, 4
      %v2086 = vmax.f32 %v2084, %v2085
      %v2087 = vrot.slane %v2086, 2
      %v2088 = vmax.f32 %v2086, %v2087
      %v2089 = vrot.slane %v2088, 1
      %v2090 = vmax.f32 %v2088, %v2089
      %v2091 = vmax.f32 %v1947, %v1948
      %v2092 = vrot.slane %v2091, 4
      %v2093 = vmax.f32 %v2091, %v2092
      %v2094 = vrot.slane %v2093, 2
      %v2095 = vmax.f32 %v2093, %v2094
      %v2096 = vrot.slane %v2095, 1
      %v2097 = vmax.f32 %v2095, %v2096
      %v2098 = vmax.f32 %v1949, %v1950
      %v2099 = vrot.slane %v2098, 4
      %v2100 = vmax.f32 %v2098, %v2099
      %v2101 = vrot.slane %v2100, 2
      %v2102 = vmax.f32 %v2100, %v2101
      %v2103 = vrot.slane %v2102, 1
      %v2104 = vmax.f32 %v2102, %v2103
      %v2105 = vmax.f32 %v1951, %v1952
      %v2106 = vrot.slane %v2105, 4
      %v2107 = vmax.f32 %v2105, %v2106
      %v2108 = vrot.slane %v2107, 2
      %v2109 = vmax.f32 %v2107, %v2108
      %v2110 = vrot.slane %v2109, 1
      %v2111 = vmax.f32 %v2109, %v2110
      %v2112 = vmax.f32 %v1953, %v1954
      %v2113 = vrot.slane %v2112, 4
      %v2114 = vmax.f32 %v2112, %v2113
      %v2115 = vrot.slane %v2114, 2
      %v2116 = vmax.f32 %v2114, %v2115
      %v2117 = vrot.slane %v2116, 1
      %v2118 = vmax.f32 %v2116, %v2117
      %v2119 = vmax.f32 %v1955, %v1956
      %v2120 = vrot.slane %v2119, 4
      %v2121 = vmax.f32 %v2119, %v2120
      %v2122 = vrot.slane %v2121, 2
      %v2123 = vmax.f32 %v2121, %v2122
      %v2124 = vrot.slane %v2123, 1
      %v2125 = vmax.f32 %v2123, %v2124
      %v2126 = vmax.f32 %v1957, %v1958
      %v2127 = vrot.slane %v2126, 4
      %v2128 = vmax.f32 %v2126, %v2127
      %v2129 = vrot.slane %v2128, 2
      %v2130 = vmax.f32 %v2128, %v2129
      %v2131 = vrot.slane %v2130, 1
      %v2132 = vmax.f32 %v2130, %v2131
      %v2133 = vmax.f32 %v1959, %v1960
      %v2134 = vrot.slane %v2133, 4
      %v2135 = vmax.f32 %v2133, %v2134
      %v2136 = vrot.slane %v2135, 2
      %v2137 = vmax.f32 %v2135, %v2136
      %v2138 = vrot.slane %v2137, 1
      %v2139 = vmax.f32 %v2137, %v2138
      %v2140 = vmax.f32 %v1961, %v1962
      %v2141 = vrot.slane %v2140, 4
      %v2142 = vmax.f32 %v2140, %v2141
      %v2143 = vrot.slane %v2142, 2
      %v2144 = vmax.f32 %v2142, %v2143
      %v2145 = vrot.slane %v2144, 1
      %v2146 = vmax.f32 %v2144, %v2145
      %v2147 = vmax.f32 %v1963, %v1964
      %v2148 = vrot.slane %v2147, 4
      %v2149 = vmax.f32 %v2147, %v2148
      %v2150 = vrot.slane %v2149, 2
      %v2151 = vmax.f32 %v2149, %v2150
      %v2152 = vrot.slane %v2151, 1
      %v2153 = vmax.f32 %v2151, %v2152
      %v2154 = vmax.f32 %v1965, %v1966
      %v2155 = vrot.slane %v2154, 4
      %v2156 = vmax.f32 %v2154, %v2155
      %v2157 = vrot.slane %v2156, 2
      %v2158 = vmax.f32 %v2156, %v2157
      %v2159 = vrot.slane %v2158, 1
      %v2160 = vmax.f32 %v2158, %v2159
      %v2161 = vmax.f32 %v1967, %v1968
      %v2162 = vrot.slane %v2161, 4
      %v2163 = vmax.f32 %v2161, %v2162
      %v2164 = vrot.slane %v2163, 2
      %v2165 = vmax.f32 %v2163, %v2164
      %v2166 = vrot.slane %v2165, 1
      %v2167 = vmax.f32 %v2165, %v2166
      %v2168 = vmax.f32 %v1969, %v1970
      %v2169 = vrot.slane %v2168, 4
      %v2170 = vmax.f32 %v2168, %v2169
      %v2171 = vrot.slane %v2170, 2
      %v2172 = vmax.f32 %v2170, %v2171
      %v2173 = vrot.slane %v2172, 1
      %v2174 = vmax.f32 %v2172, %v2173
      %v2175 = vmax.f32 %v1971, %v1972
      %v2176 = vrot.slane %v2175, 4
      %v2177 = vmax.f32 %v2175, %v2176
      %v2178 = vrot.slane %v2177, 2
      %v2179 = vmax.f32 %v2177, %v2178
      %v2180 = vrot.slane %v2179, 1
      %v2181 = vmax.f32 %v2179, %v2180
      %v2182 = vmax.f32 %v1973, %v1974
      %v2183 = vrot.slane %v2182, 4
      %v2184 = vmax.f32 %v2182, %v2183
      %v2185 = vrot.slane %v2184, 2
      %v2186 = vmax.f32 %v2184, %v2185
      %v2187 = vrot.slane %v2186, 1
      %v2188 = vmax.f32 %v2186, %v2187
      %v2189 = vmax.f32 %v1975, %v1976
      %v2190 = vrot.slane %v2189, 4
      %v2191 = vmax.f32 %v2189, %v2190
      %v2192 = vrot.slane %v2191, 2
      %v2193 = vmax.f32 %v2191, %v2192
      %v2194 = vrot.slane %v2193, 1
      %v2195 = vmax.f32 %v2193, %v2194
      %v2196 = vmax.f32 %v1977, %v1978
      %v2197 = vrot.slane %v2196, 4
      %v2198 = vmax.f32 %v2196, %v2197
      %v2199 = vrot.slane %v2198, 2
      %v2200 = vmax.f32 %v2198, %v2199
      %v2201 = vrot.slane %v2200, 1
      %v2202 = vmax.f32 %v2200, %v2201
      %v2203 = vpack.c.bf16 %v1985, %v1985
      %v2204 = vpack.c.bf16 %v1992, %v1992
      %v2205 = vpack.c.bf16 %v1999, %v1999
      %v2206 = vpack.c.bf16 %v2006, %v2006
      %v2207 = vpack.c.bf16 %v2013, %v2013
      %v2208 = vpack.c.bf16 %v2020, %v2020
      %v2209 = vpack.c.bf16 %v2027, %v2027
      %v2210 = vpack.c.bf16 %v2034, %v2034
      %v2211 = vpack.c.bf16 %v2041, %v2041
      %v2212 = vpack.c.bf16 %v2048, %v2048
      %v2213 = vpack.c.bf16 %v2055, %v2055
      %v2214 = vpack.c.bf16 %v2062, %v2062
      %v2215 = vpack.c.bf16 %v2069, %v2069
      %v2216 = vpack.c.bf16 %v2076, %v2076
      %v2217 = vpack.c.bf16 %v2083, %v2083
      %v2218 = vpack.c.bf16 %v2090, %v2090
      %v2219 = vpack.c.bf16 %v2097, %v2097
      %v2220 = vpack.c.bf16 %v2104, %v2104
      %v2221 = vpack.c.bf16 %v2111, %v2111
      %v2222 = vpack.c.bf16 %v2118, %v2118
      %v2223 = vpack.c.bf16 %v2125, %v2125
      %v2224 = vpack.c.bf16 %v2132, %v2132
      %v2225 = vpack.c.bf16 %v2139, %v2139
      %v2226 = vpack.c.bf16 %v2146, %v2146
      %v2227 = vpack.c.bf16 %v2153, %v2153
      %v2228 = vpack.c.bf16 %v2160, %v2160
      %v2229 = vpack.c.bf16 %v2167, %v2167
      %v2230 = vpack.c.bf16 %v2174, %v2174
      %v2231 = vpack.c.bf16 %v2181, %v2181
      %v2232 = vpack.c.bf16 %v2188, %v2188
      %v2233 = vpack.c.bf16 %v2195, %v2195
      %v2234 = vpack.c.bf16 %v2202, %v2202
      %v2267 = vunpack.c.l.b16 %v2203
      %v2268 = vunpack.c.l.b16 %v2204
      %v2269 = vunpack.c.l.b16 %v2205
      %v2270 = vunpack.c.l.b16 %v2206
      %v2271 = vunpack.c.l.b16 %v2207
      %v2272 = vunpack.c.l.b16 %v2208
      %v2273 = vunpack.c.l.b16 %v2209
      %v2274 = vunpack.c.l.b16 %v2210
      %v2275 = vunpack.c.l.b16 %v2211
      %v2276 = vunpack.c.l.b16 %v2212
      %v2277 = vunpack.c.l.b16 %v2213
      %v2278 = vunpack.c.l.b16 %v2214
      %v2279 = vunpack.c.l.b16 %v2215
      %v2280 = vunpack.c.l.b16 %v2216
      %v2281 = vunpack.c.l.b16 %v2217
      %v2282 = vunpack.c.l.b16 %v2218
      %v2283 = vunpack.c.l.b16 %v2219
      %v2284 = vunpack.c.l.b16 %v2220
      %v2285 = vunpack.c.l.b16 %v2221
      %v2286 = vunpack.c.l.b16 %v2222
      %v2287 = vunpack.c.l.b16 %v2223
      %v2288 = vunpack.c.l.b16 %v2224
      %v2289 = vunpack.c.l.b16 %v2225
      %v2290 = vunpack.c.l.b16 %v2226
      %v2291 = vunpack.c.l.b16 %v2227
      %v2292 = vunpack.c.l.b16 %v2228
      %v2293 = vunpack.c.l.b16 %v2229
      %v2294 = vunpack.c.l.b16 %v2230
      %v2295 = vunpack.c.l.b16 %v2231
      %v2296 = vunpack.c.l.b16 %v2232
      %v2297 = vunpack.c.l.b16 %v2233
      %v2298 = vunpack.c.l.b16 %v2234
      %v2299 = vpack.c.b16 %v2267, %v2267
      %v2300 = vpack.c.b16 %v2268, %v2268
      %v2301 = vpack.c.b16 %v2269, %v2269
      %v2302 = vpack.c.b16 %v2270, %v2270
      %v2303 = vpack.c.b16 %v2271, %v2271
      %v2304 = vpack.c.b16 %v2272, %v2272
      %v2305 = vpack.c.b16 %v2273, %v2273
      %v2306 = vpack.c.b16 %v2274, %v2274
      %v2307 = vpack.c.b16 %v2275, %v2275
      %v2308 = vpack.c.b16 %v2276, %v2276
      %v2309 = vpack.c.b16 %v2277, %v2277
      %v2310 = vpack.c.b16 %v2278, %v2278
      %v2311 = vpack.c.b16 %v2279, %v2279
      %v2312 = vpack.c.b16 %v2280, %v2280
      %v2313 = vpack.c.b16 %v2281, %v2281
      %v2314 = vpack.c.b16 %v2282, %v2282
      %v2315 = vpack.c.b16 %v2283, %v2283
      %v2316 = vpack.c.b16 %v2284, %v2284
      %v2317 = vpack.c.b16 %v2285, %v2285
      %v2318 = vpack.c.b16 %v2286, %v2286
      %v2319 = vpack.c.b16 %v2287, %v2287
      %v2320 = vpack.c.b16 %v2288, %v2288
      %v2321 = vpack.c.b16 %v2289, %v2289
      %v2322 = vpack.c.b16 %v2290, %v2290
      %v2323 = vpack.c.b16 %v2291, %v2291
      %v2324 = vpack.c.b16 %v2292, %v2292
      %v2325 = vpack.c.b16 %v2293, %v2293
      %v2326 = vpack.c.b16 %v2294, %v2294
      %v2327 = vpack.c.b16 %v2295, %v2295
      %v2328 = vpack.c.b16 %v2296, %v2296
      %v2329 = vpack.c.b16 %v2297, %v2297
      %v2330 = vpack.c.b16 %v2298, %v2298
      %v2331 = vunpack.c.l.b16 %v2299
      %v2332 = vunpack.c.l.b16 %v2300
      %v2333 = vunpack.c.l.b16 %v2301
      %v2334 = vunpack.c.l.b16 %v2302
      %v2335 = vunpack.c.l.b16 %v2303
      %v2336 = vunpack.c.l.b16 %v2304
      %v2337 = vunpack.c.l.b16 %v2305
      %v2338 = vunpack.c.l.b16 %v2306
      %v2339 = vunpack.c.l.b16 %v2307
      %v2340 = vunpack.c.l.b16 %v2308
      %v2341 = vunpack.c.l.b16 %v2309
      %v2342 = vunpack.c.l.b16 %v2310
      %v2343 = vunpack.c.l.b16 %v2311
      %v2344 = vunpack.c.l.b16 %v2312
      %v2345 = vunpack.c.l.b16 %v2313
      %v2346 = vunpack.c.l.b16 %v2314
      %v2347 = vunpack.c.l.b16 %v2315
      %v2348 = vunpack.c.l.b16 %v2316
      %v2349 = vunpack.c.l.b16 %v2317
      %v2350 = vunpack.c.l.b16 %v2318
      %v2351 = vunpack.c.l.b16 %v2319
      %v2352 = vunpack.c.l.b16 %v2320
      %v2353 = vunpack.c.l.b16 %v2321
      %v2354 = vunpack.c.l.b16 %v2322
      %v2355 = vunpack.c.l.b16 %v2323
      %v2356 = vunpack.c.l.b16 %v2324
      %v2357 = vunpack.c.l.b16 %v2325
      %v2358 = vunpack.c.l.b16 %v2326
      %v2359 = vunpack.c.l.b16 %v2327
      %v2360 = vunpack.c.l.b16 %v2328
      %v2361 = vunpack.c.l.b16 %v2329
      %v2362 = vunpack.c.l.b16 %v2330
      %vm2363 = vcmask 1041409
      %v2364 = vsel %vm2363, %v2332, %v2331
      %vm2365 = vcmask 1042434
      %v2366 = vsel %vm2365, %v2333, %v2364
      %vm2367 = vcmask 1043459
      %v2368 = vsel %vm2367, %v2334, %v2366
      %vm2369 = vcmask 1044484
      %v2370 = vsel %vm2369, %v2335, %v2368
      %vm2371 = vcmask 1045509
      %v2372 = vsel %vm2371, %v2336, %v2370
      %vm2373 = vcmask 1046534
      %v2374 = vsel %vm2373, %v2337, %v2372
      %vm2375 = vcmask 1047559
      %v2376 = vsel %vm2375, %v2338, %v2374
      %v2377 = vsel %vm2363, %v2340, %v2339
      %v2378 = vsel %vm2365, %v2341, %v2377
      %v2379 = vsel %vm2367, %v2342, %v2378
      %v2380 = vsel %vm2369, %v2343, %v2379
      %v2381 = vsel %vm2371, %v2344, %v2380
      %v2382 = vsel %vm2373, %v2345, %v2381
      %v2383 = vsel %vm2375, %v2346, %v2382
      %v2384 = vsel %vm2363, %v2348, %v2347
      %v2385 = vsel %vm2365, %v2349, %v2384
      %v2386 = vsel %vm2367, %v2350, %v2385
      %v2387 = vsel %vm2369, %v2351, %v2386
      %v2388 = vsel %vm2371, %v2352, %v2387
      %v2389 = vsel %vm2373, %v2353, %v2388
      %v2390 = vsel %vm2375, %v2354, %v2389
      %v2391 = vsel %vm2363, %v2356, %v2355
      %v2392 = vsel %vm2365, %v2357, %v2391
      %v2393 = vsel %vm2367, %v2358, %v2392
      %v2394 = vsel %vm2369, %v2359, %v2393
      %v2395 = vsel %vm2371, %v2360, %v2394
      %v2396 = vsel %vm2373, %v2361, %v2395
      %v2397 = vsel %vm2375, %v2362, %v2396
      %v2398 = vpack.c.b16 %v2376, %v2376
      %v2399 = vpack.c.b16 %v2383, %v2383
      %v2400 = vpack.c.b16 %v2390, %v2390
      %v2401 = vpack.c.b16 %v2397, %v2397
      %2406 = vst [vmem:[%s253] sm:$0xf] %v2398
      %2407 = vst [vmem:[%s253 + $0x4] sm:$0xf] %v2399
      %2408 = vst [vmem:[%s253 + $0x8] sm:$0xf] %v2400
      %2409 = vst [vmem:[%s253 + $0xc] sm:$0xf] %v2401
      %s2410 = smul.u32 4, %s17
      %p2411 = scmp.lt.s32.totalorder %s2410, 7
      %s2412 = scalar_select %p2411, %s2410, 7
      %s2413 = smul.addr %s2412, 4
      %s2414 = scalar_lea.vmem %s6, %s2413
      // Predicated region
      $region45: #{pointnet2_encoder_forward.4} parent=43 // pred_check
        %p2415 = pneg %p166
      $region46: #{pointnet2_encoder_forward.4} parent=43 // pred_check_branch
        %2417 = sbr.rel (%p2415) target = $region48
      $region47: #{pointnet2_encoder_forward.4} parent=43 // pred_region
        %s2418 = smul.u32 4, %s17
      $region48: #{pointnet2_encoder_forward.4} parent=43 // pred_fallthru
        _
    $region44: #{pointnet2_encoder_forward.4} parent=5 // pred_fallthru
      _
    %p2419 = scmp.le.s32.totalorder 2, %s12
    // Predicated region
    $region49: #{pointnet2_encoder_forward.4} parent=5 // pred_check
      %p2420 = pneg %p2419
    $region50: #{pointnet2_encoder_forward.4} parent=5 // pred_check_branch
      %2422 = sbr.rel (%p2420) target = $region52
    $region51: #{pointnet2_encoder_forward.4} parent=5 // pred_region
      %s2423 = ssub.s32 %s12, 2
      // Predicated region
      $region53: #{pointnet2_encoder_forward.4} parent=51 // pred_check
        %p2424 = pneg %p172
      $region54: #{pointnet2_encoder_forward.4} parent=51 // pred_check_branch
        %2426 = sbr.rel (%p2424) target = $region56
      $region55: #{pointnet2_encoder_forward.4} parent=51 // pred_region
        %s2427 = smul.u32 4, %s18
        %p2428 = scmp.lt.s32.totalorder %s2427, 7
        %s2429 = scalar_select %p2428, %s2427, 7
        %s2430 = smul.addr %s2429, 4
        %s2431 = scalar_lea.vmem %s6, %s2430
      $region56: #{pointnet2_encoder_forward.4} parent=51 // pred_fallthru
        _
    $region52: #{pointnet2_encoder_forward.4} parent=5 // pred_fallthru
      _
  $region6: #{pointnet2_encoder_forward.4} parent=0 // loop_footer
    %s16 = sadd.s32 1, %s12
  $region7: #{pointnet2_encoder_forward.4} parent=0 // loop_footer_branch
    %11 = sbr.rel target = $region3
  $region8: #{pointnet2_encoder_forward.4} parent=0 // loop_exit
    _

// kernel: custom-call.32
$region0: #{custom-call.32}
  %s0 = inlined_call_operand.vmem [shape: f32[2,16], index: 0, kind: output, shape index: {}]

// kernel: pointnet2_encoder_forward.5
$region0: #{pointnet2_encoder_forward.5}
  #allocation0 [shape = 'u32[]', space=smem, size = 0x4, offset = 0x4, fixed_abs, tag = 'smem constant byte address 0x4 - core index']
  #allocation1 [shape = 'u32[144,128]{1,0:T(1,128)}', space=vmem, size = 0x12000, scoped, tag = 'internal scratch']
  %s0 = inlined_call_operand.vmem [shape: bf16[256,16], index: 0, kind: input, shape index: {}]
  %s1 = inlined_call_operand.vmem [shape: bf16[256,128], index: 1, kind: input, shape index: {}]
  %s2 = inlined_call_operand.vmem [shape: bf16[16,128], index: 2, kind: input, shape index: {}]
  %s3 = inlined_call_operand.vmem [shape: bf16[128,128], index: 3, kind: input, shape index: {}]
  %s4 = inlined_call_operand.vmem [shape: bf16[128,128], index: 4, kind: input, shape index: {}]
  %s5 = inlined_call_operand.vmem [shape: f32[1,128], index: 5, kind: input, shape index: {}]
  %s6 = inlined_call_operand.vmem [shape: bf16[128,256], index: 6, kind: input, shape index: {}]
  %s7 = inlined_call_operand.vmem [shape: f32[1,256], index: 7, kind: input, shape index: {}]
  %s8 = inlined_call_operand.vmem [shape: bf16[32,256], index: 8, kind: output, shape index: {}]
  %s9 = sld [smem:[#allocation0]]
  $region65: #{pointnet2_encoder_forward.5} parent=0
    _
  %s11 = ssub.s32 1, %s9
  %s12 = scalar_select 0, %s11, %s9
  loop: start=0, step=1, limit=4
  $region2: #{pointnet2_encoder_forward.5} parent=0 // loop_pre_header
    _
  $region3: #{pointnet2_encoder_forward.5} parent=0 // loop_header
    %s14 = sphi 0, %s18
    %p15 = scmp.ge.s32.totalorder %s14, 4
    %s24 = sphi 0, %s26
    %s27 = sphi 0, %s24
    %s28 = sphi 0, %s27
    %s44 = sphi 0, %s28
    %s50 = sphi 0, %s52
    %s53 = sphi 0, %s50
    %s54 = sphi 0, %s53
    %s70 = sphi 0, %s54
    %s74 = sphi 0, %s74
    %s76 = sphi 0, %s74
    %s77 = sphi 0, %s76
    %s91 = sphi 0, %s77
    %s95 = sphi 0, %s95
    %s97 = sphi 0, %s95
    %s98 = sphi 0, %s97
    %s112 = sphi 0, %s98
    %s116 = sphi 0, %s116
    %s118 = sphi 0, %s116
    %s119 = sphi 0, %s118
    %s133 = sphi 0, %s119
    %s137 = sphi 0, %s137
    %s139 = sphi 0, %s137
    %s140 = sphi 0, %s139
    %s154 = sphi 0, %s140
    %s158 = sphi 0, %s158
    %s160 = sphi 0, %s158
    %s161 = sphi 0, %s160
    %s175 = sphi 0, %s161
    %s179 = sphi 0, %s179
    %s181 = sphi 0, %s179
    %s182 = sphi 0, %s181
    %s196 = sphi 0, %s182
    %s202 = sphi 0, %s204
    %s205 = sphi 0, %s202
    %s206 = sphi 0, %s205
    %s222 = sphi 0, %s206
  $region4: #{pointnet2_encoder_forward.5} parent=0 // loop_header_branch
    %17 = sbr.rel (%p15) target = $region8
  $region5: #{pointnet2_encoder_forward.5} parent=0 // loop_body
    %s19 = ssub.s32 %s14, 1
    %s20 = ssub.s32 %s14, 2
    %s21 = sadd.s32 %s14, 1
    %s22 = ssub.s32 %s14, %s21
    %p23 = scmp.eq.s32.totalorder %s22, 0
    %s25 = sadd.s32 %s24, 1
    %s26 = scalar_select %p23, %s24, %s25
    %p29 = pneg %p23
    %p30 = scmp.eq.s32.totalorder %s14, 1
    %p31 = por %p29, %p30
    %p32 = scmp.ne.s32.totalorder %s24, %s27
    %p33 = scmp.eq.s32.totalorder %s14, 0
    %p34 = por %p32, %p33
    %p35 = scmp.ne.s32.totalorder %s24, %s27
    %p36 = scmp.eq.s32.totalorder %s19, 1
    %p37 = por %p35, %p36
    %p38 = scmp.ne.s32.totalorder %s27, %s28
    %p39 = scmp.eq.s32.totalorder %s19, 0
    %p40 = por %p38, %p39
    %p41 = scmp.ne.s32.totalorder %s27, %s28
    %p42 = scmp.eq.s32.totalorder %s20, 1
    %p43 = por %p41, %p42
    %p45 = scmp.ne.s32.totalorder %s28, %s44
    %p46 = scmp.eq.s32.totalorder %s20, 0
    %p47 = por %p45, %p46
    %s48 = ssub.s32 %s14, %s21
    %p49 = scmp.eq.s32.totalorder %s48, 0
    %s51 = sadd.s32 %s50, 1
    %s52 = scalar_select %p49, %s50, %s51
    %p55 = pneg %p49
    %p56 = scmp.eq.s32.totalorder %s14, 1
    %p57 = por %p55, %p56
    %p58 = scmp.ne.s32.totalorder %s50, %s53
    %p59 = scmp.eq.s32.totalorder %s14, 0
    %p60 = por %p58, %p59
    %p61 = scmp.ne.s32.totalorder %s50, %s53
    %p62 = scmp.eq.s32.totalorder %s19, 1
    %p63 = por %p61, %p62
    %p64 = scmp.ne.s32.totalorder %s53, %s54
    %p65 = scmp.eq.s32.totalorder %s19, 0
    %p66 = por %p64, %p65
    %p67 = scmp.ne.s32.totalorder %s53, %s54
    %p68 = scmp.eq.s32.totalorder %s20, 1
    %p69 = por %p67, %p68
    %p71 = scmp.ne.s32.totalorder %s54, %s70
    %p72 = scmp.eq.s32.totalorder %s20, 0
    %p73 = por %p71, %p72
    %s75 = sadd.s32 %s74, 1
    %p78 = scmp.eq.s32.totalorder %s14, 1
    %p79 = scmp.ne.s32.totalorder %s74, %s76
    %p80 = scmp.eq.s32.totalorder %s14, 0
    %p81 = por %p79, %p80
    %p82 = scmp.ne.s32.totalorder %s74, %s76
    %p83 = scmp.eq.s32.totalorder %s19, 1
    %p84 = por %p82, %p83
    %p85 = scmp.ne.s32.totalorder %s76, %s77
    %p86 = scmp.eq.s32.totalorder %s19, 0
    %p87 = por %p85, %p86
    %p88 = scmp.ne.s32.totalorder %s76, %s77
    %p89 = scmp.eq.s32.totalorder %s20, 1
    %p90 = por %p88, %p89
    %p92 = scmp.ne.s32.totalorder %s77, %s91
    %p93 = scmp.eq.s32.totalorder %s20, 0
    %p94 = por %p92, %p93
    %s96 = sadd.s32 %s95, 1
    %p99 = scmp.eq.s32.totalorder %s14, 1
    %p100 = scmp.ne.s32.totalorder %s95, %s97
    %p101 = scmp.eq.s32.totalorder %s14, 0
    %p102 = por %p100, %p101
    %p103 = scmp.ne.s32.totalorder %s95, %s97
    %p104 = scmp.eq.s32.totalorder %s19, 1
    %p105 = por %p103, %p104
    %p106 = scmp.ne.s32.totalorder %s97, %s98
    %p107 = scmp.eq.s32.totalorder %s19, 0
    %p108 = por %p106, %p107
    %p109 = scmp.ne.s32.totalorder %s97, %s98
    %p110 = scmp.eq.s32.totalorder %s20, 1
    %p111 = por %p109, %p110
    %p113 = scmp.ne.s32.totalorder %s98, %s112
    %p114 = scmp.eq.s32.totalorder %s20, 0
    %p115 = por %p113, %p114
    %s117 = sadd.s32 %s116, 1
    %p120 = scmp.eq.s32.totalorder %s14, 1
    %p121 = scmp.ne.s32.totalorder %s116, %s118
    %p122 = scmp.eq.s32.totalorder %s14, 0
    %p123 = por %p121, %p122
    %p124 = scmp.ne.s32.totalorder %s116, %s118
    %p125 = scmp.eq.s32.totalorder %s19, 1
    %p126 = por %p124, %p125
    %p127 = scmp.ne.s32.totalorder %s118, %s119
    %p128 = scmp.eq.s32.totalorder %s19, 0
    %p129 = por %p127, %p128
    %p130 = scmp.ne.s32.totalorder %s118, %s119
    %p131 = scmp.eq.s32.totalorder %s20, 1
    %p132 = por %p130, %p131
    %p134 = scmp.ne.s32.totalorder %s119, %s133
    %p135 = scmp.eq.s32.totalorder %s20, 0
    %p136 = por %p134, %p135
    %s138 = sadd.s32 %s137, 1
    %p141 = scmp.eq.s32.totalorder %s14, 1
    %p142 = scmp.ne.s32.totalorder %s137, %s139
    %p143 = scmp.eq.s32.totalorder %s14, 0
    %p144 = por %p142, %p143
    %p145 = scmp.ne.s32.totalorder %s137, %s139
    %p146 = scmp.eq.s32.totalorder %s19, 1
    %p147 = por %p145, %p146
    %p148 = scmp.ne.s32.totalorder %s139, %s140
    %p149 = scmp.eq.s32.totalorder %s19, 0
    %p150 = por %p148, %p149
    %p151 = scmp.ne.s32.totalorder %s139, %s140
    %p152 = scmp.eq.s32.totalorder %s20, 1
    %p153 = por %p151, %p152
    %p155 = scmp.ne.s32.totalorder %s140, %s154
    %p156 = scmp.eq.s32.totalorder %s20, 0
    %p157 = por %p155, %p156
    %s159 = sadd.s32 %s158, 1
    %p162 = scmp.eq.s32.totalorder %s14, 1
    %p163 = scmp.ne.s32.totalorder %s158, %s160
    %p164 = scmp.eq.s32.totalorder %s14, 0
    %p165 = por %p163, %p164
    %p166 = scmp.ne.s32.totalorder %s158, %s160
    %p167 = scmp.eq.s32.totalorder %s19, 1
    %p168 = por %p166, %p167
    %p169 = scmp.ne.s32.totalorder %s160, %s161
    %p170 = scmp.eq.s32.totalorder %s19, 0
    %p171 = por %p169, %p170
    %p172 = scmp.ne.s32.totalorder %s160, %s161
    %p173 = scmp.eq.s32.totalorder %s20, 1
    %p174 = por %p172, %p173
    %p176 = scmp.ne.s32.totalorder %s161, %s175
    %p177 = scmp.eq.s32.totalorder %s20, 0
    %p178 = por %p176, %p177
    %s180 = sadd.s32 %s179, 1
    %p183 = scmp.eq.s32.totalorder %s14, 1
    %p184 = scmp.ne.s32.totalorder %s179, %s181
    %p185 = scmp.eq.s32.totalorder %s14, 0
    %p186 = por %p184, %p185
    %p187 = scmp.ne.s32.totalorder %s179, %s181
    %p188 = scmp.eq.s32.totalorder %s19, 1
    %p189 = por %p187, %p188
    %p190 = scmp.ne.s32.totalorder %s181, %s182
    %p191 = scmp.eq.s32.totalorder %s19, 0
    %p192 = por %p190, %p191
    %p193 = scmp.ne.s32.totalorder %s181, %s182
    %p194 = scmp.eq.s32.totalorder %s20, 1
    %p195 = por %p193, %p194
    %p197 = scmp.ne.s32.totalorder %s182, %s196
    %p198 = scmp.eq.s32.totalorder %s20, 0
    %p199 = por %p197, %p198
    %s200 = ssub.s32 %s14, %s21
    %p201 = scmp.eq.s32.totalorder %s200, 0
    %s203 = sadd.s32 %s202, 1
    %s204 = scalar_select %p201, %s202, %s203
    %p207 = pneg %p201
    %p208 = scmp.eq.s32.totalorder %s14, 1
    %p209 = por %p207, %p208
    %p210 = scmp.ne.s32.totalorder %s202, %s205
    %p211 = scmp.eq.s32.totalorder %s14, 0
    %p212 = por %p210, %p211
    %p213 = scmp.ne.s32.totalorder %s202, %s205
    %p214 = scmp.eq.s32.totalorder %s19, 1
    %p215 = por %p213, %p214
    %p216 = scmp.ne.s32.totalorder %s205, %s206
    %p217 = scmp.eq.s32.totalorder %s19, 0
    %p218 = por %p216, %p217
    %p219 = scmp.ne.s32.totalorder %s205, %s206
    %p220 = scmp.eq.s32.totalorder %s20, 1
    %p221 = por %p219, %p220
    %p223 = scmp.ne.s32.totalorder %s206, %s222
    %p224 = scmp.eq.s32.totalorder %s20, 0
    %p225 = por %p223, %p224
    %p226 = scmp.le.s32.totalorder 1, %s14
    %p227 = scmp.lt.s32.totalorder %s14, 3
    %p228 = pnand %p226, %p227
    %p229 = pneg %p228
    // Predicated region
    $region9: #{pointnet2_encoder_forward.5} parent=5 // pred_check
      _
    $region10: #{pointnet2_encoder_forward.5} parent=5 // pred_check_branch
      %231 = sbr.rel (%p228) target = $region12
    $region11: #{pointnet2_encoder_forward.5} parent=5 // pred_region
      %s232 = ssub.s32 %s14, 1
      // Predicated region
      $region13: #{pointnet2_encoder_forward.5} parent=11 // pred_check
        %p233 = pneg %p87
      $region14: #{pointnet2_encoder_forward.5} parent=11 // pred_check_branch
        %235 = sbr.rel (%p233) target = $region16
      $region15: #{pointnet2_encoder_forward.5} parent=11 // pred_region
        _
      $region16: #{pointnet2_encoder_forward.5} parent=11 // pred_fallthru
        _
      // Predicated region
      $region17: #{pointnet2_encoder_forward.5} parent=11 // pred_check
        %p236 = pneg %p108
      $region18: #{pointnet2_encoder_forward.5} parent=11 // pred_check_branch
        %238 = sbr.rel (%p236) target = $region20
      $region19: #{pointnet2_encoder_forward.5} parent=11 // pred_region
        _
      $region20: #{pointnet2_encoder_forward.5} parent=11 // pred_fallthru
        _
      // Predicated region
      $region21: #{pointnet2_encoder_forward.5} parent=11 // pred_check
        %p239 = pneg %p129
      $region22: #{pointnet2_encoder_forward.5} parent=11 // pred_check_branch
        %241 = sbr.rel (%p239) target = $region24
      $region23: #{pointnet2_encoder_forward.5} parent=11 // pred_region
        _
      $region24: #{pointnet2_encoder_forward.5} parent=11 // pred_fallthru
        _
      // Predicated region
      $region25: #{pointnet2_encoder_forward.5} parent=11 // pred_check
        %p242 = pneg %p150
      $region26: #{pointnet2_encoder_forward.5} parent=11 // pred_check_branch
        %244 = sbr.rel (%p242) target = $region28
      $region27: #{pointnet2_encoder_forward.5} parent=11 // pred_region
        _
      $region28: #{pointnet2_encoder_forward.5} parent=11 // pred_fallthru
        _
      // Predicated region
      $region29: #{pointnet2_encoder_forward.5} parent=11 // pred_check
        %p245 = pneg %p171
      $region30: #{pointnet2_encoder_forward.5} parent=11 // pred_check_branch
        %247 = sbr.rel (%p245) target = $region32
      $region31: #{pointnet2_encoder_forward.5} parent=11 // pred_region
        _
      $region32: #{pointnet2_encoder_forward.5} parent=11 // pred_fallthru
        _
      // Predicated region
      $region33: #{pointnet2_encoder_forward.5} parent=11 // pred_check
        %p248 = pneg %p192
      $region34: #{pointnet2_encoder_forward.5} parent=11 // pred_check_branch
        %250 = sbr.rel (%p248) target = $region36
      $region35: #{pointnet2_encoder_forward.5} parent=11 // pred_region
        _
      $region36: #{pointnet2_encoder_forward.5} parent=11 // pred_fallthru
        _
    $region12: #{pointnet2_encoder_forward.5} parent=5 // pred_fallthru
      _
    %p251 = scmp.lt.s32.totalorder %s14, 2
    // Predicated region
    $region37: #{pointnet2_encoder_forward.5} parent=5 // pred_check
      %p252 = pneg %p251
    $region38: #{pointnet2_encoder_forward.5} parent=5 // pred_check_branch
      %254 = sbr.rel (%p252) target = $region40
    $region39: #{pointnet2_encoder_forward.5} parent=5 // pred_region
      // Predicated region
      $region41: #{pointnet2_encoder_forward.5} parent=39 // pred_check
        %p255 = pneg %p34
      $region42: #{pointnet2_encoder_forward.5} parent=39 // pred_check_branch
        %257 = sbr.rel (%p255) target = $region44
      $region43: #{pointnet2_encoder_forward.5} parent=39 // pred_region
        %s258 = smul.u32 16, %s14
        %p259 = scmp.lt.s32.totalorder %s258, 31
        %s260 = scalar_select %p259, %s258, 31
        %s261 = smul.addr %s260, 4
        %s262 = scalar_lea.vmem %s0, %s261
        %s263 = smul.u32 16, %s14
      $region44: #{pointnet2_encoder_forward.5} parent=39 // pred_fallthru
        _
      // Predicated region
      $region45: #{pointnet2_encoder_forward.5} parent=39 // pred_check
        %p264 = pneg %p60
      $region46: #{pointnet2_encoder_forward.5} parent=39 // pred_check_branch
        %266 = sbr.rel (%p264) target = $region48
      $region47: #{pointnet2_encoder_forward.5} parent=39 // pred_region
        %s267 = smul.u32 16, %s14
        %p268 = scmp.lt.s32.totalorder %s267, 31
        %s269 = scalar_select %p268, %s267, 31
        %s270 = smul.addr %s269, 4
        %s271 = scalar_lea.vmem %s1, %s270
        %s272 = smul.u32 16, %s14
      $region48: #{pointnet2_encoder_forward.5} parent=39 // pred_fallthru
        _
    $region40: #{pointnet2_encoder_forward.5} parent=5 // pred_fallthru
      _
    %p273 = scmp.le.s32.totalorder 1, %s14
    %p274 = scmp.lt.s32.totalorder %s14, 3
    %p275 = pnand %p273, %p274
    %p276 = pneg %p275
    // Predicated region
    $region49: #{pointnet2_encoder_forward.5} parent=5 // pred_check
      _
    $region50: #{pointnet2_encoder_forward.5} parent=5 // pred_check_branch
      %278 = sbr.rel (%p275) target = $region52
    $region51: #{pointnet2_encoder_forward.5} parent=5 // pred_region
      %s279 = ssub.s32 %s14, 1
      %s280 = smul.u32 16, %s19
      %p281 = scmp.lt.s32.totalorder %s280, 31
      %s282 = scalar_select %p281, %s280, 31
      %s283 = smul.addr %s282, 4
      %s284 = scalar_lea.vmem %s0, %s283
      %p285 = pneg %p40
      %p286 = pneg %p37
      %s287 = smul.u32 16, %s19
      %p288 = scmp.lt.s32.totalorder %s287, 31
      %s289 = scalar_select %p288, %s287, 31
      %s290 = smul.addr %s289, 4
      %s291 = scalar_lea.vmem %s1, %s290
      %p292 = pneg %p66
      %p293 = pneg %p63
      %p294 = pneg %p87
      %p295 = pneg %p84
      %p296 = pneg %p108
      %p297 = pneg %p105
      %p298 = pneg %p129
      %p299 = pneg %p126
      %p300 = pneg %p150
      %p301 = pneg %p147
      %p302 = pneg %p171
      %p303 = pneg %p168
      %p304 = pneg %p192
      %p305 = pneg %p189
      %p306 = pneg %p218
      %p307 = pneg %p215
      %s308 = smul.u32 2, %s19
      %p309 = scmp.lt.s32.totalorder %s308, 3
      %s310 = scalar_select %p309, %s308, 3
      %s311 = smul.addr %s310, 2
      %s312 = smul.addr %s311, 4
      %s313 = scalar_lea.vmem %s8, %s312
      %s314 = smul.u32 16, %s19
      %p315 = scmp.lt.s32.totalorder %s314, 31
      %s316 = scalar_select %p315, %s314, 31
      %s317 = smul.addr %s316, 4
      %s318 = scalar_lea.vmem %s0, %s317
      %s319 = smul.u32 16, %s19
      %s320 = smul.u32 16, %s19
      %p321 = scmp.lt.s32.totalorder %s320, 31
      %s322 = scalar_select %p321, %s320, 31
      %s323 = smul.addr %s322, 4
      %s324 = scalar_lea.vmem %s1, %s323
      %s325 = smul.u32 16, %s19
      %s326 = smul.u32 2, %s19
      %p327 = scmp.lt.s32.totalorder %s326, 3
      %s328 = scalar_select %p327, %s326, 3
      %s329 = smul.addr %s328, 2
      %s330 = smul.addr %s329, 4
      %s331 = scalar_lea.vmem %s8, %s330
      %s332 = smul.u32 2, %s19
      %v334 = vld [vmem:[%s318] sm:$0xf]
      %v335 = vld [vmem:[%s318 + $0x4] sm:$0xf]
      %v336 = vld [vmem:[%s318 + $0x8] sm:$0xf]
      %v337 = vld [vmem:[%s318 + $0xc] sm:$0xf]
      %v338 = vld [vmem:[%s318 + $0x10] sm:$0xf]
      %v339 = vld [vmem:[%s318 + $0x14] sm:$0xf]
      %v340 = vld [vmem:[%s318 + $0x18] sm:$0xf]
      %v341 = vld [vmem:[%s318 + $0x1c] sm:$0xf]
      %v342 = vld [vmem:[%s318 + $0x20] sm:$0xf]
      %v343 = vld [vmem:[%s318 + $0x24] sm:$0xf]
      %v344 = vld [vmem:[%s318 + $0x28] sm:$0xf]
      %v345 = vld [vmem:[%s318 + $0x2c] sm:$0xf]
      %v346 = vld [vmem:[%s318 + $0x30] sm:$0xf]
      %v347 = vld [vmem:[%s318 + $0x34] sm:$0xf]
      %v348 = vld [vmem:[%s318 + $0x38] sm:$0xf]
      %v349 = vld [vmem:[%s318 + $0x3c] sm:$0xf]
      %v350 = vld [vmem:[%s2] sm:$0xf]
      %v351 = vld [vmem:[%s2 + $0x4] sm:$0xf]
      %v352 = vld [vmem:[%s324] sm:$0xf]
      %v353 = vld [vmem:[%s324 + $0x4] sm:$0xf]
      %v354 = vld [vmem:[%s324 + $0x8] sm:$0xf]
      %v355 = vld [vmem:[%s324 + $0xc] sm:$0xf]
      %v356 = vld [vmem:[%s324 + $0x10] sm:$0xf]
      %v357 = vld [vmem:[%s324 + $0x14] sm:$0xf]
      %v358 = vld [vmem:[%s324 + $0x18] sm:$0xf]
      %v359 = vld [vmem:[%s324 + $0x1c] sm:$0xf]
      %v360 = vld [vmem:[%s324 + $0x20] sm:$0xf]
      %v361 = vld [vmem:[%s324 + $0x24] sm:$0xf]
      %v362 = vld [vmem:[%s324 + $0x28] sm:$0xf]
      %v363 = vld [vmem:[%s324 + $0x2c] sm:$0xf]
      %v364 = vld [vmem:[%s324 + $0x30] sm:$0xf]
      %v365 = vld [vmem:[%s324 + $0x34] sm:$0xf]
      %v366 = vld [vmem:[%s324 + $0x38] sm:$0xf]
      %v367 = vld [vmem:[%s324 + $0x3c] sm:$0xf]
      %v368 = vld [vmem:[%s3] sm:$0xf]
      %v369 = vld [vmem:[%s3 + $0x4] sm:$0xf]
      %v370 = vld [vmem:[%s3 + $0x8] sm:$0xf]
      %v371 = vld [vmem:[%s3 + $0xc] sm:$0xf]
      %v372 = vld [vmem:[%s3 + $0x10] sm:$0xf]
      %v373 = vld [vmem:[%s3 + $0x14] sm:$0xf]
      %v374 = vld [vmem:[%s3 + $0x18] sm:$0xf]
      %v375 = vld [vmem:[%s3 + $0x1c] sm:$0xf]
      %v376 = vld [vmem:[%s3 + $0x20] sm:$0xf]
      %v377 = vld [vmem:[%s3 + $0x24] sm:$0xf]
      %v378 = vld [vmem:[%s3 + $0x28] sm:$0xf]
      %v379 = vld [vmem:[%s3 + $0x2c] sm:$0xf]
      %v380 = vld [vmem:[%s3 + $0x30] sm:$0xf]
      %v381 = vld [vmem:[%s3 + $0x34] sm:$0xf]
      %v382 = vld [vmem:[%s3 + $0x38] sm:$0xf]
      %v383 = vld [vmem:[%s3 + $0x3c] sm:$0xf]
      %v400 = vunpack.c.l.b16 %v352
      %v401 = vunpack.c.l.b16 %v353
      %v402 = vunpack.c.l.b16 %v354
      %v403 = vunpack.c.l.b16 %v355
      %v404 = vunpack.c.l.b16 %v356
      %v405 = vunpack.c.l.b16 %v357
      %v406 = vunpack.c.l.b16 %v358
      %v407 = vunpack.c.l.b16 %v359
      %v408 = vunpack.c.l.b16 %v360
      %v409 = vunpack.c.l.b16 %v361
      %v410 = vunpack.c.l.b16 %v362
      %v411 = vunpack.c.l.b16 %v363
      %v412 = vunpack.c.l.b16 %v364
      %v413 = vunpack.c.l.b16 %v365
      %v414 = vunpack.c.l.b16 %v366
      %v415 = vunpack.c.l.b16 %v367
      %v416 = vpack.c.b16 %v401, %v400
      %v417 = vpack.c.b16 %v403, %v402
      %v418 = vpack.c.b16 %v405, %v404
      %v419 = vpack.c.b16 %v407, %v406
      %v420 = vpack.c.b16 %v409, %v408
      %v421 = vpack.c.b16 %v411, %v410
      %v422 = vpack.c.b16 %v413, %v412
      %v423 = vpack.c.b16 %v415, %v414
      %v448 = vunpack.c.l.b16 %v368
      %v449 = vunpack.c.l.b16 %v369
      %v450 = vunpack.c.l.b16 %v370
      %v451 = vunpack.c.l.b16 %v371
      %v452 = vunpack.c.l.b16 %v372
      %v453 = vunpack.c.l.b16 %v373
      %v454 = vunpack.c.l.b16 %v374
      %v455 = vunpack.c.l.b16 %v375
      %v456 = vunpack.c.l.b16 %v376
      %v457 = vunpack.c.l.b16 %v377
      %v458 = vunpack.c.l.b16 %v378
      %v459 = vunpack.c.l.b16 %v379
      %v460 = vunpack.c.l.b16 %v380
      %v461 = vunpack.c.l.b16 %v381
      %v462 = vunpack.c.l.b16 %v382
      %v463 = vunpack.c.l.b16 %v383
      %v464 = vpack.c.b16 %v449, %v448
      %v465 = vpack.c.b16 %v451, %v450
      %v466 = vpack.c.b16 %v453, %v452
      %v467 = vpack.c.b16 %v455, %v454
      %v468 = vpack.c.b16 %v457, %v456
      %v469 = vpack.c.b16 %v459, %v458
      %v470 = vpack.c.b16 %v461, %v460
      %v471 = vpack.c.b16 %v463, %v462
      %480 = vmatprep.subr.bf16.mxu0 0
      %481 = vmatpush1.bf16.msra.mxu0 %v464
      %482 = vmatprep.subr.bf16.mxu0 0
      %483 = vmatpush1.bf16.msra.mxu0 %v465
      %484 = vmatprep.subr.bf16.mxu0 0
      %485 = vmatpush1.bf16.msra.mxu0 %v466
      %486 = vmatprep.subr.bf16.mxu0 0
      %487 = vmatpush1.bf16.msra.mxu0 %v467
      %488 = vmatprep.subr.bf16.mxu0 0
      %489 = vmatpush1.bf16.msra.mxu0 %v468
      %490 = vmatprep.subr.bf16.mxu0 0
      %491 = vmatpush1.bf16.msra.mxu0 %v469
      %492 = vmatprep.subr.bf16.mxu0 0
      %493 = vmatpush1.bf16.msra.mxu0 %v470
      %494 = vmatprep.subr.bf16.mxu0 0
      %495 = vmatpush1.bf16.msra.mxu0 %v471
      %496 = vmatprep.subr.bf16.mxu0 0
      %497 = vmatpush1.bf16.msra.mxu0 0
      %498 = vmatprep.subr.bf16.mxu0 0
      %499 = vmatpush1.bf16.msra.mxu0 0
      %500 = vmatprep.subr.bf16.mxu0 0
      %501 = vmatpush1.bf16.msra.mxu0 0
      %502 = vmatprep.subr.bf16.mxu0 0
      %503 = vmatpush1.bf16.msra.mxu0 0
      %504 = vmatprep.subr.bf16.mxu0 0
      %505 = vmatpush1.bf16.msra.mxu0 0
      %506 = vmatprep.subr.bf16.mxu0 0
      %507 = vmatpush1.bf16.msra.mxu0 0
      %508 = vmatprep.subr.bf16.mxu0 0
      %509 = vmatpush1.bf16.msra.mxu0 0
      %510 = vmatprep.subr.bf16.mxu0 0
      %511 = vmatpush1.bf16.msra.mxu0 0
      %512 = vmatprep.mubr.bf16.mxu0 0
      %513 = vmatmul.mubr.bf16.gmra.mrb[0].mxu0 %v416
      %v514 = vpop.f32.mrb[0].mxu0
      %v515 = vadd.f32 0.0, %v514
      %v516 = vpop.f32.mrb[0].mxu0
      %v517 = vpop.f32.mrb[0].mxu0
      %v518 = vadd.f32 0.0, %v517
      %v519 = vpop.f32.mrb[0].mxu0
      %520 = vmatprep.mubr.bf16.mxu0 0
      %521 = vmatmul.mubr.bf16.gmra.mrb[0].mxu0 %v417
      %v522 = vpop.f32.mrb[0].mxu0
      %v523 = vadd.f32 0.0, %v522
      %v524 = vpop.f32.mrb[0].mxu0
      %v525 = vpop.f32.mrb[0].mxu0
      %v526 = vadd.f32 0.0, %v525
      %v527 = vpop.f32.mrb[0].mxu0
      %528 = vmatprep.mubr.bf16.mxu0 0
      %529 = vmatmul.mubr.bf16.gmra.mrb[0].mxu0 %v418
      %v530 = vpop.f32.mrb[0].mxu0
      %v531 = vadd.f32 0.0, %v530
      %v532 = vpop.f32.mrb[0].mxu0
      %v533 = vpop.f32.mrb[0].mxu0
      %v534 = vadd.f32 0.0, %v533
      %v535 = vpop.f32.mrb[0].mxu0
      %536 = vmatprep.mubr.bf16.mxu0 0
      %537 = vmatmul.mubr.bf16.gmra.mrb[0].mxu0 %v419
      %v538 = vpop.f32.mrb[0].mxu0
      %v539 = vadd.f32 0.0, %v538
      %v540 = vpop.f32.mrb[0].mxu0
      %v541 = vpop.f32.mrb[0].mxu0
      %v542 = vadd.f32 0.0, %v541
      %v543 = vpop.f32.mrb[0].mxu0
      %544 = vmatprep.mubr.bf16.mxu0 0
      %545 = vmatmul.mubr.bf16.gmra.mrb[0].mxu0 %v420
      %v546 = vpop.f32.mrb[0].mxu0
      %v547 = vadd.f32 0.0, %v546
      %v548 = vpop.f32.mrb[0].mxu0
      %v549 = vpop.f32.mrb[0].mxu0
      %v550 = vadd.f32 0.0, %v549
      %v551 = vpop.f32.mrb[0].mxu0
      %552 = vmatprep.mubr.bf16.mxu0 0
      %553 = vmatmul.mubr.bf16.gmra.mrb[0].mxu0 %v421
      %v554 = vpop.f32.mrb[0].mxu0
      %v555 = vadd.f32 0.0, %v554
      %v556 = vpop.f32.mrb[0].mxu0
      %v557 = vpop.f32.mrb[0].mxu0
      %v558 = vadd.f32 0.0, %v557
      %v559 = vpop.f32.mrb[0].mxu0
      %560 = vmatprep.mubr.bf16.mxu0 0
      %561 = vmatmul.mubr.bf16.gmra.mrb[0].mxu0 %v422
      %v562 = vpop.f32.mrb[0].mxu0
      %v563 = vadd.f32 0.0, %v562
      %v564 = vpop.f32.mrb[0].mxu0
      %v565 = vpop.f32.mrb[0].mxu0
      %v566 = vadd.f32 0.0, %v565
      %v567 = vpop.f32.mrb[0].mxu0
      %568 = vmatprep.mubr.bf16.mxu0 0
      %569 = vmatmul.mubr.bf16.gmra.mrb[0].mxu0 %v423
      %v570 = vpop.f32.mrb[0].mxu0
      %v571 = vadd.f32 0.0, %v570
      %v572 = vpop.f32.mrb[0].mxu0
      %v573 = vpop.f32.mrb[0].mxu0
      %v574 = vadd.f32 0.0, %v573
      %v575 = vpop.f32.mrb[0].mxu0
      %576 = vdwg.mxu0
      %v593 = vunpack.c.l.b16 %v334
      %v594 = vunpack.c.l.b16 %v335
      %v595 = vunpack.c.l.b16 %v336
      %v596 = vunpack.c.l.b16 %v337
      %v597 = vunpack.c.l.b16 %v338
      %v598 = vunpack.c.l.b16 %v339
      %v599 = vunpack.c.l.b16 %v340
      %v600 = vunpack.c.l.b16 %v341
      %v601 = vunpack.c.l.b16 %v342
      %v602 = vunpack.c.l.b16 %v343
      %v603 = vunpack.c.l.b16 %v344
      %v604 = vunpack.c.l.b16 %v345
      %v605 = vunpack.c.l.b16 %v346
      %v606 = vunpack.c.l.b16 %v347
      %v607 = vunpack.c.l.b16 %v348
      %v608 = vunpack.c.l.b16 %v349
      %v609 = vpack.c.b16 %v594, %v593
      %v610 = vpack.c.b16 %v596, %v595
      %v611 = vpack.c.b16 %v598, %v597
      %v612 = vpack.c.b16 %v600, %v599
      %v613 = vpack.c.b16 %v602, %v601
      %v614 = vpack.c.b16 %v604, %v603
      %v615 = vpack.c.b16 %v606, %v605
      %v616 = vpack.c.b16 %v608, %v607
      %v619 = vunpack.c.l.b16 %v350
      %v620 = vunpack.c.l.b16 %v351
      %v621 = vpack.c.b16 %v620, %v619
      %vm623 = vcmask 130048
      %v625 = vsel %vm623, %v609, 0
      %v628 = vsel %vm623, %v610, 0
      %v631 = vsel %vm623, %v611, 0
      %v634 = vsel %vm623, %v612, 0
      %v637 = vsel %vm623, %v613, 0
      %v640 = vsel %vm623, %v614, 0
      %v643 = vsel %vm623, %v615, 0
      %v646 = vsel %vm623, %v616, 0
      %648 = vmatprep.subr.bf16.mxu0 0
      %649 = vmatpush1.bf16.msra.mxu0 %v621
      %650 = vmatprep.subr.bf16.mxu0 0
      %651 = vmatpush1.bf16.msra.mxu0 0
      %652 = vmatprep.subr.bf16.mxu0 0
      %653 = vmatpush1.bf16.msra.mxu0 0
      %654 = vmatprep.subr.bf16.mxu0 0
      %655 = vmatpush1.bf16.msra.mxu0 0
      %656 = vmatprep.subr.bf16.mxu0 0
      %657 = vmatpush1.bf16.msra.mxu0 0
      %658 = vmatprep.subr.bf16.mxu0 0
      %659 = vmatpush1.bf16.msra.mxu0 0
      %660 = vmatprep.subr.bf16.mxu0 0
      %661 = vmatpush1.bf16.msra.mxu0 0
      %662 = vmatprep.subr.bf16.mxu0 0
      %663 = vmatpush1.bf16.msra.mxu0 0
      %664 = vmatprep.subr.bf16.mxu0 0
      %665 = vmatpush1.bf16.msra.mxu0 0
      %666 = vmatprep.subr.bf16.mxu0 0
      %667 = vmatpush1.bf16.msra.mxu0 0
      %668 = vmatprep.subr.bf16.mxu0 0
      %669 = vmatpush1.bf16.msra.mxu0 0
      %670 = vmatprep.subr.bf16.mxu0 0
      %671 = vmatpush1.bf16.msra.mxu0 0
      %672 = vmatprep.subr.bf16.mxu0 0
      %673 = vmatpush1.bf16.msra.mxu0 0
      %674 = vmatprep.subr.bf16.mxu0 0
      %675 = vmatpush1.bf16.msra.mxu0 0
      %676 = vmatprep.subr.bf16.mxu0 0
      %677 = vmatpush1.bf16.msra.mxu0 0
      %678 = vmatprep.subr.bf16.mxu0 0
      %679 = vmatpush1.bf16.msra.mxu0 0
      %680 = vmatprep.mubr.bf16.mxu0 0
      %681 = vmatmul.mubr.bf16.gmra.mrb[0].mxu0 %v625
      %v682 = vpop.f32.mrb[0].mxu0
      %v683 = vadd.f32 %v515, %v682
      %v684 = vpop.f32.mrb[0].mxu0
      %v685 = vpop.f32.mrb[0].mxu0
      %v686 = vadd.f32 %v518, %v685
      %v687 = vpop.f32.mrb[0].mxu0
      %688 = vmatprep.mubr.bf16.mxu0 0
      %689 = vmatmul.mubr.bf16.gmra.mrb[0].mxu0 %v628
      %v690 = vpop.f32.mrb[0].mxu0
      %v691 = vadd.f32 %v523, %v690
      %v692 = vpop.f32.mrb[0].mxu0
      %v693 = vpop.f32.mrb[0].mxu0
      %v694 = vadd.f32 %v526, %v693
      %v695 = vpop.f32.mrb[0].mxu0
      %696 = vmatprep.mubr.bf16.mxu0 0
      %697 = vmatmul.mubr.bf16.gmra.mrb[0].mxu0 %v631
      %v698 = vpop.f32.mrb[0].mxu0
      %v699 = vadd.f32 %v531, %v698
      %v700 = vpop.f32.mrb[0].mxu0
      %v701 = vpop.f32.mrb[0].mxu0
      %v702 = vadd.f32 %v534, %v701
      %v703 = vpop.f32.mrb[0].mxu0
      %704 = vmatprep.mubr.bf16.mxu0 0
      %705 = vmatmul.mubr.bf16.gmra.mrb[0].mxu0 %v634
      %v706 = vpop.f32.mrb[0].mxu0
      %v707 = vadd.f32 %v539, %v706
      %v708 = vpop.f32.mrb[0].mxu0
      %v709 = vpop.f32.mrb[0].mxu0
      %v710 = vadd.f32 %v542, %v709
      %v711 = vpop.f32.mrb[0].mxu0
      %712 = vmatprep.mubr.bf16.mxu0 0
      %713 = vmatmul.mubr.bf16.gmra.mrb[0].mxu0 %v637
      %v714 = vpop.f32.mrb[0].mxu0
      %v715 = vadd.f32 %v547, %v714
      %v716 = vpop.f32.mrb[0].mxu0
      %v717 = vpop.f32.mrb[0].mxu0
      %v718 = vadd.f32 %v550, %v717
      %v719 = vpop.f32.mrb[0].mxu0
      %720 = vmatprep.mubr.bf16.mxu0 0
      %721 = vmatmul.mubr.bf16.gmra.mrb[0].mxu0 %v640
      %v722 = vpop.f32.mrb[0].mxu0
      %v723 = vadd.f32 %v555, %v722
      %v724 = vpop.f32.mrb[0].mxu0
      %v725 = vpop.f32.mrb[0].mxu0
      %v726 = vadd.f32 %v558, %v725
      %v727 = vpop.f32.mrb[0].mxu0
      %728 = vmatprep.mubr.bf16.mxu0 0
      %729 = vmatmul.mubr.bf16.gmra.mrb[0].mxu0 %v643
      %v730 = vpop.f32.mrb[0].mxu0
      %v731 = vadd.f32 %v563, %v730
      %v732 = vpop.f32.mrb[0].mxu0
      %v733 = vpop.f32.mrb[0].mxu0
      %v734 = vadd.f32 %v566, %v733
      %v735 = vpop.f32.mrb[0].mxu0
      %736 = vmatprep.mubr.bf16.mxu0 0
      %737 = vmatmul.mubr.bf16.gmra.mrb[0].mxu0 %v646
      %v738 = vpop.f32.mrb[0].mxu0
      %v739 = vadd.f32 %v571, %v738
      %v740 = vpop.f32.mrb[0].mxu0
      %v741 = vpop.f32.mrb[0].mxu0
      %v742 = vadd.f32 %v574, %v741
      %v743 = vpop.f32.mrb[0].mxu0
      %744 = vdwg.mxu0
      %v745 = vmax.f32 %v683, 0.0
      %v746 = vmax.f32 %v686, 0.0
      %v747 = vmax.f32 %v691, 0.0
      %v748 = vmax.f32 %v694, 0.0
      %v749 = vmax.f32 %v699, 0.0
      %v750 = vmax.f32 %v702, 0.0
      %v751 = vmax.f32 %v707, 0.0
      %v752 = vmax.f32 %v710, 0.0
      %v753 = vmax.f32 %v715, 0.0
      %v754 = vmax.f32 %v718, 0.0
      %v755 = vmax.f32 %v723, 0.0
      %v756 = vmax.f32 %v726, 0.0
      %v757 = vmax.f32 %v731, 0.0
      %v758 = vmax.f32 %v734, 0.0
      %v759 = vmax.f32 %v739, 0.0
      %v760 = vmax.f32 %v742, 0.0
      %v761 = vpack.c.bf16 %v746, %v745
      %v762 = vpack.c.bf16 %v748, %v747
      %v763 = vpack.c.bf16 %v750, %v749
      %v764 = vpack.c.bf16 %v752, %v751
      %v765 = vpack.c.bf16 %v754, %v753
      %v766 = vpack.c.bf16 %v756, %v755
      %v767 = vpack.c.bf16 %v758, %v757
      %v768 = vpack.c.bf16 %v760, %v759
      %v769 = vld [vmem:[%s4] sm:$0xf]
      %v770 = vld [vmem:[%s4 + $0x4] sm:$0xf]
      %v771 = vld [vmem:[%s4 + $0x8] sm:$0xf]
      %v772 = vld [vmem:[%s4 + $0xc] sm:$0xf]
      %v773 = vld [vmem:[%s4 + $0x10] sm:$0xf]
      %v774 = vld [vmem:[%s4 + $0x14] sm:$0xf]
      %v775 = vld [vmem:[%s4 + $0x18] sm:$0xf]
      %v776 = vld [vmem:[%s4 + $0x1c] sm:$0xf]
      %v777 = vld [vmem:[%s4 + $0x20] sm:$0xf]
      %v778 = vld [vmem:[%s4 + $0x24] sm:$0xf]
      %v779 = vld [vmem:[%s4 + $0x28] sm:$0xf]
      %v780 = vld [vmem:[%s4 + $0x2c] sm:$0xf]
      %v781 = vld [vmem:[%s4 + $0x30] sm:$0xf]
      %v782 = vld [vmem:[%s4 + $0x34] sm:$0xf]
      %v783 = vld [vmem:[%s4 + $0x38] sm:$0xf]
      %v784 = vld [vmem:[%s4 + $0x3c] sm:$0xf]
      %v785 = vld [vmem:[%s5] sm:$0x1]
      %v787 = vlaneseq
      %v788 = vshrl.u32 %v787, 7
      %v789 = vsub.s32 0, %v788
      %v790 = vrot.slane %v785, %v789
      %v808 = vunpack.c.l.b16 %v769
      %v809 = vunpack.c.l.b16 %v770
      %v810 = vunpack.c.l.b16 %v771
      %v811 = vunpack.c.l.b16 %v772
      %v812 = vunpack.c.l.b16 %v773
      %v813 = vunpack.c.l.b16 %v774
      %v814 = vunpack.c.l.b16 %v775
      %v815 = vunpack.c.l.b16 %v776
      %v816 = vunpack.c.l.b16 %v777
      %v817 = vunpack.c.l.b16 %v778
      %v818 = vunpack.c.l.b16 %v779
      %v819 = vunpack.c.l.b16 %v780
      %v820 = vunpack.c.l.b16 %v781
      %v821 = vunpack.c.l.b16 %v782
      %v822 = vunpack.c.l.b16 %v783
      %v823 = vunpack.c.l.b16 %v784
      %v824 = vpack.c.b16 %v809, %v808
      %v825 = vpack.c.b16 %v811, %v810
      %v826 = vpack.c.b16 %v813, %v812
      %v827 = vpack.c.b16 %v815, %v814
      %v828 = vpack.c.b16 %v817, %v816
      %v829 = vpack.c.b16 %v819, %v818
      %v830 = vpack.c.b16 %v821, %v820
      %v831 = vpack.c.b16 %v823, %v822
      %840 = vmatprep.subr.bf16.mxu0 0
      %841 = vmatpush1.bf16.msra.mxu0 %v824
      %842 = vmatprep.subr.bf16.mxu0 0
      %843 = vmatpush1.bf16.msra.mxu0 %v825
      %844 = vmatprep.subr.bf16.mxu0 0
      %845 = vmatpush1.bf16.msra.mxu0 %v826
      %846 = vmatprep.subr.bf16.mxu0 0
      %847 = vmatpush1.bf16.msra.mxu0 %v827
      %848 = vmatprep.subr.bf16.mxu0 0
      %849 = vmatpush1.bf16.msra.mxu0 %v828
      %850 = vmatprep.subr.bf16.mxu0 0
      %851 = vmatpush1.bf16.msra.mxu0 %v829
      %852 = vmatprep.subr.bf16.mxu0 0
      %853 = vmatpush1.bf16.msra.mxu0 %v830
      %854 = vmatprep.subr.bf16.mxu0 0
      %855 = vmatpush1.bf16.msra.mxu0 %v831
      %856 = vmatprep.subr.bf16.mxu0 0
      %857 = vmatpush1.bf16.msra.mxu0 0
      %858 = vmatprep.subr.bf16.mxu0 0
      %859 = vmatpush1.bf16.msra.mxu0 0
      %860 = vmatprep.subr.bf16.mxu0 0
      %861 = vmatpush1.bf16.msra.mxu0 0
      %862 = vmatprep.subr.bf16.mxu0 0
      %863 = vmatpush1.bf16.msra.mxu0 0
      %864 = vmatprep.subr.bf16.mxu0 0
      %865 = vmatpush1.bf16.msra.mxu0 0
      %866 = vmatprep.subr.bf16.mxu0 0
      %867 = vmatpush1.bf16.msra.mxu0 0
      %868 = vmatprep.subr.bf16.mxu0 0
      %869 = vmatpush1.bf16.msra.mxu0 0
      %870 = vmatprep.subr.bf16.mxu0 0
      %871 = vmatpush1.bf16.msra.mxu0 0
      %872 = vmatprep.mubr.bf16.mxu0 0
      %873 = vmatmul.mubr.bf16.gmra.mrb[0].mxu0 %v761
      %v874 = vpop.f32.mrb[0].mxu0
      %v875 = vadd.f32 %v790, %v874
      %v876 = vpop.f32.mrb[0].mxu0
      %v877 = vpop.f32.mrb[0].mxu0
      %v878 = vadd.f32 %v790, %v877
      %v879 = vpop.f32.mrb[0].mxu0
      %880 = vmatprep.mubr.bf16.mxu0 0
      %881 = vmatmul.mubr.bf16.gmra.mrb[0].mxu0 %v762
      %v882 = vpop.f32.mrb[0].mxu0
      %v883 = vadd.f32 %v790, %v882
      %v884 = vpop.f32.mrb[0].mxu0
      %v885 = vpop.f32.mrb[0].mxu0
      %v886 = vadd.f32 %v790, %v885
      %v887 = vpop.f32.mrb[0].mxu0
      %888 = vmatprep.mubr.bf16.mxu0 0
      %889 = vmatmul.mubr.bf16.gmra.mrb[0].mxu0 %v763
      %v890 = vpop.f32.mrb[0].mxu0
      %v891 = vadd.f32 %v790, %v890
      %v892 = vpop.f32.mrb[0].mxu0
      %v893 = vpop.f32.mrb[0].mxu0
      %v894 = vadd.f32 %v790, %v893
      %v895 = vpop.f32.mrb[0].mxu0
      %896 = vmatprep.mubr.bf16.mxu0 0
      %897 = vmatmul.mubr.bf16.gmra.mrb[0].mxu0 %v764
      %v898 = vpop.f32.mrb[0].mxu0
      %v899 = vadd.f32 %v790, %v898
      %v900 = vpop.f32.mrb[0].mxu0
      %v901 = vpop.f32.mrb[0].mxu0
      %v902 = vadd.f32 %v790, %v901
      %v903 = vpop.f32.mrb[0].mxu0
      %904 = vmatprep.mubr.bf16.mxu0 0
      %905 = vmatmul.mubr.bf16.gmra.mrb[0].mxu0 %v765
      %v906 = vpop.f32.mrb[0].mxu0
      %v907 = vadd.f32 %v790, %v906
      %v908 = vpop.f32.mrb[0].mxu0
      %v909 = vpop.f32.mrb[0].mxu0
      %v910 = vadd.f32 %v790, %v909
      %v911 = vpop.f32.mrb[0].mxu0
      %912 = vmatprep.mubr.bf16.mxu0 0
      %913 = vmatmul.mubr.bf16.gmra.mrb[0].mxu0 %v766
      %v914 = vpop.f32.mrb[0].mxu0
      %v915 = vadd.f32 %v790, %v914
      %v916 = vpop.f32.mrb[0].mxu0
      %v917 = vpop.f32.mrb[0].mxu0
      %v918 = vadd.f32 %v790, %v917
      %v919 = vpop.f32.mrb[0].mxu0
      %920 = vmatprep.mubr.bf16.mxu0 0
      %921 = vmatmul.mubr.bf16.gmra.mrb[0].mxu0 %v767
      %v922 = vpop.f32.mrb[0].mxu0
      %v923 = vadd.f32 %v790, %v922
      %v924 = vpop.f32.mrb[0].mxu0
      %v925 = vpop.f32.mrb[0].mxu0
      %v926 = vadd.f32 %v790, %v925
      %v927 = vpop.f32.mrb[0].mxu0
      %928 = vmatprep.mubr.bf16.mxu0 0
      %929 = vmatmul.mubr.bf16.gmra.mrb[0].mxu0 %v768
      %v930 = vpop.f32.mrb[0].mxu0
      %v931 = vadd.f32 %v790, %v930
      %v932 = vpop.f32.mrb[0].mxu0
      %v933 = vpop.f32.mrb[0].mxu0
      %v934 = vadd.f32 %v790, %v933
      %v935 = vpop.f32.mrb[0].mxu0
      %936 = vdwg.mxu0
      %v937 = vmax.f32 %v875, 0.0
      %v938 = vmax.f32 %v878, 0.0
      %v939 = vmax.f32 %v883, 0.0
      %v940 = vmax.f32 %v886, 0.0
      %v941 = vmax.f32 %v891, 0.0
      %v942 = vmax.f32 %v894, 0.0
      %v943 = vmax.f32 %v899, 0.0
      %v944 = vmax.f32 %v902, 0.0
      %v945 = vmax.f32 %v907, 0.0
      %v946 = vmax.f32 %v910, 0.0
      %v947 = vmax.f32 %v915, 0.0
      %v948 = vmax.f32 %v918, 0.0
      %v949 = vmax.f32 %v923, 0.0
      %v950 = vmax.f32 %v926, 0.0
      %v951 = vmax.f32 %v931, 0.0
      %v952 = vmax.f32 %v934, 0.0
      %v953 = vpack.c.bf16 %v938, %v937
      %v954 = vpack.c.bf16 %v940, %v939
      %v955 = vpack.c.bf16 %v942, %v941
      %v956 = vpack.c.bf16 %v944, %v943
      %v957 = vpack.c.bf16 %v946, %v945
      %v958 = vpack.c.bf16 %v948, %v947
      %v959 = vpack.c.bf16 %v950, %v949
      %v960 = vpack.c.bf16 %v952, %v951
      %v961 = vld [vmem:[%s6] sm:$0xff]
      %v962 = vld [vmem:[%s6 + $0x8] sm:$0xff]
      %v963 = vld [vmem:[%s6 + $0x10] sm:$0xff]
      %v964 = vld [vmem:[%s6 + $0x18] sm:$0xff]
      %v965 = vld [vmem:[%s6 + $0x20] sm:$0xff]
      %v966 = vld [vmem:[%s6 + $0x28] sm:$0xff]
      %v967 = vld [vmem:[%s6 + $0x30] sm:$0xff]
      %v968 = vld [vmem:[%s6 + $0x38] sm:$0xff]
      %v969 = vld [vmem:[%s6 + $0x40] sm:$0xff]
      %v970 = vld [vmem:[%s6 + $0x48] sm:$0xff]
      %v971 = vld [vmem:[%s6 + $0x50] sm:$0xff]
      %v972 = vld [vmem:[%s6 + $0x58] sm:$0xff]
      %v973 = vld [vmem:[%s6 + $0x60] sm:$0xff]
      %v974 = vld [vmem:[%s6 + $0x68] sm:$0xff]
      %v975 = vld [vmem:[%s6 + $0x70] sm:$0xff]
      %v976 = vld [vmem:[%s6 + $0x78] sm:$0xff]
      %v977 = vld [vmem:[%s7] sm:$0x3]
      %v979 = vlaneseq
      %v980 = vshrl.u32 %v979, 7
      %v981 = vsub.s32 0, %v980
      %v982 = vrot.slane %v977, %v981
      %v983 = vlaneseq
      %v984 = vshrl.u32 %v983, 7
      %v985 = vsub.s32 1, %v984
      %v986 = vrot.slane %v977, %v985
      %v1005 = vunpack.c.l.b16 %v961
      %v1006 = vunpack.c.h.b16 %v961
      %v1007 = vunpack.c.l.b16 %v962
      %v1008 = vunpack.c.h.b16 %v962
      %v1009 = vunpack.c.l.b16 %v963
      %v1010 = vunpack.c.h.b16 %v963
      %v1011 = vunpack.c.l.b16 %v964
      %v1012 = vunpack.c.h.b16 %v964
      %v1013 = vunpack.c.l.b16 %v965
      %v1014 = vunpack.c.h.b16 %v965
      %v1015 = vunpack.c.l.b16 %v966
      %v1016 = vunpack.c.h.b16 %v966
      %v1017 = vunpack.c.l.b16 %v967
      %v1018 = vunpack.c.h.b16 %v967
      %v1019 = vunpack.c.l.b16 %v968
      %v1020 = vunpack.c.h.b16 %v968
      %v1021 = vunpack.c.l.b16 %v969
      %v1022 = vunpack.c.h.b16 %v969
      %v1023 = vunpack.c.l.b16 %v970
      %v1024 = vunpack.c.h.b16 %v970
      %v1025 = vunpack.c.l.b16 %v971
      %v1026 = vunpack.c.h.b16 %v971
      %v1027 = vunpack.c.l.b16 %v972
      %v1028 = vunpack.c.h.b16 %v972
      %v1029 = vunpack.c.l.b16 %v973
      %v1030 = vunpack.c.h.b16 %v973
      %v1031 = vunpack.c.l.b16 %v974
      %v1032 = vunpack.c.h.b16 %v974
      %v1033 = vunpack.c.l.b16 %v975
      %v1034 = vunpack.c.h.b16 %v975
      %v1035 = vunpack.c.l.b16 %v976
      %v1036 = vunpack.c.h.b16 %v976
      %v1037 = vpack.c.b16 %v1007, %v1005
      %v1038 = vpack.c.b16 %v1008, %v1006
      %v1039 = vpack.c.b16 %v1011, %v1009
      %v1040 = vpack.c.b16 %v1012, %v1010
      %v1041 = vpack.c.b16 %v1015, %v1013
      %v1042 = vpack.c.b16 %v1016, %v1014
      %v1043 = vpack.c.b16 %v1019, %v1017
      %v1044 = vpack.c.b16 %v1020, %v1018
      %v1045 = vpack.c.b16 %v1023, %v1021
      %v1046 = vpack.c.b16 %v1024, %v1022
      %v1047 = vpack.c.b16 %v1027, %v1025
      %v1048 = vpack.c.b16 %v1028, %v1026
      %v1049 = vpack.c.b16 %v1031, %v1029
      %v1050 = vpack.c.b16 %v1032, %v1030
      %v1051 = vpack.c.b16 %v1035, %v1033
      %v1052 = vpack.c.b16 %v1036, %v1034
      %1069 = vmatprep.subr.bf16.mxu0 %v1038
      %1070 = vmatpush1.bf16.msra.mxu0 %v1037
      %1071 = vmatprep.subr.bf16.mxu0 %v1040
      %1072 = vmatpush1.bf16.msra.mxu0 %v1039
      %1073 = vmatprep.subr.bf16.mxu0 %v1042
      %1074 = vmatpush1.bf16.msra.mxu0 %v1041
      %1075 = vmatprep.subr.bf16.mxu0 %v1044
      %1076 = vmatpush1.bf16.msra.mxu0 %v1043
      %1077 = vmatprep.subr.bf16.mxu0 %v1046
      %1078 = vmatpush1.bf16.msra.mxu0 %v1045
      %1079 = vmatprep.subr.bf16.mxu0 %v1048
      %1080 = vmatpush1.bf16.msra.mxu0 %v1047
      %1081 = vmatprep.subr.bf16.mxu0 %v1050
      %1082 = vmatpush1.bf16.msra.mxu0 %v1049
      %1083 = vmatprep.subr.bf16.mxu0 %v1052
      %1084 = vmatpush1.bf16.msra.mxu0 %v1051
      %1085 = vmatprep.subr.bf16.mxu0 0
      %1086 = vmatpush1.bf16.msra.mxu0 0
      %1087 = vmatprep.subr.bf16.mxu0 0
      %1088 = vmatpush1.bf16.msra.mxu0 0
      %1089 = vmatprep.subr.bf16.mxu0 0
      %1090 = vmatpush1.bf16.msra.mxu0 0
      %1091 = vmatprep.subr.bf16.mxu0 0
      %1092 = vmatpush1.bf16.msra.mxu0 0
      %1093 = vmatprep.subr.bf16.mxu0 0
      %1094 = vmatpush1.bf16.msra.mxu0 0
      %1095 = vmatprep.subr.bf16.mxu0 0
      %1096 = vmatpush1.bf16.msra.mxu0 0
      %1097 = vmatprep.subr.bf16.mxu0 0
      %1098 = vmatpush1.bf16.msra.mxu0 0
      %1099 = vmatprep.subr.bf16.mxu0 0
      %1100 = vmatpush1.bf16.msra.mxu0 0
      %1101 = vmatprep.mubr.bf16.mxu0 0
      %1102 = vmatmul.mubr.bf16.gmra.mrb[0].mxu0 %v953
      %v1103 = vpop.f32.mrb[0].mxu0
      %v1104 = vadd.f32 %v982, %v1103
      %v1105 = vpop.f32.mrb[0].mxu0
      %v1106 = vadd.f32 %v986, %v1105
      %v1107 = vpop.f32.mrb[0].mxu0
      %v1108 = vadd.f32 %v982, %v1107
      %v1109 = vpop.f32.mrb[0].mxu0
      %v1110 = vadd.f32 %v986, %v1109
      %1111 = vmatprep.mubr.bf16.mxu0 0
      %1112 = vmatmul.mubr.bf16.gmra.mrb[0].mxu0 %v954
      %v1113 = vpop.f32.mrb[0].mxu0
      %v1114 = vadd.f32 %v982, %v1113
      %v1115 = vpop.f32.mrb[0].mxu0
      %v1116 = vadd.f32 %v986, %v1115
      %v1117 = vpop.f32.mrb[0].mxu0
      %v1118 = vadd.f32 %v982, %v1117
      %v1119 = vpop.f32.mrb[0].mxu0
      %v1120 = vadd.f32 %v986, %v1119
      %1121 = vmatprep.mubr.bf16.mxu0 0
      %1122 = vmatmul.mubr.bf16.gmra.mrb[0].mxu0 %v955
      %v1123 = vpop.f32.mrb[0].mxu0
      %v1124 = vadd.f32 %v982, %v1123
      %v1125 = vpop.f32.mrb[0].mxu0
      %v1126 = vadd.f32 %v986, %v1125
      %v1127 = vpop.f32.mrb[0].mxu0
      %v1128 = vadd.f32 %v982, %v1127
      %v1129 = vpop.f32.mrb[0].mxu0
      %v1130 = vadd.f32 %v986, %v1129
      %1131 = vmatprep.mubr.bf16.mxu0 0
      %1132 = vmatmul.mubr.bf16.gmra.mrb[0].mxu0 %v956
      %v1133 = vpop.f32.mrb[0].mxu0
      %v1134 = vadd.f32 %v982, %v1133
      %v1135 = vpop.f32.mrb[0].mxu0
      %v1136 = vadd.f32 %v986, %v1135
      %v1137 = vpop.f32.mrb[0].mxu0
      %v1138 = vadd.f32 %v982, %v1137
      %v1139 = vpop.f32.mrb[0].mxu0
      %v1140 = vadd.f32 %v986, %v1139
      %1141 = vmatprep.mubr.bf16.mxu0 0
      %1142 = vmatmul.mubr.bf16.gmra.mrb[0].mxu0 %v957
      %v1143 = vpop.f32.mrb[0].mxu0
      %v1144 = vadd.f32 %v982, %v1143
      %v1145 = vpop.f32.mrb[0].mxu0
      %v1146 = vadd.f32 %v986, %v1145
      %v1147 = vpop.f32.mrb[0].mxu0
      %v1148 = vadd.f32 %v982, %v1147
      %v1149 = vpop.f32.mrb[0].mxu0
      %v1150 = vadd.f32 %v986, %v1149
      %1151 = vmatprep.mubr.bf16.mxu0 0
      %1152 = vmatmul.mubr.bf16.gmra.mrb[0].mxu0 %v958
      %v1153 = vpop.f32.mrb[0].mxu0
      %v1154 = vadd.f32 %v982, %v1153
      %v1155 = vpop.f32.mrb[0].mxu0
      %v1156 = vadd.f32 %v986, %v1155
      %v1157 = vpop.f32.mrb[0].mxu0
      %v1158 = vadd.f32 %v982, %v1157
      %v1159 = vpop.f32.mrb[0].mxu0
      %v1160 = vadd.f32 %v986, %v1159
      %1161 = vmatprep.mubr.bf16.mxu0 0
      %1162 = vmatmul.mubr.bf16.gmra.mrb[0].mxu0 %v959
      %v1163 = vpop.f32.mrb[0].mxu0
      %v1164 = vadd.f32 %v982, %v1163
      %v1165 = vpop.f32.mrb[0].mxu0
      %v1166 = vadd.f32 %v986, %v1165
      %v1167 = vpop.f32.mrb[0].mxu0
      %v1168 = vadd.f32 %v982, %v1167
      %v1169 = vpop.f32.mrb[0].mxu0
      %v1170 = vadd.f32 %v986, %v1169
      %1171 = vmatprep.mubr.bf16.mxu0 0
      %1172 = vmatmul.mubr.bf16.gmra.mrb[0].mxu0 %v960
      %v1173 = vpop.f32.mrb[0].mxu0
      %v1174 = vadd.f32 %v982, %v1173
      %v1175 = vpop.f32.mrb[0].mxu0
      %v1176 = vadd.f32 %v986, %v1175
      %v1177 = vpop.f32.mrb[0].mxu0
      %v1178 = vadd.f32 %v982, %v1177
      %v1179 = vpop.f32.mrb[0].mxu0
      %v1180 = vadd.f32 %v986, %v1179
      %1181 = vdwg.mxu0
      %v1182 = vmax.f32 %v1104, 0.0
      %v1183 = vmax.f32 %v1106, 0.0
      %v1184 = vmax.f32 %v1108, 0.0
      %v1185 = vmax.f32 %v1110, 0.0
      %v1186 = vmax.f32 %v1114, 0.0
      %v1187 = vmax.f32 %v1116, 0.0
      %v1188 = vmax.f32 %v1118, 0.0
      %v1189 = vmax.f32 %v1120, 0.0
      %v1190 = vmax.f32 %v1124, 0.0
      %v1191 = vmax.f32 %v1126, 0.0
      %v1192 = vmax.f32 %v1128, 0.0
      %v1193 = vmax.f32 %v1130, 0.0
      %v1194 = vmax.f32 %v1134, 0.0
      %v1195 = vmax.f32 %v1136, 0.0
      %v1196 = vmax.f32 %v1138, 0.0
      %v1197 = vmax.f32 %v1140, 0.0
      %v1198 = vmax.f32 %v1144, 0.0
      %v1199 = vmax.f32 %v1146, 0.0
      %v1200 = vmax.f32 %v1148, 0.0
      %v1201 = vmax.f32 %v1150, 0.0
      %v1202 = vmax.f32 %v1154, 0.0
      %v1203 = vmax.f32 %v1156, 0.0
      %v1204 = vmax.f32 %v1158, 0.0
      %v1205 = vmax.f32 %v1160, 0.0
      %v1206 = vmax.f32 %v1164, 0.0
      %v1207 = vmax.f32 %v1166, 0.0
      %v1208 = vmax.f32 %v1168, 0.0
      %v1209 = vmax.f32 %v1170, 0.0
      %v1210 = vmax.f32 %v1174, 0.0
      %v1211 = vmax.f32 %v1176, 0.0
      %v1212 = vmax.f32 %v1178, 0.0
      %v1213 = vmax.f32 %v1180, 0.0
      %v1214 = vrot.slane %v1182, 4
      %v1215 = vmax.f32 %v1182, %v1214
      %v1216 = vrot.slane %v1215, 2
      %v1217 = vmax.f32 %v1215, %v1216
      %v1218 = vrot.slane %v1217, 1
      %v1219 = vmax.f32 %v1217, %v1218
      %v1220 = vrot.slane %v1183, 4
      %v1221 = vmax.f32 %v1183, %v1220
      %v1222 = vrot.slane %v1221, 2
      %v1223 = vmax.f32 %v1221, %v1222
      %v1224 = vrot.slane %v1223, 1
      %v1225 = vmax.f32 %v1223, %v1224
      %v1226 = vrot.slane %v1184, 4
      %v1227 = vmax.f32 %v1184, %v1226
      %v1228 = vrot.slane %v1227, 2
      %v1229 = vmax.f32 %v1227, %v1228
      %v1230 = vrot.slane %v1229, 1
      %v1231 = vmax.f32 %v1229, %v1230
      %v1232 = vrot.slane %v1185, 4
      %v1233 = vmax.f32 %v1185, %v1232
      %v1234 = vrot.slane %v1233, 2
      %v1235 = vmax.f32 %v1233, %v1234
      %v1236 = vrot.slane %v1235, 1
      %v1237 = vmax.f32 %v1235, %v1236
      %v1238 = vrot.slane %v1186, 4
      %v1239 = vmax.f32 %v1186, %v1238
      %v1240 = vrot.slane %v1239, 2
      %v1241 = vmax.f32 %v1239, %v1240
      %v1242 = vrot.slane %v1241, 1
      %v1243 = vmax.f32 %v1241, %v1242
      %v1244 = vrot.slane %v1187, 4
      %v1245 = vmax.f32 %v1187, %v1244
      %v1246 = vrot.slane %v1245, 2
      %v1247 = vmax.f32 %v1245, %v1246
      %v1248 = vrot.slane %v1247, 1
      %v1249 = vmax.f32 %v1247, %v1248
      %v1250 = vrot.slane %v1188, 4
      %v1251 = vmax.f32 %v1188, %v1250
      %v1252 = vrot.slane %v1251, 2
      %v1253 = vmax.f32 %v1251, %v1252
      %v1254 = vrot.slane %v1253, 1
      %v1255 = vmax.f32 %v1253, %v1254
      %v1256 = vrot.slane %v1189, 4
      %v1257 = vmax.f32 %v1189, %v1256
      %v1258 = vrot.slane %v1257, 2
      %v1259 = vmax.f32 %v1257, %v1258
      %v1260 = vrot.slane %v1259, 1
      %v1261 = vmax.f32 %v1259, %v1260
      %v1262 = vrot.slane %v1190, 4
      %v1263 = vmax.f32 %v1190, %v1262
      %v1264 = vrot.slane %v1263, 2
      %v1265 = vmax.f32 %v1263, %v1264
      %v1266 = vrot.slane %v1265, 1
      %v1267 = vmax.f32 %v1265, %v1266
      %v1268 = vrot.slane %v1191, 4
      %v1269 = vmax.f32 %v1191, %v1268
      %v1270 = vrot.slane %v1269, 2
      %v1271 = vmax.f32 %v1269, %v1270
      %v1272 = vrot.slane %v1271, 1
      %v1273 = vmax.f32 %v1271, %v1272
      %v1274 = vrot.slane %v1192, 4
      %v1275 = vmax.f32 %v1192, %v1274
      %v1276 = vrot.slane %v1275, 2
      %v1277 = vmax.f32 %v1275, %v1276
      %v1278 = vrot.slane %v1277, 1
      %v1279 = vmax.f32 %v1277, %v1278
      %v1280 = vrot.slane %v1193, 4
      %v1281 = vmax.f32 %v1193, %v1280
      %v1282 = vrot.slane %v1281, 2
      %v1283 = vmax.f32 %v1281, %v1282
      %v1284 = vrot.slane %v1283, 1
      %v1285 = vmax.f32 %v1283, %v1284
      %v1286 = vrot.slane %v1194, 4
      %v1287 = vmax.f32 %v1194, %v1286
      %v1288 = vrot.slane %v1287, 2
      %v1289 = vmax.f32 %v1287, %v1288
      %v1290 = vrot.slane %v1289, 1
      %v1291 = vmax.f32 %v1289, %v1290
      %v1292 = vrot.slane %v1195, 4
      %v1293 = vmax.f32 %v1195, %v1292
      %v1294 = vrot.slane %v1293, 2
      %v1295 = vmax.f32 %v1293, %v1294
      %v1296 = vrot.slane %v1295, 1
      %v1297 = vmax.f32 %v1295, %v1296
      %v1298 = vrot.slane %v1196, 4
      %v1299 = vmax.f32 %v1196, %v1298
      %v1300 = vrot.slane %v1299, 2
      %v1301 = vmax.f32 %v1299, %v1300
      %v1302 = vrot.slane %v1301, 1
      %v1303 = vmax.f32 %v1301, %v1302
      %v1304 = vrot.slane %v1197, 4
      %v1305 = vmax.f32 %v1197, %v1304
      %v1306 = vrot.slane %v1305, 2
      %v1307 = vmax.f32 %v1305, %v1306
      %v1308 = vrot.slane %v1307, 1
      %v1309 = vmax.f32 %v1307, %v1308
      %v1310 = vrot.slane %v1198, 4
      %v1311 = vmax.f32 %v1198, %v1310
      %v1312 = vrot.slane %v1311, 2
      %v1313 = vmax.f32 %v1311, %v1312
      %v1314 = vrot.slane %v1313, 1
      %v1315 = vmax.f32 %v1313, %v1314
      %v1316 = vrot.slane %v1199, 4
      %v1317 = vmax.f32 %v1199, %v1316
      %v1318 = vrot.slane %v1317, 2
      %v1319 = vmax.f32 %v1317, %v1318
      %v1320 = vrot.slane %v1319, 1
      %v1321 = vmax.f32 %v1319, %v1320
      %v1322 = vrot.slane %v1200, 4
      %v1323 = vmax.f32 %v1200, %v1322
      %v1324 = vrot.slane %v1323, 2
      %v1325 = vmax.f32 %v1323, %v1324
      %v1326 = vrot.slane %v1325, 1
      %v1327 = vmax.f32 %v1325, %v1326
      %v1328 = vrot.slane %v1201, 4
      %v1329 = vmax.f32 %v1201, %v1328
      %v1330 = vrot.slane %v1329, 2
      %v1331 = vmax.f32 %v1329, %v1330
      %v1332 = vrot.slane %v1331, 1
      %v1333 = vmax.f32 %v1331, %v1332
      %v1334 = vrot.slane %v1202, 4
      %v1335 = vmax.f32 %v1202, %v1334
      %v1336 = vrot.slane %v1335, 2
      %v1337 = vmax.f32 %v1335, %v1336
      %v1338 = vrot.slane %v1337, 1
      %v1339 = vmax.f32 %v1337, %v1338
      %v1340 = vrot.slane %v1203, 4
      %v1341 = vmax.f32 %v1203, %v1340
      %v1342 = vrot.slane %v1341, 2
      %v1343 = vmax.f32 %v1341, %v1342
      %v1344 = vrot.slane %v1343, 1
      %v1345 = vmax.f32 %v1343, %v1344
      %v1346 = vrot.slane %v1204, 4
      %v1347 = vmax.f32 %v1204, %v1346
      %v1348 = vrot.slane %v1347, 2
      %v1349 = vmax.f32 %v1347, %v1348
      %v1350 = vrot.slane %v1349, 1
      %v1351 = vmax.f32 %v1349, %v1350
      %v1352 = vrot.slane %v1205, 4
      %v1353 = vmax.f32 %v1205, %v1352
      %v1354 = vrot.slane %v1353, 2
      %v1355 = vmax.f32 %v1353, %v1354
      %v1356 = vrot.slane %v1355, 1
      %v1357 = vmax.f32 %v1355, %v1356
      %v1358 = vrot.slane %v1206, 4
      %v1359 = vmax.f32 %v1206, %v1358
      %v1360 = vrot.slane %v1359, 2
      %v1361 = vmax.f32 %v1359, %v1360
      %v1362 = vrot.slane %v1361, 1
      %v1363 = vmax.f32 %v1361, %v1362
      %v1364 = vrot.slane %v1207, 4
      %v1365 = vmax.f32 %v1207, %v1364
      %v1366 = vrot.slane %v1365, 2
      %v1367 = vmax.f32 %v1365, %v1366
      %v1368 = vrot.slane %v1367, 1
      %v1369 = vmax.f32 %v1367, %v1368
      %v1370 = vrot.slane %v1208, 4
      %v1371 = vmax.f32 %v1208, %v1370
      %v1372 = vrot.slane %v1371, 2
      %v1373 = vmax.f32 %v1371, %v1372
      %v1374 = vrot.slane %v1373, 1
      %v1375 = vmax.f32 %v1373, %v1374
      %v1376 = vrot.slane %v1209, 4
      %v1377 = vmax.f32 %v1209, %v1376
      %v1378 = vrot.slane %v1377, 2
      %v1379 = vmax.f32 %v1377, %v1378
      %v1380 = vrot.slane %v1379, 1
      %v1381 = vmax.f32 %v1379, %v1380
      %v1382 = vrot.slane %v1210, 4
      %v1383 = vmax.f32 %v1210, %v1382
      %v1384 = vrot.slane %v1383, 2
      %v1385 = vmax.f32 %v1383, %v1384
      %v1386 = vrot.slane %v1385, 1
      %v1387 = vmax.f32 %v1385, %v1386
      %v1388 = vrot.slane %v1211, 4
      %v1389 = vmax.f32 %v1211, %v1388
      %v1390 = vrot.slane %v1389, 2
      %v1391 = vmax.f32 %v1389, %v1390
      %v1392 = vrot.slane %v1391, 1
      %v1393 = vmax.f32 %v1391, %v1392
      %v1394 = vrot.slane %v1212, 4
      %v1395 = vmax.f32 %v1212, %v1394
      %v1396 = vrot.slane %v1395, 2
      %v1397 = vmax.f32 %v1395, %v1396
      %v1398 = vrot.slane %v1397, 1
      %v1399 = vmax.f32 %v1397, %v1398
      %v1400 = vrot.slane %v1213, 4
      %v1401 = vmax.f32 %v1213, %v1400
      %v1402 = vrot.slane %v1401, 2
      %v1403 = vmax.f32 %v1401, %v1402
      %v1404 = vrot.slane %v1403, 1
      %v1405 = vmax.f32 %v1403, %v1404
      %v1406 = vpack.c.bf16 %v1219, %v1219
      %v1407 = vpack.c.bf16 %v1225, %v1225
      %v1408 = vpack.c.bf16 %v1231, %v1231
      %v1409 = vpack.c.bf16 %v1237, %v1237
      %v1410 = vpack.c.bf16 %v1243, %v1243
      %v1411 = vpack.c.bf16 %v1249, %v1249
      %v1412 = vpack.c.bf16 %v1255, %v1255
      %v1413 = vpack.c.bf16 %v1261, %v1261
      %v1414 = vpack.c.bf16 %v1267, %v1267
      %v1415 = vpack.c.bf16 %v1273, %v1273
      %v1416 = vpack.c.bf16 %v1279, %v1279
      %v1417 = vpack.c.bf16 %v1285, %v1285
      %v1418 = vpack.c.bf16 %v1291, %v1291
      %v1419 = vpack.c.bf16 %v1297, %v1297
      %v1420 = vpack.c.bf16 %v1303, %v1303
      %v1421 = vpack.c.bf16 %v1309, %v1309
      %v1422 = vpack.c.bf16 %v1315, %v1315
      %v1423 = vpack.c.bf16 %v1321, %v1321
      %v1424 = vpack.c.bf16 %v1327, %v1327
      %v1425 = vpack.c.bf16 %v1333, %v1333
      %v1426 = vpack.c.bf16 %v1339, %v1339
      %v1427 = vpack.c.bf16 %v1345, %v1345
      %v1428 = vpack.c.bf16 %v1351, %v1351
      %v1429 = vpack.c.bf16 %v1357, %v1357
      %v1430 = vpack.c.bf16 %v1363, %v1363
      %v1431 = vpack.c.bf16 %v1369, %v1369
      %v1432 = vpack.c.bf16 %v1375, %v1375
      %v1433 = vpack.c.bf16 %v1381, %v1381
      %v1434 = vpack.c.bf16 %v1387, %v1387
      %v1435 = vpack.c.bf16 %v1393, %v1393
      %v1436 = vpack.c.bf16 %v1399, %v1399
      %v1437 = vpack.c.bf16 %v1405, %v1405
      %v1470 = vunpack.c.l.b16 %v1406
      %v1471 = vunpack.c.l.b16 %v1407
      %v1472 = vunpack.c.l.b16 %v1408
      %v1473 = vunpack.c.l.b16 %v1409
      %v1474 = vunpack.c.l.b16 %v1410
      %v1475 = vunpack.c.l.b16 %v1411
      %v1476 = vunpack.c.l.b16 %v1412
      %v1477 = vunpack.c.l.b16 %v1413
      %v1478 = vunpack.c.l.b16 %v1414
      %v1479 = vunpack.c.l.b16 %v1415
      %v1480 = vunpack.c.l.b16 %v1416
      %v1481 = vunpack.c.l.b16 %v1417
      %v1482 = vunpack.c.l.b16 %v1418
      %v1483 = vunpack.c.l.b16 %v1419
      %v1484 = vunpack.c.l.b16 %v1420
      %v1485 = vunpack.c.l.b16 %v1421
      %v1486 = vunpack.c.l.b16 %v1422
      %v1487 = vunpack.c.l.b16 %v1423
      %v1488 = vunpack.c.l.b16 %v1424
      %v1489 = vunpack.c.l.b16 %v1425
      %v1490 = vunpack.c.l.b16 %v1426
      %v1491 = vunpack.c.l.b16 %v1427
      %v1492 = vunpack.c.l.b16 %v1428
      %v1493 = vunpack.c.l.b16 %v1429
      %v1494 = vunpack.c.l.b16 %v1430
      %v1495 = vunpack.c.l.b16 %v1431
      %v1496 = vunpack.c.l.b16 %v1432
      %v1497 = vunpack.c.l.b16 %v1433
      %v1498 = vunpack.c.l.b16 %v1434
      %v1499 = vunpack.c.l.b16 %v1435
      %v1500 = vunpack.c.l.b16 %v1436
      %v1501 = vunpack.c.l.b16 %v1437
      %v1502 = vpack.c.b16 %v1471, %v1470
      %v1503 = vpack.c.b16 %v1473, %v1472
      %v1504 = vpack.c.b16 %v1475, %v1474
      %v1505 = vpack.c.b16 %v1477, %v1476
      %v1506 = vpack.c.b16 %v1479, %v1478
      %v1507 = vpack.c.b16 %v1481, %v1480
      %v1508 = vpack.c.b16 %v1483, %v1482
      %v1509 = vpack.c.b16 %v1485, %v1484
      %v1510 = vpack.c.b16 %v1487, %v1486
      %v1511 = vpack.c.b16 %v1489, %v1488
      %v1512 = vpack.c.b16 %v1491, %v1490
      %v1513 = vpack.c.b16 %v1493, %v1492
      %v1514 = vpack.c.b16 %v1495, %v1494
      %v1515 = vpack.c.b16 %v1497, %v1496
      %v1516 = vpack.c.b16 %v1499, %v1498
      %v1517 = vpack.c.b16 %v1501, %v1500
      %v1518 = vunpack.c.l.b16 %v1502
      %v1519 = vunpack.c.h.b16 %v1502
      %v1520 = vunpack.c.l.b16 %v1503
      %v1521 = vunpack.c.h.b16 %v1503
      %v1522 = vunpack.c.l.b16 %v1504
      %v1523 = vunpack.c.h.b16 %v1504
      %v1524 = vunpack.c.l.b16 %v1505
      %v1525 = vunpack.c.h.b16 %v1505
      %v1526 = vunpack.c.l.b16 %v1506
      %v1527 = vunpack.c.h.b16 %v1506
      %v1528 = vunpack.c.l.b16 %v1507
      %v1529 = vunpack.c.h.b16 %v1507
      %v1530 = vunpack.c.l.b16 %v1508
      %v1531 = vunpack.c.h.b16 %v1508
      %v1532 = vunpack.c.l.b16 %v1509
      %v1533 = vunpack.c.h.b16 %v1509
      %v1534 = vunpack.c.l.b16 %v1510
      %v1535 = vunpack.c.h.b16 %v1510
      %v1536 = vunpack.c.l.b16 %v1511
      %v1537 = vunpack.c.h.b16 %v1511
      %v1538 = vunpack.c.l.b16 %v1512
      %v1539 = vunpack.c.h.b16 %v1512
      %v1540 = vunpack.c.l.b16 %v1513
      %v1541 = vunpack.c.h.b16 %v1513
      %v1542 = vunpack.c.l.b16 %v1514
      %v1543 = vunpack.c.h.b16 %v1514
      %v1544 = vunpack.c.l.b16 %v1515
      %v1545 = vunpack.c.h.b16 %v1515
      %v1546 = vunpack.c.l.b16 %v1516
      %v1547 = vunpack.c.h.b16 %v1516
      %v1548 = vunpack.c.l.b16 %v1517
      %v1549 = vunpack.c.h.b16 %v1517
      %vm1550 = vcmask 1041409
      %v1551 = vsel %vm1550, %v1520, %v1518
      %vm1552 = vcmask 1042434
      %v1553 = vsel %vm1552, %v1522, %v1551
      %vm1554 = vcmask 1043459
      %v1555 = vsel %vm1554, %v1524, %v1553
      %vm1556 = vcmask 1044484
      %v1557 = vsel %vm1556, %v1526, %v1555
      %vm1558 = vcmask 1045509
      %v1559 = vsel %vm1558, %v1528, %v1557
      %vm1560 = vcmask 1046534
      %v1561 = vsel %vm1560, %v1530, %v1559
      %vm1562 = vcmask 1047559
      %v1563 = vsel %vm1562, %v1532, %v1561
      %v1564 = vsel %vm1550, %v1521, %v1519
      %v1565 = vsel %vm1552, %v1523, %v1564
      %v1566 = vsel %vm1554, %v1525, %v1565
      %v1567 = vsel %vm1556, %v1527, %v1566
      %v1568 = vsel %vm1558, %v1529, %v1567
      %v1569 = vsel %vm1560, %v1531, %v1568
      %v1570 = vsel %vm1562, %v1533, %v1569
      %v1571 = vsel %vm1550, %v1536, %v1534
      %v1572 = vsel %vm1552, %v1538, %v1571
      %v1573 = vsel %vm1554, %v1540, %v1572
      %v1574 = vsel %vm1556, %v1542, %v1573
      %v1575 = vsel %vm1558, %v1544, %v1574
      %v1576 = vsel %vm1560, %v1546, %v1575
      %v1577 = vsel %vm1562, %v1548, %v1576
      %v1578 = vsel %vm1550, %v1537, %v1535
      %v1579 = vsel %vm1552, %v1539, %v1578
      %v1580 = vsel %vm1554, %v1541, %v1579
      %v1581 = vsel %vm1556, %v1543, %v1580
      %v1582 = vsel %vm1558, %v1545, %v1581
      %v1583 = vsel %vm1560, %v1547, %v1582
      %v1584 = vsel %vm1562, %v1549, %v1583
      %v1585 = vpack.c.b16 %v1570, %v1563
      %v1586 = vpack.c.b16 %v1584, %v1577
      %1589 = vst [vmem:[%s331] sm:$0xff] %v1585
      %1590 = vst [vmem:[%s331 + $0x8] sm:$0xff] %v1586
      %s1591 = smul.u32 2, %s19
      %p1592 = scmp.lt.s32.totalorder %s1591, 3
      %s1593 = scalar_select %p1592, %s1591, 3
      %s1594 = smul.addr %s1593, 2
      %s1595 = smul.addr %s1594, 4
      %s1596 = scalar_lea.vmem %s8, %s1595
      // Predicated region
      $region53: #{pointnet2_encoder_forward.5} parent=51 // pred_check
        %p1597 = pneg %p215
      $region54: #{pointnet2_encoder_forward.5} parent=51 // pred_check_branch
        %1599 = sbr.rel (%p1597) target = $region56
      $region55: #{pointnet2_encoder_forward.5} parent=51 // pred_region
        %s1600 = smul.u32 2, %s19
      $region56: #{pointnet2_encoder_forward.5} parent=51 // pred_fallthru
        _
    $region52: #{pointnet2_encoder_forward.5} parent=5 // pred_fallthru
      _
    %p1601 = scmp.le.s32.totalorder 2, %s14
    // Predicated region
    $region57: #{pointnet2_encoder_forward.5} parent=5 // pred_check
      %p1602 = pneg %p1601
    $region58: #{pointnet2_encoder_forward.5} parent=5 // pred_check_branch
      %1604 = sbr.rel (%p1602) target = $region60
    $region59: #{pointnet2_encoder_forward.5} parent=5 // pred_region
      %s1605 = ssub.s32 %s14, 2
      // Predicated region
      $region61: #{pointnet2_encoder_forward.5} parent=59 // pred_check
        %p1606 = pneg %p221
      $region62: #{pointnet2_encoder_forward.5} parent=59 // pred_check_branch
        %1608 = sbr.rel (%p1606) target = $region64
      $region63: #{pointnet2_encoder_forward.5} parent=59 // pred_region
        %s1609 = smul.u32 2, %s20
        %p1610 = scmp.lt.s32.totalorder %s1609, 3
        %s1611 = scalar_select %p1610, %s1609, 3
        %s1612 = smul.addr %s1611, 2
        %s1613 = smul.addr %s1612, 4
        %s1614 = scalar_lea.vmem %s8, %s1613
      $region64: #{pointnet2_encoder_forward.5} parent=59 // pred_fallthru
        _
    $region60: #{pointnet2_encoder_forward.5} parent=5 // pred_fallthru
      _
  $region6: #{pointnet2_encoder_forward.5} parent=0 // loop_footer
    %s18 = sadd.s32 1, %s14
  $region7: #{pointnet2_encoder_forward.5} parent=0 // loop_footer_branch
    %13 = sbr.rel target = $region3
  $region8: #{pointnet2_encoder_forward.5} parent=0 // loop_exit
    _

// kernel: custom-call.33
$region0: #{custom-call.33}
  %s0 = inlined_call_operand.vmem [shape: f32[2,8], index: 0, kind: output, shape index: {}]

// kernel: pointnet2_encoder_forward.6
$region0: #{pointnet2_encoder_forward.6}
  #allocation0 [shape = 'u32[]', space=smem, size = 0x4, offset = 0x4, fixed_abs, tag = 'smem constant byte address 0x4 - core index']
  #allocation1 [shape = 'u32[144,128]{1,0:T(1,128)}', space=vmem, size = 0x12000, scoped, tag = 'internal scratch']
  %s0 = inlined_call_operand.vmem [shape: bf16[128,16], index: 0, kind: input, shape index: {}]
  %s1 = inlined_call_operand.vmem [shape: bf16[128,256], index: 1, kind: input, shape index: {}]
  %s2 = inlined_call_operand.vmem [shape: bf16[16,256], index: 2, kind: input, shape index: {}]
  %s3 = inlined_call_operand.vmem [shape: bf16[256,256], index: 3, kind: input, shape index: {}]
  %s4 = inlined_call_operand.vmem [shape: bf16[256,256], index: 4, kind: input, shape index: {}]
  %s5 = inlined_call_operand.vmem [shape: f32[1,256], index: 5, kind: input, shape index: {}]
  %s6 = inlined_call_operand.vmem [shape: bf16[256,512], index: 6, kind: input, shape index: {}]
  %s7 = inlined_call_operand.vmem [shape: f32[1,512], index: 7, kind: input, shape index: {}]
  %s8 = inlined_call_operand.vmem [shape: bf16[16,512], index: 8, kind: output, shape index: {}]
  %s9 = sld [smem:[#allocation0]]
  $region65: #{pointnet2_encoder_forward.6} parent=0
    _
  %s11 = ssub.s32 1, %s9
  %s12 = scalar_select 0, %s11, %s9
  loop: start=0, step=1, limit=4
  $region2: #{pointnet2_encoder_forward.6} parent=0 // loop_pre_header
    _
  $region3: #{pointnet2_encoder_forward.6} parent=0 // loop_header
    %s14 = sphi 0, %s18
    %p15 = scmp.ge.s32.totalorder %s14, 4
    %s24 = sphi 0, %s26
    %s27 = sphi 0, %s24
    %s28 = sphi 0, %s27
    %s44 = sphi 0, %s28
    %s50 = sphi 0, %s52
    %s53 = sphi 0, %s50
    %s54 = sphi 0, %s53
    %s70 = sphi 0, %s54
    %s74 = sphi 0, %s74
    %s76 = sphi 0, %s74
    %s77 = sphi 0, %s76
    %s91 = sphi 0, %s77
    %s95 = sphi 0, %s95
    %s97 = sphi 0, %s95
    %s98 = sphi 0, %s97
    %s112 = sphi 0, %s98
    %s116 = sphi 0, %s116
    %s118 = sphi 0, %s116
    %s119 = sphi 0, %s118
    %s133 = sphi 0, %s119
    %s137 = sphi 0, %s137
    %s139 = sphi 0, %s137
    %s140 = sphi 0, %s139
    %s154 = sphi 0, %s140
    %s158 = sphi 0, %s158
    %s160 = sphi 0, %s158
    %s161 = sphi 0, %s160
    %s175 = sphi 0, %s161
    %s179 = sphi 0, %s179
    %s181 = sphi 0, %s179
    %s182 = sphi 0, %s181
    %s196 = sphi 0, %s182
    %s202 = sphi 0, %s204
    %s205 = sphi 0, %s202
    %s206 = sphi 0, %s205
    %s222 = sphi 0, %s206
  $region4: #{pointnet2_encoder_forward.6} parent=0 // loop_header_branch
    %17 = sbr.rel (%p15) target = $region8
  $region5: #{pointnet2_encoder_forward.6} parent=0 // loop_body
    %s19 = ssub.s32 %s14, 1
    %s20 = ssub.s32 %s14, 2
    %s21 = sadd.s32 %s14, 1
    %s22 = ssub.s32 %s14, %s21
    %p23 = scmp.eq.s32.totalorder %s22, 0
    %s25 = sadd.s32 %s24, 1
    %s26 = scalar_select %p23, %s24, %s25
    %p29 = pneg %p23
    %p30 = scmp.eq.s32.totalorder %s14, 1
    %p31 = por %p29, %p30
    %p32 = scmp.ne.s32.totalorder %s24, %s27
    %p33 = scmp.eq.s32.totalorder %s14, 0
    %p34 = por %p32, %p33
    %p35 = scmp.ne.s32.totalorder %s24, %s27
    %p36 = scmp.eq.s32.totalorder %s19, 1
    %p37 = por %p35, %p36
    %p38 = scmp.ne.s32.totalorder %s27, %s28
    %p39 = scmp.eq.s32.totalorder %s19, 0
    %p40 = por %p38, %p39
    %p41 = scmp.ne.s32.totalorder %s27, %s28
    %p42 = scmp.eq.s32.totalorder %s20, 1
    %p43 = por %p41, %p42
    %p45 = scmp.ne.s32.totalorder %s28, %s44
    %p46 = scmp.eq.s32.totalorder %s20, 0
    %p47 = por %p45, %p46
    %s48 = ssub.s32 %s14, %s21
    %p49 = scmp.eq.s32.totalorder %s48, 0
    %s51 = sadd.s32 %s50, 1
    %s52 = scalar_select %p49, %s50, %s51
    %p55 = pneg %p49
    %p56 = scmp.eq.s32.totalorder %s14, 1
    %p57 = por %p55, %p56
    %p58 = scmp.ne.s32.totalorder %s50, %s53
    %p59 = scmp.eq.s32.totalorder %s14, 0
    %p60 = por %p58, %p59
    %p61 = scmp.ne.s32.totalorder %s50, %s53
    %p62 = scmp.eq.s32.totalorder %s19, 1
    %p63 = por %p61, %p62
    %p64 = scmp.ne.s32.totalorder %s53, %s54
    %p65 = scmp.eq.s32.totalorder %s19, 0
    %p66 = por %p64, %p65
    %p67 = scmp.ne.s32.totalorder %s53, %s54
    %p68 = scmp.eq.s32.totalorder %s20, 1
    %p69 = por %p67, %p68
    %p71 = scmp.ne.s32.totalorder %s54, %s70
    %p72 = scmp.eq.s32.totalorder %s20, 0
    %p73 = por %p71, %p72
    %s75 = sadd.s32 %s74, 1
    %p78 = scmp.eq.s32.totalorder %s14, 1
    %p79 = scmp.ne.s32.totalorder %s74, %s76
    %p80 = scmp.eq.s32.totalorder %s14, 0
    %p81 = por %p79, %p80
    %p82 = scmp.ne.s32.totalorder %s74, %s76
    %p83 = scmp.eq.s32.totalorder %s19, 1
    %p84 = por %p82, %p83
    %p85 = scmp.ne.s32.totalorder %s76, %s77
    %p86 = scmp.eq.s32.totalorder %s19, 0
    %p87 = por %p85, %p86
    %p88 = scmp.ne.s32.totalorder %s76, %s77
    %p89 = scmp.eq.s32.totalorder %s20, 1
    %p90 = por %p88, %p89
    %p92 = scmp.ne.s32.totalorder %s77, %s91
    %p93 = scmp.eq.s32.totalorder %s20, 0
    %p94 = por %p92, %p93
    %s96 = sadd.s32 %s95, 1
    %p99 = scmp.eq.s32.totalorder %s14, 1
    %p100 = scmp.ne.s32.totalorder %s95, %s97
    %p101 = scmp.eq.s32.totalorder %s14, 0
    %p102 = por %p100, %p101
    %p103 = scmp.ne.s32.totalorder %s95, %s97
    %p104 = scmp.eq.s32.totalorder %s19, 1
    %p105 = por %p103, %p104
    %p106 = scmp.ne.s32.totalorder %s97, %s98
    %p107 = scmp.eq.s32.totalorder %s19, 0
    %p108 = por %p106, %p107
    %p109 = scmp.ne.s32.totalorder %s97, %s98
    %p110 = scmp.eq.s32.totalorder %s20, 1
    %p111 = por %p109, %p110
    %p113 = scmp.ne.s32.totalorder %s98, %s112
    %p114 = scmp.eq.s32.totalorder %s20, 0
    %p115 = por %p113, %p114
    %s117 = sadd.s32 %s116, 1
    %p120 = scmp.eq.s32.totalorder %s14, 1
    %p121 = scmp.ne.s32.totalorder %s116, %s118
    %p122 = scmp.eq.s32.totalorder %s14, 0
    %p123 = por %p121, %p122
    %p124 = scmp.ne.s32.totalorder %s116, %s118
    %p125 = scmp.eq.s32.totalorder %s19, 1
    %p126 = por %p124, %p125
    %p127 = scmp.ne.s32.totalorder %s118, %s119
    %p128 = scmp.eq.s32.totalorder %s19, 0
    %p129 = por %p127, %p128
    %p130 = scmp.ne.s32.totalorder %s118, %s119
    %p131 = scmp.eq.s32.totalorder %s20, 1
    %p132 = por %p130, %p131
    %p134 = scmp.ne.s32.totalorder %s119, %s133
    %p135 = scmp.eq.s32.totalorder %s20, 0
    %p136 = por %p134, %p135
    %s138 = sadd.s32 %s137, 1
    %p141 = scmp.eq.s32.totalorder %s14, 1
    %p142 = scmp.ne.s32.totalorder %s137, %s139
    %p143 = scmp.eq.s32.totalorder %s14, 0
    %p144 = por %p142, %p143
    %p145 = scmp.ne.s32.totalorder %s137, %s139
    %p146 = scmp.eq.s32.totalorder %s19, 1
    %p147 = por %p145, %p146
    %p148 = scmp.ne.s32.totalorder %s139, %s140
    %p149 = scmp.eq.s32.totalorder %s19, 0
    %p150 = por %p148, %p149
    %p151 = scmp.ne.s32.totalorder %s139, %s140
    %p152 = scmp.eq.s32.totalorder %s20, 1
    %p153 = por %p151, %p152
    %p155 = scmp.ne.s32.totalorder %s140, %s154
    %p156 = scmp.eq.s32.totalorder %s20, 0
    %p157 = por %p155, %p156
    %s159 = sadd.s32 %s158, 1
    %p162 = scmp.eq.s32.totalorder %s14, 1
    %p163 = scmp.ne.s32.totalorder %s158, %s160
    %p164 = scmp.eq.s32.totalorder %s14, 0
    %p165 = por %p163, %p164
    %p166 = scmp.ne.s32.totalorder %s158, %s160
    %p167 = scmp.eq.s32.totalorder %s19, 1
    %p168 = por %p166, %p167
    %p169 = scmp.ne.s32.totalorder %s160, %s161
    %p170 = scmp.eq.s32.totalorder %s19, 0
    %p171 = por %p169, %p170
    %p172 = scmp.ne.s32.totalorder %s160, %s161
    %p173 = scmp.eq.s32.totalorder %s20, 1
    %p174 = por %p172, %p173
    %p176 = scmp.ne.s32.totalorder %s161, %s175
    %p177 = scmp.eq.s32.totalorder %s20, 0
    %p178 = por %p176, %p177
    %s180 = sadd.s32 %s179, 1
    %p183 = scmp.eq.s32.totalorder %s14, 1
    %p184 = scmp.ne.s32.totalorder %s179, %s181
    %p185 = scmp.eq.s32.totalorder %s14, 0
    %p186 = por %p184, %p185
    %p187 = scmp.ne.s32.totalorder %s179, %s181
    %p188 = scmp.eq.s32.totalorder %s19, 1
    %p189 = por %p187, %p188
    %p190 = scmp.ne.s32.totalorder %s181, %s182
    %p191 = scmp.eq.s32.totalorder %s19, 0
    %p192 = por %p190, %p191
    %p193 = scmp.ne.s32.totalorder %s181, %s182
    %p194 = scmp.eq.s32.totalorder %s20, 1
    %p195 = por %p193, %p194
    %p197 = scmp.ne.s32.totalorder %s182, %s196
    %p198 = scmp.eq.s32.totalorder %s20, 0
    %p199 = por %p197, %p198
    %s200 = ssub.s32 %s14, %s21
    %p201 = scmp.eq.s32.totalorder %s200, 0
    %s203 = sadd.s32 %s202, 1
    %s204 = scalar_select %p201, %s202, %s203
    %p207 = pneg %p201
    %p208 = scmp.eq.s32.totalorder %s14, 1
    %p209 = por %p207, %p208
    %p210 = scmp.ne.s32.totalorder %s202, %s205
    %p211 = scmp.eq.s32.totalorder %s14, 0
    %p212 = por %p210, %p211
    %p213 = scmp.ne.s32.totalorder %s202, %s205
    %p214 = scmp.eq.s32.totalorder %s19, 1
    %p215 = por %p213, %p214
    %p216 = scmp.ne.s32.totalorder %s205, %s206
    %p217 = scmp.eq.s32.totalorder %s19, 0
    %p218 = por %p216, %p217
    %p219 = scmp.ne.s32.totalorder %s205, %s206
    %p220 = scmp.eq.s32.totalorder %s20, 1
    %p221 = por %p219, %p220
    %p223 = scmp.ne.s32.totalorder %s206, %s222
    %p224 = scmp.eq.s32.totalorder %s20, 0
    %p225 = por %p223, %p224
    %p226 = scmp.le.s32.totalorder 1, %s14
    %p227 = scmp.lt.s32.totalorder %s14, 3
    %p228 = pnand %p226, %p227
    %p229 = pneg %p228
    // Predicated region
    $region9: #{pointnet2_encoder_forward.6} parent=5 // pred_check
      _
    $region10: #{pointnet2_encoder_forward.6} parent=5 // pred_check_branch
      %231 = sbr.rel (%p228) target = $region12
    $region11: #{pointnet2_encoder_forward.6} parent=5 // pred_region
      %s232 = ssub.s32 %s14, 1
      // Predicated region
      $region13: #{pointnet2_encoder_forward.6} parent=11 // pred_check
        %p233 = pneg %p87
      $region14: #{pointnet2_encoder_forward.6} parent=11 // pred_check_branch
        %235 = sbr.rel (%p233) target = $region16
      $region15: #{pointnet2_encoder_forward.6} parent=11 // pred_region
        _
      $region16: #{pointnet2_encoder_forward.6} parent=11 // pred_fallthru
        _
      // Predicated region
      $region17: #{pointnet2_encoder_forward.6} parent=11 // pred_check
        %p236 = pneg %p108
      $region18: #{pointnet2_encoder_forward.6} parent=11 // pred_check_branch
        %238 = sbr.rel (%p236) target = $region20
      $region19: #{pointnet2_encoder_forward.6} parent=11 // pred_region
        _
      $region20: #{pointnet2_encoder_forward.6} parent=11 // pred_fallthru
        _
      // Predicated region
      $region21: #{pointnet2_encoder_forward.6} parent=11 // pred_check
        %p239 = pneg %p129
      $region22: #{pointnet2_encoder_forward.6} parent=11 // pred_check_branch
        %241 = sbr.rel (%p239) target = $region24
      $region23: #{pointnet2_encoder_forward.6} parent=11 // pred_region
        _
      $region24: #{pointnet2_encoder_forward.6} parent=11 // pred_fallthru
        _
      // Predicated region
      $region25: #{pointnet2_encoder_forward.6} parent=11 // pred_check
        %p242 = pneg %p150
      $region26: #{pointnet2_encoder_forward.6} parent=11 // pred_check_branch
        %244 = sbr.rel (%p242) target = $region28
      $region27: #{pointnet2_encoder_forward.6} parent=11 // pred_region
        _
      $region28: #{pointnet2_encoder_forward.6} parent=11 // pred_fallthru
        _
      // Predicated region
      $region29: #{pointnet2_encoder_forward.6} parent=11 // pred_check
        %p245 = pneg %p171
      $region30: #{pointnet2_encoder_forward.6} parent=11 // pred_check_branch
        %247 = sbr.rel (%p245) target = $region32
      $region31: #{pointnet2_encoder_forward.6} parent=11 // pred_region
        _
      $region32: #{pointnet2_encoder_forward.6} parent=11 // pred_fallthru
        _
      // Predicated region
      $region33: #{pointnet2_encoder_forward.6} parent=11 // pred_check
        %p248 = pneg %p192
      $region34: #{pointnet2_encoder_forward.6} parent=11 // pred_check_branch
        %250 = sbr.rel (%p248) target = $region36
      $region35: #{pointnet2_encoder_forward.6} parent=11 // pred_region
        _
      $region36: #{pointnet2_encoder_forward.6} parent=11 // pred_fallthru
        _
    $region12: #{pointnet2_encoder_forward.6} parent=5 // pred_fallthru
      _
    %p251 = scmp.lt.s32.totalorder %s14, 2
    // Predicated region
    $region37: #{pointnet2_encoder_forward.6} parent=5 // pred_check
      %p252 = pneg %p251
    $region38: #{pointnet2_encoder_forward.6} parent=5 // pred_check_branch
      %254 = sbr.rel (%p252) target = $region40
    $region39: #{pointnet2_encoder_forward.6} parent=5 // pred_region
      // Predicated region
      $region41: #{pointnet2_encoder_forward.6} parent=39 // pred_check
        %p255 = pneg %p34
      $region42: #{pointnet2_encoder_forward.6} parent=39 // pred_check_branch
        %257 = sbr.rel (%p255) target = $region44
      $region43: #{pointnet2_encoder_forward.6} parent=39 // pred_region
        %s258 = smul.u32 8, %s14
        %p259 = scmp.lt.s32.totalorder %s258, 15
        %s260 = scalar_select %p259, %s258, 15
        %s261 = smul.addr %s260, 4
        %s262 = scalar_lea.vmem %s0, %s261
        %s263 = smul.u32 8, %s14
      $region44: #{pointnet2_encoder_forward.6} parent=39 // pred_fallthru
        _
      // Predicated region
      $region45: #{pointnet2_encoder_forward.6} parent=39 // pred_check
        %p264 = pneg %p60
      $region46: #{pointnet2_encoder_forward.6} parent=39 // pred_check_branch
        %266 = sbr.rel (%p264) target = $region48
      $region47: #{pointnet2_encoder_forward.6} parent=39 // pred_region
        %s267 = smul.u32 8, %s14
        %p268 = scmp.lt.s32.totalorder %s267, 15
        %s269 = scalar_select %p268, %s267, 15
        %s270 = smul.addr %s269, 2
        %s271 = smul.addr %s270, 4
        %s272 = scalar_lea.vmem %s1, %s271
        %s273 = smul.u32 8, %s14
      $region48: #{pointnet2_encoder_forward.6} parent=39 // pred_fallthru
        _
    $region40: #{pointnet2_encoder_forward.6} parent=5 // pred_fallthru
      _
    %p274 = scmp.le.s32.totalorder 1, %s14
    %p275 = scmp.lt.s32.totalorder %s14, 3
    %p276 = pnand %p274, %p275
    %p277 = pneg %p276
    // Predicated region
    $region49: #{pointnet2_encoder_forward.6} parent=5 // pred_check
      _
    $region50: #{pointnet2_encoder_forward.6} parent=5 // pred_check_branch
      %279 = sbr.rel (%p276) target = $region52
    $region51: #{pointnet2_encoder_forward.6} parent=5 // pred_region
      %s280 = ssub.s32 %s14, 1
      %s281 = smul.u32 8, %s19
      %p282 = scmp.lt.s32.totalorder %s281, 15
      %s283 = scalar_select %p282, %s281, 15
      %s284 = smul.addr %s283, 4
      %s285 = scalar_lea.vmem %s0, %s284
      %p286 = pneg %p40
      %p287 = pneg %p37
      %s288 = smul.u32 8, %s19
      %p289 = scmp.lt.s32.totalorder %s288, 15
      %s290 = scalar_select %p289, %s288, 15
      %s291 = smul.addr %s290, 2
      %s292 = smul.addr %s291, 4
      %s293 = scalar_lea.vmem %s1, %s292
      %p294 = pneg %p66
      %p295 = pneg %p63
      %p296 = pneg %p87
      %p297 = pneg %p84
      %p298 = pneg %p108
      %p299 = pneg %p105
      %p300 = pneg %p129
      %p301 = pneg %p126
      %p302 = pneg %p150
      %p303 = pneg %p147
      %p304 = pneg %p171
      %p305 = pneg %p168
      %p306 = pneg %p192
      %p307 = pneg %p189
      %p308 = pneg %p218
      %p309 = pneg %p215
      %p310 = scmp.lt.s32.totalorder %s19, 1
      %s311 = scalar_select %p310, %s19, 1
      %s312 = smul.addr %s311, 4
      %s313 = smul.addr %s312, 4
      %s314 = scalar_lea.vmem %s8, %s313
      %s315 = smul.u32 8, %s19
      %p316 = scmp.lt.s32.totalorder %s315, 15
      %s317 = scalar_select %p316, %s315, 15
      %s318 = smul.addr %s317, 4
      %s319 = scalar_lea.vmem %s0, %s318
      %s320 = smul.u32 8, %s19
      %s321 = smul.u32 8, %s19
      %p322 = scmp.lt.s32.totalorder %s321, 15
      %s323 = scalar_select %p322, %s321, 15
      %s324 = smul.addr %s323, 2
      %s325 = smul.addr %s324, 4
      %s326 = scalar_lea.vmem %s1, %s325
      %s327 = smul.u32 8, %s19
      %p328 = scmp.lt.s32.totalorder %s19, 1
      %s329 = scalar_select %p328, %s19, 1
      %s330 = smul.addr %s329, 4
      %s331 = smul.addr %s330, 4
      %s332 = scalar_lea.vmem %s8, %s331
      %v334 = vld [vmem:[%s319] sm:$0xf]
      %v335 = vld [vmem:[%s319 + $0x4] sm:$0xf]
      %v336 = vld [vmem:[%s319 + $0x8] sm:$0xf]
      %v337 = vld [vmem:[%s319 + $0xc] sm:$0xf]
      %v338 = vld [vmem:[%s319 + $0x10] sm:$0xf]
      %v339 = vld [vmem:[%s319 + $0x14] sm:$0xf]
      %v340 = vld [vmem:[%s319 + $0x18] sm:$0xf]
      %v341 = vld [vmem:[%s319 + $0x1c] sm:$0xf]
      %v342 = vld [vmem:[%s2] sm:$0xff]
      %v343 = vld [vmem:[%s2 + $0x8] sm:$0xff]
      %v344 = vld [vmem:[%s326] sm:$0xff]
      %v345 = vld [vmem:[%s326 + $0x8] sm:$0xff]
      %v346 = vld [vmem:[%s326 + $0x10] sm:$0xff]
      %v347 = vld [vmem:[%s326 + $0x18] sm:$0xff]
      %v348 = vld [vmem:[%s326 + $0x20] sm:$0xff]
      %v349 = vld [vmem:[%s326 + $0x28] sm:$0xff]
      %v350 = vld [vmem:[%s326 + $0x30] sm:$0xff]
      %v351 = vld [vmem:[%s326 + $0x38] sm:$0xff]
      %v352 = vld [vmem:[%s3] sm:$0xff]
      %v353 = vld [vmem:[%s3 + $0x8] sm:$0xff]
      %v354 = vld [vmem:[%s3 + $0x10] sm:$0xff]
      %v355 = vld [vmem:[%s3 + $0x18] sm:$0xff]
      %v356 = vld [vmem:[%s3 + $0x20] sm:$0xff]
      %v357 = vld [vmem:[%s3 + $0x28] sm:$0xff]
      %v358 = vld [vmem:[%s3 + $0x30] sm:$0xff]
      %v359 = vld [vmem:[%s3 + $0x38] sm:$0xff]
      %v360 = vld [vmem:[%s3 + $0x40] sm:$0xff]
      %v361 = vld [vmem:[%s3 + $0x48] sm:$0xff]
      %v362 = vld [vmem:[%s3 + $0x50] sm:$0xff]
      %v363 = vld [vmem:[%s3 + $0x58] sm:$0xff]
      %v364 = vld [vmem:[%s3 + $0x60] sm:$0xff]
      %v365 = vld [vmem:[%s3 + $0x68] sm:$0xff]
      %v366 = vld [vmem:[%s3 + $0x70] sm:$0xff]
      %v367 = vld [vmem:[%s3 + $0x78] sm:$0xff]
      %v368 = vld [vmem:[%s3 + $0x80] sm:$0xff]
      %v369 = vld [vmem:[%s3 + $0x88] sm:$0xff]
      %v370 = vld [vmem:[%s3 + $0x90] sm:$0xff]
      %v371 = vld [vmem:[%s3 + $0x98] sm:$0xff]
      %v372 = vld [vmem:[%s3 + $0xa0] sm:$0xff]
      %v373 = vld [vmem:[%s3 + $0xa8] sm:$0xff]
      %v374 = vld [vmem:[%s3 + $0xb0] sm:$0xff]
      %v375 = vld [vmem:[%s3 + $0xb8] sm:$0xff]
      %v376 = vld [vmem:[%s3 + $0xc0] sm:$0xff]
      %v377 = vld [vmem:[%s3 + $0xc8] sm:$0xff]
      %v378 = vld [vmem:[%s3 + $0xd0] sm:$0xff]
      %v379 = vld [vmem:[%s3 + $0xd8] sm:$0xff]
      %v380 = vld [vmem:[%s3 + $0xe0] sm:$0xff]
      %v381 = vld [vmem:[%s3 + $0xe8] sm:$0xff]
      %v382 = vld [vmem:[%s3 + $0xf0] sm:$0xff]
      %v383 = vld [vmem:[%s3 + $0xf8] sm:$0xff]
      %v392 = vunpack.c.l.b16 %v344
      %v393 = vunpack.c.h.b16 %v344
      %v394 = vunpack.c.l.b16 %v345
      %v395 = vunpack.c.h.b16 %v345
      %v396 = vunpack.c.l.b16 %v346
      %v397 = vunpack.c.h.b16 %v346
      %v398 = vunpack.c.l.b16 %v347
      %v399 = vunpack.c.h.b16 %v347
      %v400 = vunpack.c.l.b16 %v348
      %v401 = vunpack.c.h.b16 %v348
      %v402 = vunpack.c.l.b16 %v349
      %v403 = vunpack.c.h.b16 %v349
      %v404 = vunpack.c.l.b16 %v350
      %v405 = vunpack.c.h.b16 %v350
      %v406 = vunpack.c.l.b16 %v351
      %v407 = vunpack.c.h.b16 %v351
      %v408 = vpack.c.b16 %v394, %v392
      %v409 = vpack.c.b16 %v395, %v393
      %v410 = vpack.c.b16 %v398, %v396
      %v411 = vpack.c.b16 %v399, %v397
      %v412 = vpack.c.b16 %v402, %v400
      %v413 = vpack.c.b16 %v403, %v401
      %v414 = vpack.c.b16 %v406, %v404
      %v415 = vpack.c.b16 %v407, %v405
      %v456 = vunpack.c.l.b16 %v352
      %v457 = vunpack.c.h.b16 %v352
      %v458 = vunpack.c.l.b16 %v353
      %v459 = vunpack.c.h.b16 %v353
      %v460 = vunpack.c.l.b16 %v354
      %v461 = vunpack.c.h.b16 %v354
      %v462 = vunpack.c.l.b16 %v355
      %v463 = vunpack.c.h.b16 %v355
      %v464 = vunpack.c.l.b16 %v356
      %v465 = vunpack.c.h.b16 %v356
      %v466 = vunpack.c.l.b16 %v357
      %v467 = vunpack.c.h.b16 %v357
      %v468 = vunpack.c.l.b16 %v358
      %v469 = vunpack.c.h.b16 %v358
      %v470 = vunpack.c.l.b16 %v359
      %v471 = vunpack.c.h.b16 %v359
      %v472 = vunpack.c.l.b16 %v360
      %v473 = vunpack.c.h.b16 %v360
      %v474 = vunpack.c.l.b16 %v361
      %v475 = vunpack.c.h.b16 %v361
      %v476 = vunpack.c.l.b16 %v362
      %v477 = vunpack.c.h.b16 %v362
      %v478 = vunpack.c.l.b16 %v363
      %v479 = vunpack.c.h.b16 %v363
      %v480 = vunpack.c.l.b16 %v364
      %v481 = vunpack.c.h.b16 %v364
      %v482 = vunpack.c.l.b16 %v365
      %v483 = vunpack.c.h.b16 %v365
      %v484 = vunpack.c.l.b16 %v366
      %v485 = vunpack.c.h.b16 %v366
      %v486 = vunpack.c.l.b16 %v367
      %v487 = vunpack.c.h.b16 %v367
      %v488 = vunpack.c.l.b16 %v368
      %v489 = vunpack.c.h.b16 %v368
      %v490 = vunpack.c.l.b16 %v369
      %v491 = vunpack.c.h.b16 %v369
      %v492 = vunpack.c.l.b16 %v370
      %v493 = vunpack.c.h.b16 %v370
      %v494 = vunpack.c.l.b16 %v371
      %v495 = vunpack.c.h.b16 %v371
      %v496 = vunpack.c.l.b16 %v372
      %v497 = vunpack.c.h.b16 %v372
      %v498 = vunpack.c.l.b16 %v373
      %v499 = vunpack.c.h.b16 %v373
      %v500 = vunpack.c.l.b16 %v374
      %v501 = vunpack.c.h.b16 %v374
      %v502 = vunpack.c.l.b16 %v375
      %v503 = vunpack.c.h.b16 %v375
      %v504 = vunpack.c.l.b16 %v376
      %v505 = vunpack.c.h.b16 %v376
      %v506 = vunpack.c.l.b16 %v377
      %v507 = vunpack.c.h.b16 %v377
      %v508 = vunpack.c.l.b16 %v378
      %v509 = vunpack.c.h.b16 %v378
      %v510 = vunpack.c.l.b16 %v379
      %v511 = vunpack.c.h.b16 %v379
      %v512 = vunpack.c.l.b16 %v380
      %v513 = vunpack.c.h.b16 %v380
      %v514 = vunpack.c.l.b16 %v381
      %v515 = vunpack.c.h.b16 %v381
      %v516 = vunpack.c.l.b16 %v382
      %v517 = vunpack.c.h.b16 %v382
      %v518 = vunpack.c.l.b16 %v383
      %v519 = vunpack.c.h.b16 %v383
      %v520 = vpack.c.b16 %v458, %v456
      %v521 = vpack.c.b16 %v459, %v457
      %v522 = vpack.c.b16 %v462, %v460
      %v523 = vpack.c.b16 %v463, %v461
      %v524 = vpack.c.b16 %v466, %v464
      %v525 = vpack.c.b16 %v467, %v465
      %v526 = vpack.c.b16 %v470, %v468
      %v527 = vpack.c.b16 %v471, %v469
      %v528 = vpack.c.b16 %v474, %v472
      %v529 = vpack.c.b16 %v475, %v473
      %v530 = vpack.c.b16 %v478, %v476
      %v531 = vpack.c.b16 %v479, %v477
      %v532 = vpack.c.b16 %v482, %v480
      %v533 = vpack.c.b16 %v483, %v481
      %v534 = vpack.c.b16 %v486, %v484
      %v535 = vpack.c.b16 %v487, %v485
      %v536 = vpack.c.b16 %v490, %v488
      %v537 = vpack.c.b16 %v491, %v489
      %v538 = vpack.c.b16 %v494, %v492
      %v539 = vpack.c.b16 %v495, %v493
      %v540 = vpack.c.b16 %v498, %v496
      %v541 = vpack.c.b16 %v499, %v497
      %v542 = vpack.c.b16 %v502, %v500
      %v543 = vpack.c.b16 %v503, %v501
      %v544 = vpack.c.b16 %v506, %v504
      %v545 = vpack.c.b16 %v507, %v505
      %v546 = vpack.c.b16 %v510, %v508
      %v547 = vpack.c.b16 %v511, %v509
      %v548 = vpack.c.b16 %v514, %v512
      %v549 = vpack.c.b16 %v515, %v513
      %v550 = vpack.c.b16 %v518, %v516
      %v551 = vpack.c.b16 %v519, %v517
      %584 = vmatprep.subr.bf16.mxu0 %v521
      %585 = vmatpush1.bf16.msra.mxu0 %v520
      %586 = vmatprep.subr.bf16.mxu0 %v523
      %587 = vmatpush1.bf16.msra.mxu0 %v522
      %588 = vmatprep.subr.bf16.mxu0 %v525
      %589 = vmatpush1.bf16.msra.mxu0 %v524
      %590 = vmatprep.subr.bf16.mxu0 %v527
      %591 = vmatpush1.bf16.msra.mxu0 %v526
      %592 = vmatprep.subr.bf16.mxu0 %v529
      %593 = vmatpush1.bf16.msra.mxu0 %v528
      %594 = vmatprep.subr.bf16.mxu0 %v531
      %595 = vmatpush1.bf16.msra.mxu0 %v530
      %596 = vmatprep.subr.bf16.mxu0 %v533
      %597 = vmatpush1.bf16.msra.mxu0 %v532
      %598 = vmatprep.subr.bf16.mxu0 %v535
      %599 = vmatpush1.bf16.msra.mxu0 %v534
      %600 = vmatprep.subr.bf16.mxu0 %v537
      %601 = vmatpush1.bf16.msra.mxu0 %v536
      %602 = vmatprep.subr.bf16.mxu0 %v539
      %603 = vmatpush1.bf16.msra.mxu0 %v538
      %604 = vmatprep.subr.bf16.mxu0 %v541
      %605 = vmatpush1.bf16.msra.mxu0 %v540
      %606 = vmatprep.subr.bf16.mxu0 %v543
      %607 = vmatpush1.bf16.msra.mxu0 %v542
      %608 = vmatprep.subr.bf16.mxu0 %v545
      %609 = vmatpush1.bf16.msra.mxu0 %v544
      %610 = vmatprep.subr.bf16.mxu0 %v547
      %611 = vmatpush1.bf16.msra.mxu0 %v546
      %612 = vmatprep.subr.bf16.mxu0 %v549
      %613 = vmatpush1.bf16.msra.mxu0 %v548
      %614 = vmatprep.subr.bf16.mxu0 %v551
      %615 = vmatpush1.bf16.msra.mxu0 %v550
      %616 = vmatprep.mubr.bf16.mxu0 %v409
      %617 = vmatmul.mubr.bf16.gmra.mrb[0].mxu0 %v408
      %v618 = vpop.f32.mrb[0].mxu0
      %v619 = vadd.f32 0.0, %v618
      %v620 = vpop.f32.mrb[0].mxu0
      %v621 = vadd.f32 0.0, %v620
      %v622 = vpop.f32.mrb[0].mxu0
      %v623 = vadd.f32 0.0, %v622
      %v624 = vpop.f32.mrb[0].mxu0
      %v625 = vadd.f32 0.0, %v624
      %626 = vmatprep.mubr.bf16.mxu0 %v411
      %627 = vmatmul.mubr.bf16.gmra.mrb[0].mxu0 %v410
      %v628 = vpop.f32.mrb[0].mxu0
      %v629 = vadd.f32 0.0, %v628
      %v630 = vpop.f32.mrb[0].mxu0
      %v631 = vadd.f32 0.0, %v630
      %v632 = vpop.f32.mrb[0].mxu0
      %v633 = vadd.f32 0.0, %v632
      %v634 = vpop.f32.mrb[0].mxu0
      %v635 = vadd.f32 0.0, %v634
      %636 = vmatprep.mubr.bf16.mxu0 %v413
      %637 = vmatmul.mubr.bf16.gmra.mrb[0].mxu0 %v412
      %v638 = vpop.f32.mrb[0].mxu0
      %v639 = vadd.f32 0.0, %v638
      %v640 = vpop.f32.mrb[0].mxu0
      %v641 = vadd.f32 0.0, %v640
      %v642 = vpop.f32.mrb[0].mxu0
      %v643 = vadd.f32 0.0, %v642
      %v644 = vpop.f32.mrb[0].mxu0
      %v645 = vadd.f32 0.0, %v644
      %646 = vmatprep.mubr.bf16.mxu0 %v415
      %647 = vmatmul.mubr.bf16.gmra.mrb[0].mxu0 %v414
      %v648 = vpop.f32.mrb[0].mxu0
      %v649 = vadd.f32 0.0, %v648
      %v650 = vpop.f32.mrb[0].mxu0
      %v651 = vadd.f32 0.0, %v650
      %v652 = vpop.f32.mrb[0].mxu0
      %v653 = vadd.f32 0.0, %v652
      %v654 = vpop.f32.mrb[0].mxu0
      %v655 = vadd.f32 0.0, %v654
      %656 = vdwg.mxu0
      %v665 = vunpack.c.l.b16 %v334
      %v666 = vunpack.c.l.b16 %v335
      %v667 = vunpack.c.l.b16 %v336
      %v668 = vunpack.c.l.b16 %v337
      %v669 = vunpack.c.l.b16 %v338
      %v670 = vunpack.c.l.b16 %v339
      %v671 = vunpack.c.l.b16 %v340
      %v672 = vunpack.c.l.b16 %v341
      %v673 = vpack.c.b16 %v666, %v665
      %v674 = vpack.c.b16 %v668, %v667
      %v675 = vpack.c.b16 %v670, %v669
      %v676 = vpack.c.b16 %v672, %v671
      %v679 = vunpack.c.l.b16 %v342
      %v680 = vunpack.c.h.b16 %v342
      %v681 = vunpack.c.l.b16 %v343
      %v682 = vunpack.c.h.b16 %v343
      %v683 = vpack.c.b16 %v681, %v679
      %v684 = vpack.c.b16 %v682, %v680
      %vm687 = vcmask 130048
      %v689 = vsel %vm687, %v673, 0
      %v692 = vsel %vm687, %v674, 0
      %v695 = vsel %vm687, %v675, 0
      %v698 = vsel %vm687, %v676, 0
      %700 = vmatprep.subr.bf16.mxu0 %v684
      %701 = vmatpush1.bf16.msra.mxu0 %v683
      %702 = vmatprep.subr.bf16.mxu0 0
      %703 = vmatpush1.bf16.msra.mxu0 0
      %704 = vmatprep.subr.bf16.mxu0 0
      %705 = vmatpush1.bf16.msra.mxu0 0
      %706 = vmatprep.subr.bf16.mxu0 0
      %707 = vmatpush1.bf16.msra.mxu0 0
      %708 = vmatprep.subr.bf16.mxu0 0
      %709 = vmatpush1.bf16.msra.mxu0 0
      %710 = vmatprep.subr.bf16.mxu0 0
      %711 = vmatpush1.bf16.msra.mxu0 0
      %712 = vmatprep.subr.bf16.mxu0 0
      %713 = vmatpush1.bf16.msra.mxu0 0
      %714 = vmatprep.subr.bf16.mxu0 0
      %715 = vmatpush1.bf16.msra.mxu0 0
      %716 = vmatprep.subr.bf16.mxu0 0
      %717 = vmatpush1.bf16.msra.mxu0 0
      %718 = vmatprep.subr.bf16.mxu0 0
      %719 = vmatpush1.bf16.msra.mxu0 0
      %720 = vmatprep.subr.bf16.mxu0 0
      %721 = vmatpush1.bf16.msra.mxu0 0
      %722 = vmatprep.subr.bf16.mxu0 0
      %723 = vmatpush1.bf16.msra.mxu0 0
      %724 = vmatprep.subr.bf16.mxu0 0
      %725 = vmatpush1.bf16.msra.mxu0 0
      %726 = vmatprep.subr.bf16.mxu0 0
      %727 = vmatpush1.bf16.msra.mxu0 0
      %728 = vmatprep.subr.bf16.mxu0 0
      %729 = vmatpush1.bf16.msra.mxu0 0
      %730 = vmatprep.subr.bf16.mxu0 0
      %731 = vmatpush1.bf16.msra.mxu0 0
      %732 = vmatprep.mubr.bf16.mxu0 0
      %733 = vmatmul.mubr.bf16.gmra.mrb[0].mxu0 %v689
      %v734 = vpop.f32.mrb[0].mxu0
      %v735 = vadd.f32 %v619, %v734
      %v736 = vpop.f32.mrb[0].mxu0
      %v737 = vadd.f32 %v621, %v736
      %v738 = vpop.f32.mrb[0].mxu0
      %v739 = vadd.f32 %v623, %v738
      %v740 = vpop.f32.mrb[0].mxu0
      %v741 = vadd.f32 %v625, %v740
      %742 = vmatprep.mubr.bf16.mxu0 0
      %743 = vmatmul.mubr.bf16.gmra.mrb[0].mxu0 %v692
      %v744 = vpop.f32.mrb[0].mxu0
      %v745 = vadd.f32 %v629, %v744
      %v746 = vpop.f32.mrb[0].mxu0
      %v747 = vadd.f32 %v631, %v746
      %v748 = vpop.f32.mrb[0].mxu0
      %v749 = vadd.f32 %v633, %v748
      %v750 = vpop.f32.mrb[0].mxu0
      %v751 = vadd.f32 %v635, %v750
      %752 = vmatprep.mubr.bf16.mxu0 0
      %753 = vmatmul.mubr.bf16.gmra.mrb[0].mxu0 %v695
      %v754 = vpop.f32.mrb[0].mxu0
      %v755 = vadd.f32 %v639, %v754
      %v756 = vpop.f32.mrb[0].mxu0
      %v757 = vadd.f32 %v641, %v756
      %v758 = vpop.f32.mrb[0].mxu0
      %v759 = vadd.f32 %v643, %v758
      %v760 = vpop.f32.mrb[0].mxu0
      %v761 = vadd.f32 %v645, %v760
      %762 = vmatprep.mubr.bf16.mxu0 0
      %763 = vmatmul.mubr.bf16.gmra.mrb[0].mxu0 %v698
      %v764 = vpop.f32.mrb[0].mxu0
      %v765 = vadd.f32 %v649, %v764
      %v766 = vpop.f32.mrb[0].mxu0
      %v767 = vadd.f32 %v651, %v766
      %v768 = vpop.f32.mrb[0].mxu0
      %v769 = vadd.f32 %v653, %v768
      %v770 = vpop.f32.mrb[0].mxu0
      %v771 = vadd.f32 %v655, %v770
      %772 = vdwg.mxu0
      %v773 = vmax.f32 %v735, 0.0
      %v774 = vmax.f32 %v737, 0.0
      %v775 = vmax.f32 %v739, 0.0
      %v776 = vmax.f32 %v741, 0.0
      %v777 = vmax.f32 %v745, 0.0
      %v778 = vmax.f32 %v747, 0.0
      %v779 = vmax.f32 %v749, 0.0
      %v780 = vmax.f32 %v751, 0.0
      %v781 = vmax.f32 %v755, 0.0
      %v782 = vmax.f32 %v757, 0.0
      %v783 = vmax.f32 %v759, 0.0
      %v784 = vmax.f32 %v761, 0.0
      %v785 = vmax.f32 %v765, 0.0
      %v786 = vmax.f32 %v767, 0.0
      %v787 = vmax.f32 %v769, 0.0
      %v788 = vmax.f32 %v771, 0.0
      %v789 = vpack.c.bf16 %v775, %v773
      %v790 = vpack.c.bf16 %v776, %v774
      %v791 = vpack.c.bf16 %v779, %v777
      %v792 = vpack.c.bf16 %v780, %v778
      %v793 = vpack.c.bf16 %v783, %v781
      %v794 = vpack.c.bf16 %v784, %v782
      %v795 = vpack.c.bf16 %v787, %v785
      %v796 = vpack.c.bf16 %v788, %v786
      %v797 = vld [vmem:[%s4] sm:$0xff]
      %v798 = vld [vmem:[%s4 + $0x8] sm:$0xff]
      %v799 = vld [vmem:[%s4 + $0x10] sm:$0xff]
      %v800 = vld [vmem:[%s4 + $0x18] sm:$0xff]
      %v801 = vld [vmem:[%s4 + $0x20] sm:$0xff]
      %v802 = vld [vmem:[%s4 + $0x28] sm:$0xff]
      %v803 = vld [vmem:[%s4 + $0x30] sm:$0xff]
      %v804 = vld [vmem:[%s4 + $0x38] sm:$0xff]
      %v805 = vld [vmem:[%s4 + $0x40] sm:$0xff]
      %v806 = vld [vmem:[%s4 + $0x48] sm:$0xff]
      %v807 = vld [vmem:[%s4 + $0x50] sm:$0xff]
      %v808 = vld [vmem:[%s4 + $0x58] sm:$0xff]
      %v809 = vld [vmem:[%s4 + $0x60] sm:$0xff]
      %v810 = vld [vmem:[%s4 + $0x68] sm:$0xff]
      %v811 = vld [vmem:[%s4 + $0x70] sm:$0xff]
      %v812 = vld [vmem:[%s4 + $0x78] sm:$0xff]
      %v813 = vld [vmem:[%s4 + $0x80] sm:$0xff]
      %v814 = vld [vmem:[%s4 + $0x88] sm:$0xff]
      %v815 = vld [vmem:[%s4 + $0x90] sm:$0xff]
      %v816 = vld [vmem:[%s4 + $0x98] sm:$0xff]
      %v817 = vld [vmem:[%s4 + $0xa0] sm:$0xff]
      %v818 = vld [vmem:[%s4 + $0xa8] sm:$0xff]
      %v819 = vld [vmem:[%s4 + $0xb0] sm:$0xff]
      %v820 = vld [vmem:[%s4 + $0xb8] sm:$0xff]
      %v821 = vld [vmem:[%s4 + $0xc0] sm:$0xff]
      %v822 = vld [vmem:[%s4 + $0xc8] sm:$0xff]
      %v823 = vld [vmem:[%s4 + $0xd0] sm:$0xff]
      %v824 = vld [vmem:[%s4 + $0xd8] sm:$0xff]
      %v825 = vld [vmem:[%s4 + $0xe0] sm:$0xff]
      %v826 = vld [vmem:[%s4 + $0xe8] sm:$0xff]
      %v827 = vld [vmem:[%s4 + $0xf0] sm:$0xff]
      %v828 = vld [vmem:[%s4 + $0xf8] sm:$0xff]
      %v829 = vld [vmem:[%s5] sm:$0x3]
      %v831 = vlaneseq
      %v832 = vshrl.u32 %v831, 7
      %v833 = vsub.s32 0, %v832
      %v834 = vrot.slane %v829, %v833
      %v835 = vlaneseq
      %v836 = vshrl.u32 %v835, 7
      %v837 = vsub.s32 1, %v836
      %v838 = vrot.slane %v829, %v837
      %v873 = vunpack.c.l.b16 %v797
      %v874 = vunpack.c.h.b16 %v797
      %v875 = vunpack.c.l.b16 %v798
      %v876 = vunpack.c.h.b16 %v798
      %v877 = vunpack.c.l.b16 %v799
      %v878 = vunpack.c.h.b16 %v799
      %v879 = vunpack.c.l.b16 %v800
      %v880 = vunpack.c.h.b16 %v800
      %v881 = vunpack.c.l.b16 %v801
      %v882 = vunpack.c.h.b16 %v801
      %v883 = vunpack.c.l.b16 %v802
      %v884 = vunpack.c.h.b16 %v802
      %v885 = vunpack.c.l.b16 %v803
      %v886 = vunpack.c.h.b16 %v803
      %v887 = vunpack.c.l.b16 %v804
      %v888 = vunpack.c.h.b16 %v804
      %v889 = vunpack.c.l.b16 %v805
      %v890 = vunpack.c.h.b16 %v805
      %v891 = vunpack.c.l.b16 %v806
      %v892 = vunpack.c.h.b16 %v806
      %v893 = vunpack.c.l.b16 %v807
      %v894 = vunpack.c.h.b16 %v807
      %v895 = vunpack.c.l.b16 %v808
      %v896 = vunpack.c.h.b16 %v808
      %v897 = vunpack.c.l.b16 %v809
      %v898 = vunpack.c.h.b16 %v809
      %v899 = vunpack.c.l.b16 %v810
      %v900 = vunpack.c.h.b16 %v810
      %v901 = vunpack.c.l.b16 %v811
      %v902 = vunpack.c.h.b16 %v811
      %v903 = vunpack.c.l.b16 %v812
      %v904 = vunpack.c.h.b16 %v812
      %v905 = vunpack.c.l.b16 %v813
      %v906 = vunpack.c.h.b16 %v813
      %v907 = vunpack.c.l.b16 %v814
      %v908 = vunpack.c.h.b16 %v814
      %v909 = vunpack.c.l.b16 %v815
      %v910 = vunpack.c.h.b16 %v815
      %v911 = vunpack.c.l.b16 %v816
      %v912 = vunpack.c.h.b16 %v816
      %v913 = vunpack.c.l.b16 %v817
      %v914 = vunpack.c.h.b16 %v817
      %v915 = vunpack.c.l.b16 %v818
      %v916 = vunpack.c.h.b16 %v818
      %v917 = vunpack.c.l.b16 %v819
      %v918 = vunpack.c.h.b16 %v819
      %v919 = vunpack.c.l.b16 %v820
      %v920 = vunpack.c.h.b16 %v820
      %v921 = vunpack.c.l.b16 %v821
      %v922 = vunpack.c.h.b16 %v821
      %v923 = vunpack.c.l.b16 %v822
      %v924 = vunpack.c.h.b16 %v822
      %v925 = vunpack.c.l.b16 %v823
      %v926 = vunpack.c.h.b16 %v823
      %v927 = vunpack.c.l.b16 %v824
      %v928 = vunpack.c.h.b16 %v824
      %v929 = vunpack.c.l.b16 %v825
      %v930 = vunpack.c.h.b16 %v825
      %v931 = vunpack.c.l.b16 %v826
      %v932 = vunpack.c.h.b16 %v826
      %v933 = vunpack.c.l.b16 %v827
      %v934 = vunpack.c.h.b16 %v827
      %v935 = vunpack.c.l.b16 %v828
      %v936 = vunpack.c.h.b16 %v828
      %v937 = vpack.c.b16 %v875, %v873
      %v938 = vpack.c.b16 %v876, %v874
      %v939 = vpack.c.b16 %v879, %v877
      %v940 = vpack.c.b16 %v880, %v878
      %v941 = vpack.c.b16 %v883, %v881
      %v942 = vpack.c.b16 %v884, %v882
      %v943 = vpack.c.b16 %v887, %v885
      %v944 = vpack.c.b16 %v888, %v886
      %v945 = vpack.c.b16 %v891, %v889
      %v946 = vpack.c.b16 %v892, %v890
      %v947 = vpack.c.b16 %v895, %v893
      %v948 = vpack.c.b16 %v896, %v894
      %v949 = vpack.c.b16 %v899, %v897
      %v950 = vpack.c.b16 %v900, %v898
      %v951 = vpack.c.b16 %v903, %v901
      %v952 = vpack.c.b16 %v904, %v902
      %v953 = vpack.c.b16 %v907, %v905
      %v954 = vpack.c.b16 %v908, %v906
      %v955 = vpack.c.b16 %v911, %v909
      %v956 = vpack.c.b16 %v912, %v910
      %v957 = vpack.c.b16 %v915, %v913
      %v958 = vpack.c.b16 %v916, %v914
      %v959 = vpack.c.b16 %v919, %v917
      %v960 = vpack.c.b16 %v920, %v918
      %v961 = vpack.c.b16 %v923, %v921
      %v962 = vpack.c.b16 %v924, %v922
      %v963 = vpack.c.b16 %v927, %v925
      %v964 = vpack.c.b16 %v928, %v926
      %v965 = vpack.c.b16 %v931, %v929
      %v966 = vpack.c.b16 %v932, %v930
      %v967 = vpack.c.b16 %v935, %v933
      %v968 = vpack.c.b16 %v936, %v934
      %1001 = vmatprep.subr.bf16.mxu0 %v938
      %1002 = vmatpush1.bf16.msra.mxu0 %v937
      %1003 = vmatprep.subr.bf16.mxu0 %v940
      %1004 = vmatpush1.bf16.msra.mxu0 %v939
      %1005 = vmatprep.subr.bf16.mxu0 %v942
      %1006 = vmatpush1.bf16.msra.mxu0 %v941
      %1007 = vmatprep.subr.bf16.mxu0 %v944
      %1008 = vmatpush1.bf16.msra.mxu0 %v943
      %1009 = vmatprep.subr.bf16.mxu0 %v946
      %1010 = vmatpush1.bf16.msra.mxu0 %v945
      %1011 = vmatprep.subr.bf16.mxu0 %v948
      %1012 = vmatpush1.bf16.msra.mxu0 %v947
      %1013 = vmatprep.subr.bf16.mxu0 %v950
      %1014 = vmatpush1.bf16.msra.mxu0 %v949
      %1015 = vmatprep.subr.bf16.mxu0 %v952
      %1016 = vmatpush1.bf16.msra.mxu0 %v951
      %1017 = vmatprep.subr.bf16.mxu0 %v954
      %1018 = vmatpush1.bf16.msra.mxu0 %v953
      %1019 = vmatprep.subr.bf16.mxu0 %v956
      %1020 = vmatpush1.bf16.msra.mxu0 %v955
      %1021 = vmatprep.subr.bf16.mxu0 %v958
      %1022 = vmatpush1.bf16.msra.mxu0 %v957
      %1023 = vmatprep.subr.bf16.mxu0 %v960
      %1024 = vmatpush1.bf16.msra.mxu0 %v959
      %1025 = vmatprep.subr.bf16.mxu0 %v962
      %1026 = vmatpush1.bf16.msra.mxu0 %v961
      %1027 = vmatprep.subr.bf16.mxu0 %v964
      %1028 = vmatpush1.bf16.msra.mxu0 %v963
      %1029 = vmatprep.subr.bf16.mxu0 %v966
      %1030 = vmatpush1.bf16.msra.mxu0 %v965
      %1031 = vmatprep.subr.bf16.mxu0 %v968
      %1032 = vmatpush1.bf16.msra.mxu0 %v967
      %1033 = vmatprep.mubr.bf16.mxu0 %v790
      %1034 = vmatmul.mubr.bf16.gmra.mrb[0].mxu0 %v789
      %v1035 = vpop.f32.mrb[0].mxu0
      %v1036 = vadd.f32 %v834, %v1035
      %v1037 = vpop.f32.mrb[0].mxu0
      %v1038 = vadd.f32 %v838, %v1037
      %v1039 = vpop.f32.mrb[0].mxu0
      %v1040 = vadd.f32 %v834, %v1039
      %v1041 = vpop.f32.mrb[0].mxu0
      %v1042 = vadd.f32 %v838, %v1041
      %1043 = vmatprep.mubr.bf16.mxu0 %v792
      %1044 = vmatmul.mubr.bf16.gmra.mrb[0].mxu0 %v791
      %v1045 = vpop.f32.mrb[0].mxu0
      %v1046 = vadd.f32 %v834, %v1045
      %v1047 = vpop.f32.mrb[0].mxu0
      %v1048 = vadd.f32 %v838, %v1047
      %v1049 = vpop.f32.mrb[0].mxu0
      %v1050 = vadd.f32 %v834, %v1049
      %v1051 = vpop.f32.mrb[0].mxu0
      %v1052 = vadd.f32 %v838, %v1051
      %1053 = vmatprep.mubr.bf16.mxu0 %v794
      %1054 = vmatmul.mubr.bf16.gmra.mrb[0].mxu0 %v793
      %v1055 = vpop.f32.mrb[0].mxu0
      %v1056 = vadd.f32 %v834, %v1055
      %v1057 = vpop.f32.mrb[0].mxu0
      %v1058 = vadd.f32 %v838, %v1057
      %v1059 = vpop.f32.mrb[0].mxu0
      %v1060 = vadd.f32 %v834, %v1059
      %v1061 = vpop.f32.mrb[0].mxu0
      %v1062 = vadd.f32 %v838, %v1061
      %1063 = vmatprep.mubr.bf16.mxu0 %v796
      %1064 = vmatmul.mubr.bf16.gmra.mrb[0].mxu0 %v795
      %v1065 = vpop.f32.mrb[0].mxu0
      %v1066 = vadd.f32 %v834, %v1065
      %v1067 = vpop.f32.mrb[0].mxu0
      %v1068 = vadd.f32 %v838, %v1067
      %v1069 = vpop.f32.mrb[0].mxu0
      %v1070 = vadd.f32 %v834, %v1069
      %v1071 = vpop.f32.mrb[0].mxu0
      %v1072 = vadd.f32 %v838, %v1071
      %1073 = vdwg.mxu0
      %v1074 = vmax.f32 %v1036, 0.0
      %v1075 = vmax.f32 %v1038, 0.0
      %v1076 = vmax.f32 %v1040, 0.0
      %v1077 = vmax.f32 %v1042, 0.0
      %v1078 = vmax.f32 %v1046, 0.0
      %v1079 = vmax.f32 %v1048, 0.0
      %v1080 = vmax.f32 %v1050, 0.0
      %v1081 = vmax.f32 %v1052, 0.0
      %v1082 = vmax.f32 %v1056, 0.0
      %v1083 = vmax.f32 %v1058, 0.0
      %v1084 = vmax.f32 %v1060, 0.0
      %v1085 = vmax.f32 %v1062, 0.0
      %v1086 = vmax.f32 %v1066, 0.0
      %v1087 = vmax.f32 %v1068, 0.0
      %v1088 = vmax.f32 %v1070, 0.0
      %v1089 = vmax.f32 %v1072, 0.0
      %v1090 = vpack.c.bf16 %v1076, %v1074
      %v1091 = vpack.c.bf16 %v1077, %v1075
      %v1092 = vpack.c.bf16 %v1080, %v1078
      %v1093 = vpack.c.bf16 %v1081, %v1079
      %v1094 = vpack.c.bf16 %v1084, %v1082
      %v1095 = vpack.c.bf16 %v1085, %v1083
      %v1096 = vpack.c.bf16 %v1088, %v1086
      %v1097 = vpack.c.bf16 %v1089, %v1087
      %v1098 = vld [vmem:[%s6] sm:$0xff]
      %v1099 = vld [vmem:[%s6 + $0x8] sm:$0xff]
      %v1100 = vld [vmem:[%s6 + $0x10] sm:$0xff]
      %v1101 = vld [vmem:[%s6 + $0x18] sm:$0xff]
      %v1102 = vld [vmem:[%s6 + $0x20] sm:$0xff]
      %v1103 = vld [vmem:[%s6 + $0x28] sm:$0xff]
      %v1104 = vld [vmem:[%s6 + $0x30] sm:$0xff]
      %v1105 = vld [vmem:[%s6 + $0x38] sm:$0xff]
      %v1106 = vld [vmem:[%s6 + $0x40] sm:$0xff]
      %v1107 = vld [vmem:[%s6 + $0x48] sm:$0xff]
      %v1108 = vld [vmem:[%s6 + $0x50] sm:$0xff]
      %v1109 = vld [vmem:[%s6 + $0x58] sm:$0xff]
      %v1110 = vld [vmem:[%s6 + $0x60] sm:$0xff]
      %v1111 = vld [vmem:[%s6 + $0x68] sm:$0xff]
      %v1112 = vld [vmem:[%s6 + $0x70] sm:$0xff]
      %v1113 = vld [vmem:[%s6 + $0x78] sm:$0xff]
      %v1114 = vld [vmem:[%s6 + $0x80] sm:$0xff]
      %v1115 = vld [vmem:[%s6 + $0x88] sm:$0xff]
      %v1116 = vld [vmem:[%s6 + $0x90] sm:$0xff]
      %v1117 = vld [vmem:[%s6 + $0x98] sm:$0xff]
      %v1118 = vld [vmem:[%s6 + $0xa0] sm:$0xff]
      %v1119 = vld [vmem:[%s6 + $0xa8] sm:$0xff]
      %v1120 = vld [vmem:[%s6 + $0xb0] sm:$0xff]
      %v1121 = vld [vmem:[%s6 + $0xb8] sm:$0xff]
      %v1122 = vld [vmem:[%s6 + $0xc0] sm:$0xff]
      %v1123 = vld [vmem:[%s6 + $0xc8] sm:$0xff]
      %v1124 = vld [vmem:[%s6 + $0xd0] sm:$0xff]
      %v1125 = vld [vmem:[%s6 + $0xd8] sm:$0xff]
      %v1126 = vld [vmem:[%s6 + $0xe0] sm:$0xff]
      %v1127 = vld [vmem:[%s6 + $0xe8] sm:$0xff]
      %v1128 = vld [vmem:[%s6 + $0xf0] sm:$0xff]
      %v1129 = vld [vmem:[%s6 + $0xf8] sm:$0xff]
      %v1130 = vld [vmem:[%s6 + $0x100] sm:$0xff]
      %v1131 = vld [vmem:[%s6 + $0x108] sm:$0xff]
      %v1132 = vld [vmem:[%s6 + $0x110] sm:$0xff]
      %v1133 = vld [vmem:[%s6 + $0x118] sm:$0xff]
      %v1134 = vld [vmem:[%s6 + $0x120] sm:$0xff]
      %v1135 = vld [vmem:[%s6 + $0x128] sm:$0xff]
      %v1136 = vld [vmem:[%s6 + $0x130] sm:$0xff]
      %v1137 = vld [vmem:[%s6 + $0x138] sm:$0xff]
      %v1138 = vld [vmem:[%s6 + $0x140] sm:$0xff]
      %v1139 = vld [vmem:[%s6 + $0x148] sm:$0xff]
      %v1140 = vld [vmem:[%s6 + $0x150] sm:$0xff]
      %v1141 = vld [vmem:[%s6 + $0x158] sm:$0xff]
      %v1142 = vld [vmem:[%s6 + $0x160] sm:$0xff]
      %v1143 = vld [vmem:[%s6 + $0x168] sm:$0xff]
      %v1144 = vld [vmem:[%s6 + $0x170] sm:$0xff]
      %v1145 = vld [vmem:[%s6 + $0x178] sm:$0xff]
      %v1146 = vld [vmem:[%s6 + $0x180] sm:$0xff]
      %v1147 = vld [vmem:[%s6 + $0x188] sm:$0xff]
      %v1148 = vld [vmem:[%s6 + $0x190] sm:$0xff]
      %v1149 = vld [vmem:[%s6 + $0x198] sm:$0xff]
      %v1150 = vld [vmem:[%s6 + $0x1a0] sm:$0xff]
      %v1151 = vld [vmem:[%s6 + $0x1a8] sm:$0xff]
      %v1152 = vld [vmem:[%s6 + $0x1b0] sm:$0xff]
      %v1153 = vld [vmem:[%s6 + $0x1b8] sm:$0xff]
      %v1154 = vld [vmem:[%s6 + $0x1c0] sm:$0xff]
      %v1155 = vld [vmem:[%s6 + $0x1c8] sm:$0xff]
      %v1156 = vld [vmem:[%s6 + $0x1d0] sm:$0xff]
      %v1157 = vld [vmem:[%s6 + $0x1d8] sm:$0xff]
      %v1158 = vld [vmem:[%s6 + $0x1e0] sm:$0xff]
      %v1159 = vld [vmem:[%s6 + $0x1e8] sm:$0xff]
      %v1160 = vld [vmem:[%s6 + $0x1f0] sm:$0xff]
      %v1161 = vld [vmem:[%s6 + $0x1f8] sm:$0xff]
      %v1162 = vld [vmem:[%s7] sm:$0xf]
      %v1164 = vlaneseq
      %v1165 = vshrl.u32 %v1164, 7
      %v1166 = vsub.s32 0, %v1165
      %v1167 = vrot.slane %v1162, %v1166
      %v1168 = vlaneseq
      %v1169 = vshrl.u32 %v1168, 7
      %v1170 = vsub.s32 1, %v1169
      %v1171 = vrot.slane %v1162, %v1170
      %v1172 = vlaneseq
      %v1173 = vshrl.u32 %v1172, 7
      %v1174 = vsub.s32 2, %v1173
      %v1175 = vrot.slane %v1162, %v1174
      %v1176 = vlaneseq
      %v1177 = vshrl.u32 %v1176, 7
      %v1178 = vsub.s32 3, %v1177
      %v1179 = vrot.slane %v1162, %v1178
      %v1248 = vunpack.c.l.b16 %v1098
      %v1249 = vunpack.c.h.b16 %v1098
      %v1250 = vunpack.c.l.b16 %v1099
      %v1251 = vunpack.c.h.b16 %v1099
      %v1252 = vunpack.c.l.b16 %v1100
      %v1253 = vunpack.c.h.b16 %v1100
      %v1254 = vunpack.c.l.b16 %v1101
      %v1255 = vunpack.c.h.b16 %v1101
      %v1256 = vunpack.c.l.b16 %v1102
      %v1257 = vunpack.c.h.b16 %v1102
      %v1258 = vunpack.c.l.b16 %v1103
      %v1259 = vunpack.c.h.b16 %v1103
      %v1260 = vunpack.c.l.b16 %v1104
      %v1261 = vunpack.c.h.b16 %v1104
      %v1262 = vunpack.c.l.b16 %v1105
      %v1263 = vunpack.c.h.b16 %v1105
      %v1264 = vunpack.c.l.b16 %v1106
      %v1265 = vunpack.c.h.b16 %v1106
      %v1266 = vunpack.c.l.b16 %v1107
      %v1267 = vunpack.c.h.b16 %v1107
      %v1268 = vunpack.c.l.b16 %v1108
      %v1269 = vunpack.c.h.b16 %v1108
      %v1270 = vunpack.c.l.b16 %v1109
      %v1271 = vunpack.c.h.b16 %v1109
      %v1272 = vunpack.c.l.b16 %v1110
      %v1273 = vunpack.c.h.b16 %v1110
      %v1274 = vunpack.c.l.b16 %v1111
      %v1275 = vunpack.c.h.b16 %v1111
      %v1276 = vunpack.c.l.b16 %v1112
      %v1277 = vunpack.c.h.b16 %v1112
      %v1278 = vunpack.c.l.b16 %v1113
      %v1279 = vunpack.c.h.b16 %v1113
      %v1280 = vunpack.c.l.b16 %v1114
      %v1281 = vunpack.c.h.b16 %v1114
      %v1282 = vunpack.c.l.b16 %v1115
      %v1283 = vunpack.c.h.b16 %v1115
      %v1284 = vunpack.c.l.b16 %v1116
      %v1285 = vunpack.c.h.b16 %v1116
      %v1286 = vunpack.c.l.b16 %v1117
      %v1287 = vunpack.c.h.b16 %v1117
      %v1288 = vunpack.c.l.b16 %v1118
      %v1289 = vunpack.c.h.b16 %v1118
      %v1290 = vunpack.c.l.b16 %v1119
      %v1291 = vunpack.c.h.b16 %v1119
      %v1292 = vunpack.c.l.b16 %v1120
      %v1293 = vunpack.c.h.b16 %v1120
      %v1294 = vunpack.c.l.b16 %v1121
      %v1295 = vunpack.c.h.b16 %v1121
      %v1296 = vunpack.c.l.b16 %v1122
      %v1297 = vunpack.c.h.b16 %v1122
      %v1298 = vunpack.c.l.b16 %v1123
      %v1299 = vunpack.c.h.b16 %v1123
      %v1300 = vunpack.c.l.b16 %v1124
      %v1301 = vunpack.c.h.b16 %v1124
      %v1302 = vunpack.c.l.b16 %v1125
      %v1303 = vunpack.c.h.b16 %v1125
      %v1304 = vunpack.c.l.b16 %v1126
      %v1305 = vunpack.c.h.b16 %v1126
      %v1306 = vunpack.c.l.b16 %v1127
      %v1307 = vunpack.c.h.b16 %v1127
      %v1308 = vunpack.c.l.b16 %v1128
      %v1309 = vunpack.c.h.b16 %v1128
      %v1310 = vunpack.c.l.b16 %v1129
      %v1311 = vunpack.c.h.b16 %v1129
      %v1312 = vunpack.c.l.b16 %v1130
      %v1313 = vunpack.c.h.b16 %v1130
      %v1314 = vunpack.c.l.b16 %v1131
      %v1315 = vunpack.c.h.b16 %v1131
      %v1316 = vunpack.c.l.b16 %v1132
      %v1317 = vunpack.c.h.b16 %v1132
      %v1318 = vunpack.c.l.b16 %v1133
      %v1319 = vunpack.c.h.b16 %v1133
      %v1320 = vunpack.c.l.b16 %v1134
      %v1321 = vunpack.c.h.b16 %v1134
      %v1322 = vunpack.c.l.b16 %v1135
      %v1323 = vunpack.c.h.b16 %v1135
      %v1324 = vunpack.c.l.b16 %v1136
      %v1325 = vunpack.c.h.b16 %v1136
      %v1326 = vunpack.c.l.b16 %v1137
      %v1327 = vunpack.c.h.b16 %v1137
      %v1328 = vunpack.c.l.b16 %v1138
      %v1329 = vunpack.c.h.b16 %v1138
      %v1330 = vunpack.c.l.b16 %v1139
      %v1331 = vunpack.c.h.b16 %v1139
      %v1332 = vunpack.c.l.b16 %v1140
      %v1333 = vunpack.c.h.b16 %v1140
      %v1334 = vunpack.c.l.b16 %v1141
      %v1335 = vunpack.c.h.b16 %v1141
      %v1336 = vunpack.c.l.b16 %v1142
      %v1337 = vunpack.c.h.b16 %v1142
      %v1338 = vunpack.c.l.b16 %v1143
      %v1339 = vunpack.c.h.b16 %v1143
      %v1340 = vunpack.c.l.b16 %v1144
      %v1341 = vunpack.c.h.b16 %v1144
      %v1342 = vunpack.c.l.b16 %v1145
      %v1343 = vunpack.c.h.b16 %v1145
      %v1344 = vunpack.c.l.b16 %v1146
      %v1345 = vunpack.c.h.b16 %v1146
      %v1346 = vunpack.c.l.b16 %v1147
      %v1347 = vunpack.c.h.b16 %v1147
      %v1348 = vunpack.c.l.b16 %v1148
      %v1349 = vunpack.c.h.b16 %v1148
      %v1350 = vunpack.c.l.b16 %v1149
      %v1351 = vunpack.c.h.b16 %v1149
      %v1352 = vunpack.c.l.b16 %v1150
      %v1353 = vunpack.c.h.b16 %v1150
      %v1354 = vunpack.c.l.b16 %v1151
      %v1355 = vunpack.c.h.b16 %v1151
      %v1356 = vunpack.c.l.b16 %v1152
      %v1357 = vunpack.c.h.b16 %v1152
      %v1358 = vunpack.c.l.b16 %v1153
      %v1359 = vunpack.c.h.b16 %v1153
      %v1360 = vunpack.c.l.b16 %v1154
      %v1361 = vunpack.c.h.b16 %v1154
      %v1362 = vunpack.c.l.b16 %v1155
      %v1363 = vunpack.c.h.b16 %v1155
      %v1364 = vunpack.c.l.b16 %v1156
      %v1365 = vunpack.c.h.b16 %v1156
      %v1366 = vunpack.c.l.b16 %v1157
      %v1367 = vunpack.c.h.b16 %v1157
      %v1368 = vunpack.c.l.b16 %v1158
      %v1369 = vunpack.c.h.b16 %v1158
      %v1370 = vunpack.c.l.b16 %v1159
      %v1371 = vunpack.c.h.b16 %v1159
      %v1372 = vunpack.c.l.b16 %v1160
      %v1373 = vunpack.c.h.b16 %v1160
      %v1374 = vunpack.c.l.b16 %v1161
      %v1375 = vunpack.c.h.b16 %v1161
      %v1376 = vpack.c.b16 %v1252, %v1248
      %v1377 = vpack.c.b16 %v1253, %v1249
      %v1378 = vpack.c.b16 %v1254, %v1250
      %v1379 = vpack.c.b16 %v1255, %v1251
      %v1380 = vpack.c.b16 %v1260, %v1256
      %v1381 = vpack.c.b16 %v1261, %v1257
      %v1382 = vpack.c.b16 %v1262, %v1258
      %v1383 = vpack.c.b16 %v1263, %v1259
      %v1384 = vpack.c.b16 %v1268, %v1264
      %v1385 = vpack.c.b16 %v1269, %v1265
      %v1386 = vpack.c.b16 %v1270, %v1266
      %v1387 = vpack.c.b16 %v1271, %v1267
      %v1388 = vpack.c.b16 %v1276, %v1272
      %v1389 = vpack.c.b16 %v1277, %v1273
      %v1390 = vpack.c.b16 %v1278, %v1274
      %v1391 = vpack.c.b16 %v1279, %v1275
      %v1392 = vpack.c.b16 %v1284, %v1280
      %v1393 = vpack.c.b16 %v1285, %v1281
      %v1394 = vpack.c.b16 %v1286, %v1282
      %v1395 = vpack.c.b16 %v1287, %v1283
      %v1396 = vpack.c.b16 %v1292, %v1288
      %v1397 = vpack.c.b16 %v1293, %v1289
      %v1398 = vpack.c.b16 %v1294, %v1290
      %v1399 = vpack.c.b16 %v1295, %v1291
      %v1400 = vpack.c.b16 %v1300, %v1296
      %v1401 = vpack.c.b16 %v1301, %v1297
      %v1402 = vpack.c.b16 %v1302, %v1298
      %v1403 = vpack.c.b16 %v1303, %v1299
      %v1404 = vpack.c.b16 %v1308, %v1304
      %v1405 = vpack.c.b16 %v1309, %v1305
      %v1406 = vpack.c.b16 %v1310, %v1306
      %v1407 = vpack.c.b16 %v1311, %v1307
      %v1408 = vpack.c.b16 %v1316, %v1312
      %v1409 = vpack.c.b16 %v1317, %v1313
      %v1410 = vpack.c.b16 %v1318, %v1314
      %v1411 = vpack.c.b16 %v1319, %v1315
      %v1412 = vpack.c.b16 %v1324, %v1320
      %v1413 = vpack.c.b16 %v1325, %v1321
      %v1414 = vpack.c.b16 %v1326, %v1322
      %v1415 = vpack.c.b16 %v1327, %v1323
      %v1416 = vpack.c.b16 %v1332, %v1328
      %v1417 = vpack.c.b16 %v1333, %v1329
      %v1418 = vpack.c.b16 %v1334, %v1330
      %v1419 = vpack.c.b16 %v1335, %v1331
      %v1420 = vpack.c.b16 %v1340, %v1336
      %v1421 = vpack.c.b16 %v1341, %v1337
      %v1422 = vpack.c.b16 %v1342, %v1338
      %v1423 = vpack.c.b16 %v1343, %v1339
      %v1424 = vpack.c.b16 %v1348, %v1344
      %v1425 = vpack.c.b16 %v1349, %v1345
      %v1426 = vpack.c.b16 %v1350, %v1346
      %v1427 = vpack.c.b16 %v1351, %v1347
      %v1428 = vpack.c.b16 %v1356, %v1352
      %v1429 = vpack.c.b16 %v1357, %v1353
      %v1430 = vpack.c.b16 %v1358, %v1354
      %v1431 = vpack.c.b16 %v1359, %v1355
      %v1432 = vpack.c.b16 %v1364, %v1360
      %v1433 = vpack.c.b16 %v1365, %v1361
      %v1434 = vpack.c.b16 %v1366, %v1362
      %v1435 = vpack.c.b16 %v1367, %v1363
      %v1436 = vpack.c.b16 %v1372, %v1368
      %v1437 = vpack.c.b16 %v1373, %v1369
      %v1438 = vpack.c.b16 %v1374, %v1370
      %v1439 = vpack.c.b16 %v1375, %v1371
      %1504 = vmatprep.subr.bf16.mxu0 %v1377
      %1505 = vmatpush1.bf16.msra.mxu0 %v1376
      %1506 = vmatprep.subr.bf16.mxu0 %v1381
      %1507 = vmatpush1.bf16.msra.mxu0 %v1380
      %1508 = vmatprep.subr.bf16.mxu0 %v1385
      %1509 = vmatpush1.bf16.msra.mxu0 %v1384
      %1510 = vmatprep.subr.bf16.mxu0 %v1389
      %1511 = vmatpush1.bf16.msra.mxu0 %v1388
      %1512 = vmatprep.subr.bf16.mxu0 %v1393
      %1513 = vmatpush1.bf16.msra.mxu0 %v1392
      %1514 = vmatprep.subr.bf16.mxu0 %v1397
      %1515 = vmatpush1.bf16.msra.mxu0 %v1396
      %1516 = vmatprep.subr.bf16.mxu0 %v1401
      %1517 = vmatpush1.bf16.msra.mxu0 %v1400
      %1518 = vmatprep.subr.bf16.mxu0 %v1405
      %1519 = vmatpush1.bf16.msra.mxu0 %v1404
      %1520 = vmatprep.subr.bf16.mxu0 %v1409
      %1521 = vmatpush1.bf16.msra.mxu0 %v1408
      %1522 = vmatprep.subr.bf16.mxu0 %v1413
      %1523 = vmatpush1.bf16.msra.mxu0 %v1412
      %1524 = vmatprep.subr.bf16.mxu0 %v1417
      %1525 = vmatpush1.bf16.msra.mxu0 %v1416
      %1526 = vmatprep.subr.bf16.mxu0 %v1421
      %1527 = vmatpush1.bf16.msra.mxu0 %v1420
      %1528 = vmatprep.subr.bf16.mxu0 %v1425
      %1529 = vmatpush1.bf16.msra.mxu0 %v1424
      %1530 = vmatprep.subr.bf16.mxu0 %v1429
      %1531 = vmatpush1.bf16.msra.mxu0 %v1428
      %1532 = vmatprep.subr.bf16.mxu0 %v1433
      %1533 = vmatpush1.bf16.msra.mxu0 %v1432
      %1534 = vmatprep.subr.bf16.mxu0 %v1437
      %1535 = vmatpush1.bf16.msra.mxu0 %v1436
      %1536 = vmatprep.mubr.bf16.mxu0 %v1091
      %1537 = vmatmul.mubr.bf16.gmra.mrb[0].mxu0 %v1090
      %v1538 = vpop.f32.mrb[0].mxu0
      %v1539 = vadd.f32 %v1167, %v1538
      %v1540 = vpop.f32.mrb[0].mxu0
      %v1541 = vadd.f32 %v1171, %v1540
      %v1542 = vpop.f32.mrb[0].mxu0
      %v1543 = vadd.f32 %v1167, %v1542
      %v1544 = vpop.f32.mrb[0].mxu0
      %v1545 = vadd.f32 %v1171, %v1544
      %1546 = vmatprep.mubr.bf16.mxu0 %v1093
      %1547 = vmatmul.mubr.bf16.gmra.mrb[0].mxu0 %v1092
      %v1548 = vpop.f32.mrb[0].mxu0
      %v1549 = vadd.f32 %v1167, %v1548
      %v1550 = vpop.f32.mrb[0].mxu0
      %v1551 = vadd.f32 %v1171, %v1550
      %v1552 = vpop.f32.mrb[0].mxu0
      %v1553 = vadd.f32 %v1167, %v1552
      %v1554 = vpop.f32.mrb[0].mxu0
      %v1555 = vadd.f32 %v1171, %v1554
      %1556 = vmatprep.mubr.bf16.mxu0 %v1095
      %1557 = vmatmul.mubr.bf16.gmra.mrb[0].mxu0 %v1094
      %v1558 = vpop.f32.mrb[0].mxu0
      %v1559 = vadd.f32 %v1167, %v1558
      %v1560 = vpop.f32.mrb[0].mxu0
      %v1561 = vadd.f32 %v1171, %v1560
      %v1562 = vpop.f32.mrb[0].mxu0
      %v1563 = vadd.f32 %v1167, %v1562
      %v1564 = vpop.f32.mrb[0].mxu0
      %v1565 = vadd.f32 %v1171, %v1564
      %1566 = vmatprep.mubr.bf16.mxu0 %v1097
      %1567 = vmatmul.mubr.bf16.gmra.mrb[0].mxu0 %v1096
      %v1568 = vpop.f32.mrb[0].mxu0
      %v1569 = vadd.f32 %v1167, %v1568
      %v1570 = vpop.f32.mrb[0].mxu0
      %v1571 = vadd.f32 %v1171, %v1570
      %v1572 = vpop.f32.mrb[0].mxu0
      %v1573 = vadd.f32 %v1167, %v1572
      %v1574 = vpop.f32.mrb[0].mxu0
      %v1575 = vadd.f32 %v1171, %v1574
      %1576 = vdwg.mxu0
      %1577 = vmatprep.subr.bf16.mxu0 %v1379
      %1578 = vmatpush1.bf16.msra.mxu0 %v1378
      %1579 = vmatprep.subr.bf16.mxu0 %v1383
      %1580 = vmatpush1.bf16.msra.mxu0 %v1382
      %1581 = vmatprep.subr.bf16.mxu0 %v1387
      %1582 = vmatpush1.bf16.msra.mxu0 %v1386
      %1583 = vmatprep.subr.bf16.mxu0 %v1391
      %1584 = vmatpush1.bf16.msra.mxu0 %v1390
      %1585 = vmatprep.subr.bf16.mxu0 %v1395
      %1586 = vmatpush1.bf16.msra.mxu0 %v1394
      %1587 = vmatprep.subr.bf16.mxu0 %v1399
      %1588 = vmatpush1.bf16.msra.mxu0 %v1398
      %1589 = vmatprep.subr.bf16.mxu0 %v1403
      %1590 = vmatpush1.bf16.msra.mxu0 %v1402
      %1591 = vmatprep.subr.bf16.mxu0 %v1407
      %1592 = vmatpush1.bf16.msra.mxu0 %v1406
      %1593 = vmatprep.subr.bf16.mxu0 %v1411
      %1594 = vmatpush1.bf16.msra.mxu0 %v1410
      %1595 = vmatprep.subr.bf16.mxu0 %v1415
      %1596 = vmatpush1.bf16.msra.mxu0 %v1414
      %1597 = vmatprep.subr.bf16.mxu0 %v1419
      %1598 = vmatpush1.bf16.msra.mxu0 %v1418
      %1599 = vmatprep.subr.bf16.mxu0 %v1423
      %1600 = vmatpush1.bf16.msra.mxu0 %v1422
      %1601 = vmatprep.subr.bf16.mxu0 %v1427
      %1602 = vmatpush1.bf16.msra.mxu0 %v1426
      %1603 = vmatprep.subr.bf16.mxu0 %v1431
      %1604 = vmatpush1.bf16.msra.mxu0 %v1430
      %1605 = vmatprep.subr.bf16.mxu0 %v1435
      %1606 = vmatpush1.bf16.msra.mxu0 %v1434
      %1607 = vmatprep.subr.bf16.mxu0 %v1439
      %1608 = vmatpush1.bf16.msra.mxu0 %v1438
      %1609 = vmatprep.mubr.bf16.mxu0 %v1091
      %1610 = vmatmul.mubr.bf16.gmra.mrb[0].mxu0 %v1090
      %v1611 = vpop.f32.mrb[0].mxu0
      %v1612 = vadd.f32 %v1175, %v1611
      %v1613 = vpop.f32.mrb[0].mxu0
      %v1614 = vadd.f32 %v1179, %v1613
      %v1615 = vpop.f32.mrb[0].mxu0
      %v1616 = vadd.f32 %v1175, %v1615
      %v1617 = vpop.f32.mrb[0].mxu0
      %v1618 = vadd.f32 %v1179, %v1617
      %1619 = vmatprep.mubr.bf16.mxu0 %v1093
      %1620 = vmatmul.mubr.bf16.gmra.mrb[0].mxu0 %v1092
      %v1621 = vpop.f32.mrb[0].mxu0
      %v1622 = vadd.f32 %v1175, %v1621
      %v1623 = vpop.f32.mrb[0].mxu0
      %v1624 = vadd.f32 %v1179, %v1623
      %v1625 = vpop.f32.mrb[0].mxu0
      %v1626 = vadd.f32 %v1175, %v1625
      %v1627 = vpop.f32.mrb[0].mxu0
      %v1628 = vadd.f32 %v1179, %v1627
      %1629 = vmatprep.mubr.bf16.mxu0 %v1095
      %1630 = vmatmul.mubr.bf16.gmra.mrb[0].mxu0 %v1094
      %v1631 = vpop.f32.mrb[0].mxu0
      %v1632 = vadd.f32 %v1175, %v1631
      %v1633 = vpop.f32.mrb[0].mxu0
      %v1634 = vadd.f32 %v1179, %v1633
      %v1635 = vpop.f32.mrb[0].mxu0
      %v1636 = vadd.f32 %v1175, %v1635
      %v1637 = vpop.f32.mrb[0].mxu0
      %v1638 = vadd.f32 %v1179, %v1637
      %1639 = vmatprep.mubr.bf16.mxu0 %v1097
      %1640 = vmatmul.mubr.bf16.gmra.mrb[0].mxu0 %v1096
      %v1641 = vpop.f32.mrb[0].mxu0
      %v1642 = vadd.f32 %v1175, %v1641
      %v1643 = vpop.f32.mrb[0].mxu0
      %v1644 = vadd.f32 %v1179, %v1643
      %v1645 = vpop.f32.mrb[0].mxu0
      %v1646 = vadd.f32 %v1175, %v1645
      %v1647 = vpop.f32.mrb[0].mxu0
      %v1648 = vadd.f32 %v1179, %v1647
      %1649 = vdwg.mxu0
      %v1650 = vmax.f32 %v1539, 0.0
      %v1651 = vmax.f32 %v1541, 0.0
      %v1652 = vmax.f32 %v1612, 0.0
      %v1653 = vmax.f32 %v1614, 0.0
      %v1654 = vmax.f32 %v1543, 0.0
      %v1655 = vmax.f32 %v1545, 0.0
      %v1656 = vmax.f32 %v1616, 0.0
      %v1657 = vmax.f32 %v1618, 0.0
      %v1658 = vmax.f32 %v1549, 0.0
      %v1659 = vmax.f32 %v1551, 0.0
      %v1660 = vmax.f32 %v1622, 0.0
      %v1661 = vmax.f32 %v1624, 0.0
      %v1662 = vmax.f32 %v1553, 0.0
      %v1663 = vmax.f32 %v1555, 0.0
      %v1664 = vmax.f32 %v1626, 0.0
      %v1665 = vmax.f32 %v1628, 0.0
      %v1666 = vmax.f32 %v1559, 0.0
      %v1667 = vmax.f32 %v1561, 0.0
      %v1668 = vmax.f32 %v1632, 0.0
      %v1669 = vmax.f32 %v1634, 0.0
      %v1670 = vmax.f32 %v1563, 0.0
      %v1671 = vmax.f32 %v1565, 0.0
      %v1672 = vmax.f32 %v1636, 0.0
      %v1673 = vmax.f32 %v1638, 0.0
      %v1674 = vmax.f32 %v1569, 0.0
      %v1675 = vmax.f32 %v1571, 0.0
      %v1676 = vmax.f32 %v1642, 0.0
      %v1677 = vmax.f32 %v1644, 0.0
      %v1678 = vmax.f32 %v1573, 0.0
      %v1679 = vmax.f32 %v1575, 0.0
      %v1680 = vmax.f32 %v1646, 0.0
      %v1681 = vmax.f32 %v1648, 0.0
      %v1682 = vrot.slane %v1650, 4
      %v1683 = vmax.f32 %v1650, %v1682
      %v1684 = vrot.slane %v1683, 2
      %v1685 = vmax.f32 %v1683, %v1684
      %v1686 = vrot.slane %v1685, 1
      %v1687 = vmax.f32 %v1685, %v1686
      %v1688 = vrot.slane %v1651, 4
      %v1689 = vmax.f32 %v1651, %v1688
      %v1690 = vrot.slane %v1689, 2
      %v1691 = vmax.f32 %v1689, %v1690
      %v1692 = vrot.slane %v1691, 1
      %v1693 = vmax.f32 %v1691, %v1692
      %v1694 = vrot.slane %v1652, 4
      %v1695 = vmax.f32 %v1652, %v1694
      %v1696 = vrot.slane %v1695, 2
      %v1697 = vmax.f32 %v1695, %v1696
      %v1698 = vrot.slane %v1697, 1
      %v1699 = vmax.f32 %v1697, %v1698
      %v1700 = vrot.slane %v1653, 4
      %v1701 = vmax.f32 %v1653, %v1700
      %v1702 = vrot.slane %v1701, 2
      %v1703 = vmax.f32 %v1701, %v1702
      %v1704 = vrot.slane %v1703, 1
      %v1705 = vmax.f32 %v1703, %v1704
      %v1706 = vrot.slane %v1654, 4
      %v1707 = vmax.f32 %v1654, %v1706
      %v1708 = vrot.slane %v1707, 2
      %v1709 = vmax.f32 %v1707, %v1708
      %v1710 = vrot.slane %v1709, 1
      %v1711 = vmax.f32 %v1709, %v1710
      %v1712 = vrot.slane %v1655, 4
      %v1713 = vmax.f32 %v1655, %v1712
      %v1714 = vrot.slane %v1713, 2
      %v1715 = vmax.f32 %v1713, %v1714
      %v1716 = vrot.slane %v1715, 1
      %v1717 = vmax.f32 %v1715, %v1716
      %v1718 = vrot.slane %v1656, 4
      %v1719 = vmax.f32 %v1656, %v1718
      %v1720 = vrot.slane %v1719, 2
      %v1721 = vmax.f32 %v1719, %v1720
      %v1722 = vrot.slane %v1721, 1
      %v1723 = vmax.f32 %v1721, %v1722
      %v1724 = vrot.slane %v1657, 4
      %v1725 = vmax.f32 %v1657, %v1724
      %v1726 = vrot.slane %v1725, 2
      %v1727 = vmax.f32 %v1725, %v1726
      %v1728 = vrot.slane %v1727, 1
      %v1729 = vmax.f32 %v1727, %v1728
      %v1730 = vrot.slane %v1658, 4
      %v1731 = vmax.f32 %v1658, %v1730
      %v1732 = vrot.slane %v1731, 2
      %v1733 = vmax.f32 %v1731, %v1732
      %v1734 = vrot.slane %v1733, 1
      %v1735 = vmax.f32 %v1733, %v1734
      %v1736 = vrot.slane %v1659, 4
      %v1737 = vmax.f32 %v1659, %v1736
      %v1738 = vrot.slane %v1737, 2
      %v1739 = vmax.f32 %v1737, %v1738
      %v1740 = vrot.slane %v1739, 1
      %v1741 = vmax.f32 %v1739, %v1740
      %v1742 = vrot.slane %v1660, 4
      %v1743 = vmax.f32 %v1660, %v1742
      %v1744 = vrot.slane %v1743, 2
      %v1745 = vmax.f32 %v1743, %v1744
      %v1746 = vrot.slane %v1745, 1
      %v1747 = vmax.f32 %v1745, %v1746
      %v1748 = vrot.slane %v1661, 4
      %v1749 = vmax.f32 %v1661, %v1748
      %v1750 = vrot.slane %v1749, 2
      %v1751 = vmax.f32 %v1749, %v1750
      %v1752 = vrot.slane %v1751, 1
      %v1753 = vmax.f32 %v1751, %v1752
      %v1754 = vrot.slane %v1662, 4
      %v1755 = vmax.f32 %v1662, %v1754
      %v1756 = vrot.slane %v1755, 2
      %v1757 = vmax.f32 %v1755, %v1756
      %v1758 = vrot.slane %v1757, 1
      %v1759 = vmax.f32 %v1757, %v1758
      %v1760 = vrot.slane %v1663, 4
      %v1761 = vmax.f32 %v1663, %v1760
      %v1762 = vrot.slane %v1761, 2
      %v1763 = vmax.f32 %v1761, %v1762
      %v1764 = vrot.slane %v1763, 1
      %v1765 = vmax.f32 %v1763, %v1764
      %v1766 = vrot.slane %v1664, 4
      %v1767 = vmax.f32 %v1664, %v1766
      %v1768 = vrot.slane %v1767, 2
      %v1769 = vmax.f32 %v1767, %v1768
      %v1770 = vrot.slane %v1769, 1
      %v1771 = vmax.f32 %v1769, %v1770
      %v1772 = vrot.slane %v1665, 4
      %v1773 = vmax.f32 %v1665, %v1772
      %v1774 = vrot.slane %v1773, 2
      %v1775 = vmax.f32 %v1773, %v1774
      %v1776 = vrot.slane %v1775, 1
      %v1777 = vmax.f32 %v1775, %v1776
      %v1778 = vrot.slane %v1666, 4
      %v1779 = vmax.f32 %v1666, %v1778
      %v1780 = vrot.slane %v1779, 2
      %v1781 = vmax.f32 %v1779, %v1780
      %v1782 = vrot.slane %v1781, 1
      %v1783 = vmax.f32 %v1781, %v1782
      %v1784 = vrot.slane %v1667, 4
      %v1785 = vmax.f32 %v1667, %v1784
      %v1786 = vrot.slane %v1785, 2
      %v1787 = vmax.f32 %v1785, %v1786
      %v1788 = vrot.slane %v1787, 1
      %v1789 = vmax.f32 %v1787, %v1788
      %v1790 = vrot.slane %v1668, 4
      %v1791 = vmax.f32 %v1668, %v1790
      %v1792 = vrot.slane %v1791, 2
      %v1793 = vmax.f32 %v1791, %v1792
      %v1794 = vrot.slane %v1793, 1
      %v1795 = vmax.f32 %v1793, %v1794
      %v1796 = vrot.slane %v1669, 4
      %v1797 = vmax.f32 %v1669, %v1796
      %v1798 = vrot.slane %v1797, 2
      %v1799 = vmax.f32 %v1797, %v1798
      %v1800 = vrot.slane %v1799, 1
      %v1801 = vmax.f32 %v1799, %v1800
      %v1802 = vrot.slane %v1670, 4
      %v1803 = vmax.f32 %v1670, %v1802
      %v1804 = vrot.slane %v1803, 2
      %v1805 = vmax.f32 %v1803, %v1804
      %v1806 = vrot.slane %v1805, 1
      %v1807 = vmax.f32 %v1805, %v1806
      %v1808 = vrot.slane %v1671, 4
      %v1809 = vmax.f32 %v1671, %v1808
      %v1810 = vrot.slane %v1809, 2
      %v1811 = vmax.f32 %v1809, %v1810
      %v1812 = vrot.slane %v1811, 1
      %v1813 = vmax.f32 %v1811, %v1812
      %v1814 = vrot.slane %v1672, 4
      %v1815 = vmax.f32 %v1672, %v1814
      %v1816 = vrot.slane %v1815, 2
      %v1817 = vmax.f32 %v1815, %v1816
      %v1818 = vrot.slane %v1817, 1
      %v1819 = vmax.f32 %v1817, %v1818
      %v1820 = vrot.slane %v1673, 4
      %v1821 = vmax.f32 %v1673, %v1820
      %v1822 = vrot.slane %v1821, 2
      %v1823 = vmax.f32 %v1821, %v1822
      %v1824 = vrot.slane %v1823, 1
      %v1825 = vmax.f32 %v1823, %v1824
      %v1826 = vrot.slane %v1674, 4
      %v1827 = vmax.f32 %v1674, %v1826
      %v1828 = vrot.slane %v1827, 2
      %v1829 = vmax.f32 %v1827, %v1828
      %v1830 = vrot.slane %v1829, 1
      %v1831 = vmax.f32 %v1829, %v1830
      %v1832 = vrot.slane %v1675, 4
      %v1833 = vmax.f32 %v1675, %v1832
      %v1834 = vrot.slane %v1833, 2
      %v1835 = vmax.f32 %v1833, %v1834
      %v1836 = vrot.slane %v1835, 1
      %v1837 = vmax.f32 %v1835, %v1836
      %v1838 = vrot.slane %v1676, 4
      %v1839 = vmax.f32 %v1676, %v1838
      %v1840 = vrot.slane %v1839, 2
      %v1841 = vmax.f32 %v1839, %v1840
      %v1842 = vrot.slane %v1841, 1
      %v1843 = vmax.f32 %v1841, %v1842
      %v1844 = vrot.slane %v1677, 4
      %v1845 = vmax.f32 %v1677, %v1844
      %v1846 = vrot.slane %v1845, 2
      %v1847 = vmax.f32 %v1845, %v1846
      %v1848 = vrot.slane %v1847, 1
      %v1849 = vmax.f32 %v1847, %v1848
      %v1850 = vrot.slane %v1678, 4
      %v1851 = vmax.f32 %v1678, %v1850
      %v1852 = vrot.slane %v1851, 2
      %v1853 = vmax.f32 %v1851, %v1852
      %v1854 = vrot.slane %v1853, 1
      %v1855 = vmax.f32 %v1853, %v1854
      %v1856 = vrot.slane %v1679, 4
      %v1857 = vmax.f32 %v1679, %v1856
      %v1858 = vrot.slane %v1857, 2
      %v1859 = vmax.f32 %v1857, %v1858
      %v1860 = vrot.slane %v1859, 1
      %v1861 = vmax.f32 %v1859, %v1860
      %v1862 = vrot.slane %v1680, 4
      %v1863 = vmax.f32 %v1680, %v1862
      %v1864 = vrot.slane %v1863, 2
      %v1865 = vmax.f32 %v1863, %v1864
      %v1866 = vrot.slane %v1865, 1
      %v1867 = vmax.f32 %v1865, %v1866
      %v1868 = vrot.slane %v1681, 4
      %v1869 = vmax.f32 %v1681, %v1868
      %v1870 = vrot.slane %v1869, 2
      %v1871 = vmax.f32 %v1869, %v1870
      %v1872 = vrot.slane %v1871, 1
      %v1873 = vmax.f32 %v1871, %v1872
      %v1874 = vpack.c.bf16 %v1687, %v1687
      %v1875 = vpack.c.bf16 %v1693, %v1693
      %v1876 = vpack.c.bf16 %v1699, %v1699
      %v1877 = vpack.c.bf16 %v1705, %v1705
      %v1878 = vpack.c.bf16 %v1711, %v1711
      %v1879 = vpack.c.bf16 %v1717, %v1717
      %v1880 = vpack.c.bf16 %v1723, %v1723
      %v1881 = vpack.c.bf16 %v1729, %v1729
      %v1882 = vpack.c.bf16 %v1735, %v1735
      %v1883 = vpack.c.bf16 %v1741, %v1741
      %v1884 = vpack.c.bf16 %v1747, %v1747
      %v1885 = vpack.c.bf16 %v1753, %v1753
      %v1886 = vpack.c.bf16 %v1759, %v1759
      %v1887 = vpack.c.bf16 %v1765, %v1765
      %v1888 = vpack.c.bf16 %v1771, %v1771
      %v1889 = vpack.c.bf16 %v1777, %v1777
      %v1890 = vpack.c.bf16 %v1783, %v1783
      %v1891 = vpack.c.bf16 %v1789, %v1789
      %v1892 = vpack.c.bf16 %v1795, %v1795
      %v1893 = vpack.c.bf16 %v1801, %v1801
      %v1894 = vpack.c.bf16 %v1807, %v1807
      %v1895 = vpack.c.bf16 %v1813, %v1813
      %v1896 = vpack.c.bf16 %v1819, %v1819
      %v1897 = vpack.c.bf16 %v1825, %v1825
      %v1898 = vpack.c.bf16 %v1831, %v1831
      %v1899 = vpack.c.bf16 %v1837, %v1837
      %v1900 = vpack.c.bf16 %v1843, %v1843
      %v1901 = vpack.c.bf16 %v1849, %v1849
      %v1902 = vpack.c.bf16 %v1855, %v1855
      %v1903 = vpack.c.bf16 %v1861, %v1861
      %v1904 = vpack.c.bf16 %v1867, %v1867
      %v1905 = vpack.c.bf16 %v1873, %v1873
      %v1938 = vunpack.c.l.b16 %v1874
      %v1939 = vunpack.c.l.b16 %v1875
      %v1940 = vunpack.c.l.b16 %v1876
      %v1941 = vunpack.c.l.b16 %v1877
      %v1942 = vunpack.c.l.b16 %v1878
      %v1943 = vunpack.c.l.b16 %v1879
      %v1944 = vunpack.c.l.b16 %v1880
      %v1945 = vunpack.c.l.b16 %v1881
      %v1946 = vunpack.c.l.b16 %v1882
      %v1947 = vunpack.c.l.b16 %v1883
      %v1948 = vunpack.c.l.b16 %v1884
      %v1949 = vunpack.c.l.b16 %v1885
      %v1950 = vunpack.c.l.b16 %v1886
      %v1951 = vunpack.c.l.b16 %v1887
      %v1952 = vunpack.c.l.b16 %v1888
      %v1953 = vunpack.c.l.b16 %v1889
      %v1954 = vunpack.c.l.b16 %v1890
      %v1955 = vunpack.c.l.b16 %v1891
      %v1956 = vunpack.c.l.b16 %v1892
      %v1957 = vunpack.c.l.b16 %v1893
      %v1958 = vunpack.c.l.b16 %v1894
      %v1959 = vunpack.c.l.b16 %v1895
      %v1960 = vunpack.c.l.b16 %v1896
      %v1961 = vunpack.c.l.b16 %v1897
      %v1962 = vunpack.c.l.b16 %v1898
      %v1963 = vunpack.c.l.b16 %v1899
      %v1964 = vunpack.c.l.b16 %v1900
      %v1965 = vunpack.c.l.b16 %v1901
      %v1966 = vunpack.c.l.b16 %v1902
      %v1967 = vunpack.c.l.b16 %v1903
      %v1968 = vunpack.c.l.b16 %v1904
      %v1969 = vunpack.c.l.b16 %v1905
      %v1970 = vpack.c.b16 %v1939, %v1938
      %v1971 = vpack.c.b16 %v1941, %v1940
      %v1972 = vpack.c.b16 %v1943, %v1942
      %v1973 = vpack.c.b16 %v1945, %v1944
      %v1974 = vpack.c.b16 %v1947, %v1946
      %v1975 = vpack.c.b16 %v1949, %v1948
      %v1976 = vpack.c.b16 %v1951, %v1950
      %v1977 = vpack.c.b16 %v1953, %v1952
      %v1978 = vpack.c.b16 %v1955, %v1954
      %v1979 = vpack.c.b16 %v1957, %v1956
      %v1980 = vpack.c.b16 %v1959, %v1958
      %v1981 = vpack.c.b16 %v1961, %v1960
      %v1982 = vpack.c.b16 %v1963, %v1962
      %v1983 = vpack.c.b16 %v1965, %v1964
      %v1984 = vpack.c.b16 %v1967, %v1966
      %v1985 = vpack.c.b16 %v1969, %v1968
      %v1986 = vunpack.c.l.b16 %v1970
      %v1987 = vunpack.c.h.b16 %v1970
      %v1988 = vunpack.c.l.b16 %v1971
      %v1989 = vunpack.c.h.b16 %v1971
      %v1990 = vunpack.c.l.b16 %v1972
      %v1991 = vunpack.c.h.b16 %v1972
      %v1992 = vunpack.c.l.b16 %v1973
      %v1993 = vunpack.c.h.b16 %v1973
      %v1994 = vunpack.c.l.b16 %v1974
      %v1995 = vunpack.c.h.b16 %v1974
      %v1996 = vunpack.c.l.b16 %v1975
      %v1997 = vunpack.c.h.b16 %v1975
      %v1998 = vunpack.c.l.b16 %v1976
      %v1999 = vunpack.c.h.b16 %v1976
      %v2000 = vunpack.c.l.b16 %v1977
      %v2001 = vunpack.c.h.b16 %v1977
      %v2002 = vunpack.c.l.b16 %v1978
      %v2003 = vunpack.c.h.b16 %v1978
      %v2004 = vunpack.c.l.b16 %v1979
      %v2005 = vunpack.c.h.b16 %v1979
      %v2006 = vunpack.c.l.b16 %v1980
      %v2007 = vunpack.c.h.b16 %v1980
      %v2008 = vunpack.c.l.b16 %v1981
      %v2009 = vunpack.c.h.b16 %v1981
      %v2010 = vunpack.c.l.b16 %v1982
      %v2011 = vunpack.c.h.b16 %v1982
      %v2012 = vunpack.c.l.b16 %v1983
      %v2013 = vunpack.c.h.b16 %v1983
      %v2014 = vunpack.c.l.b16 %v1984
      %v2015 = vunpack.c.h.b16 %v1984
      %v2016 = vunpack.c.l.b16 %v1985
      %v2017 = vunpack.c.h.b16 %v1985
      %vm2018 = vcmask 1041409
      %v2019 = vsel %vm2018, %v1990, %v1986
      %vm2020 = vcmask 1042434
      %v2021 = vsel %vm2020, %v1994, %v2019
      %vm2022 = vcmask 1043459
      %v2023 = vsel %vm2022, %v1998, %v2021
      %vm2024 = vcmask 1044484
      %v2025 = vsel %vm2024, %v2002, %v2023
      %vm2026 = vcmask 1045509
      %v2027 = vsel %vm2026, %v2006, %v2025
      %vm2028 = vcmask 1046534
      %v2029 = vsel %vm2028, %v2010, %v2027
      %vm2030 = vcmask 1047559
      %v2031 = vsel %vm2030, %v2014, %v2029
      %v2032 = vsel %vm2018, %v1991, %v1987
      %v2033 = vsel %vm2020, %v1995, %v2032
      %v2034 = vsel %vm2022, %v1999, %v2033
      %v2035 = vsel %vm2024, %v2003, %v2034
      %v2036 = vsel %vm2026, %v2007, %v2035
      %v2037 = vsel %vm2028, %v2011, %v2036
      %v2038 = vsel %vm2030, %v2015, %v2037
      %v2039 = vsel %vm2018, %v1992, %v1988
      %v2040 = vsel %vm2020, %v1996, %v2039
      %v2041 = vsel %vm2022, %v2000, %v2040
      %v2042 = vsel %vm2024, %v2004, %v2041
      %v2043 = vsel %vm2026, %v2008, %v2042
      %v2044 = vsel %vm2028, %v2012, %v2043
      %v2045 = vsel %vm2030, %v2016, %v2044
      %v2046 = vsel %vm2018, %v1993, %v1989
      %v2047 = vsel %vm2020, %v1997, %v2046
      %v2048 = vsel %vm2022, %v2001, %v2047
      %v2049 = vsel %vm2024, %v2005, %v2048
      %v2050 = vsel %vm2026, %v2009, %v2049
      %v2051 = vsel %vm2028, %v2013, %v2050
      %v2052 = vsel %vm2030, %v2017, %v2051
      %v2053 = vpack.c.b16 %v2038, %v2031
      %v2054 = vpack.c.b16 %v2052, %v2045
      %2057 = vst [vmem:[%s332] sm:$0xff] %v2053
      %2058 = vst [vmem:[%s332 + $0x8] sm:$0xff] %v2054
      %p2059 = scmp.lt.s32.totalorder %s19, 1
      %s2060 = scalar_select %p2059, %s19, 1
      %s2061 = smul.addr %s2060, 4
      %s2062 = smul.addr %s2061, 4
      %s2063 = scalar_lea.vmem %s8, %s2062
      // Predicated region
      $region53: #{pointnet2_encoder_forward.6} parent=51 // pred_check
        %p2064 = pneg %p215
      $region54: #{pointnet2_encoder_forward.6} parent=51 // pred_check_branch
        %2066 = sbr.rel (%p2064) target = $region56
      $region55: #{pointnet2_encoder_forward.6} parent=51 // pred_region
        _
      $region56: #{pointnet2_encoder_forward.6} parent=51 // pred_fallthru
        _
    $region52: #{pointnet2_encoder_forward.6} parent=5 // pred_fallthru
      _
    %p2067 = scmp.le.s32.totalorder 2, %s14
    // Predicated region
    $region57: #{pointnet2_encoder_forward.6} parent=5 // pred_check
      %p2068 = pneg %p2067
    $region58: #{pointnet2_encoder_forward.6} parent=5 // pred_check_branch
      %2070 = sbr.rel (%p2068) target = $region60
    $region59: #{pointnet2_encoder_forward.6} parent=5 // pred_region
      %s2071 = ssub.s32 %s14, 2
      // Predicated region
      $region61: #{pointnet2_encoder_forward.6} parent=59 // pred_check
        %p2072 = pneg %p221
      $region62: #{pointnet2_encoder_forward.6} parent=59 // pred_check_branch
        %2074 = sbr.rel (%p2072) target = $region64
      $region63: #{pointnet2_encoder_forward.6} parent=59 // pred_region
        %p2075 = scmp.lt.s32.totalorder %s20, 1
        %s2076 = scalar_select %p2075, %s20, 1
        %s2077 = smul.addr %s2076, 4
        %s2078 = smul.addr %s2077, 4
        %s2079 = scalar_lea.vmem %s8, %s2078
      $region64: #{pointnet2_encoder_forward.6} parent=59 // pred_fallthru
        _
    $region60: #{pointnet2_encoder_forward.6} parent=5 // pred_fallthru
      _
  $region6: #{pointnet2_encoder_forward.6} parent=0 // loop_footer
    %s18 = sadd.s32 1, %s14
  $region7: #{pointnet2_encoder_forward.6} parent=0 // loop_footer_branch
    %13 = sbr.rel target = $region3
  $region8: #{pointnet2_encoder_forward.6} parent=0 // loop_exit
    _

// kernel: pointnet2_encoder_forward.7
$region0: #{pointnet2_encoder_forward.7}
  #allocation0 [shape = 'u32[]', space=smem, size = 0x4, offset = 0x4, fixed_abs, tag = 'smem constant byte address 0x4 - core index']
  #allocation1 [shape = 'u32[144,128]{1,0:T(1,128)}', space=vmem, size = 0x12000, scoped, tag = 'internal scratch']
  %s0 = inlined_call_operand.vmem [shape: bf16[128,16], index: 0, kind: input, shape index: {}]
  %s1 = inlined_call_operand.vmem [shape: bf16[128,512], index: 1, kind: input, shape index: {}]
  %s2 = inlined_call_operand.vmem [shape: bf16[16,512], index: 2, kind: input, shape index: {}]
  %s3 = inlined_call_operand.vmem [shape: bf16[512,512], index: 3, kind: input, shape index: {}]
  %s4 = inlined_call_operand.vmem [shape: bf16[512,512], index: 4, kind: input, shape index: {}]
  %s5 = inlined_call_operand.vmem [shape: f32[1,512], index: 5, kind: input, shape index: {}]
  %s6 = inlined_call_operand.vmem [shape: bf16[512,512], index: 6, kind: input, shape index: {}]
  %s7 = inlined_call_operand.vmem [shape: f32[1,512], index: 7, kind: input, shape index: {}]
  %s8 = inlined_call_operand.vmem [shape: bf16[16,512], index: 8, kind: output, shape index: {}]
  %s9 = sld [smem:[#allocation0]]
  $region65: #{pointnet2_encoder_forward.7} parent=0
    _
  %s11 = ssub.s32 1, %s9
  %s12 = scalar_select 0, %s11, %s9
  loop: start=0, step=1, limit=4
  $region2: #{pointnet2_encoder_forward.7} parent=0 // loop_pre_header
    _
  $region3: #{pointnet2_encoder_forward.7} parent=0 // loop_header
    %s14 = sphi 0, %s18
    %p15 = scmp.ge.s32.totalorder %s14, 4
    %s24 = sphi 0, %s26
    %s27 = sphi 0, %s24
    %s28 = sphi 0, %s27
    %s44 = sphi 0, %s28
    %s50 = sphi 0, %s52
    %s53 = sphi 0, %s50
    %s54 = sphi 0, %s53
    %s70 = sphi 0, %s54
    %s74 = sphi 0, %s74
    %s76 = sphi 0, %s74
    %s77 = sphi 0, %s76
    %s91 = sphi 0, %s77
    %s95 = sphi 0, %s95
    %s97 = sphi 0, %s95
    %s98 = sphi 0, %s97
    %s112 = sphi 0, %s98
    %s116 = sphi 0, %s116
    %s118 = sphi 0, %s116
    %s119 = sphi 0, %s118
    %s133 = sphi 0, %s119
    %s137 = sphi 0, %s137
    %s139 = sphi 0, %s137
    %s140 = sphi 0, %s139
    %s154 = sphi 0, %s140
    %s158 = sphi 0, %s158
    %s160 = sphi 0, %s158
    %s161 = sphi 0, %s160
    %s175 = sphi 0, %s161
    %s179 = sphi 0, %s179
    %s181 = sphi 0, %s179
    %s182 = sphi 0, %s181
    %s196 = sphi 0, %s182
    %s202 = sphi 0, %s204
    %s205 = sphi 0, %s202
    %s206 = sphi 0, %s205
    %s222 = sphi 0, %s206
  $region4: #{pointnet2_encoder_forward.7} parent=0 // loop_header_branch
    %17 = sbr.rel (%p15) target = $region8
  $region5: #{pointnet2_encoder_forward.7} parent=0 // loop_body
    %s19 = ssub.s32 %s14, 1
    %s20 = ssub.s32 %s14, 2
    %s21 = sadd.s32 %s14, 1
    %s22 = ssub.s32 %s14, %s21
    %p23 = scmp.eq.s32.totalorder %s22, 0
    %s25 = sadd.s32 %s24, 1
    %s26 = scalar_select %p23, %s24, %s25
    %p29 = pneg %p23
    %p30 = scmp.eq.s32.totalorder %s14, 1
    %p31 = por %p29, %p30
    %p32 = scmp.ne.s32.totalorder %s24, %s27
    %p33 = scmp.eq.s32.totalorder %s14, 0
    %p34 = por %p32, %p33
    %p35 = scmp.ne.s32.totalorder %s24, %s27
    %p36 = scmp.eq.s32.totalorder %s19, 1
    %p37 = por %p35, %p36
    %p38 = scmp.ne.s32.totalorder %s27, %s28
    %p39 = scmp.eq.s32.totalorder %s19, 0
    %p40 = por %p38, %p39
    %p41 = scmp.ne.s32.totalorder %s27, %s28
    %p42 = scmp.eq.s32.totalorder %s20, 1
    %p43 = por %p41, %p42
    %p45 = scmp.ne.s32.totalorder %s28, %s44
    %p46 = scmp.eq.s32.totalorder %s20, 0
    %p47 = por %p45, %p46
    %s48 = ssub.s32 %s14, %s21
    %p49 = scmp.eq.s32.totalorder %s48, 0
    %s51 = sadd.s32 %s50, 1
    %s52 = scalar_select %p49, %s50, %s51
    %p55 = pneg %p49
    %p56 = scmp.eq.s32.totalorder %s14, 1
    %p57 = por %p55, %p56
    %p58 = scmp.ne.s32.totalorder %s50, %s53
    %p59 = scmp.eq.s32.totalorder %s14, 0
    %p60 = por %p58, %p59
    %p61 = scmp.ne.s32.totalorder %s50, %s53
    %p62 = scmp.eq.s32.totalorder %s19, 1
    %p63 = por %p61, %p62
    %p64 = scmp.ne.s32.totalorder %s53, %s54
    %p65 = scmp.eq.s32.totalorder %s19, 0
    %p66 = por %p64, %p65
    %p67 = scmp.ne.s32.totalorder %s53, %s54
    %p68 = scmp.eq.s32.totalorder %s20, 1
    %p69 = por %p67, %p68
    %p71 = scmp.ne.s32.totalorder %s54, %s70
    %p72 = scmp.eq.s32.totalorder %s20, 0
    %p73 = por %p71, %p72
    %s75 = sadd.s32 %s74, 1
    %p78 = scmp.eq.s32.totalorder %s14, 1
    %p79 = scmp.ne.s32.totalorder %s74, %s76
    %p80 = scmp.eq.s32.totalorder %s14, 0
    %p81 = por %p79, %p80
    %p82 = scmp.ne.s32.totalorder %s74, %s76
    %p83 = scmp.eq.s32.totalorder %s19, 1
    %p84 = por %p82, %p83
    %p85 = scmp.ne.s32.totalorder %s76, %s77
    %p86 = scmp.eq.s32.totalorder %s19, 0
    %p87 = por %p85, %p86
    %p88 = scmp.ne.s32.totalorder %s76, %s77
    %p89 = scmp.eq.s32.totalorder %s20, 1
    %p90 = por %p88, %p89
    %p92 = scmp.ne.s32.totalorder %s77, %s91
    %p93 = scmp.eq.s32.totalorder %s20, 0
    %p94 = por %p92, %p93
    %s96 = sadd.s32 %s95, 1
    %p99 = scmp.eq.s32.totalorder %s14, 1
    %p100 = scmp.ne.s32.totalorder %s95, %s97
    %p101 = scmp.eq.s32.totalorder %s14, 0
    %p102 = por %p100, %p101
    %p103 = scmp.ne.s32.totalorder %s95, %s97
    %p104 = scmp.eq.s32.totalorder %s19, 1
    %p105 = por %p103, %p104
    %p106 = scmp.ne.s32.totalorder %s97, %s98
    %p107 = scmp.eq.s32.totalorder %s19, 0
    %p108 = por %p106, %p107
    %p109 = scmp.ne.s32.totalorder %s97, %s98
    %p110 = scmp.eq.s32.totalorder %s20, 1
    %p111 = por %p109, %p110
    %p113 = scmp.ne.s32.totalorder %s98, %s112
    %p114 = scmp.eq.s32.totalorder %s20, 0
    %p115 = por %p113, %p114
    %s117 = sadd.s32 %s116, 1
    %p120 = scmp.eq.s32.totalorder %s14, 1
    %p121 = scmp.ne.s32.totalorder %s116, %s118
    %p122 = scmp.eq.s32.totalorder %s14, 0
    %p123 = por %p121, %p122
    %p124 = scmp.ne.s32.totalorder %s116, %s118
    %p125 = scmp.eq.s32.totalorder %s19, 1
    %p126 = por %p124, %p125
    %p127 = scmp.ne.s32.totalorder %s118, %s119
    %p128 = scmp.eq.s32.totalorder %s19, 0
    %p129 = por %p127, %p128
    %p130 = scmp.ne.s32.totalorder %s118, %s119
    %p131 = scmp.eq.s32.totalorder %s20, 1
    %p132 = por %p130, %p131
    %p134 = scmp.ne.s32.totalorder %s119, %s133
    %p135 = scmp.eq.s32.totalorder %s20, 0
    %p136 = por %p134, %p135
    %s138 = sadd.s32 %s137, 1
    %p141 = scmp.eq.s32.totalorder %s14, 1
    %p142 = scmp.ne.s32.totalorder %s137, %s139
    %p143 = scmp.eq.s32.totalorder %s14, 0
    %p144 = por %p142, %p143
    %p145 = scmp.ne.s32.totalorder %s137, %s139
    %p146 = scmp.eq.s32.totalorder %s19, 1
    %p147 = por %p145, %p146
    %p148 = scmp.ne.s32.totalorder %s139, %s140
    %p149 = scmp.eq.s32.totalorder %s19, 0
    %p150 = por %p148, %p149
    %p151 = scmp.ne.s32.totalorder %s139, %s140
    %p152 = scmp.eq.s32.totalorder %s20, 1
    %p153 = por %p151, %p152
    %p155 = scmp.ne.s32.totalorder %s140, %s154
    %p156 = scmp.eq.s32.totalorder %s20, 0
    %p157 = por %p155, %p156
    %s159 = sadd.s32 %s158, 1
    %p162 = scmp.eq.s32.totalorder %s14, 1
    %p163 = scmp.ne.s32.totalorder %s158, %s160
    %p164 = scmp.eq.s32.totalorder %s14, 0
    %p165 = por %p163, %p164
    %p166 = scmp.ne.s32.totalorder %s158, %s160
    %p167 = scmp.eq.s32.totalorder %s19, 1
    %p168 = por %p166, %p167
    %p169 = scmp.ne.s32.totalorder %s160, %s161
    %p170 = scmp.eq.s32.totalorder %s19, 0
    %p171 = por %p169, %p170
    %p172 = scmp.ne.s32.totalorder %s160, %s161
    %p173 = scmp.eq.s32.totalorder %s20, 1
    %p174 = por %p172, %p173
    %p176 = scmp.ne.s32.totalorder %s161, %s175
    %p177 = scmp.eq.s32.totalorder %s20, 0
    %p178 = por %p176, %p177
    %s180 = sadd.s32 %s179, 1
    %p183 = scmp.eq.s32.totalorder %s14, 1
    %p184 = scmp.ne.s32.totalorder %s179, %s181
    %p185 = scmp.eq.s32.totalorder %s14, 0
    %p186 = por %p184, %p185
    %p187 = scmp.ne.s32.totalorder %s179, %s181
    %p188 = scmp.eq.s32.totalorder %s19, 1
    %p189 = por %p187, %p188
    %p190 = scmp.ne.s32.totalorder %s181, %s182
    %p191 = scmp.eq.s32.totalorder %s19, 0
    %p192 = por %p190, %p191
    %p193 = scmp.ne.s32.totalorder %s181, %s182
    %p194 = scmp.eq.s32.totalorder %s20, 1
    %p195 = por %p193, %p194
    %p197 = scmp.ne.s32.totalorder %s182, %s196
    %p198 = scmp.eq.s32.totalorder %s20, 0
    %p199 = por %p197, %p198
    %s200 = ssub.s32 %s14, %s21
    %p201 = scmp.eq.s32.totalorder %s200, 0
    %s203 = sadd.s32 %s202, 1
    %s204 = scalar_select %p201, %s202, %s203
    %p207 = pneg %p201
    %p208 = scmp.eq.s32.totalorder %s14, 1
    %p209 = por %p207, %p208
    %p210 = scmp.ne.s32.totalorder %s202, %s205
    %p211 = scmp.eq.s32.totalorder %s14, 0
    %p212 = por %p210, %p211
    %p213 = scmp.ne.s32.totalorder %s202, %s205
    %p214 = scmp.eq.s32.totalorder %s19, 1
    %p215 = por %p213, %p214
    %p216 = scmp.ne.s32.totalorder %s205, %s206
    %p217 = scmp.eq.s32.totalorder %s19, 0
    %p218 = por %p216, %p217
    %p219 = scmp.ne.s32.totalorder %s205, %s206
    %p220 = scmp.eq.s32.totalorder %s20, 1
    %p221 = por %p219, %p220
    %p223 = scmp.ne.s32.totalorder %s206, %s222
    %p224 = scmp.eq.s32.totalorder %s20, 0
    %p225 = por %p223, %p224
    %p226 = scmp.le.s32.totalorder 1, %s14
    %p227 = scmp.lt.s32.totalorder %s14, 3
    %p228 = pnand %p226, %p227
    %p229 = pneg %p228
    // Predicated region
    $region9: #{pointnet2_encoder_forward.7} parent=5 // pred_check
      _
    $region10: #{pointnet2_encoder_forward.7} parent=5 // pred_check_branch
      %231 = sbr.rel (%p228) target = $region12
    $region11: #{pointnet2_encoder_forward.7} parent=5 // pred_region
      %s232 = ssub.s32 %s14, 1
      // Predicated region
      $region13: #{pointnet2_encoder_forward.7} parent=11 // pred_check
        %p233 = pneg %p87
      $region14: #{pointnet2_encoder_forward.7} parent=11 // pred_check_branch
        %235 = sbr.rel (%p233) target = $region16
      $region15: #{pointnet2_encoder_forward.7} parent=11 // pred_region
        _
      $region16: #{pointnet2_encoder_forward.7} parent=11 // pred_fallthru
        _
      // Predicated region
      $region17: #{pointnet2_encoder_forward.7} parent=11 // pred_check
        %p236 = pneg %p108
      $region18: #{pointnet2_encoder_forward.7} parent=11 // pred_check_branch
        %238 = sbr.rel (%p236) target = $region20
      $region19: #{pointnet2_encoder_forward.7} parent=11 // pred_region
        _
      $region20: #{pointnet2_encoder_forward.7} parent=11 // pred_fallthru
        _
      // Predicated region
      $region21: #{pointnet2_encoder_forward.7} parent=11 // pred_check
        %p239 = pneg %p129
      $region22: #{pointnet2_encoder_forward.7} parent=11 // pred_check_branch
        %241 = sbr.rel (%p239) target = $region24
      $region23: #{pointnet2_encoder_forward.7} parent=11 // pred_region
        _
      $region24: #{pointnet2_encoder_forward.7} parent=11 // pred_fallthru
        _
      // Predicated region
      $region25: #{pointnet2_encoder_forward.7} parent=11 // pred_check
        %p242 = pneg %p150
      $region26: #{pointnet2_encoder_forward.7} parent=11 // pred_check_branch
        %244 = sbr.rel (%p242) target = $region28
      $region27: #{pointnet2_encoder_forward.7} parent=11 // pred_region
        _
      $region28: #{pointnet2_encoder_forward.7} parent=11 // pred_fallthru
        _
      // Predicated region
      $region29: #{pointnet2_encoder_forward.7} parent=11 // pred_check
        %p245 = pneg %p171
      $region30: #{pointnet2_encoder_forward.7} parent=11 // pred_check_branch
        %247 = sbr.rel (%p245) target = $region32
      $region31: #{pointnet2_encoder_forward.7} parent=11 // pred_region
        _
      $region32: #{pointnet2_encoder_forward.7} parent=11 // pred_fallthru
        _
      // Predicated region
      $region33: #{pointnet2_encoder_forward.7} parent=11 // pred_check
        %p248 = pneg %p192
      $region34: #{pointnet2_encoder_forward.7} parent=11 // pred_check_branch
        %250 = sbr.rel (%p248) target = $region36
      $region35: #{pointnet2_encoder_forward.7} parent=11 // pred_region
        _
      $region36: #{pointnet2_encoder_forward.7} parent=11 // pred_fallthru
        _
    $region12: #{pointnet2_encoder_forward.7} parent=5 // pred_fallthru
      _
    %p251 = scmp.lt.s32.totalorder %s14, 2
    // Predicated region
    $region37: #{pointnet2_encoder_forward.7} parent=5 // pred_check
      %p252 = pneg %p251
    $region38: #{pointnet2_encoder_forward.7} parent=5 // pred_check_branch
      %254 = sbr.rel (%p252) target = $region40
    $region39: #{pointnet2_encoder_forward.7} parent=5 // pred_region
      // Predicated region
      $region41: #{pointnet2_encoder_forward.7} parent=39 // pred_check
        %p255 = pneg %p34
      $region42: #{pointnet2_encoder_forward.7} parent=39 // pred_check_branch
        %257 = sbr.rel (%p255) target = $region44
      $region43: #{pointnet2_encoder_forward.7} parent=39 // pred_region
        %s258 = smul.u32 8, %s14
        %p259 = scmp.lt.s32.totalorder %s258, 15
        %s260 = scalar_select %p259, %s258, 15
        %s261 = smul.addr %s260, 4
        %s262 = scalar_lea.vmem %s0, %s261
        %s263 = smul.u32 8, %s14
      $region44: #{pointnet2_encoder_forward.7} parent=39 // pred_fallthru
        _
      // Predicated region
      $region45: #{pointnet2_encoder_forward.7} parent=39 // pred_check
        %p264 = pneg %p60
      $region46: #{pointnet2_encoder_forward.7} parent=39 // pred_check_branch
        %266 = sbr.rel (%p264) target = $region48
      $region47: #{pointnet2_encoder_forward.7} parent=39 // pred_region
        %s267 = smul.u32 8, %s14
        %p268 = scmp.lt.s32.totalorder %s267, 15
        %s269 = scalar_select %p268, %s267, 15
        %s270 = smul.addr %s269, 4
        %s271 = smul.addr %s270, 4
        %s272 = scalar_lea.vmem %s1, %s271
        %s273 = smul.u32 8, %s14
      $region48: #{pointnet2_encoder_forward.7} parent=39 // pred_fallthru
        _
    $region40: #{pointnet2_encoder_forward.7} parent=5 // pred_fallthru
      _
    %p274 = scmp.le.s32.totalorder 1, %s14
    %p275 = scmp.lt.s32.totalorder %s14, 3
    %p276 = pnand %p274, %p275
    %p277 = pneg %p276
    // Predicated region
    $region49: #{pointnet2_encoder_forward.7} parent=5 // pred_check
      _
    $region50: #{pointnet2_encoder_forward.7} parent=5 // pred_check_branch
      %279 = sbr.rel (%p276) target = $region52
    $region51: #{pointnet2_encoder_forward.7} parent=5 // pred_region
      %s280 = ssub.s32 %s14, 1
      %s281 = smul.u32 8, %s19
      %p282 = scmp.lt.s32.totalorder %s281, 15
      %s283 = scalar_select %p282, %s281, 15
      %s284 = smul.addr %s283, 4
      %s285 = scalar_lea.vmem %s0, %s284
      %p286 = pneg %p40
      %p287 = pneg %p37
      %s288 = smul.u32 8, %s19
      %p289 = scmp.lt.s32.totalorder %s288, 15
      %s290 = scalar_select %p289, %s288, 15
      %s291 = smul.addr %s290, 4
      %s292 = smul.addr %s291, 4
      %s293 = scalar_lea.vmem %s1, %s292
      %p294 = pneg %p66
      %p295 = pneg %p63
      %p296 = pneg %p87
      %p297 = pneg %p84
      %p298 = pneg %p108
      %p299 = pneg %p105
      %p300 = pneg %p129
      %p301 = pneg %p126
      %p302 = pneg %p150
      %p303 = pneg %p147
      %p304 = pneg %p171
      %p305 = pneg %p168
      %p306 = pneg %p192
      %p307 = pneg %p189
      %p308 = pneg %p218
      %p309 = pneg %p215
      %p310 = scmp.lt.s32.totalorder %s19, 1
      %s311 = scalar_select %p310, %s19, 1
      %s312 = smul.addr %s311, 4
      %s313 = smul.addr %s312, 4
      %s314 = scalar_lea.vmem %s8, %s313
      %s315 = smul.u32 8, %s19
      %p316 = scmp.lt.s32.totalorder %s315, 15
      %s317 = scalar_select %p316, %s315, 15
      %s318 = smul.addr %s317, 4
      %s319 = scalar_lea.vmem %s0, %s318
      %s320 = smul.u32 8, %s19
      %s321 = smul.u32 8, %s19
      %p322 = scmp.lt.s32.totalorder %s321, 15
      %s323 = scalar_select %p322, %s321, 15
      %s324 = smul.addr %s323, 4
      %s325 = smul.addr %s324, 4
      %s326 = scalar_lea.vmem %s1, %s325
      %s327 = smul.u32 8, %s19
      %p328 = scmp.lt.s32.totalorder %s19, 1
      %s329 = scalar_select %p328, %s19, 1
      %s330 = smul.addr %s329, 4
      %s331 = smul.addr %s330, 4
      %s332 = scalar_lea.vmem %s8, %s331
      %v334 = vld [vmem:[%s319] sm:$0xf]
      %v335 = vld [vmem:[%s319 + $0x4] sm:$0xf]
      %v336 = vld [vmem:[%s319 + $0x8] sm:$0xf]
      %v337 = vld [vmem:[%s319 + $0xc] sm:$0xf]
      %v338 = vld [vmem:[%s319 + $0x10] sm:$0xf]
      %v339 = vld [vmem:[%s319 + $0x14] sm:$0xf]
      %v340 = vld [vmem:[%s319 + $0x18] sm:$0xf]
      %v341 = vld [vmem:[%s319 + $0x1c] sm:$0xf]
      %v342 = vld [vmem:[%s2] sm:$0xff]
      %v343 = vld [vmem:[%s2 + $0x8] sm:$0xff]
      %v344 = vld [vmem:[%s2 + $0x10] sm:$0xff]
      %v345 = vld [vmem:[%s2 + $0x18] sm:$0xff]
      %v346 = vld [vmem:[%s326] sm:$0xff]
      %v347 = vld [vmem:[%s326 + $0x8] sm:$0xff]
      %v348 = vld [vmem:[%s326 + $0x10] sm:$0xff]
      %v349 = vld [vmem:[%s326 + $0x18] sm:$0xff]
      %v350 = vld [vmem:[%s326 + $0x20] sm:$0xff]
      %v351 = vld [vmem:[%s326 + $0x28] sm:$0xff]
      %v352 = vld [vmem:[%s326 + $0x30] sm:$0xff]
      %v353 = vld [vmem:[%s326 + $0x38] sm:$0xff]
      %v354 = vld [vmem:[%s326 + $0x40] sm:$0xff]
      %v355 = vld [vmem:[%s326 + $0x48] sm:$0xff]
      %v356 = vld [vmem:[%s326 + $0x50] sm:$0xff]
      %v357 = vld [vmem:[%s326 + $0x58] sm:$0xff]
      %v358 = vld [vmem:[%s326 + $0x60] sm:$0xff]
      %v359 = vld [vmem:[%s326 + $0x68] sm:$0xff]
      %v360 = vld [vmem:[%s326 + $0x70] sm:$0xff]
      %v361 = vld [vmem:[%s326 + $0x78] sm:$0xff]
      %v362 = vld [vmem:[%s3] sm:$0xff]
      %v363 = vld [vmem:[%s3 + $0x8] sm:$0xff]
      %v364 = vld [vmem:[%s3 + $0x10] sm:$0xff]
      %v365 = vld [vmem:[%s3 + $0x18] sm:$0xff]
      %v366 = vld [vmem:[%s3 + $0x20] sm:$0xff]
      %v367 = vld [vmem:[%s3 + $0x28] sm:$0xff]
      %v368 = vld [vmem:[%s3 + $0x30] sm:$0xff]
      %v369 = vld [vmem:[%s3 + $0x38] sm:$0xff]
      %v370 = vld [vmem:[%s3 + $0x40] sm:$0xff]
      %v371 = vld [vmem:[%s3 + $0x48] sm:$0xff]
      %v372 = vld [vmem:[%s3 + $0x50] sm:$0xff]
      %v373 = vld [vmem:[%s3 + $0x58] sm:$0xff]
      %v374 = vld [vmem:[%s3 + $0x60] sm:$0xff]
      %v375 = vld [vmem:[%s3 + $0x68] sm:$0xff]
      %v376 = vld [vmem:[%s3 + $0x70] sm:$0xff]
      %v377 = vld [vmem:[%s3 + $0x78] sm:$0xff]
      %v378 = vld [vmem:[%s3 + $0x80] sm:$0xff]
      %v379 = vld [vmem:[%s3 + $0x88] sm:$0xff]
      %v380 = vld [vmem:[%s3 + $0x90] sm:$0xff]
      %v381 = vld [vmem:[%s3 + $0x98] sm:$0xff]
      %v382 = vld [vmem:[%s3 + $0xa0] sm:$0xff]
      %v383 = vld [vmem:[%s3 + $0xa8] sm:$0xff]
      %v384 = vld [vmem:[%s3 + $0xb0] sm:$0xff]
      %v385 = vld [vmem:[%s3 + $0xb8] sm:$0xff]
      %v386 = vld [vmem:[%s3 + $0xc0] sm:$0xff]
      %v387 = vld [vmem:[%s3 + $0xc8] sm:$0xff]
      %v388 = vld [vmem:[%s3 + $0xd0] sm:$0xff]
      %v389 = vld [vmem:[%s3 + $0xd8] sm:$0xff]
      %v390 = vld [vmem:[%s3 + $0xe0] sm:$0xff]
      %v391 = vld [vmem:[%s3 + $0xe8] sm:$0xff]
      %v392 = vld [vmem:[%s3 + $0xf0] sm:$0xff]
      %v393 = vld [vmem:[%s3 + $0xf8] sm:$0xff]
      %v394 = vld [vmem:[%s3 + $0x100] sm:$0xff]
      %v395 = vld [vmem:[%s3 + $0x108] sm:$0xff]
      %v396 = vld [vmem:[%s3 + $0x110] sm:$0xff]
      %v397 = vld [vmem:[%s3 + $0x118] sm:$0xff]
      %v398 = vld [vmem:[%s3 + $0x120] sm:$0xff]
      %v399 = vld [vmem:[%s3 + $0x128] sm:$0xff]
      %v400 = vld [vmem:[%s3 + $0x130] sm:$0xff]
      %v401 = vld [vmem:[%s3 + $0x138] sm:$0xff]
      %v402 = vld [vmem:[%s3 + $0x140] sm:$0xff]
      %v403 = vld [vmem:[%s3 + $0x148] sm:$0xff]
      %v404 = vld [vmem:[%s3 + $0x150] sm:$0xff]
      %v405 = vld [vmem:[%s3 + $0x158] sm:$0xff]
      %v406 = vld [vmem:[%s3 + $0x160] sm:$0xff]
      %v407 = vld [vmem:[%s3 + $0x168] sm:$0xff]
      %v408 = vld [vmem:[%s3 + $0x170] sm:$0xff]
      %v409 = vld [vmem:[%s3 + $0x178] sm:$0xff]
      %v410 = vld [vmem:[%s3 + $0x180] sm:$0xff]
      %v411 = vld [vmem:[%s3 + $0x188] sm:$0xff]
      %v412 = vld [vmem:[%s3 + $0x190] sm:$0xff]
      %v413 = vld [vmem:[%s3 + $0x198] sm:$0xff]
      %v414 = vld [vmem:[%s3 + $0x1a0] sm:$0xff]
      %v415 = vld [vmem:[%s3 + $0x1a8] sm:$0xff]
      %v416 = vld [vmem:[%s3 + $0x1b0] sm:$0xff]
      %v417 = vld [vmem:[%s3 + $0x1b8] sm:$0xff]
      %v418 = vld [vmem:[%s3 + $0x1c0] sm:$0xff]
      %v419 = vld [vmem:[%s3 + $0x1c8] sm:$0xff]
      %v420 = vld [vmem:[%s3 + $0x1d0] sm:$0xff]
      %v421 = vld [vmem:[%s3 + $0x1d8] sm:$0xff]
      %v422 = vld [vmem:[%s3 + $0x1e0] sm:$0xff]
      %v423 = vld [vmem:[%s3 + $0x1e8] sm:$0xff]
      %v424 = vld [vmem:[%s3 + $0x1f0] sm:$0xff]
      %v425 = vld [vmem:[%s3 + $0x1f8] sm:$0xff]
      %v426 = vld [vmem:[%s3 + $0x200] sm:$0xff]
      %v427 = vld [vmem:[%s3 + $0x208] sm:$0xff]
      %v428 = vld [vmem:[%s3 + $0x210] sm:$0xff]
      %v429 = vld [vmem:[%s3 + $0x218] sm:$0xff]
      %v430 = vld [vmem:[%s3 + $0x220] sm:$0xff]
      %v431 = vld [vmem:[%s3 + $0x228] sm:$0xff]
      %v432 = vld [vmem:[%s3 + $0x230] sm:$0xff]
      %v433 = vld [vmem:[%s3 + $0x238] sm:$0xff]
      %v434 = vld [vmem:[%s3 + $0x240] sm:$0xff]
      %v435 = vld [vmem:[%s3 + $0x248] sm:$0xff]
      %v436 = vld [vmem:[%s3 + $0x250] sm:$0xff]
      %v437 = vld [vmem:[%s3 + $0x258] sm:$0xff]
      %v438 = vld [vmem:[%s3 + $0x260] sm:$0xff]
      %v439 = vld [vmem:[%s3 + $0x268] sm:$0xff]
      %v440 = vld [vmem:[%s3 + $0x270] sm:$0xff]
      %v441 = vld [vmem:[%s3 + $0x278] sm:$0xff]
      %v442 = vld [vmem:[%s3 + $0x280] sm:$0xff]
      %v443 = vld [vmem:[%s3 + $0x288] sm:$0xff]
      %v444 = vld [vmem:[%s3 + $0x290] sm:$0xff]
      %v445 = vld [vmem:[%s3 + $0x298] sm:$0xff]
      %v446 = vld [vmem:[%s3 + $0x2a0] sm:$0xff]
      %v447 = vld [vmem:[%s3 + $0x2a8] sm:$0xff]
      %v448 = vld [vmem:[%s3 + $0x2b0] sm:$0xff]
      %v449 = vld [vmem:[%s3 + $0x2b8] sm:$0xff]
      %v450 = vld [vmem:[%s3 + $0x2c0] sm:$0xff]
      %v451 = vld [vmem:[%s3 + $0x2c8] sm:$0xff]
      %v452 = vld [vmem:[%s3 + $0x2d0] sm:$0xff]
      %v453 = vld [vmem:[%s3 + $0x2d8] sm:$0xff]
      %v454 = vld [vmem:[%s3 + $0x2e0] sm:$0xff]
      %v455 = vld [vmem:[%s3 + $0x2e8] sm:$0xff]
      %v456 = vld [vmem:[%s3 + $0x2f0] sm:$0xff]
      %v457 = vld [vmem:[%s3 + $0x2f8] sm:$0xff]
      %v458 = vld [vmem:[%s3 + $0x300] sm:$0xff]
      %v459 = vld [vmem:[%s3 + $0x308] sm:$0xff]
      %v460 = vld [vmem:[%s3 + $0x310] sm:$0xff]
      %v461 = vld [vmem:[%s3 + $0x318] sm:$0xff]
      %v462 = vld [vmem:[%s3 + $0x320] sm:$0xff]
      %v463 = vld [vmem:[%s3 + $0x328] sm:$0xff]
      %v464 = vld [vmem:[%s3 + $0x330] sm:$0xff]
      %v465 = vld [vmem:[%s3 + $0x338] sm:$0xff]
      %v466 = vld [vmem:[%s3 + $0x340] sm:$0xff]
      %v467 = vld [vmem:[%s3 + $0x348] sm:$0xff]
      %v468 = vld [vmem:[%s3 + $0x350] sm:$0xff]
      %v469 = vld [vmem:[%s3 + $0x358] sm:$0xff]
      %v470 = vld [vmem:[%s3 + $0x360] sm:$0xff]
      %v471 = vld [vmem:[%s3 + $0x368] sm:$0xff]
      %v472 = vld [vmem:[%s3 + $0x370] sm:$0xff]
      %v473 = vld [vmem:[%s3 + $0x378] sm:$0xff]
      %v474 = vld [vmem:[%s3 + $0x380] sm:$0xff]
      %v475 = vld [vmem:[%s3 + $0x388] sm:$0xff]
      %v476 = vld [vmem:[%s3 + $0x390] sm:$0xff]
      %v477 = vld [vmem:[%s3 + $0x398] sm:$0xff]
      %v478 = vld [vmem:[%s3 + $0x3a0] sm:$0xff]
      %v479 = vld [vmem:[%s3 + $0x3a8] sm:$0xff]
      %v480 = vld [vmem:[%s3 + $0x3b0] sm:$0xff]
      %v481 = vld [vmem:[%s3 + $0x3b8] sm:$0xff]
      %v482 = vld [vmem:[%s3 + $0x3c0] sm:$0xff]
      %v483 = vld [vmem:[%s3 + $0x3c8] sm:$0xff]
      %v484 = vld [vmem:[%s3 + $0x3d0] sm:$0xff]
      %v485 = vld [vmem:[%s3 + $0x3d8] sm:$0xff]
      %v486 = vld [vmem:[%s3 + $0x3e0] sm:$0xff]
      %v487 = vld [vmem:[%s3 + $0x3e8] sm:$0xff]
      %v488 = vld [vmem:[%s3 + $0x3f0] sm:$0xff]
      %v489 = vld [vmem:[%s3 + $0x3f8] sm:$0xff]
      %v506 = vunpack.c.l.b16 %v346
      %v507 = vunpack.c.h.b16 %v346
      %v508 = vunpack.c.l.b16 %v347
      %v509 = vunpack.c.h.b16 %v347
      %v510 = vunpack.c.l.b16 %v348
      %v511 = vunpack.c.h.b16 %v348
      %v512 = vunpack.c.l.b16 %v349
      %v513 = vunpack.c.h.b16 %v349
      %v514 = vunpack.c.l.b16 %v350
      %v515 = vunpack.c.h.b16 %v350
      %v516 = vunpack.c.l.b16 %v351
      %v517 = vunpack.c.h.b16 %v351
      %v518 = vunpack.c.l.b16 %v352
      %v519 = vunpack.c.h.b16 %v352
      %v520 = vunpack.c.l.b16 %v353
      %v521 = vunpack.c.h.b16 %v353
      %v522 = vunpack.c.l.b16 %v354
      %v523 = vunpack.c.h.b16 %v354
      %v524 = vunpack.c.l.b16 %v355
      %v525 = vunpack.c.h.b16 %v355
      %v526 = vunpack.c.l.b16 %v356
      %v527 = vunpack.c.h.b16 %v356
      %v528 = vunpack.c.l.b16 %v357
      %v529 = vunpack.c.h.b16 %v357
      %v530 = vunpack.c.l.b16 %v358
      %v531 = vunpack.c.h.b16 %v358
      %v532 = vunpack.c.l.b16 %v359
      %v533 = vunpack.c.h.b16 %v359
      %v534 = vunpack.c.l.b16 %v360
      %v535 = vunpack.c.h.b16 %v360
      %v536 = vunpack.c.l.b16 %v361
      %v537 = vunpack.c.h.b16 %v361
      %v538 = vpack.c.b16 %v510, %v506
      %v539 = vpack.c.b16 %v511, %v507
      %v540 = vpack.c.b16 %v512, %v508
      %v541 = vpack.c.b16 %v513, %v509
      %v542 = vpack.c.b16 %v518, %v514
      %v543 = vpack.c.b16 %v519, %v515
      %v544 = vpack.c.b16 %v520, %v516
      %v545 = vpack.c.b16 %v521, %v517
      %v546 = vpack.c.b16 %v526, %v522
      %v547 = vpack.c.b16 %v527, %v523
      %v548 = vpack.c.b16 %v528, %v524
      %v549 = vpack.c.b16 %v529, %v525
      %v550 = vpack.c.b16 %v534, %v530
      %v551 = vpack.c.b16 %v535, %v531
      %v552 = vpack.c.b16 %v536, %v532
      %v553 = vpack.c.b16 %v537, %v533
      %v698 = vunpack.c.l.b16 %v362
      %v699 = vunpack.c.h.b16 %v362
      %v700 = vunpack.c.l.b16 %v363
      %v701 = vunpack.c.h.b16 %v363
      %v702 = vunpack.c.l.b16 %v364
      %v703 = vunpack.c.h.b16 %v364
      %v704 = vunpack.c.l.b16 %v365
      %v705 = vunpack.c.h.b16 %v365
      %v706 = vunpack.c.l.b16 %v366
      %v707 = vunpack.c.h.b16 %v366
      %v708 = vunpack.c.l.b16 %v367
      %v709 = vunpack.c.h.b16 %v367
      %v710 = vunpack.c.l.b16 %v368
      %v711 = vunpack.c.h.b16 %v368
      %v712 = vunpack.c.l.b16 %v369
      %v713 = vunpack.c.h.b16 %v369
      %v714 = vunpack.c.l.b16 %v370
      %v715 = vunpack.c.h.b16 %v370
      %v716 = vunpack.c.l.b16 %v371
      %v717 = vunpack.c.h.b16 %v371
      %v718 = vunpack.c.l.b16 %v372
      %v719 = vunpack.c.h.b16 %v372
      %v720 = vunpack.c.l.b16 %v373
      %v721 = vunpack.c.h.b16 %v373
      %v722 = vunpack.c.l.b16 %v374
      %v723 = vunpack.c.h.b16 %v374
      %v724 = vunpack.c.l.b16 %v375
      %v725 = vunpack.c.h.b16 %v375
      %v726 = vunpack.c.l.b16 %v376
      %v727 = vunpack.c.h.b16 %v376
      %v728 = vunpack.c.l.b16 %v377
      %v729 = vunpack.c.h.b16 %v377
      %v730 = vunpack.c.l.b16 %v378
      %v731 = vunpack.c.h.b16 %v378
      %v732 = vunpack.c.l.b16 %v379
      %v733 = vunpack.c.h.b16 %v379
      %v734 = vunpack.c.l.b16 %v380
      %v735 = vunpack.c.h.b16 %v380
      %v736 = vunpack.c.l.b16 %v381
      %v737 = vunpack.c.h.b16 %v381
      %v738 = vunpack.c.l.b16 %v382
      %v739 = vunpack.c.h.b16 %v382
      %v740 = vunpack.c.l.b16 %v383
      %v741 = vunpack.c.h.b16 %v383
      %v742 = vunpack.c.l.b16 %v384
      %v743 = vunpack.c.h.b16 %v384
      %v744 = vunpack.c.l.b16 %v385
      %v745 = vunpack.c.h.b16 %v385
      %v746 = vunpack.c.l.b16 %v386
      %v747 = vunpack.c.h.b16 %v386
      %v748 = vunpack.c.l.b16 %v387
      %v749 = vunpack.c.h.b16 %v387
      %v750 = vunpack.c.l.b16 %v388
      %v751 = vunpack.c.h.b16 %v388
      %v752 = vunpack.c.l.b16 %v389
      %v753 = vunpack.c.h.b16 %v389
      %v754 = vunpack.c.l.b16 %v390
      %v755 = vunpack.c.h.b16 %v390
      %v756 = vunpack.c.l.b16 %v391
      %v757 = vunpack.c.h.b16 %v391
      %v758 = vunpack.c.l.b16 %v392
      %v759 = vunpack.c.h.b16 %v392
      %v760 = vunpack.c.l.b16 %v393
      %v761 = vunpack.c.h.b16 %v393
      %v762 = vunpack.c.l.b16 %v394
      %v763 = vunpack.c.h.b16 %v394
      %v764 = vunpack.c.l.b16 %v395
      %v765 = vunpack.c.h.b16 %v395
      %v766 = vunpack.c.l.b16 %v396
      %v767 = vunpack.c.h.b16 %v396
      %v768 = vunpack.c.l.b16 %v397
      %v769 = vunpack.c.h.b16 %v397
      %v770 = vunpack.c.l.b16 %v398
      %v771 = vunpack.c.h.b16 %v398
      %v772 = vunpack.c.l.b16 %v399
      %v773 = vunpack.c.h.b16 %v399
      %v774 = vunpack.c.l.b16 %v400
      %v775 = vunpack.c.h.b16 %v400
      %v776 = vunpack.c.l.b16 %v401
      %v777 = vunpack.c.h.b16 %v401
      %v778 = vunpack.c.l.b16 %v402
      %v779 = vunpack.c.h.b16 %v402
      %v780 = vunpack.c.l.b16 %v403
      %v781 = vunpack.c.h.b16 %v403
      %v782 = vunpack.c.l.b16 %v404
      %v783 = vunpack.c.h.b16 %v404
      %v784 = vunpack.c.l.b16 %v405
      %v785 = vunpack.c.h.b16 %v405
      %v786 = vunpack.c.l.b16 %v406
      %v787 = vunpack.c.h.b16 %v406
      %v788 = vunpack.c.l.b16 %v407
      %v789 = vunpack.c.h.b16 %v407
      %v790 = vunpack.c.l.b16 %v408
      %v791 = vunpack.c.h.b16 %v408
      %v792 = vunpack.c.l.b16 %v409
      %v793 = vunpack.c.h.b16 %v409
      %v794 = vunpack.c.l.b16 %v410
      %v795 = vunpack.c.h.b16 %v410
      %v796 = vunpack.c.l.b16 %v411
      %v797 = vunpack.c.h.b16 %v411
      %v798 = vunpack.c.l.b16 %v412
      %v799 = vunpack.c.h.b16 %v412
      %v800 = vunpack.c.l.b16 %v413
      %v801 = vunpack.c.h.b16 %v413
      %v802 = vunpack.c.l.b16 %v414
      %v803 = vunpack.c.h.b16 %v414
      %v804 = vunpack.c.l.b16 %v415
      %v805 = vunpack.c.h.b16 %v415
      %v806 = vunpack.c.l.b16 %v416
      %v807 = vunpack.c.h.b16 %v416
      %v808 = vunpack.c.l.b16 %v417
      %v809 = vunpack.c.h.b16 %v417
      %v810 = vunpack.c.l.b16 %v418
      %v811 = vunpack.c.h.b16 %v418
      %v812 = vunpack.c.l.b16 %v419
      %v813 = vunpack.c.h.b16 %v419
      %v814 = vunpack.c.l.b16 %v420
      %v815 = vunpack.c.h.b16 %v420
      %v816 = vunpack.c.l.b16 %v421
      %v817 = vunpack.c.h.b16 %v421
      %v818 = vunpack.c.l.b16 %v422
      %v819 = vunpack.c.h.b16 %v422
      %v820 = vunpack.c.l.b16 %v423
      %v821 = vunpack.c.h.b16 %v423
      %v822 = vunpack.c.l.b16 %v424
      %v823 = vunpack.c.h.b16 %v424
      %v824 = vunpack.c.l.b16 %v425
      %v825 = vunpack.c.h.b16 %v425
      %v826 = vunpack.c.l.b16 %v426
      %v827 = vunpack.c.h.b16 %v426
      %v828 = vunpack.c.l.b16 %v427
      %v829 = vunpack.c.h.b16 %v427
      %v830 = vunpack.c.l.b16 %v428
      %v831 = vunpack.c.h.b16 %v428
      %v832 = vunpack.c.l.b16 %v429
      %v833 = vunpack.c.h.b16 %v429
      %v834 = vunpack.c.l.b16 %v430
      %v835 = vunpack.c.h.b16 %v430
      %v836 = vunpack.c.l.b16 %v431
      %v837 = vunpack.c.h.b16 %v431
      %v838 = vunpack.c.l.b16 %v432
      %v839 = vunpack.c.h.b16 %v432
      %v840 = vunpack.c.l.b16 %v433
      %v841 = vunpack.c.h.b16 %v433
      %v842 = vunpack.c.l.b16 %v434
      %v843 = vunpack.c.h.b16 %v434
      %v844 = vunpack.c.l.b16 %v435
      %v845 = vunpack.c.h.b16 %v435
      %v846 = vunpack.c.l.b16 %v436
      %v847 = vunpack.c.h.b16 %v436
      %v848 = vunpack.c.l.b16 %v437
      %v849 = vunpack.c.h.b16 %v437
      %v850 = vunpack.c.l.b16 %v438
      %v851 = vunpack.c.h.b16 %v438
      %v852 = vunpack.c.l.b16 %v439
      %v853 = vunpack.c.h.b16 %v439
      %v854 = vunpack.c.l.b16 %v440
      %v855 = vunpack.c.h.b16 %v440
      %v856 = vunpack.c.l.b16 %v441
      %v857 = vunpack.c.h.b16 %v441
      %v858 = vunpack.c.l.b16 %v442
      %v859 = vunpack.c.h.b16 %v442
      %v860 = vunpack.c.l.b16 %v443
      %v861 = vunpack.c.h.b16 %v443
      %v862 = vunpack.c.l.b16 %v444
      %v863 = vunpack.c.h.b16 %v444
      %v864 = vunpack.c.l.b16 %v445
      %v865 = vunpack.c.h.b16 %v445
      %v866 = vunpack.c.l.b16 %v446
      %v867 = vunpack.c.h.b16 %v446
      %v868 = vunpack.c.l.b16 %v447
      %v869 = vunpack.c.h.b16 %v447
      %v870 = vunpack.c.l.b16 %v448
      %v871 = vunpack.c.h.b16 %v448
      %v872 = vunpack.c.l.b16 %v449
      %v873 = vunpack.c.h.b16 %v449
      %v874 = vunpack.c.l.b16 %v450
      %v875 = vunpack.c.h.b16 %v450
      %v876 = vunpack.c.l.b16 %v451
      %v877 = vunpack.c.h.b16 %v451
      %v878 = vunpack.c.l.b16 %v452
      %v879 = vunpack.c.h.b16 %v452
      %v880 = vunpack.c.l.b16 %v453
      %v881 = vunpack.c.h.b16 %v453
      %v882 = vunpack.c.l.b16 %v454
      %v883 = vunpack.c.h.b16 %v454
      %v884 = vunpack.c.l.b16 %v455
      %v885 = vunpack.c.h.b16 %v455
      %v886 = vunpack.c.l.b16 %v456
      %v887 = vunpack.c.h.b16 %v456
      %v888 = vunpack.c.l.b16 %v457
      %v889 = vunpack.c.h.b16 %v457
      %v890 = vunpack.c.l.b16 %v458
      %v891 = vunpack.c.h.b16 %v458
      %v892 = vunpack.c.l.b16 %v459
      %v893 = vunpack.c.h.b16 %v459
      %v894 = vunpack.c.l.b16 %v460
      %v895 = vunpack.c.h.b16 %v460
      %v896 = vunpack.c.l.b16 %v461
      %v897 = vunpack.c.h.b16 %v461
      %v898 = vunpack.c.l.b16 %v462
      %v899 = vunpack.c.h.b16 %v462
      %v900 = vunpack.c.l.b16 %v463
      %v901 = vunpack.c.h.b16 %v463
      %v902 = vunpack.c.l.b16 %v464
      %v903 = vunpack.c.h.b16 %v464
      %v904 = vunpack.c.l.b16 %v465
      %v905 = vunpack.c.h.b16 %v465
      %v906 = vunpack.c.l.b16 %v466
      %v907 = vunpack.c.h.b16 %v466
      %v908 = vunpack.c.l.b16 %v467
      %v909 = vunpack.c.h.b16 %v467
      %v910 = vunpack.c.l.b16 %v468
      %v911 = vunpack.c.h.b16 %v468
      %v912 = vunpack.c.l.b16 %v469
      %v913 = vunpack.c.h.b16 %v469
      %v914 = vunpack.c.l.b16 %v470
      %v915 = vunpack.c.h.b16 %v470
      %v916 = vunpack.c.l.b16 %v471
      %v917 = vunpack.c.h.b16 %v471
      %v918 = vunpack.c.l.b16 %v472
      %v919 = vunpack.c.h.b16 %v472
      %v920 = vunpack.c.l.b16 %v473
      %v921 = vunpack.c.h.b16 %v473
      %v922 = vunpack.c.l.b16 %v474
      %v923 = vunpack.c.h.b16 %v474
      %v924 = vunpack.c.l.b16 %v475
      %v925 = vunpack.c.h.b16 %v475
      %v926 = vunpack.c.l.b16 %v476
      %v927 = vunpack.c.h.b16 %v476
      %v928 = vunpack.c.l.b16 %v477
      %v929 = vunpack.c.h.b16 %v477
      %v930 = vunpack.c.l.b16 %v478
      %v931 = vunpack.c.h.b16 %v478
      %v932 = vunpack.c.l.b16 %v479
      %v933 = vunpack.c.h.b16 %v479
      %v934 = vunpack.c.l.b16 %v480
      %v935 = vunpack.c.h.b16 %v480
      %v936 = vunpack.c.l.b16 %v481
      %v937 = vunpack.c.h.b16 %v481
      %v938 = vunpack.c.l.b16 %v482
      %v939 = vunpack.c.h.b16 %v482
      %v940 = vunpack.c.l.b16 %v483
      %v941 = vunpack.c.h.b16 %v483
      %v942 = vunpack.c.l.b16 %v484
      %v943 = vunpack.c.h.b16 %v484
      %v944 = vunpack.c.l.b16 %v485
      %v945 = vunpack.c.h.b16 %v485
      %v946 = vunpack.c.l.b16 %v486
      %v947 = vunpack.c.h.b16 %v486
      %v948 = vunpack.c.l.b16 %v487
      %v949 = vunpack.c.h.b16 %v487
      %v950 = vunpack.c.l.b16 %v488
      %v951 = vunpack.c.h.b16 %v488
      %v952 = vunpack.c.l.b16 %v489
      %v953 = vunpack.c.h.b16 %v489
      %v954 = vpack.c.b16 %v702, %v698
      %v955 = vpack.c.b16 %v703, %v699
      %v956 = vpack.c.b16 %v704, %v700
      %v957 = vpack.c.b16 %v705, %v701
      %v958 = vpack.c.b16 %v710, %v706
      %v959 = vpack.c.b16 %v711, %v707
      %v960 = vpack.c.b16 %v712, %v708
      %v961 = vpack.c.b16 %v713, %v709
      %v962 = vpack.c.b16 %v718, %v714
      %v963 = vpack.c.b16 %v719, %v715
      %v964 = vpack.c.b16 %v720, %v716
      %v965 = vpack.c.b16 %v721, %v717
      %v966 = vpack.c.b16 %v726, %v722
      %v967 = vpack.c.b16 %v727, %v723
      %v968 = vpack.c.b16 %v728, %v724
      %v969 = vpack.c.b16 %v729, %v725
      %v970 = vpack.c.b16 %v734, %v730
      %v971 = vpack.c.b16 %v735, %v731
      %v972 = vpack.c.b16 %v736, %v732
      %v973 = vpack.c.b16 %v737, %v733
      %v974 = vpack.c.b16 %v742, %v738
      %v975 = vpack.c.b16 %v743, %v739
      %v976 = vpack.c.b16 %v744, %v740
      %v977 = vpack.c.b16 %v745, %v741
      %v978 = vpack.c.b16 %v750, %v746
      %v979 = vpack.c.b16 %v751, %v747
      %v980 = vpack.c.b16 %v752, %v748
      %v981 = vpack.c.b16 %v753, %v749
      %v982 = vpack.c.b16 %v758, %v754
      %v983 = vpack.c.b16 %v759, %v755
      %v984 = vpack.c.b16 %v760, %v756
      %v985 = vpack.c.b16 %v761, %v757
      %v986 = vpack.c.b16 %v766, %v762
      %v987 = vpack.c.b16 %v767, %v763
      %v988 = vpack.c.b16 %v768, %v764
      %v989 = vpack.c.b16 %v769, %v765
      %v990 = vpack.c.b16 %v774, %v770
      %v991 = vpack.c.b16 %v775, %v771
      %v992 = vpack.c.b16 %v776, %v772
      %v993 = vpack.c.b16 %v777, %v773
      %v994 = vpack.c.b16 %v782, %v778
      %v995 = vpack.c.b16 %v783, %v779
      %v996 = vpack.c.b16 %v784, %v780
      %v997 = vpack.c.b16 %v785, %v781
      %v998 = vpack.c.b16 %v790, %v786
      %v999 = vpack.c.b16 %v791, %v787
      %v1000 = vpack.c.b16 %v792, %v788
      %v1001 = vpack.c.b16 %v793, %v789
      %v1002 = vpack.c.b16 %v798, %v794
      %v1003 = vpack.c.b16 %v799, %v795
      %v1004 = vpack.c.b16 %v800, %v796
      %v1005 = vpack.c.b16 %v801, %v797
      %v1006 = vpack.c.b16 %v806, %v802
      %v1007 = vpack.c.b16 %v807, %v803
      %v1008 = vpack.c.b16 %v808, %v804
      %v1009 = vpack.c.b16 %v809, %v805
      %v1010 = vpack.c.b16 %v814, %v810
      %v1011 = vpack.c.b16 %v815, %v811
      %v1012 = vpack.c.b16 %v816, %v812
      %v1013 = vpack.c.b16 %v817, %v813
      %v1014 = vpack.c.b16 %v822, %v818
      %v1015 = vpack.c.b16 %v823, %v819
      %v1016 = vpack.c.b16 %v824, %v820
      %v1017 = vpack.c.b16 %v825, %v821
      %v1018 = vpack.c.b16 %v830, %v826
      %v1019 = vpack.c.b16 %v831, %v827
      %v1020 = vpack.c.b16 %v832, %v828
      %v1021 = vpack.c.b16 %v833, %v829
      %v1022 = vpack.c.b16 %v838, %v834
      %v1023 = vpack.c.b16 %v839, %v835
      %v1024 = vpack.c.b16 %v840, %v836
      %v1025 = vpack.c.b16 %v841, %v837
      %v1026 = vpack.c.b16 %v846, %v842
      %v1027 = vpack.c.b16 %v847, %v843
      %v1028 = vpack.c.b16 %v848, %v844
      %v1029 = vpack.c.b16 %v849, %v845
      %v1030 = vpack.c.b16 %v854, %v850
      %v1031 = vpack.c.b16 %v855, %v851
      %v1032 = vpack.c.b16 %v856, %v852
      %v1033 = vpack.c.b16 %v857, %v853
      %v1034 = vpack.c.b16 %v862, %v858
      %v1035 = vpack.c.b16 %v863, %v859
      %v1036 = vpack.c.b16 %v864, %v860
      %v1037 = vpack.c.b16 %v865, %v861
      %v1038 = vpack.c.b16 %v870, %v866
      %v1039 = vpack.c.b16 %v871, %v867
      %v1040 = vpack.c.b16 %v872, %v868
      %v1041 = vpack.c.b16 %v873, %v869
      %v1042 = vpack.c.b16 %v878, %v874
      %v1043 = vpack.c.b16 %v879, %v875
      %v1044 = vpack.c.b16 %v880, %v876
      %v1045 = vpack.c.b16 %v881, %v877
      %v1046 = vpack.c.b16 %v886, %v882
      %v1047 = vpack.c.b16 %v887, %v883
      %v1048 = vpack.c.b16 %v888, %v884
      %v1049 = vpack.c.b16 %v889, %v885
      %v1050 = vpack.c.b16 %v894, %v890
      %v1051 = vpack.c.b16 %v895, %v891
      %v1052 = vpack.c.b16 %v896, %v892
      %v1053 = vpack.c.b16 %v897, %v893
      %v1054 = vpack.c.b16 %v902, %v898
      %v1055 = vpack.c.b16 %v903, %v899
      %v1056 = vpack.c.b16 %v904, %v900
      %v1057 = vpack.c.b16 %v905, %v901
      %v1058 = vpack.c.b16 %v910, %v906
      %v1059 = vpack.c.b16 %v911, %v907
      %v1060 = vpack.c.b16 %v912, %v908
      %v1061 = vpack.c.b16 %v913, %v909
      %v1062 = vpack.c.b16 %v918, %v914
      %v1063 = vpack.c.b16 %v919, %v915
      %v1064 = vpack.c.b16 %v920, %v916
      %v1065 = vpack.c.b16 %v921, %v917
      %v1066 = vpack.c.b16 %v926, %v922
      %v1067 = vpack.c.b16 %v927, %v923
      %v1068 = vpack.c.b16 %v928, %v924
      %v1069 = vpack.c.b16 %v929, %v925
      %v1070 = vpack.c.b16 %v934, %v930
      %v1071 = vpack.c.b16 %v935, %v931
      %v1072 = vpack.c.b16 %v936, %v932
      %v1073 = vpack.c.b16 %v937, %v933
      %v1074 = vpack.c.b16 %v942, %v938
      %v1075 = vpack.c.b16 %v943, %v939
      %v1076 = vpack.c.b16 %v944, %v940
      %v1077 = vpack.c.b16 %v945, %v941
      %v1078 = vpack.c.b16 %v950, %v946
      %v1079 = vpack.c.b16 %v951, %v947
      %v1080 = vpack.c.b16 %v952, %v948
      %v1081 = vpack.c.b16 %v953, %v949
      %1210 = vmatprep.subr.bf16.mxu0 %v955
      %1211 = vmatpush1.bf16.msra.mxu0 %v954
      %1212 = vmatprep.subr.bf16.mxu0 %v959
      %1213 = vmatpush1.bf16.msra.mxu0 %v958
      %1214 = vmatprep.subr.bf16.mxu0 %v963
      %1215 = vmatpush1.bf16.msra.mxu0 %v962
      %1216 = vmatprep.subr.bf16.mxu0 %v967
      %1217 = vmatpush1.bf16.msra.mxu0 %v966
      %1218 = vmatprep.subr.bf16.mxu0 %v971
      %1219 = vmatpush1.bf16.msra.mxu0 %v970
      %1220 = vmatprep.subr.bf16.mxu0 %v975
      %1221 = vmatpush1.bf16.msra.mxu0 %v974
      %1222 = vmatprep.subr.bf16.mxu0 %v979
      %1223 = vmatpush1.bf16.msra.mxu0 %v978
      %1224 = vmatprep.subr.bf16.mxu0 %v983
      %1225 = vmatpush1.bf16.msra.mxu0 %v982
      %1226 = vmatprep.subr.bf16.mxu0 %v987
      %1227 = vmatpush1.bf16.msra.mxu0 %v986
      %1228 = vmatprep.subr.bf16.mxu0 %v991
      %1229 = vmatpush1.bf16.msra.mxu0 %v990
      %1230 = vmatprep.subr.bf16.mxu0 %v995
      %1231 = vmatpush1.bf16.msra.mxu0 %v994
      %1232 = vmatprep.subr.bf16.mxu0 %v999
      %1233 = vmatpush1.bf16.msra.mxu0 %v998
      %1234 = vmatprep.subr.bf16.mxu0 %v1003
      %1235 = vmatpush1.bf16.msra.mxu0 %v1002
      %1236 = vmatprep.subr.bf16.mxu0 %v1007
      %1237 = vmatpush1.bf16.msra.mxu0 %v1006
      %1238 = vmatprep.subr.bf16.mxu0 %v1011
      %1239 = vmatpush1.bf16.msra.mxu0 %v1010
      %1240 = vmatprep.subr.bf16.mxu0 %v1015
      %1241 = vmatpush1.bf16.msra.mxu0 %v1014
      %1242 = vmatprep.mubr.bf16.mxu0 %v539
      %1243 = vmatmul.mubr.bf16.gmra.mrb[0].mxu0 %v538
      %v1244 = vpop.f32.mrb[0].mxu0
      %v1245 = vadd.f32 0.0, %v1244
      %v1246 = vpop.f32.mrb[0].mxu0
      %v1247 = vadd.f32 0.0, %v1246
      %v1248 = vpop.f32.mrb[0].mxu0
      %v1249 = vadd.f32 0.0, %v1248
      %v1250 = vpop.f32.mrb[0].mxu0
      %v1251 = vadd.f32 0.0, %v1250
      %1252 = vmatprep.mubr.bf16.mxu0 %v543
      %1253 = vmatmul.mubr.bf16.gmra.mrb[0].mxu0 %v542
      %v1254 = vpop.f32.mrb[0].mxu0
      %v1255 = vadd.f32 0.0, %v1254
      %v1256 = vpop.f32.mrb[0].mxu0
      %v1257 = vadd.f32 0.0, %v1256
      %v1258 = vpop.f32.mrb[0].mxu0
      %v1259 = vadd.f32 0.0, %v1258
      %v1260 = vpop.f32.mrb[0].mxu0
      %v1261 = vadd.f32 0.0, %v1260
      %1262 = vmatprep.mubr.bf16.mxu0 %v547
      %1263 = vmatmul.mubr.bf16.gmra.mrb[0].mxu0 %v546
      %v1264 = vpop.f32.mrb[0].mxu0
      %v1265 = vadd.f32 0.0, %v1264
      %v1266 = vpop.f32.mrb[0].mxu0
      %v1267 = vadd.f32 0.0, %v1266
      %v1268 = vpop.f32.mrb[0].mxu0
      %v1269 = vadd.f32 0.0, %v1268
      %v1270 = vpop.f32.mrb[0].mxu0
      %v1271 = vadd.f32 0.0, %v1270
      %1272 = vmatprep.mubr.bf16.mxu0 %v551
      %1273 = vmatmul.mubr.bf16.gmra.mrb[0].mxu0 %v550
      %v1274 = vpop.f32.mrb[0].mxu0
      %v1275 = vadd.f32 0.0, %v1274
      %v1276 = vpop.f32.mrb[0].mxu0
      %v1277 = vadd.f32 0.0, %v1276
      %v1278 = vpop.f32.mrb[0].mxu0
      %v1279 = vadd.f32 0.0, %v1278
      %v1280 = vpop.f32.mrb[0].mxu0
      %v1281 = vadd.f32 0.0, %v1280
      %1282 = vdwg.mxu0
      %1283 = vmatprep.subr.bf16.mxu0 %v1019
      %1284 = vmatpush1.bf16.msra.mxu0 %v1018
      %1285 = vmatprep.subr.bf16.mxu0 %v1023
      %1286 = vmatpush1.bf16.msra.mxu0 %v1022
      %1287 = vmatprep.subr.bf16.mxu0 %v1027
      %1288 = vmatpush1.bf16.msra.mxu0 %v1026
      %1289 = vmatprep.subr.bf16.mxu0 %v1031
      %1290 = vmatpush1.bf16.msra.mxu0 %v1030
      %1291 = vmatprep.subr.bf16.mxu0 %v1035
      %1292 = vmatpush1.bf16.msra.mxu0 %v1034
      %1293 = vmatprep.subr.bf16.mxu0 %v1039
      %1294 = vmatpush1.bf16.msra.mxu0 %v1038
      %1295 = vmatprep.subr.bf16.mxu0 %v1043
      %1296 = vmatpush1.bf16.msra.mxu0 %v1042
      %1297 = vmatprep.subr.bf16.mxu0 %v1047
      %1298 = vmatpush1.bf16.msra.mxu0 %v1046
      %1299 = vmatprep.subr.bf16.mxu0 %v1051
      %1300 = vmatpush1.bf16.msra.mxu0 %v1050
      %1301 = vmatprep.subr.bf16.mxu0 %v1055
      %1302 = vmatpush1.bf16.msra.mxu0 %v1054
      %1303 = vmatprep.subr.bf16.mxu0 %v1059
      %1304 = vmatpush1.bf16.msra.mxu0 %v1058
      %1305 = vmatprep.subr.bf16.mxu0 %v1063
      %1306 = vmatpush1.bf16.msra.mxu0 %v1062
      %1307 = vmatprep.subr.bf16.mxu0 %v1067
      %1308 = vmatpush1.bf16.msra.mxu0 %v1066
      %1309 = vmatprep.subr.bf16.mxu0 %v1071
      %1310 = vmatpush1.bf16.msra.mxu0 %v1070
      %1311 = vmatprep.subr.bf16.mxu0 %v1075
      %1312 = vmatpush1.bf16.msra.mxu0 %v1074
      %1313 = vmatprep.subr.bf16.mxu0 %v1079
      %1314 = vmatpush1.bf16.msra.mxu0 %v1078
      %1315 = vmatprep.mubr.bf16.mxu0 %v541
      %1316 = vmatmul.mubr.bf16.gmra.mrb[0].mxu0 %v540
      %v1317 = vpop.f32.mrb[0].mxu0
      %v1318 = vadd.f32 %v1245, %v1317
      %v1319 = vpop.f32.mrb[0].mxu0
      %v1320 = vadd.f32 %v1247, %v1319
      %v1321 = vpop.f32.mrb[0].mxu0
      %v1322 = vadd.f32 %v1249, %v1321
      %v1323 = vpop.f32.mrb[0].mxu0
      %v1324 = vadd.f32 %v1251, %v1323
      %1325 = vmatprep.mubr.bf16.mxu0 %v545
      %1326 = vmatmul.mubr.bf16.gmra.mrb[0].mxu0 %v544
      %v1327 = vpop.f32.mrb[0].mxu0
      %v1328 = vadd.f32 %v1255, %v1327
      %v1329 = vpop.f32.mrb[0].mxu0
      %v1330 = vadd.f32 %v1257, %v1329
      %v1331 = vpop.f32.mrb[0].mxu0
      %v1332 = vadd.f32 %v1259, %v1331
      %v1333 = vpop.f32.mrb[0].mxu0
      %v1334 = vadd.f32 %v1261, %v1333
      %1335 = vmatprep.mubr.bf16.mxu0 %v549
      %1336 = vmatmul.mubr.bf16.gmra.mrb[0].mxu0 %v548
      %v1337 = vpop.f32.mrb[0].mxu0
      %v1338 = vadd.f32 %v1265, %v1337
      %v1339 = vpop.f32.mrb[0].mxu0
      %v1340 = vadd.f32 %v1267, %v1339
      %v1341 = vpop.f32.mrb[0].mxu0
      %v1342 = vadd.f32 %v1269, %v1341
      %v1343 = vpop.f32.mrb[0].mxu0
      %v1344 = vadd.f32 %v1271, %v1343
      %1345 = vmatprep.mubr.bf16.mxu0 %v553
      %1346 = vmatmul.mubr.bf16.gmra.mrb[0].mxu0 %v552
      %v1347 = vpop.f32.mrb[0].mxu0
      %v1348 = vadd.f32 %v1275, %v1347
      %v1349 = vpop.f32.mrb[0].mxu0
      %v1350 = vadd.f32 %v1277, %v1349
      %v1351 = vpop.f32.mrb[0].mxu0
      %v1352 = vadd.f32 %v1279, %v1351
      %v1353 = vpop.f32.mrb[0].mxu0
      %v1354 = vadd.f32 %v1281, %v1353
      %1355 = vdwg.mxu0
      %1356 = vmatprep.subr.bf16.mxu0 %v957
      %1357 = vmatpush1.bf16.msra.mxu0 %v956
      %1358 = vmatprep.subr.bf16.mxu0 %v961
      %1359 = vmatpush1.bf16.msra.mxu0 %v960
      %1360 = vmatprep.subr.bf16.mxu0 %v965
      %1361 = vmatpush1.bf16.msra.mxu0 %v964
      %1362 = vmatprep.subr.bf16.mxu0 %v969
      %1363 = vmatpush1.bf16.msra.mxu0 %v968
      %1364 = vmatprep.subr.bf16.mxu0 %v973
      %1365 = vmatpush1.bf16.msra.mxu0 %v972
      %1366 = vmatprep.subr.bf16.mxu0 %v977
      %1367 = vmatpush1.bf16.msra.mxu0 %v976
      %1368 = vmatprep.subr.bf16.mxu0 %v981
      %1369 = vmatpush1.bf16.msra.mxu0 %v980
      %1370 = vmatprep.subr.bf16.mxu0 %v985
      %1371 = vmatpush1.bf16.msra.mxu0 %v984
      %1372 = vmatprep.subr.bf16.mxu0 %v989
      %1373 = vmatpush1.bf16.msra.mxu0 %v988
      %1374 = vmatprep.subr.bf16.mxu0 %v993
      %1375 = vmatpush1.bf16.msra.mxu0 %v992
      %1376 = vmatprep.subr.bf16.mxu0 %v997
      %1377 = vmatpush1.bf16.msra.mxu0 %v996
      %1378 = vmatprep.subr.bf16.mxu0 %v1001
      %1379 = vmatpush1.bf16.msra.mxu0 %v1000
      %1380 = vmatprep.subr.bf16.mxu0 %v1005
      %1381 = vmatpush1.bf16.msra.mxu0 %v1004
      %1382 = vmatprep.subr.bf16.mxu0 %v1009
      %1383 = vmatpush1.bf16.msra.mxu0 %v1008
      %1384 = vmatprep.subr.bf16.mxu0 %v1013
      %1385 = vmatpush1.bf16.msra.mxu0 %v1012
      %1386 = vmatprep.subr.bf16.mxu0 %v1017
      %1387 = vmatpush1.bf16.msra.mxu0 %v1016
      %1388 = vmatprep.mubr.bf16.mxu0 %v539
      %1389 = vmatmul.mubr.bf16.gmra.mrb[0].mxu0 %v538
      %v1390 = vpop.f32.mrb[0].mxu0
      %v1391 = vadd.f32 0.0, %v1390
      %v1392 = vpop.f32.mrb[0].mxu0
      %v1393 = vadd.f32 0.0, %v1392
      %v1394 = vpop.f32.mrb[0].mxu0
      %v1395 = vadd.f32 0.0, %v1394
      %v1396 = vpop.f32.mrb[0].mxu0
      %v1397 = vadd.f32 0.0, %v1396
      %1398 = vmatprep.mubr.bf16.mxu0 %v543
      %1399 = vmatmul.mubr.bf16.gmra.mrb[0].mxu0 %v542
      %v1400 = vpop.f32.mrb[0].mxu0
      %v1401 = vadd.f32 0.0, %v1400
      %v1402 = vpop.f32.mrb[0].mxu0
      %v1403 = vadd.f32 0.0, %v1402
      %v1404 = vpop.f32.mrb[0].mxu0
      %v1405 = vadd.f32 0.0, %v1404
      %v1406 = vpop.f32.mrb[0].mxu0
      %v1407 = vadd.f32 0.0, %v1406
      %1408 = vmatprep.mubr.bf16.mxu0 %v547
      %1409 = vmatmul.mubr.bf16.gmra.mrb[0].mxu0 %v546
      %v1410 = vpop.f32.mrb[0].mxu0
      %v1411 = vadd.f32 0.0, %v1410
      %v1412 = vpop.f32.mrb[0].mxu0
      %v1413 = vadd.f32 0.0, %v1412
      %v1414 = vpop.f32.mrb[0].mxu0
      %v1415 = vadd.f32 0.0, %v1414
      %v1416 = vpop.f32.mrb[0].mxu0
      %v1417 = vadd.f32 0.0, %v1416
      %1418 = vmatprep.mubr.bf16.mxu0 %v551
      %1419 = vmatmul.mubr.bf16.gmra.mrb[0].mxu0 %v550
      %v1420 = vpop.f32.mrb[0].mxu0
      %v1421 = vadd.f32 0.0, %v1420
      %v1422 = vpop.f32.mrb[0].mxu0
      %v1423 = vadd.f32 0.0, %v1422
      %v1424 = vpop.f32.mrb[0].mxu0
      %v1425 = vadd.f32 0.0, %v1424
      %v1426 = vpop.f32.mrb[0].mxu0
      %v1427 = vadd.f32 0.0, %v1426
      %1428 = vdwg.mxu0
      %1429 = vmatprep.subr.bf16.mxu0 %v1021
      %1430 = vmatpush1.bf16.msra.mxu0 %v1020
      %1431 = vmatprep.subr.bf16.mxu0 %v1025
      %1432 = vmatpush1.bf16.msra.mxu0 %v1024
      %1433 = vmatprep.subr.bf16.mxu0 %v1029
      %1434 = vmatpush1.bf16.msra.mxu0 %v1028
      %1435 = vmatprep.subr.bf16.mxu0 %v1033
      %1436 = vmatpush1.bf16.msra.mxu0 %v1032
      %1437 = vmatprep.subr.bf16.mxu0 %v1037
      %1438 = vmatpush1.bf16.msra.mxu0 %v1036
      %1439 = vmatprep.subr.bf16.mxu0 %v1041
      %1440 = vmatpush1.bf16.msra.mxu0 %v1040
      %1441 = vmatprep.subr.bf16.mxu0 %v1045
      %1442 = vmatpush1.bf16.msra.mxu0 %v1044
      %1443 = vmatprep.subr.bf16.mxu0 %v1049
      %1444 = vmatpush1.bf16.msra.mxu0 %v1048
      %1445 = vmatprep.subr.bf16.mxu0 %v1053
      %1446 = vmatpush1.bf16.msra.mxu0 %v1052
      %1447 = vmatprep.subr.bf16.mxu0 %v1057
      %1448 = vmatpush1.bf16.msra.mxu0 %v1056
      %1449 = vmatprep.subr.bf16.mxu0 %v1061
      %1450 = vmatpush1.bf16.msra.mxu0 %v1060
      %1451 = vmatprep.subr.bf16.mxu0 %v1065
      %1452 = vmatpush1.bf16.msra.mxu0 %v1064
      %1453 = vmatprep.subr.bf16.mxu0 %v1069
      %1454 = vmatpush1.bf16.msra.mxu0 %v1068
      %1455 = vmatprep.subr.bf16.mxu0 %v1073
      %1456 = vmatpush1.bf16.msra.mxu0 %v1072
      %1457 = vmatprep.subr.bf16.mxu0 %v1077
      %1458 = vmatpush1.bf16.msra.mxu0 %v1076
      %1459 = vmatprep.subr.bf16.mxu0 %v1081
      %1460 = vmatpush1.bf16.msra.mxu0 %v1080
      %1461 = vmatprep.mubr.bf16.mxu0 %v541
      %1462 = vmatmul.mubr.bf16.gmra.mrb[0].mxu0 %v540
      %v1463 = vpop.f32.mrb[0].mxu0
      %v1464 = vadd.f32 %v1391, %v1463
      %v1465 = vpop.f32.mrb[0].mxu0
      %v1466 = vadd.f32 %v1393, %v1465
      %v1467 = vpop.f32.mrb[0].mxu0
      %v1468 = vadd.f32 %v1395, %v1467
      %v1469 = vpop.f32.mrb[0].mxu0
      %v1470 = vadd.f32 %v1397, %v1469
      %1471 = vmatprep.mubr.bf16.mxu0 %v545
      %1472 = vmatmul.mubr.bf16.gmra.mrb[0].mxu0 %v544
      %v1473 = vpop.f32.mrb[0].mxu0
      %v1474 = vadd.f32 %v1401, %v1473
      %v1475 = vpop.f32.mrb[0].mxu0
      %v1476 = vadd.f32 %v1403, %v1475
      %v1477 = vpop.f32.mrb[0].mxu0
      %v1478 = vadd.f32 %v1405, %v1477
      %v1479 = vpop.f32.mrb[0].mxu0
      %v1480 = vadd.f32 %v1407, %v1479
      %1481 = vmatprep.mubr.bf16.mxu0 %v549
      %1482 = vmatmul.mubr.bf16.gmra.mrb[0].mxu0 %v548
      %v1483 = vpop.f32.mrb[0].mxu0
      %v1484 = vadd.f32 %v1411, %v1483
      %v1485 = vpop.f32.mrb[0].mxu0
      %v1486 = vadd.f32 %v1413, %v1485
      %v1487 = vpop.f32.mrb[0].mxu0
      %v1488 = vadd.f32 %v1415, %v1487
      %v1489 = vpop.f32.mrb[0].mxu0
      %v1490 = vadd.f32 %v1417, %v1489
      %1491 = vmatprep.mubr.bf16.mxu0 %v553
      %1492 = vmatmul.mubr.bf16.gmra.mrb[0].mxu0 %v552
      %v1493 = vpop.f32.mrb[0].mxu0
      %v1494 = vadd.f32 %v1421, %v1493
      %v1495 = vpop.f32.mrb[0].mxu0
      %v1496 = vadd.f32 %v1423, %v1495
      %v1497 = vpop.f32.mrb[0].mxu0
      %v1498 = vadd.f32 %v1425, %v1497
      %v1499 = vpop.f32.mrb[0].mxu0
      %v1500 = vadd.f32 %v1427, %v1499
      %1501 = vdwg.mxu0
      %v1510 = vunpack.c.l.b16 %v334
      %v1511 = vunpack.c.l.b16 %v335
      %v1512 = vunpack.c.l.b16 %v336
      %v1513 = vunpack.c.l.b16 %v337
      %v1514 = vunpack.c.l.b16 %v338
      %v1515 = vunpack.c.l.b16 %v339
      %v1516 = vunpack.c.l.b16 %v340
      %v1517 = vunpack.c.l.b16 %v341
      %v1518 = vpack.c.b16 %v1511, %v1510
      %v1519 = vpack.c.b16 %v1513, %v1512
      %v1520 = vpack.c.b16 %v1515, %v1514
      %v1521 = vpack.c.b16 %v1517, %v1516
      %v1526 = vunpack.c.l.b16 %v342
      %v1527 = vunpack.c.h.b16 %v342
      %v1528 = vunpack.c.l.b16 %v343
      %v1529 = vunpack.c.h.b16 %v343
      %v1530 = vunpack.c.l.b16 %v344
      %v1531 = vunpack.c.h.b16 %v344
      %v1532 = vunpack.c.l.b16 %v345
      %v1533 = vunpack.c.h.b16 %v345
      %v1534 = vpack.c.b16 %v1530, %v1526
      %v1535 = vpack.c.b16 %v1531, %v1527
      %v1536 = vpack.c.b16 %v1532, %v1528
      %v1537 = vpack.c.b16 %v1533, %v1529
      %vm1542 = vcmask 130048
      %v1544 = vsel %vm1542, %v1518, 0
      %v1547 = vsel %vm1542, %v1519, 0
      %v1550 = vsel %vm1542, %v1520, 0
      %v1553 = vsel %vm1542, %v1521, 0
      %1555 = vmatprep.subr.bf16.mxu0 %v1535
      %1556 = vmatpush1.bf16.msra.mxu0 %v1534
      %1557 = vmatprep.subr.bf16.mxu0 0
      %1558 = vmatpush1.bf16.msra.mxu0 0
      %1559 = vmatprep.subr.bf16.mxu0 0
      %1560 = vmatpush1.bf16.msra.mxu0 0
      %1561 = vmatprep.subr.bf16.mxu0 0
      %1562 = vmatpush1.bf16.msra.mxu0 0
      %1563 = vmatprep.subr.bf16.mxu0 0
      %1564 = vmatpush1.bf16.msra.mxu0 0
      %1565 = vmatprep.subr.bf16.mxu0 0
      %1566 = vmatpush1.bf16.msra.mxu0 0
      %1567 = vmatprep.subr.bf16.mxu0 0
      %1568 = vmatpush1.bf16.msra.mxu0 0
      %1569 = vmatprep.subr.bf16.mxu0 0
      %1570 = vmatpush1.bf16.msra.mxu0 0
      %1571 = vmatprep.subr.bf16.mxu0 0
      %1572 = vmatpush1.bf16.msra.mxu0 0
      %1573 = vmatprep.subr.bf16.mxu0 0
      %1574 = vmatpush1.bf16.msra.mxu0 0
      %1575 = vmatprep.subr.bf16.mxu0 0
      %1576 = vmatpush1.bf16.msra.mxu0 0
      %1577 = vmatprep.subr.bf16.mxu0 0
      %1578 = vmatpush1.bf16.msra.mxu0 0
      %1579 = vmatprep.subr.bf16.mxu0 0
      %1580 = vmatpush1.bf16.msra.mxu0 0
      %1581 = vmatprep.subr.bf16.mxu0 0
      %1582 = vmatpush1.bf16.msra.mxu0 0
      %1583 = vmatprep.subr.bf16.mxu0 0
      %1584 = vmatpush1.bf16.msra.mxu0 0
      %1585 = vmatprep.subr.bf16.mxu0 0
      %1586 = vmatpush1.bf16.msra.mxu0 0
      %1587 = vmatprep.mubr.bf16.mxu0 0
      %1588 = vmatmul.mubr.bf16.gmra.mrb[0].mxu0 %v1544
      %v1589 = vpop.f32.mrb[0].mxu0
      %v1590 = vadd.f32 %v1318, %v1589
      %v1591 = vpop.f32.mrb[0].mxu0
      %v1592 = vadd.f32 %v1320, %v1591
      %v1593 = vpop.f32.mrb[0].mxu0
      %v1594 = vadd.f32 %v1322, %v1593
      %v1595 = vpop.f32.mrb[0].mxu0
      %v1596 = vadd.f32 %v1324, %v1595
      %1597 = vmatprep.mubr.bf16.mxu0 0
      %1598 = vmatmul.mubr.bf16.gmra.mrb[0].mxu0 %v1547
      %v1599 = vpop.f32.mrb[0].mxu0
      %v1600 = vadd.f32 %v1328, %v1599
      %v1601 = vpop.f32.mrb[0].mxu0
      %v1602 = vadd.f32 %v1330, %v1601
      %v1603 = vpop.f32.mrb[0].mxu0
      %v1604 = vadd.f32 %v1332, %v1603
      %v1605 = vpop.f32.mrb[0].mxu0
      %v1606 = vadd.f32 %v1334, %v1605
      %1607 = vmatprep.mubr.bf16.mxu0 0
      %1608 = vmatmul.mubr.bf16.gmra.mrb[0].mxu0 %v1550
      %v1609 = vpop.f32.mrb[0].mxu0
      %v1610 = vadd.f32 %v1338, %v1609
      %v1611 = vpop.f32.mrb[0].mxu0
      %v1612 = vadd.f32 %v1340, %v1611
      %v1613 = vpop.f32.mrb[0].mxu0
      %v1614 = vadd.f32 %v1342, %v1613
      %v1615 = vpop.f32.mrb[0].mxu0
      %v1616 = vadd.f32 %v1344, %v1615
      %1617 = vmatprep.mubr.bf16.mxu0 0
      %1618 = vmatmul.mubr.bf16.gmra.mrb[0].mxu0 %v1553
      %v1619 = vpop.f32.mrb[0].mxu0
      %v1620 = vadd.f32 %v1348, %v1619
      %v1621 = vpop.f32.mrb[0].mxu0
      %v1622 = vadd.f32 %v1350, %v1621
      %v1623 = vpop.f32.mrb[0].mxu0
      %v1624 = vadd.f32 %v1352, %v1623
      %v1625 = vpop.f32.mrb[0].mxu0
      %v1626 = vadd.f32 %v1354, %v1625
      %1627 = vdwg.mxu0
      %1628 = vmatprep.subr.bf16.mxu0 %v1537
      %1629 = vmatpush1.bf16.msra.mxu0 %v1536
      %1630 = vmatprep.subr.bf16.mxu0 0
      %1631 = vmatpush1.bf16.msra.mxu0 0
      %1632 = vmatprep.subr.bf16.mxu0 0
      %1633 = vmatpush1.bf16.msra.mxu0 0
      %1634 = vmatprep.subr.bf16.mxu0 0
      %1635 = vmatpush1.bf16.msra.mxu0 0
      %1636 = vmatprep.subr.bf16.mxu0 0
      %1637 = vmatpush1.bf16.msra.mxu0 0
      %1638 = vmatprep.subr.bf16.mxu0 0
      %1639 = vmatpush1.bf16.msra.mxu0 0
      %1640 = vmatprep.subr.bf16.mxu0 0
      %1641 = vmatpush1.bf16.msra.mxu0 0
      %1642 = vmatprep.subr.bf16.mxu0 0
      %1643 = vmatpush1.bf16.msra.mxu0 0
      %1644 = vmatprep.subr.bf16.mxu0 0
      %1645 = vmatpush1.bf16.msra.mxu0 0
      %1646 = vmatprep.subr.bf16.mxu0 0
      %1647 = vmatpush1.bf16.msra.mxu0 0
      %1648 = vmatprep.subr.bf16.mxu0 0
      %1649 = vmatpush1.bf16.msra.mxu0 0
      %1650 = vmatprep.subr.bf16.mxu0 0
      %1651 = vmatpush1.bf16.msra.mxu0 0
      %1652 = vmatprep.subr.bf16.mxu0 0
      %1653 = vmatpush1.bf16.msra.mxu0 0
      %1654 = vmatprep.subr.bf16.mxu0 0
      %1655 = vmatpush1.bf16.msra.mxu0 0
      %1656 = vmatprep.subr.bf16.mxu0 0
      %1657 = vmatpush1.bf16.msra.mxu0 0
      %1658 = vmatprep.subr.bf16.mxu0 0
      %1659 = vmatpush1.bf16.msra.mxu0 0
      %1660 = vmatprep.mubr.bf16.mxu0 0
      %1661 = vmatmul.mubr.bf16.gmra.mrb[0].mxu0 %v1544
      %v1662 = vpop.f32.mrb[0].mxu0
      %v1663 = vadd.f32 %v1464, %v1662
      %v1664 = vpop.f32.mrb[0].mxu0
      %v1665 = vadd.f32 %v1466, %v1664
      %v1666 = vpop.f32.mrb[0].mxu0
      %v1667 = vadd.f32 %v1468, %v1666
      %v1668 = vpop.f32.mrb[0].mxu0
      %v1669 = vadd.f32 %v1470, %v1668
      %1670 = vmatprep.mubr.bf16.mxu0 0
      %1671 = vmatmul.mubr.bf16.gmra.mrb[0].mxu0 %v1547
      %v1672 = vpop.f32.mrb[0].mxu0
      %v1673 = vadd.f32 %v1474, %v1672
      %v1674 = vpop.f32.mrb[0].mxu0
      %v1675 = vadd.f32 %v1476, %v1674
      %v1676 = vpop.f32.mrb[0].mxu0
      %v1677 = vadd.f32 %v1478, %v1676
      %v1678 = vpop.f32.mrb[0].mxu0
      %v1679 = vadd.f32 %v1480, %v1678
      %1680 = vmatprep.mubr.bf16.mxu0 0
      %1681 = vmatmul.mubr.bf16.gmra.mrb[0].mxu0 %v1550
      %v1682 = vpop.f32.mrb[0].mxu0
      %v1683 = vadd.f32 %v1484, %v1682
      %v1684 = vpop.f32.mrb[0].mxu0
      %v1685 = vadd.f32 %v1486, %v1684
      %v1686 = vpop.f32.mrb[0].mxu0
      %v1687 = vadd.f32 %v1488, %v1686
      %v1688 = vpop.f32.mrb[0].mxu0
      %v1689 = vadd.f32 %v1490, %v1688
      %1690 = vmatprep.mubr.bf16.mxu0 0
      %1691 = vmatmul.mubr.bf16.gmra.mrb[0].mxu0 %v1553
      %v1692 = vpop.f32.mrb[0].mxu0
      %v1693 = vadd.f32 %v1494, %v1692
      %v1694 = vpop.f32.mrb[0].mxu0
      %v1695 = vadd.f32 %v1496, %v1694
      %v1696 = vpop.f32.mrb[0].mxu0
      %v1697 = vadd.f32 %v1498, %v1696
      %v1698 = vpop.f32.mrb[0].mxu0
      %v1699 = vadd.f32 %v1500, %v1698
      %1700 = vdwg.mxu0
      %v1701 = vmax.f32 %v1590, 0.0
      %v1702 = vmax.f32 %v1592, 0.0
      %v1703 = vmax.f32 %v1663, 0.0
      %v1704 = vmax.f32 %v1665, 0.0
      %v1705 = vmax.f32 %v1594, 0.0
      %v1706 = vmax.f32 %v1596, 0.0
      %v1707 = vmax.f32 %v1667, 0.0
      %v1708 = vmax.f32 %v1669, 0.0
      %v1709 = vmax.f32 %v1600, 0.0
      %v1710 = vmax.f32 %v1602, 0.0
      %v1711 = vmax.f32 %v1673, 0.0
      %v1712 = vmax.f32 %v1675, 0.0
      %v1713 = vmax.f32 %v1604, 0.0
      %v1714 = vmax.f32 %v1606, 0.0
      %v1715 = vmax.f32 %v1677, 0.0
      %v1716 = vmax.f32 %v1679, 0.0
      %v1717 = vmax.f32 %v1610, 0.0
      %v1718 = vmax.f32 %v1612, 0.0
      %v1719 = vmax.f32 %v1683, 0.0
      %v1720 = vmax.f32 %v1685, 0.0
      %v1721 = vmax.f32 %v1614, 0.0
      %v1722 = vmax.f32 %v1616, 0.0
      %v1723 = vmax.f32 %v1687, 0.0
      %v1724 = vmax.f32 %v1689, 0.0
      %v1725 = vmax.f32 %v1620, 0.0
      %v1726 = vmax.f32 %v1622, 0.0
      %v1727 = vmax.f32 %v1693, 0.0
      %v1728 = vmax.f32 %v1695, 0.0
      %v1729 = vmax.f32 %v1624, 0.0
      %v1730 = vmax.f32 %v1626, 0.0
      %v1731 = vmax.f32 %v1697, 0.0
      %v1732 = vmax.f32 %v1699, 0.0
      %v1733 = vpack.c.bf16 %v1705, %v1701
      %v1734 = vpack.c.bf16 %v1706, %v1702
      %v1735 = vpack.c.bf16 %v1707, %v1703
      %v1736 = vpack.c.bf16 %v1708, %v1704
      %v1737 = vpack.c.bf16 %v1713, %v1709
      %v1738 = vpack.c.bf16 %v1714, %v1710
      %v1739 = vpack.c.bf16 %v1715, %v1711
      %v1740 = vpack.c.bf16 %v1716, %v1712
      %v1741 = vpack.c.bf16 %v1721, %v1717
      %v1742 = vpack.c.bf16 %v1722, %v1718
      %v1743 = vpack.c.bf16 %v1723, %v1719
      %v1744 = vpack.c.bf16 %v1724, %v1720
      %v1745 = vpack.c.bf16 %v1729, %v1725
      %v1746 = vpack.c.bf16 %v1730, %v1726
      %v1747 = vpack.c.bf16 %v1731, %v1727
      %v1748 = vpack.c.bf16 %v1732, %v1728
      %v1749 = vld [vmem:[%s4] sm:$0xff]
      %v1750 = vld [vmem:[%s4 + $0x8] sm:$0xff]
      %v1751 = vld [vmem:[%s4 + $0x10] sm:$0xff]
      %v1752 = vld [vmem:[%s4 + $0x18] sm:$0xff]
      %v1753 = vld [vmem:[%s4 + $0x20] sm:$0xff]
      %v1754 = vld [vmem:[%s4 + $0x28] sm:$0xff]
      %v1755 = vld [vmem:[%s4 + $0x30] sm:$0xff]
      %v1756 = vld [vmem:[%s4 + $0x38] sm:$0xff]
      %v1757 = vld [vmem:[%s4 + $0x40] sm:$0xff]
      %v1758 = vld [vmem:[%s4 + $0x48] sm:$0xff]
      %v1759 = vld [vmem:[%s4 + $0x50] sm:$0xff]
      %v1760 = vld [vmem:[%s4 + $0x58] sm:$0xff]
      %v1761 = vld [vmem:[%s4 + $0x60] sm:$0xff]
      %v1762 = vld [vmem:[%s4 + $0x68] sm:$0xff]
      %v1763 = vld [vmem:[%s4 + $0x70] sm:$0xff]
      %v1764 = vld [vmem:[%s4 + $0x78] sm:$0xff]
      %v1765 = vld [vmem:[%s4 + $0x80] sm:$0xff]
      %v1766 = vld [vmem:[%s4 + $0x88] sm:$0xff]
      %v1767 = vld [vmem:[%s4 + $0x90] sm:$0xff]
      %v1768 = vld [vmem:[%s4 + $0x98] sm:$0xff]
      %v1769 = vld [vmem:[%s4 + $0xa0] sm:$0xff]
      %v1770 = vld [vmem:[%s4 + $0xa8] sm:$0xff]
      %v1771 = vld [vmem:[%s4 + $0xb0] sm:$0xff]
      %v1772 = vld [vmem:[%s4 + $0xb8] sm:$0xff]
      %v1773 = vld [vmem:[%s4 + $0xc0] sm:$0xff]
      %v1774 = vld [vmem:[%s4 + $0xc8] sm:$0xff]
      %v1775 = vld [vmem:[%s4 + $0xd0] sm:$0xff]
      %v1776 = vld [vmem:[%s4 + $0xd8] sm:$0xff]
      %v1777 = vld [vmem:[%s4 + $0xe0] sm:$0xff]
      %v1778 = vld [vmem:[%s4 + $0xe8] sm:$0xff]
      %v1779 = vld [vmem:[%s4 + $0xf0] sm:$0xff]
      %v1780 = vld [vmem:[%s4 + $0xf8] sm:$0xff]
      %v1781 = vld [vmem:[%s4 + $0x100] sm:$0xff]
      %v1782 = vld [vmem:[%s4 + $0x108] sm:$0xff]
      %v1783 = vld [vmem:[%s4 + $0x110] sm:$0xff]
      %v1784 = vld [vmem:[%s4 + $0x118] sm:$0xff]
      %v1785 = vld [vmem:[%s4 + $0x120] sm:$0xff]
      %v1786 = vld [vmem:[%s4 + $0x128] sm:$0xff]
      %v1787 = vld [vmem:[%s4 + $0x130] sm:$0xff]
      %v1788 = vld [vmem:[%s4 + $0x138] sm:$0xff]
      %v1789 = vld [vmem:[%s4 + $0x140] sm:$0xff]
      %v1790 = vld [vmem:[%s4 + $0x148] sm:$0xff]
      %v1791 = vld [vmem:[%s4 + $0x150] sm:$0xff]
      %v1792 = vld [vmem:[%s4 + $0x158] sm:$0xff]
      %v1793 = vld [vmem:[%s4 + $0x160] sm:$0xff]
      %v1794 = vld [vmem:[%s4 + $0x168] sm:$0xff]
      %v1795 = vld [vmem:[%s4 + $0x170] sm:$0xff]
      %v1796 = vld [vmem:[%s4 + $0x178] sm:$0xff]
      %v1797 = vld [vmem:[%s4 + $0x180] sm:$0xff]
      %v1798 = vld [vmem:[%s4 + $0x188] sm:$0xff]
      %v1799 = vld [vmem:[%s4 + $0x190] sm:$0xff]
      %v1800 = vld [vmem:[%s4 + $0x198] sm:$0xff]
      %v1801 = vld [vmem:[%s4 + $0x1a0] sm:$0xff]
      %v1802 = vld [vmem:[%s4 + $0x1a8] sm:$0xff]
      %v1803 = vld [vmem:[%s4 + $0x1b0] sm:$0xff]
      %v1804 = vld [vmem:[%s4 + $0x1b8] sm:$0xff]
      %v1805 = vld [vmem:[%s4 + $0x1c0] sm:$0xff]
      %v1806 = vld [vmem:[%s4 + $0x1c8] sm:$0xff]
      %v1807 = vld [vmem:[%s4 + $0x1d0] sm:$0xff]
      %v1808 = vld [vmem:[%s4 + $0x1d8] sm:$0xff]
      %v1809 = vld [vmem:[%s4 + $0x1e0] sm:$0xff]
      %v1810 = vld [vmem:[%s4 + $0x1e8] sm:$0xff]
      %v1811 = vld [vmem:[%s4 + $0x1f0] sm:$0xff]
      %v1812 = vld [vmem:[%s4 + $0x1f8] sm:$0xff]
      %v1813 = vld [vmem:[%s4 + $0x200] sm:$0xff]
      %v1814 = vld [vmem:[%s4 + $0x208] sm:$0xff]
      %v1815 = vld [vmem:[%s4 + $0x210] sm:$0xff]
      %v1816 = vld [vmem:[%s4 + $0x218] sm:$0xff]
      %v1817 = vld [vmem:[%s4 + $0x220] sm:$0xff]
      %v1818 = vld [vmem:[%s4 + $0x228] sm:$0xff]
      %v1819 = vld [vmem:[%s4 + $0x230] sm:$0xff]
      %v1820 = vld [vmem:[%s4 + $0x238] sm:$0xff]
      %v1821 = vld [vmem:[%s4 + $0x240] sm:$0xff]
      %v1822 = vld [vmem:[%s4 + $0x248] sm:$0xff]
      %v1823 = vld [vmem:[%s4 + $0x250] sm:$0xff]
      %v1824 = vld [vmem:[%s4 + $0x258] sm:$0xff]
      %v1825 = vld [vmem:[%s4 + $0x260] sm:$0xff]
      %v1826 = vld [vmem:[%s4 + $0x268] sm:$0xff]
      %v1827 = vld [vmem:[%s4 + $0x270] sm:$0xff]
      %v1828 = vld [vmem:[%s4 + $0x278] sm:$0xff]
      %v1829 = vld [vmem:[%s4 + $0x280] sm:$0xff]
      %v1830 = vld [vmem:[%s4 + $0x288] sm:$0xff]
      %v1831 = vld [vmem:[%s4 + $0x290] sm:$0xff]
      %v1832 = vld [vmem:[%s4 + $0x298] sm:$0xff]
      %v1833 = vld [vmem:[%s4 + $0x2a0] sm:$0xff]
      %v1834 = vld [vmem:[%s4 + $0x2a8] sm:$0xff]
      %v1835 = vld [vmem:[%s4 + $0x2b0] sm:$0xff]
      %v1836 = vld [vmem:[%s4 + $0x2b8] sm:$0xff]
      %v1837 = vld [vmem:[%s4 + $0x2c0] sm:$0xff]
      %v1838 = vld [vmem:[%s4 + $0x2c8] sm:$0xff]
      %v1839 = vld [vmem:[%s4 + $0x2d0] sm:$0xff]
      %v1840 = vld [vmem:[%s4 + $0x2d8] sm:$0xff]
      %v1841 = vld [vmem:[%s4 + $0x2e0] sm:$0xff]
      %v1842 = vld [vmem:[%s4 + $0x2e8] sm:$0xff]
      %v1843 = vld [vmem:[%s4 + $0x2f0] sm:$0xff]
      %v1844 = vld [vmem:[%s4 + $0x2f8] sm:$0xff]
      %v1845 = vld [vmem:[%s4 + $0x300] sm:$0xff]
      %v1846 = vld [vmem:[%s4 + $0x308] sm:$0xff]
      %v1847 = vld [vmem:[%s4 + $0x310] sm:$0xff]
      %v1848 = vld [vmem:[%s4 + $0x318] sm:$0xff]
      %v1849 = vld [vmem:[%s4 + $0x320] sm:$0xff]
      %v1850 = vld [vmem:[%s4 + $0x328] sm:$0xff]
      %v1851 = vld [vmem:[%s4 + $0x330] sm:$0xff]
      %v1852 = vld [vmem:[%s4 + $0x338] sm:$0xff]
      %v1853 = vld [vmem:[%s4 + $0x340] sm:$0xff]
      %v1854 = vld [vmem:[%s4 + $0x348] sm:$0xff]
      %v1855 = vld [vmem:[%s4 + $0x350] sm:$0xff]
      %v1856 = vld [vmem:[%s4 + $0x358] sm:$0xff]
      %v1857 = vld [vmem:[%s4 + $0x360] sm:$0xff]
      %v1858 = vld [vmem:[%s4 + $0x368] sm:$0xff]
      %v1859 = vld [vmem:[%s4 + $0x370] sm:$0xff]
      %v1860 = vld [vmem:[%s4 + $0x378] sm:$0xff]
      %v1861 = vld [vmem:[%s4 + $0x380] sm:$0xff]
      %v1862 = vld [vmem:[%s4 + $0x388] sm:$0xff]
      %v1863 = vld [vmem:[%s4 + $0x390] sm:$0xff]
      %v1864 = vld [vmem:[%s4 + $0x398] sm:$0xff]
      %v1865 = vld [vmem:[%s4 + $0x3a0] sm:$0xff]
      %v1866 = vld [vmem:[%s4 + $0x3a8] sm:$0xff]
      %v1867 = vld [vmem:[%s4 + $0x3b0] sm:$0xff]
      %v1868 = vld [vmem:[%s4 + $0x3b8] sm:$0xff]
      %v1869 = vld [vmem:[%s4 + $0x3c0] sm:$0xff]
      %v1870 = vld [vmem:[%s4 + $0x3c8] sm:$0xff]
      %v1871 = vld [vmem:[%s4 + $0x3d0] sm:$0xff]
      %v1872 = vld [vmem:[%s4 + $0x3d8] sm:$0xff]
      %v1873 = vld [vmem:[%s4 + $0x3e0] sm:$0xff]
      %v1874 = vld [vmem:[%s4 + $0x3e8] sm:$0xff]
      %v1875 = vld [vmem:[%s4 + $0x3f0] sm:$0xff]
      %v1876 = vld [vmem:[%s4 + $0x3f8] sm:$0xff]
      %v1877 = vld [vmem:[%s5] sm:$0xf]
      %v1879 = vlaneseq
      %v1880 = vshrl.u32 %v1879, 7
      %v1881 = vsub.s32 0, %v1880
      %v1882 = vrot.slane %v1877, %v1881
      %v1883 = vlaneseq
      %v1884 = vshrl.u32 %v1883, 7
      %v1885 = vsub.s32 1, %v1884
      %v1886 = vrot.slane %v1877, %v1885
      %v1887 = vlaneseq
      %v1888 = vshrl.u32 %v1887, 7
      %v1889 = vsub.s32 2, %v1888
      %v1890 = vrot.slane %v1877, %v1889
      %v1891 = vlaneseq
      %v1892 = vshrl.u32 %v1891, 7
      %v1893 = vsub.s32 3, %v1892
      %v1894 = vrot.slane %v1877, %v1893
      %v2027 = vunpack.c.l.b16 %v1749
      %v2028 = vunpack.c.h.b16 %v1749
      %v2029 = vunpack.c.l.b16 %v1750
      %v2030 = vunpack.c.h.b16 %v1750
      %v2031 = vunpack.c.l.b16 %v1751
      %v2032 = vunpack.c.h.b16 %v1751
      %v2033 = vunpack.c.l.b16 %v1752
      %v2034 = vunpack.c.h.b16 %v1752
      %v2035 = vunpack.c.l.b16 %v1753
      %v2036 = vunpack.c.h.b16 %v1753
      %v2037 = vunpack.c.l.b16 %v1754
      %v2038 = vunpack.c.h.b16 %v1754
      %v2039 = vunpack.c.l.b16 %v1755
      %v2040 = vunpack.c.h.b16 %v1755
      %v2041 = vunpack.c.l.b16 %v1756
      %v2042 = vunpack.c.h.b16 %v1756
      %v2043 = vunpack.c.l.b16 %v1757
      %v2044 = vunpack.c.h.b16 %v1757
      %v2045 = vunpack.c.l.b16 %v1758
      %v2046 = vunpack.c.h.b16 %v1758
      %v2047 = vunpack.c.l.b16 %v1759
      %v2048 = vunpack.c.h.b16 %v1759
      %v2049 = vunpack.c.l.b16 %v1760
      %v2050 = vunpack.c.h.b16 %v1760
      %v2051 = vunpack.c.l.b16 %v1761
      %v2052 = vunpack.c.h.b16 %v1761
      %v2053 = vunpack.c.l.b16 %v1762
      %v2054 = vunpack.c.h.b16 %v1762
      %v2055 = vunpack.c.l.b16 %v1763
      %v2056 = vunpack.c.h.b16 %v1763
      %v2057 = vunpack.c.l.b16 %v1764
      %v2058 = vunpack.c.h.b16 %v1764
      %v2059 = vunpack.c.l.b16 %v1765
      %v2060 = vunpack.c.h.b16 %v1765
      %v2061 = vunpack.c.l.b16 %v1766
      %v2062 = vunpack.c.h.b16 %v1766
      %v2063 = vunpack.c.l.b16 %v1767
      %v2064 = vunpack.c.h.b16 %v1767
      %v2065 = vunpack.c.l.b16 %v1768
      %v2066 = vunpack.c.h.b16 %v1768
      %v2067 = vunpack.c.l.b16 %v1769
      %v2068 = vunpack.c.h.b16 %v1769
      %v2069 = vunpack.c.l.b16 %v1770
      %v2070 = vunpack.c.h.b16 %v1770
      %v2071 = vunpack.c.l.b16 %v1771
      %v2072 = vunpack.c.h.b16 %v1771
      %v2073 = vunpack.c.l.b16 %v1772
      %v2074 = vunpack.c.h.b16 %v1772
      %v2075 = vunpack.c.l.b16 %v1773
      %v2076 = vunpack.c.h.b16 %v1773
      %v2077 = vunpack.c.l.b16 %v1774
      %v2078 = vunpack.c.h.b16 %v1774
      %v2079 = vunpack.c.l.b16 %v1775
      %v2080 = vunpack.c.h.b16 %v1775
      %v2081 = vunpack.c.l.b16 %v1776
      %v2082 = vunpack.c.h.b16 %v1776
      %v2083 = vunpack.c.l.b16 %v1777
      %v2084 = vunpack.c.h.b16 %v1777
      %v2085 = vunpack.c.l.b16 %v1778
      %v2086 = vunpack.c.h.b16 %v1778
      %v2087 = vunpack.c.l.b16 %v1779
      %v2088 = vunpack.c.h.b16 %v1779
      %v2089 = vunpack.c.l.b16 %v1780
      %v2090 = vunpack.c.h.b16 %v1780
      %v2091 = vunpack.c.l.b16 %v1781
      %v2092 = vunpack.c.h.b16 %v1781
      %v2093 = vunpack.c.l.b16 %v1782
      %v2094 = vunpack.c.h.b16 %v1782
      %v2095 = vunpack.c.l.b16 %v1783
      %v2096 = vunpack.c.h.b16 %v1783
      %v2097 = vunpack.c.l.b16 %v1784
      %v2098 = vunpack.c.h.b16 %v1784
      %v2099 = vunpack.c.l.b16 %v1785
      %v2100 = vunpack.c.h.b16 %v1785
      %v2101 = vunpack.c.l.b16 %v1786
      %v2102 = vunpack.c.h.b16 %v1786
      %v2103 = vunpack.c.l.b16 %v1787
      %v2104 = vunpack.c.h.b16 %v1787
      %v2105 = vunpack.c.l.b16 %v1788
      %v2106 = vunpack.c.h.b16 %v1788
      %v2107 = vunpack.c.l.b16 %v1789
      %v2108 = vunpack.c.h.b16 %v1789
      %v2109 = vunpack.c.l.b16 %v1790
      %v2110 = vunpack.c.h.b16 %v1790
      %v2111 = vunpack.c.l.b16 %v1791
      %v2112 = vunpack.c.h.b16 %v1791
      %v2113 = vunpack.c.l.b16 %v1792
      %v2114 = vunpack.c.h.b16 %v1792
      %v2115 = vunpack.c.l.b16 %v1793
      %v2116 = vunpack.c.h.b16 %v1793
      %v2117 = vunpack.c.l.b16 %v1794
      %v2118 = vunpack.c.h.b16 %v1794
      %v2119 = vunpack.c.l.b16 %v1795
      %v2120 = vunpack.c.h.b16 %v1795
      %v2121 = vunpack.c.l.b16 %v1796
      %v2122 = vunpack.c.h.b16 %v1796
      %v2123 = vunpack.c.l.b16 %v1797
      %v2124 = vunpack.c.h.b16 %v1797
      %v2125 = vunpack.c.l.b16 %v1798
      %v2126 = vunpack.c.h.b16 %v1798
      %v2127 = vunpack.c.l.b16 %v1799
      %v2128 = vunpack.c.h.b16 %v1799
      %v2129 = vunpack.c.l.b16 %v1800
      %v2130 = vunpack.c.h.b16 %v1800
      %v2131 = vunpack.c.l.b16 %v1801
      %v2132 = vunpack.c.h.b16 %v1801
      %v2133 = vunpack.c.l.b16 %v1802
      %v2134 = vunpack.c.h.b16 %v1802
      %v2135 = vunpack.c.l.b16 %v1803
      %v2136 = vunpack.c.h.b16 %v1803
      %v2137 = vunpack.c.l.b16 %v1804
      %v2138 = vunpack.c.h.b16 %v1804
      %v2139 = vunpack.c.l.b16 %v1805
      %v2140 = vunpack.c.h.b16 %v1805
      %v2141 = vunpack.c.l.b16 %v1806
      %v2142 = vunpack.c.h.b16 %v1806
      %v2143 = vunpack.c.l.b16 %v1807
      %v2144 = vunpack.c.h.b16 %v1807
      %v2145 = vunpack.c.l.b16 %v1808
      %v2146 = vunpack.c.h.b16 %v1808
      %v2147 = vunpack.c.l.b16 %v1809
      %v2148 = vunpack.c.h.b16 %v1809
      %v2149 = vunpack.c.l.b16 %v1810
      %v2150 = vunpack.c.h.b16 %v1810
      %v2151 = vunpack.c.l.b16 %v1811
      %v2152 = vunpack.c.h.b16 %v1811
      %v2153 = vunpack.c.l.b16 %v1812
      %v2154 = vunpack.c.h.b16 %v1812
      %v2155 = vunpack.c.l.b16 %v1813
      %v2156 = vunpack.c.h.b16 %v1813
      %v2157 = vunpack.c.l.b16 %v1814
      %v2158 = vunpack.c.h.b16 %v1814
      %v2159 = vunpack.c.l.b16 %v1815
      %v2160 = vunpack.c.h.b16 %v1815
      %v2161 = vunpack.c.l.b16 %v1816
      %v2162 = vunpack.c.h.b16 %v1816
      %v2163 = vunpack.c.l.b16 %v1817
      %v2164 = vunpack.c.h.b16 %v1817
      %v2165 = vunpack.c.l.b16 %v1818
      %v2166 = vunpack.c.h.b16 %v1818
      %v2167 = vunpack.c.l.b16 %v1819
      %v2168 = vunpack.c.h.b16 %v1819
      %v2169 = vunpack.c.l.b16 %v1820
      %v2170 = vunpack.c.h.b16 %v1820
      %v2171 = vunpack.c.l.b16 %v1821
      %v2172 = vunpack.c.h.b16 %v1821
      %v2173 = vunpack.c.l.b16 %v1822
      %v2174 = vunpack.c.h.b16 %v1822
      %v2175 = vunpack.c.l.b16 %v1823
      %v2176 = vunpack.c.h.b16 %v1823
      %v2177 = vunpack.c.l.b16 %v1824
      %v2178 = vunpack.c.h.b16 %v1824
      %v2179 = vunpack.c.l.b16 %v1825
      %v2180 = vunpack.c.h.b16 %v1825
      %v2181 = vunpack.c.l.b16 %v1826
      %v2182 = vunpack.c.h.b16 %v1826
      %v2183 = vunpack.c.l.b16 %v1827
      %v2184 = vunpack.c.h.b16 %v1827
      %v2185 = vunpack.c.l.b16 %v1828
      %v2186 = vunpack.c.h.b16 %v1828
      %v2187 = vunpack.c.l.b16 %v1829
      %v2188 = vunpack.c.h.b16 %v1829
      %v2189 = vunpack.c.l.b16 %v1830
      %v2190 = vunpack.c.h.b16 %v1830
      %v2191 = vunpack.c.l.b16 %v1831
      %v2192 = vunpack.c.h.b16 %v1831
      %v2193 = vunpack.c.l.b16 %v1832
      %v2194 = vunpack.c.h.b16 %v1832
      %v2195 = vunpack.c.l.b16 %v1833
      %v2196 = vunpack.c.h.b16 %v1833
      %v2197 = vunpack.c.l.b16 %v1834
      %v2198 = vunpack.c.h.b16 %v1834
      %v2199 = vunpack.c.l.b16 %v1835
      %v2200 = vunpack.c.h.b16 %v1835
      %v2201 = vunpack.c.l.b16 %v1836
      %v2202 = vunpack.c.h.b16 %v1836
      %v2203 = vunpack.c.l.b16 %v1837
      %v2204 = vunpack.c.h.b16 %v1837
      %v2205 = vunpack.c.l.b16 %v1838
      %v2206 = vunpack.c.h.b16 %v1838
      %v2207 = vunpack.c.l.b16 %v1839
      %v2208 = vunpack.c.h.b16 %v1839
      %v2209 = vunpack.c.l.b16 %v1840
      %v2210 = vunpack.c.h.b16 %v1840
      %v2211 = vunpack.c.l.b16 %v1841
      %v2212 = vunpack.c.h.b16 %v1841
      %v2213 = vunpack.c.l.b16 %v1842
      %v2214 = vunpack.c.h.b16 %v1842
      %v2215 = vunpack.c.l.b16 %v1843
      %v2216 = vunpack.c.h.b16 %v1843
      %v2217 = vunpack.c.l.b16 %v1844
      %v2218 = vunpack.c.h.b16 %v1844
      %v2219 = vunpack.c.l.b16 %v1845
      %v2220 = vunpack.c.h.b16 %v1845
      %v2221 = vunpack.c.l.b16 %v1846
      %v2222 = vunpack.c.h.b16 %v1846
      %v2223 = vunpack.c.l.b16 %v1847
      %v2224 = vunpack.c.h.b16 %v1847
      %v2225 = vunpack.c.l.b16 %v1848
      %v2226 = vunpack.c.h.b16 %v1848
      %v2227 = vunpack.c.l.b16 %v1849
      %v2228 = vunpack.c.h.b16 %v1849
      %v2229 = vunpack.c.l.b16 %v1850
      %v2230 = vunpack.c.h.b16 %v1850
      %v2231 = vunpack.c.l.b16 %v1851
      %v2232 = vunpack.c.h.b16 %v1851
      %v2233 = vunpack.c.l.b16 %v1852
      %v2234 = vunpack.c.h.b16 %v1852
      %v2235 = vunpack.c.l.b16 %v1853
      %v2236 = vunpack.c.h.b16 %v1853
      %v2237 = vunpack.c.l.b16 %v1854
      %v2238 = vunpack.c.h.b16 %v1854
      %v2239 = vunpack.c.l.b16 %v1855
      %v2240 = vunpack.c.h.b16 %v1855
      %v2241 = vunpack.c.l.b16 %v1856
      %v2242 = vunpack.c.h.b16 %v1856
      %v2243 = vunpack.c.l.b16 %v1857
      %v2244 = vunpack.c.h.b16 %v1857
      %v2245 = vunpack.c.l.b16 %v1858
      %v2246 = vunpack.c.h.b16 %v1858
      %v2247 = vunpack.c.l.b16 %v1859
      %v2248 = vunpack.c.h.b16 %v1859
      %v2249 = vunpack.c.l.b16 %v1860
      %v2250 = vunpack.c.h.b16 %v1860
      %v2251 = vunpack.c.l.b16 %v1861
      %v2252 = vunpack.c.h.b16 %v1861
      %v2253 = vunpack.c.l.b16 %v1862
      %v2254 = vunpack.c.h.b16 %v1862
      %v2255 = vunpack.c.l.b16 %v1863
      %v2256 = vunpack.c.h.b16 %v1863
      %v2257 = vunpack.c.l.b16 %v1864
      %v2258 = vunpack.c.h.b16 %v1864
      %v2259 = vunpack.c.l.b16 %v1865
      %v2260 = vunpack.c.h.b16 %v1865
      %v2261 = vunpack.c.l.b16 %v1866
      %v2262 = vunpack.c.h.b16 %v1866
      %v2263 = vunpack.c.l.b16 %v1867
      %v2264 = vunpack.c.h.b16 %v1867
      %v2265 = vunpack.c.l.b16 %v1868
      %v2266 = vunpack.c.h.b16 %v1868
      %v2267 = vunpack.c.l.b16 %v1869
      %v2268 = vunpack.c.h.b16 %v1869
      %v2269 = vunpack.c.l.b16 %v1870
      %v2270 = vunpack.c.h.b16 %v1870
      %v2271 = vunpack.c.l.b16 %v1871
      %v2272 = vunpack.c.h.b16 %v1871
      %v2273 = vunpack.c.l.b16 %v1872
      %v2274 = vunpack.c.h.b16 %v1872
      %v2275 = vunpack.c.l.b16 %v1873
      %v2276 = vunpack.c.h.b16 %v1873
      %v2277 = vunpack.c.l.b16 %v1874
      %v2278 = vunpack.c.h.b16 %v1874
      %v2279 = vunpack.c.l.b16 %v1875
      %v2280 = vunpack.c.h.b16 %v1875
      %v2281 = vunpack.c.l.b16 %v1876
      %v2282 = vunpack.c.h.b16 %v1876
      %v2283 = vpack.c.b16 %v2031, %v2027
      %v2284 = vpack.c.b16 %v2032, %v2028
      %v2285 = vpack.c.b16 %v2033, %v2029
      %v2286 = vpack.c.b16 %v2034, %v2030
      %v2287 = vpack.c.b16 %v2039, %v2035
      %v2288 = vpack.c.b16 %v2040, %v2036
      %v2289 = vpack.c.b16 %v2041, %v2037
      %v2290 = vpack.c.b16 %v2042, %v2038
      %v2291 = vpack.c.b16 %v2047, %v2043
      %v2292 = vpack.c.b16 %v2048, %v2044
      %v2293 = vpack.c.b16 %v2049, %v2045
      %v2294 = vpack.c.b16 %v2050, %v2046
      %v2295 = vpack.c.b16 %v2055, %v2051
      %v2296 = vpack.c.b16 %v2056, %v2052
      %v2297 = vpack.c.b16 %v2057, %v2053
      %v2298 = vpack.c.b16 %v2058, %v2054
      %v2299 = vpack.c.b16 %v2063, %v2059
      %v2300 = vpack.c.b16 %v2064, %v2060
      %v2301 = vpack.c.b16 %v2065, %v2061
      %v2302 = vpack.c.b16 %v2066, %v2062
      %v2303 = vpack.c.b16 %v2071, %v2067
      %v2304 = vpack.c.b16 %v2072, %v2068
      %v2305 = vpack.c.b16 %v2073, %v2069
      %v2306 = vpack.c.b16 %v2074, %v2070
      %v2307 = vpack.c.b16 %v2079, %v2075
      %v2308 = vpack.c.b16 %v2080, %v2076
      %v2309 = vpack.c.b16 %v2081, %v2077
      %v2310 = vpack.c.b16 %v2082, %v2078
      %v2311 = vpack.c.b16 %v2087, %v2083
      %v2312 = vpack.c.b16 %v2088, %v2084
      %v2313 = vpack.c.b16 %v2089, %v2085
      %v2314 = vpack.c.b16 %v2090, %v2086
      %v2315 = vpack.c.b16 %v2095, %v2091
      %v2316 = vpack.c.b16 %v2096, %v2092
      %v2317 = vpack.c.b16 %v2097, %v2093
      %v2318 = vpack.c.b16 %v2098, %v2094
      %v2319 = vpack.c.b16 %v2103, %v2099
      %v2320 = vpack.c.b16 %v2104, %v2100
      %v2321 = vpack.c.b16 %v2105, %v2101
      %v2322 = vpack.c.b16 %v2106, %v2102
      %v2323 = vpack.c.b16 %v2111, %v2107
      %v2324 = vpack.c.b16 %v2112, %v2108
      %v2325 = vpack.c.b16 %v2113, %v2109
      %v2326 = vpack.c.b16 %v2114, %v2110
      %v2327 = vpack.c.b16 %v2119, %v2115
      %v2328 = vpack.c.b16 %v2120, %v2116
      %v2329 = vpack.c.b16 %v2121, %v2117
      %v2330 = vpack.c.b16 %v2122, %v2118
      %v2331 = vpack.c.b16 %v2127, %v2123
      %v2332 = vpack.c.b16 %v2128, %v2124
      %v2333 = vpack.c.b16 %v2129, %v2125
      %v2334 = vpack.c.b16 %v2130, %v2126
      %v2335 = vpack.c.b16 %v2135, %v2131
      %v2336 = vpack.c.b16 %v2136, %v2132
      %v2337 = vpack.c.b16 %v2137, %v2133
      %v2338 = vpack.c.b16 %v2138, %v2134
      %v2339 = vpack.c.b16 %v2143, %v2139
      %v2340 = vpack.c.b16 %v2144, %v2140
      %v2341 = vpack.c.b16 %v2145, %v2141
      %v2342 = vpack.c.b16 %v2146, %v2142
      %v2343 = vpack.c.b16 %v2151, %v2147
      %v2344 = vpack.c.b16 %v2152, %v2148
      %v2345 = vpack.c.b16 %v2153, %v2149
      %v2346 = vpack.c.b16 %v2154, %v2150
      %v2347 = vpack.c.b16 %v2159, %v2155
      %v2348 = vpack.c.b16 %v2160, %v2156
      %v2349 = vpack.c.b16 %v2161, %v2157
      %v2350 = vpack.c.b16 %v2162, %v2158
      %v2351 = vpack.c.b16 %v2167, %v2163
      %v2352 = vpack.c.b16 %v2168, %v2164
      %v2353 = vpack.c.b16 %v2169, %v2165
      %v2354 = vpack.c.b16 %v2170, %v2166
      %v2355 = vpack.c.b16 %v2175, %v2171
      %v2356 = vpack.c.b16 %v2176, %v2172
      %v2357 = vpack.c.b16 %v2177, %v2173
      %v2358 = vpack.c.b16 %v2178, %v2174
      %v2359 = vpack.c.b16 %v2183, %v2179
      %v2360 = vpack.c.b16 %v2184, %v2180
      %v2361 = vpack.c.b16 %v2185, %v2181
      %v2362 = vpack.c.b16 %v2186, %v2182
      %v2363 = vpack.c.b16 %v2191, %v2187
      %v2364 = vpack.c.b16 %v2192, %v2188
      %v2365 = vpack.c.b16 %v2193, %v2189
      %v2366 = vpack.c.b16 %v2194, %v2190
      %v2367 = vpack.c.b16 %v2199, %v2195
      %v2368 = vpack.c.b16 %v2200, %v2196
      %v2369 = vpack.c.b16 %v2201, %v2197
      %v2370 = vpack.c.b16 %v2202, %v2198
      %v2371 = vpack.c.b16 %v2207, %v2203
      %v2372 = vpack.c.b16 %v2208, %v2204
      %v2373 = vpack.c.b16 %v2209, %v2205
      %v2374 = vpack.c.b16 %v2210, %v2206
      %v2375 = vpack.c.b16 %v2215, %v2211
      %v2376 = vpack.c.b16 %v2216, %v2212
      %v2377 = vpack.c.b16 %v2217, %v2213
      %v2378 = vpack.c.b16 %v2218, %v2214
      %v2379 = vpack.c.b16 %v2223, %v2219
      %v2380 = vpack.c.b16 %v2224, %v2220
      %v2381 = vpack.c.b16 %v2225, %v2221
      %v2382 = vpack.c.b16 %v2226, %v2222
      %v2383 = vpack.c.b16 %v2231, %v2227
      %v2384 = vpack.c.b16 %v2232, %v2228
      %v2385 = vpack.c.b16 %v2233, %v2229
      %v2386 = vpack.c.b16 %v2234, %v2230
      %v2387 = vpack.c.b16 %v2239, %v2235
      %v2388 = vpack.c.b16 %v2240, %v2236
      %v2389 = vpack.c.b16 %v2241, %v2237
      %v2390 = vpack.c.b16 %v2242, %v2238
      %v2391 = vpack.c.b16 %v2247, %v2243
      %v2392 = vpack.c.b16 %v2248, %v2244
      %v2393 = vpack.c.b16 %v2249, %v2245
      %v2394 = vpack.c.b16 %v2250, %v2246
      %v2395 = vpack.c.b16 %v2255, %v2251
      %v2396 = vpack.c.b16 %v2256, %v2252
      %v2397 = vpack.c.b16 %v2257, %v2253
      %v2398 = vpack.c.b16 %v2258, %v2254
      %v2399 = vpack.c.b16 %v2263, %v2259
      %v2400 = vpack.c.b16 %v2264, %v2260
      %v2401 = vpack.c.b16 %v2265, %v2261
      %v2402 = vpack.c.b16 %v2266, %v2262
      %v2403 = vpack.c.b16 %v2271, %v2267
      %v2404 = vpack.c.b16 %v2272, %v2268
      %v2405 = vpack.c.b16 %v2273, %v2269
      %v2406 = vpack.c.b16 %v2274, %v2270
      %v2407 = vpack.c.b16 %v2279, %v2275
      %v2408 = vpack.c.b16 %v2280, %v2276
      %v2409 = vpack.c.b16 %v2281, %v2277
      %v2410 = vpack.c.b16 %v2282, %v2278
      %2539 = vmatprep.subr.bf16.mxu0 %v2284
      %2540 = vmatpush1.bf16.msra.mxu0 %v2283
      %2541 = vmatprep.subr.bf16.mxu0 %v2288
      %2542 = vmatpush1.bf16.msra.mxu0 %v2287
      %2543 = vmatprep.subr.bf16.mxu0 %v2292
      %2544 = vmatpush1.bf16.msra.mxu0 %v2291
      %2545 = vmatprep.subr.bf16.mxu0 %v2296
      %2546 = vmatpush1.bf16.msra.mxu0 %v2295
      %2547 = vmatprep.subr.bf16.mxu0 %v2300
      %2548 = vmatpush1.bf16.msra.mxu0 %v2299
      %2549 = vmatprep.subr.bf16.mxu0 %v2304
      %2550 = vmatpush1.bf16.msra.mxu0 %v2303
      %2551 = vmatprep.subr.bf16.mxu0 %v2308
      %2552 = vmatpush1.bf16.msra.mxu0 %v2307
      %2553 = vmatprep.subr.bf16.mxu0 %v2312
      %2554 = vmatpush1.bf16.msra.mxu0 %v2311
      %2555 = vmatprep.subr.bf16.mxu0 %v2316
      %2556 = vmatpush1.bf16.msra.mxu0 %v2315
      %2557 = vmatprep.subr.bf16.mxu0 %v2320
      %2558 = vmatpush1.bf16.msra.mxu0 %v2319
      %2559 = vmatprep.subr.bf16.mxu0 %v2324
      %2560 = vmatpush1.bf16.msra.mxu0 %v2323
      %2561 = vmatprep.subr.bf16.mxu0 %v2328
      %2562 = vmatpush1.bf16.msra.mxu0 %v2327
      %2563 = vmatprep.subr.bf16.mxu0 %v2332
      %2564 = vmatpush1.bf16.msra.mxu0 %v2331
      %2565 = vmatprep.subr.bf16.mxu0 %v2336
      %2566 = vmatpush1.bf16.msra.mxu0 %v2335
      %2567 = vmatprep.subr.bf16.mxu0 %v2340
      %2568 = vmatpush1.bf16.msra.mxu0 %v2339
      %2569 = vmatprep.subr.bf16.mxu0 %v2344
      %2570 = vmatpush1.bf16.msra.mxu0 %v2343
      %2571 = vmatprep.mubr.bf16.mxu0 %v1734
      %2572 = vmatmul.mubr.bf16.gmra.mrb[0].mxu0 %v1733
      %v2573 = vpop.f32.mrb[0].mxu0
      %v2574 = vadd.f32 %v1882, %v2573
      %v2575 = vpop.f32.mrb[0].mxu0
      %v2576 = vadd.f32 %v1886, %v2575
      %v2577 = vpop.f32.mrb[0].mxu0
      %v2578 = vadd.f32 %v1882, %v2577
      %v2579 = vpop.f32.mrb[0].mxu0
      %v2580 = vadd.f32 %v1886, %v2579
      %2581 = vmatprep.mubr.bf16.mxu0 %v1738
      %2582 = vmatmul.mubr.bf16.gmra.mrb[0].mxu0 %v1737
      %v2583 = vpop.f32.mrb[0].mxu0
      %v2584 = vadd.f32 %v1882, %v2583
      %v2585 = vpop.f32.mrb[0].mxu0
      %v2586 = vadd.f32 %v1886, %v2585
      %v2587 = vpop.f32.mrb[0].mxu0
      %v2588 = vadd.f32 %v1882, %v2587
      %v2589 = vpop.f32.mrb[0].mxu0
      %v2590 = vadd.f32 %v1886, %v2589
      %2591 = vmatprep.mubr.bf16.mxu0 %v1742
      %2592 = vmatmul.mubr.bf16.gmra.mrb[0].mxu0 %v1741
      %v2593 = vpop.f32.mrb[0].mxu0
      %v2594 = vadd.f32 %v1882, %v2593
      %v2595 = vpop.f32.mrb[0].mxu0
      %v2596 = vadd.f32 %v1886, %v2595
      %v2597 = vpop.f32.mrb[0].mxu0
      %v2598 = vadd.f32 %v1882, %v2597
      %v2599 = vpop.f32.mrb[0].mxu0
      %v2600 = vadd.f32 %v1886, %v2599
      %2601 = vmatprep.mubr.bf16.mxu0 %v1746
      %2602 = vmatmul.mubr.bf16.gmra.mrb[0].mxu0 %v1745
      %v2603 = vpop.f32.mrb[0].mxu0
      %v2604 = vadd.f32 %v1882, %v2603
      %v2605 = vpop.f32.mrb[0].mxu0
      %v2606 = vadd.f32 %v1886, %v2605
      %v2607 = vpop.f32.mrb[0].mxu0
      %v2608 = vadd.f32 %v1882, %v2607
      %v2609 = vpop.f32.mrb[0].mxu0
      %v2610 = vadd.f32 %v1886, %v2609
      %2611 = vdwg.mxu0
      %2612 = vmatprep.subr.bf16.mxu0 %v2348
      %2613 = vmatpush1.bf16.msra.mxu0 %v2347
      %2614 = vmatprep.subr.bf16.mxu0 %v2352
      %2615 = vmatpush1.bf16.msra.mxu0 %v2351
      %2616 = vmatprep.subr.bf16.mxu0 %v2356
      %2617 = vmatpush1.bf16.msra.mxu0 %v2355
      %2618 = vmatprep.subr.bf16.mxu0 %v2360
      %2619 = vmatpush1.bf16.msra.mxu0 %v2359
      %2620 = vmatprep.subr.bf16.mxu0 %v2364
      %2621 = vmatpush1.bf16.msra.mxu0 %v2363
      %2622 = vmatprep.subr.bf16.mxu0 %v2368
      %2623 = vmatpush1.bf16.msra.mxu0 %v2367
      %2624 = vmatprep.subr.bf16.mxu0 %v2372
      %2625 = vmatpush1.bf16.msra.mxu0 %v2371
      %2626 = vmatprep.subr.bf16.mxu0 %v2376
      %2627 = vmatpush1.bf16.msra.mxu0 %v2375
      %2628 = vmatprep.subr.bf16.mxu0 %v2380
      %2629 = vmatpush1.bf16.msra.mxu0 %v2379
      %2630 = vmatprep.subr.bf16.mxu0 %v2384
      %2631 = vmatpush1.bf16.msra.mxu0 %v2383
      %2632 = vmatprep.subr.bf16.mxu0 %v2388
      %2633 = vmatpush1.bf16.msra.mxu0 %v2387
      %2634 = vmatprep.subr.bf16.mxu0 %v2392
      %2635 = vmatpush1.bf16.msra.mxu0 %v2391
      %2636 = vmatprep.subr.bf16.mxu0 %v2396
      %2637 = vmatpush1.bf16.msra.mxu0 %v2395
      %2638 = vmatprep.subr.bf16.mxu0 %v2400
      %2639 = vmatpush1.bf16.msra.mxu0 %v2399
      %2640 = vmatprep.subr.bf16.mxu0 %v2404
      %2641 = vmatpush1.bf16.msra.mxu0 %v2403
      %2642 = vmatprep.subr.bf16.mxu0 %v2408
      %2643 = vmatpush1.bf16.msra.mxu0 %v2407
      %2644 = vmatprep.mubr.bf16.mxu0 %v1736
      %2645 = vmatmul.mubr.bf16.gmra.mrb[0].mxu0 %v1735
      %v2646 = vpop.f32.mrb[0].mxu0
      %v2647 = vadd.f32 %v2574, %v2646
      %v2648 = vpop.f32.mrb[0].mxu0
      %v2649 = vadd.f32 %v2576, %v2648
      %v2650 = vpop.f32.mrb[0].mxu0
      %v2651 = vadd.f32 %v2578, %v2650
      %v2652 = vpop.f32.mrb[0].mxu0
      %v2653 = vadd.f32 %v2580, %v2652
      %2654 = vmatprep.mubr.bf16.mxu0 %v1740
      %2655 = vmatmul.mubr.bf16.gmra.mrb[0].mxu0 %v1739
      %v2656 = vpop.f32.mrb[0].mxu0
      %v2657 = vadd.f32 %v2584, %v2656
      %v2658 = vpop.f32.mrb[0].mxu0
      %v2659 = vadd.f32 %v2586, %v2658
      %v2660 = vpop.f32.mrb[0].mxu0
      %v2661 = vadd.f32 %v2588, %v2660
      %v2662 = vpop.f32.mrb[0].mxu0
      %v2663 = vadd.f32 %v2590, %v2662
      %2664 = vmatprep.mubr.bf16.mxu0 %v1744
      %2665 = vmatmul.mubr.bf16.gmra.mrb[0].mxu0 %v1743
      %v2666 = vpop.f32.mrb[0].mxu0
      %v2667 = vadd.f32 %v2594, %v2666
      %v2668 = vpop.f32.mrb[0].mxu0
      %v2669 = vadd.f32 %v2596, %v2668
      %v2670 = vpop.f32.mrb[0].mxu0
      %v2671 = vadd.f32 %v2598, %v2670
      %v2672 = vpop.f32.mrb[0].mxu0
      %v2673 = vadd.f32 %v2600, %v2672
      %2674 = vmatprep.mubr.bf16.mxu0 %v1748
      %2675 = vmatmul.mubr.bf16.gmra.mrb[0].mxu0 %v1747
      %v2676 = vpop.f32.mrb[0].mxu0
      %v2677 = vadd.f32 %v2604, %v2676
      %v2678 = vpop.f32.mrb[0].mxu0
      %v2679 = vadd.f32 %v2606, %v2678
      %v2680 = vpop.f32.mrb[0].mxu0
      %v2681 = vadd.f32 %v2608, %v2680
      %v2682 = vpop.f32.mrb[0].mxu0
      %v2683 = vadd.f32 %v2610, %v2682
      %2684 = vdwg.mxu0
      %2685 = vmatprep.subr.bf16.mxu0 %v2286
      %2686 = vmatpush1.bf16.msra.mxu0 %v2285
      %2687 = vmatprep.subr.bf16.mxu0 %v2290
      %2688 = vmatpush1.bf16.msra.mxu0 %v2289
      %2689 = vmatprep.subr.bf16.mxu0 %v2294
      %2690 = vmatpush1.bf16.msra.mxu0 %v2293
      %2691 = vmatprep.subr.bf16.mxu0 %v2298
      %2692 = vmatpush1.bf16.msra.mxu0 %v2297
      %2693 = vmatprep.subr.bf16.mxu0 %v2302
      %2694 = vmatpush1.bf16.msra.mxu0 %v2301
      %2695 = vmatprep.subr.bf16.mxu0 %v2306
      %2696 = vmatpush1.bf16.msra.mxu0 %v2305
      %2697 = vmatprep.subr.bf16.mxu0 %v2310
      %2698 = vmatpush1.bf16.msra.mxu0 %v2309
      %2699 = vmatprep.subr.bf16.mxu0 %v2314
      %2700 = vmatpush1.bf16.msra.mxu0 %v2313
      %2701 = vmatprep.subr.bf16.mxu0 %v2318
      %2702 = vmatpush1.bf16.msra.mxu0 %v2317
      %2703 = vmatprep.subr.bf16.mxu0 %v2322
      %2704 = vmatpush1.bf16.msra.mxu0 %v2321
      %2705 = vmatprep.subr.bf16.mxu0 %v2326
      %2706 = vmatpush1.bf16.msra.mxu0 %v2325
      %2707 = vmatprep.subr.bf16.mxu0 %v2330
      %2708 = vmatpush1.bf16.msra.mxu0 %v2329
      %2709 = vmatprep.subr.bf16.mxu0 %v2334
      %2710 = vmatpush1.bf16.msra.mxu0 %v2333
      %2711 = vmatprep.subr.bf16.mxu0 %v2338
      %2712 = vmatpush1.bf16.msra.mxu0 %v2337
      %2713 = vmatprep.subr.bf16.mxu0 %v2342
      %2714 = vmatpush1.bf16.msra.mxu0 %v2341
      %2715 = vmatprep.subr.bf16.mxu0 %v2346
      %2716 = vmatpush1.bf16.msra.mxu0 %v2345
      %2717 = vmatprep.mubr.bf16.mxu0 %v1734
      %2718 = vmatmul.mubr.bf16.gmra.mrb[0].mxu0 %v1733
      %v2719 = vpop.f32.mrb[0].mxu0
      %v2720 = vadd.f32 %v1890, %v2719
      %v2721 = vpop.f32.mrb[0].mxu0
      %v2722 = vadd.f32 %v1894, %v2721
      %v2723 = vpop.f32.mrb[0].mxu0
      %v2724 = vadd.f32 %v1890, %v2723
      %v2725 = vpop.f32.mrb[0].mxu0
      %v2726 = vadd.f32 %v1894, %v2725
      %2727 = vmatprep.mubr.bf16.mxu0 %v1738
      %2728 = vmatmul.mubr.bf16.gmra.mrb[0].mxu0 %v1737
      %v2729 = vpop.f32.mrb[0].mxu0
      %v2730 = vadd.f32 %v1890, %v2729
      %v2731 = vpop.f32.mrb[0].mxu0
      %v2732 = vadd.f32 %v1894, %v2731
      %v2733 = vpop.f32.mrb[0].mxu0
      %v2734 = vadd.f32 %v1890, %v2733
      %v2735 = vpop.f32.mrb[0].mxu0
      %v2736 = vadd.f32 %v1894, %v2735
      %2737 = vmatprep.mubr.bf16.mxu0 %v1742
      %2738 = vmatmul.mubr.bf16.gmra.mrb[0].mxu0 %v1741
      %v2739 = vpop.f32.mrb[0].mxu0
      %v2740 = vadd.f32 %v1890, %v2739
      %v2741 = vpop.f32.mrb[0].mxu0
      %v2742 = vadd.f32 %v1894, %v2741
      %v2743 = vpop.f32.mrb[0].mxu0
      %v2744 = vadd.f32 %v1890, %v2743
      %v2745 = vpop.f32.mrb[0].mxu0
      %v2746 = vadd.f32 %v1894, %v2745
      %2747 = vmatprep.mubr.bf16.mxu0 %v1746
      %2748 = vmatmul.mubr.bf16.gmra.mrb[0].mxu0 %v1745
      %v2749 = vpop.f32.mrb[0].mxu0
      %v2750 = vadd.f32 %v1890, %v2749
      %v2751 = vpop.f32.mrb[0].mxu0
      %v2752 = vadd.f32 %v1894, %v2751
      %v2753 = vpop.f32.mrb[0].mxu0
      %v2754 = vadd.f32 %v1890, %v2753
      %v2755 = vpop.f32.mrb[0].mxu0
      %v2756 = vadd.f32 %v1894, %v2755
      %2757 = vdwg.mxu0
      %2758 = vmatprep.subr.bf16.mxu0 %v2350
      %2759 = vmatpush1.bf16.msra.mxu0 %v2349
      %2760 = vmatprep.subr.bf16.mxu0 %v2354
      %2761 = vmatpush1.bf16.msra.mxu0 %v2353
      %2762 = vmatprep.subr.bf16.mxu0 %v2358
      %2763 = vmatpush1.bf16.msra.mxu0 %v2357
      %2764 = vmatprep.subr.bf16.mxu0 %v2362
      %2765 = vmatpush1.bf16.msra.mxu0 %v2361
      %2766 = vmatprep.subr.bf16.mxu0 %v2366
      %2767 = vmatpush1.bf16.msra.mxu0 %v2365
      %2768 = vmatprep.subr.bf16.mxu0 %v2370
      %2769 = vmatpush1.bf16.msra.mxu0 %v2369
      %2770 = vmatprep.subr.bf16.mxu0 %v2374
      %2771 = vmatpush1.bf16.msra.mxu0 %v2373
      %2772 = vmatprep.subr.bf16.mxu0 %v2378
      %2773 = vmatpush1.bf16.msra.mxu0 %v2377
      %2774 = vmatprep.subr.bf16.mxu0 %v2382
      %2775 = vmatpush1.bf16.msra.mxu0 %v2381
      %2776 = vmatprep.subr.bf16.mxu0 %v2386
      %2777 = vmatpush1.bf16.msra.mxu0 %v2385
      %2778 = vmatprep.subr.bf16.mxu0 %v2390
      %2779 = vmatpush1.bf16.msra.mxu0 %v2389
      %2780 = vmatprep.subr.bf16.mxu0 %v2394
      %2781 = vmatpush1.bf16.msra.mxu0 %v2393
      %2782 = vmatprep.subr.bf16.mxu0 %v2398
      %2783 = vmatpush1.bf16.msra.mxu0 %v2397
      %2784 = vmatprep.subr.bf16.mxu0 %v2402
      %2785 = vmatpush1.bf16.msra.mxu0 %v2401
      %2786 = vmatprep.subr.bf16.mxu0 %v2406
      %2787 = vmatpush1.bf16.msra.mxu0 %v2405
      %2788 = vmatprep.subr.bf16.mxu0 %v2410
      %2789 = vmatpush1.bf16.msra.mxu0 %v2409
      %2790 = vmatprep.mubr.bf16.mxu0 %v1736
      %2791 = vmatmul.mubr.bf16.gmra.mrb[0].mxu0 %v1735
      %v2792 = vpop.f32.mrb[0].mxu0
      %v2793 = vadd.f32 %v2720, %v2792
      %v2794 = vpop.f32.mrb[0].mxu0
      %v2795 = vadd.f32 %v2722, %v2794
      %v2796 = vpop.f32.mrb[0].mxu0
      %v2797 = vadd.f32 %v2724, %v2796
      %v2798 = vpop.f32.mrb[0].mxu0
      %v2799 = vadd.f32 %v2726, %v2798
      %2800 = vmatprep.mubr.bf16.mxu0 %v1740
      %2801 = vmatmul.mubr.bf16.gmra.mrb[0].mxu0 %v1739
      %v2802 = vpop.f32.mrb[0].mxu0
      %v2803 = vadd.f32 %v2730, %v2802
      %v2804 = vpop.f32.mrb[0].mxu0
      %v2805 = vadd.f32 %v2732, %v2804
      %v2806 = vpop.f32.mrb[0].mxu0
      %v2807 = vadd.f32 %v2734, %v2806
      %v2808 = vpop.f32.mrb[0].mxu0
      %v2809 = vadd.f32 %v2736, %v2808
      %2810 = vmatprep.mubr.bf16.mxu0 %v1744
      %2811 = vmatmul.mubr.bf16.gmra.mrb[0].mxu0 %v1743
      %v2812 = vpop.f32.mrb[0].mxu0
      %v2813 = vadd.f32 %v2740, %v2812
      %v2814 = vpop.f32.mrb[0].mxu0
      %v2815 = vadd.f32 %v2742, %v2814
      %v2816 = vpop.f32.mrb[0].mxu0
      %v2817 = vadd.f32 %v2744, %v2816
      %v2818 = vpop.f32.mrb[0].mxu0
      %v2819 = vadd.f32 %v2746, %v2818
      %2820 = vmatprep.mubr.bf16.mxu0 %v1748
      %2821 = vmatmul.mubr.bf16.gmra.mrb[0].mxu0 %v1747
      %v2822 = vpop.f32.mrb[0].mxu0
      %v2823 = vadd.f32 %v2750, %v2822
      %v2824 = vpop.f32.mrb[0].mxu0
      %v2825 = vadd.f32 %v2752, %v2824
      %v2826 = vpop.f32.mrb[0].mxu0
      %v2827 = vadd.f32 %v2754, %v2826
      %v2828 = vpop.f32.mrb[0].mxu0
      %v2829 = vadd.f32 %v2756, %v2828
      %2830 = vdwg.mxu0
      %v2831 = vmax.f32 %v2647, 0.0
      %v2832 = vmax.f32 %v2649, 0.0
      %v2833 = vmax.f32 %v2793, 0.0
      %v2834 = vmax.f32 %v2795, 0.0
      %v2835 = vmax.f32 %v2651, 0.0
      %v2836 = vmax.f32 %v2653, 0.0
      %v2837 = vmax.f32 %v2797, 0.0
      %v2838 = vmax.f32 %v2799, 0.0
      %v2839 = vmax.f32 %v2657, 0.0
      %v2840 = vmax.f32 %v2659, 0.0
      %v2841 = vmax.f32 %v2803, 0.0
      %v2842 = vmax.f32 %v2805, 0.0
      %v2843 = vmax.f32 %v2661, 0.0
      %v2844 = vmax.f32 %v2663, 0.0
      %v2845 = vmax.f32 %v2807, 0.0
      %v2846 = vmax.f32 %v2809, 0.0
      %v2847 = vmax.f32 %v2667, 0.0
      %v2848 = vmax.f32 %v2669, 0.0
      %v2849 = vmax.f32 %v2813, 0.0
      %v2850 = vmax.f32 %v2815, 0.0
      %v2851 = vmax.f32 %v2671, 0.0
      %v2852 = vmax.f32 %v2673, 0.0
      %v2853 = vmax.f32 %v2817, 0.0
      %v2854 = vmax.f32 %v2819, 0.0
      %v2855 = vmax.f32 %v2677, 0.0
      %v2856 = vmax.f32 %v2679, 0.0
      %v2857 = vmax.f32 %v2823, 0.0
      %v2858 = vmax.f32 %v2825, 0.0
      %v2859 = vmax.f32 %v2681, 0.0
      %v2860 = vmax.f32 %v2683, 0.0
      %v2861 = vmax.f32 %v2827, 0.0
      %v2862 = vmax.f32 %v2829, 0.0
      %v2863 = vpack.c.bf16 %v2835, %v2831
      %v2864 = vpack.c.bf16 %v2836, %v2832
      %v2865 = vpack.c.bf16 %v2837, %v2833
      %v2866 = vpack.c.bf16 %v2838, %v2834
      %v2867 = vpack.c.bf16 %v2843, %v2839
      %v2868 = vpack.c.bf16 %v2844, %v2840
      %v2869 = vpack.c.bf16 %v2845, %v2841
      %v2870 = vpack.c.bf16 %v2846, %v2842
      %v2871 = vpack.c.bf16 %v2851, %v2847
      %v2872 = vpack.c.bf16 %v2852, %v2848
      %v2873 = vpack.c.bf16 %v2853, %v2849
      %v2874 = vpack.c.bf16 %v2854, %v2850
      %v2875 = vpack.c.bf16 %v2859, %v2855
      %v2876 = vpack.c.bf16 %v2860, %v2856
      %v2877 = vpack.c.bf16 %v2861, %v2857
      %v2878 = vpack.c.bf16 %v2862, %v2858
      %v2879 = vld [vmem:[%s6] sm:$0xff]
      %v2880 = vld [vmem:[%s6 + $0x8] sm:$0xff]
      %v2881 = vld [vmem:[%s6 + $0x10] sm:$0xff]
      %v2882 = vld [vmem:[%s6 + $0x18] sm:$0xff]
      %v2883 = vld [vmem:[%s6 + $0x20] sm:$0xff]
      %v2884 = vld [vmem:[%s6 + $0x28] sm:$0xff]
      %v2885 = vld [vmem:[%s6 + $0x30] sm:$0xff]
      %v2886 = vld [vmem:[%s6 + $0x38] sm:$0xff]
      %v2887 = vld [vmem:[%s6 + $0x40] sm:$0xff]
      %v2888 = vld [vmem:[%s6 + $0x48] sm:$0xff]
      %v2889 = vld [vmem:[%s6 + $0x50] sm:$0xff]
      %v2890 = vld [vmem:[%s6 + $0x58] sm:$0xff]
      %v2891 = vld [vmem:[%s6 + $0x60] sm:$0xff]
      %v2892 = vld [vmem:[%s6 + $0x68] sm:$0xff]
      %v2893 = vld [vmem:[%s6 + $0x70] sm:$0xff]
      %v2894 = vld [vmem:[%s6 + $0x78] sm:$0xff]
      %v2895 = vld [vmem:[%s6 + $0x80] sm:$0xff]
      %v2896 = vld [vmem:[%s6 + $0x88] sm:$0xff]
      %v2897 = vld [vmem:[%s6 + $0x90] sm:$0xff]
      %v2898 = vld [vmem:[%s6 + $0x98] sm:$0xff]
      %v2899 = vld [vmem:[%s6 + $0xa0] sm:$0xff]
      %v2900 = vld [vmem:[%s6 + $0xa8] sm:$0xff]
      %v2901 = vld [vmem:[%s6 + $0xb0] sm:$0xff]
      %v2902 = vld [vmem:[%s6 + $0xb8] sm:$0xff]
      %v2903 = vld [vmem:[%s6 + $0xc0] sm:$0xff]
      %v2904 = vld [vmem:[%s6 + $0xc8] sm:$0xff]
      %v2905 = vld [vmem:[%s6 + $0xd0] sm:$0xff]
      %v2906 = vld [vmem:[%s6 + $0xd8] sm:$0xff]
      %v2907 = vld [vmem:[%s6 + $0xe0] sm:$0xff]
      %v2908 = vld [vmem:[%s6 + $0xe8] sm:$0xff]
      %v2909 = vld [vmem:[%s6 + $0xf0] sm:$0xff]
      %v2910 = vld [vmem:[%s6 + $0xf8] sm:$0xff]
      %v2911 = vld [vmem:[%s6 + $0x100] sm:$0xff]
      %v2912 = vld [vmem:[%s6 + $0x108] sm:$0xff]
      %v2913 = vld [vmem:[%s6 + $0x110] sm:$0xff]
      %v2914 = vld [vmem:[%s6 + $0x118] sm:$0xff]
      %v2915 = vld [vmem:[%s6 + $0x120] sm:$0xff]
      %v2916 = vld [vmem:[%s6 + $0x128] sm:$0xff]
      %v2917 = vld [vmem:[%s6 + $0x130] sm:$0xff]
      %v2918 = vld [vmem:[%s6 + $0x138] sm:$0xff]
      %v2919 = vld [vmem:[%s6 + $0x140] sm:$0xff]
      %v2920 = vld [vmem:[%s6 + $0x148] sm:$0xff]
      %v2921 = vld [vmem:[%s6 + $0x150] sm:$0xff]
      %v2922 = vld [vmem:[%s6 + $0x158] sm:$0xff]
      %v2923 = vld [vmem:[%s6 + $0x160] sm:$0xff]
      %v2924 = vld [vmem:[%s6 + $0x168] sm:$0xff]
      %v2925 = vld [vmem:[%s6 + $0x170] sm:$0xff]
      %v2926 = vld [vmem:[%s6 + $0x178] sm:$0xff]
      %v2927 = vld [vmem:[%s6 + $0x180] sm:$0xff]
      %v2928 = vld [vmem:[%s6 + $0x188] sm:$0xff]
      %v2929 = vld [vmem:[%s6 + $0x190] sm:$0xff]
      %v2930 = vld [vmem:[%s6 + $0x198] sm:$0xff]
      %v2931 = vld [vmem:[%s6 + $0x1a0] sm:$0xff]
      %v2932 = vld [vmem:[%s6 + $0x1a8] sm:$0xff]
      %v2933 = vld [vmem:[%s6 + $0x1b0] sm:$0xff]
      %v2934 = vld [vmem:[%s6 + $0x1b8] sm:$0xff]
      %v2935 = vld [vmem:[%s6 + $0x1c0] sm:$0xff]
      %v2936 = vld [vmem:[%s6 + $0x1c8] sm:$0xff]
      %v2937 = vld [vmem:[%s6 + $0x1d0] sm:$0xff]
      %v2938 = vld [vmem:[%s6 + $0x1d8] sm:$0xff]
      %v2939 = vld [vmem:[%s6 + $0x1e0] sm:$0xff]
      %v2940 = vld [vmem:[%s6 + $0x1e8] sm:$0xff]
      %v2941 = vld [vmem:[%s6 + $0x1f0] sm:$0xff]
      %v2942 = vld [vmem:[%s6 + $0x1f8] sm:$0xff]
      %v2943 = vld [vmem:[%s6 + $0x200] sm:$0xff]
      %v2944 = vld [vmem:[%s6 + $0x208] sm:$0xff]
      %v2945 = vld [vmem:[%s6 + $0x210] sm:$0xff]
      %v2946 = vld [vmem:[%s6 + $0x218] sm:$0xff]
      %v2947 = vld [vmem:[%s6 + $0x220] sm:$0xff]
      %v2948 = vld [vmem:[%s6 + $0x228] sm:$0xff]
      %v2949 = vld [vmem:[%s6 + $0x230] sm:$0xff]
      %v2950 = vld [vmem:[%s6 + $0x238] sm:$0xff]
      %v2951 = vld [vmem:[%s6 + $0x240] sm:$0xff]
      %v2952 = vld [vmem:[%s6 + $0x248] sm:$0xff]
      %v2953 = vld [vmem:[%s6 + $0x250] sm:$0xff]
      %v2954 = vld [vmem:[%s6 + $0x258] sm:$0xff]
      %v2955 = vld [vmem:[%s6 + $0x260] sm:$0xff]
      %v2956 = vld [vmem:[%s6 + $0x268] sm:$0xff]
      %v2957 = vld [vmem:[%s6 + $0x270] sm:$0xff]
      %v2958 = vld [vmem:[%s6 + $0x278] sm:$0xff]
      %v2959 = vld [vmem:[%s6 + $0x280] sm:$0xff]
      %v2960 = vld [vmem:[%s6 + $0x288] sm:$0xff]
      %v2961 = vld [vmem:[%s6 + $0x290] sm:$0xff]
      %v2962 = vld [vmem:[%s6 + $0x298] sm:$0xff]
      %v2963 = vld [vmem:[%s6 + $0x2a0] sm:$0xff]
      %v2964 = vld [vmem:[%s6 + $0x2a8] sm:$0xff]
      %v2965 = vld [vmem:[%s6 + $0x2b0] sm:$0xff]
      %v2966 = vld [vmem:[%s6 + $0x2b8] sm:$0xff]
      %v2967 = vld [vmem:[%s6 + $0x2c0] sm:$0xff]
      %v2968 = vld [vmem:[%s6 + $0x2c8] sm:$0xff]
      %v2969 = vld [vmem:[%s6 + $0x2d0] sm:$0xff]
      %v2970 = vld [vmem:[%s6 + $0x2d8] sm:$0xff]
      %v2971 = vld [vmem:[%s6 + $0x2e0] sm:$0xff]
      %v2972 = vld [vmem:[%s6 + $0x2e8] sm:$0xff]
      %v2973 = vld [vmem:[%s6 + $0x2f0] sm:$0xff]
      %v2974 = vld [vmem:[%s6 + $0x2f8] sm:$0xff]
      %v2975 = vld [vmem:[%s6 + $0x300] sm:$0xff]
      %v2976 = vld [vmem:[%s6 + $0x308] sm:$0xff]
      %v2977 = vld [vmem:[%s6 + $0x310] sm:$0xff]
      %v2978 = vld [vmem:[%s6 + $0x318] sm:$0xff]
      %v2979 = vld [vmem:[%s6 + $0x320] sm:$0xff]
      %v2980 = vld [vmem:[%s6 + $0x328] sm:$0xff]
      %v2981 = vld [vmem:[%s6 + $0x330] sm:$0xff]
      %v2982 = vld [vmem:[%s6 + $0x338] sm:$0xff]
      %v2983 = vld [vmem:[%s6 + $0x340] sm:$0xff]
      %v2984 = vld [vmem:[%s6 + $0x348] sm:$0xff]
      %v2985 = vld [vmem:[%s6 + $0x350] sm:$0xff]
      %v2986 = vld [vmem:[%s6 + $0x358] sm:$0xff]
      %v2987 = vld [vmem:[%s6 + $0x360] sm:$0xff]
      %v2988 = vld [vmem:[%s6 + $0x368] sm:$0xff]
      %v2989 = vld [vmem:[%s6 + $0x370] sm:$0xff]
      %v2990 = vld [vmem:[%s6 + $0x378] sm:$0xff]
      %v2991 = vld [vmem:[%s6 + $0x380] sm:$0xff]
      %v2992 = vld [vmem:[%s6 + $0x388] sm:$0xff]
      %v2993 = vld [vmem:[%s6 + $0x390] sm:$0xff]
      %v2994 = vld [vmem:[%s6 + $0x398] sm:$0xff]
      %v2995 = vld [vmem:[%s6 + $0x3a0] sm:$0xff]
      %v2996 = vld [vmem:[%s6 + $0x3a8] sm:$0xff]
      %v2997 = vld [vmem:[%s6 + $0x3b0] sm:$0xff]
      %v2998 = vld [vmem:[%s6 + $0x3b8] sm:$0xff]
      %v2999 = vld [vmem:[%s6 + $0x3c0] sm:$0xff]
      %v3000 = vld [vmem:[%s6 + $0x3c8] sm:$0xff]
      %v3001 = vld [vmem:[%s6 + $0x3d0] sm:$0xff]
      %v3002 = vld [vmem:[%s6 + $0x3d8] sm:$0xff]
      %v3003 = vld [vmem:[%s6 + $0x3e0] sm:$0xff]
      %v3004 = vld [vmem:[%s6 + $0x3e8] sm:$0xff]
      %v3005 = vld [vmem:[%s6 + $0x3f0] sm:$0xff]
      %v3006 = vld [vmem:[%s6 + $0x3f8] sm:$0xff]
      %v3007 = vld [vmem:[%s7] sm:$0xf]
      %v3009 = vlaneseq
      %v3010 = vshrl.u32 %v3009, 7
      %v3011 = vsub.s32 0, %v3010
      %v3012 = vrot.slane %v3007, %v3011
      %v3013 = vlaneseq
      %v3014 = vshrl.u32 %v3013, 7
      %v3015 = vsub.s32 1, %v3014
      %v3016 = vrot.slane %v3007, %v3015
      %v3017 = vlaneseq
      %v3018 = vshrl.u32 %v3017, 7
      %v3019 = vsub.s32 2, %v3018
      %v3020 = vrot.slane %v3007, %v3019
      %v3021 = vlaneseq
      %v3022 = vshrl.u32 %v3021, 7
      %v3023 = vsub.s32 3, %v3022
      %v3024 = vrot.slane %v3007, %v3023
      %v3157 = vunpack.c.l.b16 %v2879
      %v3158 = vunpack.c.h.b16 %v2879
      %v3159 = vunpack.c.l.b16 %v2880
      %v3160 = vunpack.c.h.b16 %v2880
      %v3161 = vunpack.c.l.b16 %v2881
      %v3162 = vunpack.c.h.b16 %v2881
      %v3163 = vunpack.c.l.b16 %v2882
      %v3164 = vunpack.c.h.b16 %v2882
      %v3165 = vunpack.c.l.b16 %v2883
      %v3166 = vunpack.c.h.b16 %v2883
      %v3167 = vunpack.c.l.b16 %v2884
      %v3168 = vunpack.c.h.b16 %v2884
      %v3169 = vunpack.c.l.b16 %v2885
      %v3170 = vunpack.c.h.b16 %v2885
      %v3171 = vunpack.c.l.b16 %v2886
      %v3172 = vunpack.c.h.b16 %v2886
      %v3173 = vunpack.c.l.b16 %v2887
      %v3174 = vunpack.c.h.b16 %v2887
      %v3175 = vunpack.c.l.b16 %v2888
      %v3176 = vunpack.c.h.b16 %v2888
      %v3177 = vunpack.c.l.b16 %v2889
      %v3178 = vunpack.c.h.b16 %v2889
      %v3179 = vunpack.c.l.b16 %v2890
      %v3180 = vunpack.c.h.b16 %v2890
      %v3181 = vunpack.c.l.b16 %v2891
      %v3182 = vunpack.c.h.b16 %v2891
      %v3183 = vunpack.c.l.b16 %v2892
      %v3184 = vunpack.c.h.b16 %v2892
      %v3185 = vunpack.c.l.b16 %v2893
      %v3186 = vunpack.c.h.b16 %v2893
      %v3187 = vunpack.c.l.b16 %v2894
      %v3188 = vunpack.c.h.b16 %v2894
      %v3189 = vunpack.c.l.b16 %v2895
      %v3190 = vunpack.c.h.b16 %v2895
      %v3191 = vunpack.c.l.b16 %v2896
      %v3192 = vunpack.c.h.b16 %v2896
      %v3193 = vunpack.c.l.b16 %v2897
      %v3194 = vunpack.c.h.b16 %v2897
      %v3195 = vunpack.c.l.b16 %v2898
      %v3196 = vunpack.c.h.b16 %v2898
      %v3197 = vunpack.c.l.b16 %v2899
      %v3198 = vunpack.c.h.b16 %v2899
      %v3199 = vunpack.c.l.b16 %v2900
      %v3200 = vunpack.c.h.b16 %v2900
      %v3201 = vunpack.c.l.b16 %v2901
      %v3202 = vunpack.c.h.b16 %v2901
      %v3203 = vunpack.c.l.b16 %v2902
      %v3204 = vunpack.c.h.b16 %v2902
      %v3205 = vunpack.c.l.b16 %v2903
      %v3206 = vunpack.c.h.b16 %v2903
      %v3207 = vunpack.c.l.b16 %v2904
      %v3208 = vunpack.c.h.b16 %v2904
      %v3209 = vunpack.c.l.b16 %v2905
      %v3210 = vunpack.c.h.b16 %v2905
      %v3211 = vunpack.c.l.b16 %v2906
      %v3212 = vunpack.c.h.b16 %v2906
      %v3213 = vunpack.c.l.b16 %v2907
      %v3214 = vunpack.c.h.b16 %v2907
      %v3215 = vunpack.c.l.b16 %v2908
      %v3216 = vunpack.c.h.b16 %v2908
      %v3217 = vunpack.c.l.b16 %v2909
      %v3218 = vunpack.c.h.b16 %v2909
      %v3219 = vunpack.c.l.b16 %v2910
      %v3220 = vunpack.c.h.b16 %v2910
      %v3221 = vunpack.c.l.b16 %v2911
      %v3222 = vunpack.c.h.b16 %v2911
      %v3223 = vunpack.c.l.b16 %v2912
      %v3224 = vunpack.c.h.b16 %v2912
      %v3225 = vunpack.c.l.b16 %v2913
      %v3226 = vunpack.c.h.b16 %v2913
      %v3227 = vunpack.c.l.b16 %v2914
      %v3228 = vunpack.c.h.b16 %v2914
      %v3229 = vunpack.c.l.b16 %v2915
      %v3230 = vunpack.c.h.b16 %v2915
      %v3231 = vunpack.c.l.b16 %v2916
      %v3232 = vunpack.c.h.b16 %v2916
      %v3233 = vunpack.c.l.b16 %v2917
      %v3234 = vunpack.c.h.b16 %v2917
      %v3235 = vunpack.c.l.b16 %v2918
      %v3236 = vunpack.c.h.b16 %v2918
      %v3237 = vunpack.c.l.b16 %v2919
      %v3238 = vunpack.c.h.b16 %v2919
      %v3239 = vunpack.c.l.b16 %v2920
      %v3240 = vunpack.c.h.b16 %v2920
      %v3241 = vunpack.c.l.b16 %v2921
      %v3242 = vunpack.c.h.b16 %v2921
      %v3243 = vunpack.c.l.b16 %v2922
      %v3244 = vunpack.c.h.b16 %v2922
      %v3245 = vunpack.c.l.b16 %v2923
      %v3246 = vunpack.c.h.b16 %v2923
      %v3247 = vunpack.c.l.b16 %v2924
      %v3248 = vunpack.c.h.b16 %v2924
      %v3249 = vunpack.c.l.b16 %v2925
      %v3250 = vunpack.c.h.b16 %v2925
      %v3251 = vunpack.c.l.b16 %v2926
      %v3252 = vunpack.c.h.b16 %v2926
      %v3253 = vunpack.c.l.b16 %v2927
      %v3254 = vunpack.c.h.b16 %v2927
      %v3255 = vunpack.c.l.b16 %v2928
      %v3256 = vunpack.c.h.b16 %v2928
      %v3257 = vunpack.c.l.b16 %v2929
      %v3258 = vunpack.c.h.b16 %v2929
      %v3259 = vunpack.c.l.b16 %v2930
      %v3260 = vunpack.c.h.b16 %v2930
      %v3261 = vunpack.c.l.b16 %v2931
      %v3262 = vunpack.c.h.b16 %v2931
      %v3263 = vunpack.c.l.b16 %v2932
      %v3264 = vunpack.c.h.b16 %v2932
      %v3265 = vunpack.c.l.b16 %v2933
      %v3266 = vunpack.c.h.b16 %v2933
      %v3267 = vunpack.c.l.b16 %v2934
      %v3268 = vunpack.c.h.b16 %v2934
      %v3269 = vunpack.c.l.b16 %v2935
      %v3270 = vunpack.c.h.b16 %v2935
      %v3271 = vunpack.c.l.b16 %v2936
      %v3272 = vunpack.c.h.b16 %v2936
      %v3273 = vunpack.c.l.b16 %v2937
      %v3274 = vunpack.c.h.b16 %v2937
      %v3275 = vunpack.c.l.b16 %v2938
      %v3276 = vunpack.c.h.b16 %v2938
      %v3277 = vunpack.c.l.b16 %v2939
      %v3278 = vunpack.c.h.b16 %v2939
      %v3279 = vunpack.c.l.b16 %v2940
      %v3280 = vunpack.c.h.b16 %v2940
      %v3281 = vunpack.c.l.b16 %v2941
      %v3282 = vunpack.c.h.b16 %v2941
      %v3283 = vunpack.c.l.b16 %v2942
      %v3284 = vunpack.c.h.b16 %v2942
      %v3285 = vunpack.c.l.b16 %v2943
      %v3286 = vunpack.c.h.b16 %v2943
      %v3287 = vunpack.c.l.b16 %v2944
      %v3288 = vunpack.c.h.b16 %v2944
      %v3289 = vunpack.c.l.b16 %v2945
      %v3290 = vunpack.c.h.b16 %v2945
      %v3291 = vunpack.c.l.b16 %v2946
      %v3292 = vunpack.c.h.b16 %v2946
      %v3293 = vunpack.c.l.b16 %v2947
      %v3294 = vunpack.c.h.b16 %v2947
      %v3295 = vunpack.c.l.b16 %v2948
      %v3296 = vunpack.c.h.b16 %v2948
      %v3297 = vunpack.c.l.b16 %v2949
      %v3298 = vunpack.c.h.b16 %v2949
      %v3299 = vunpack.c.l.b16 %v2950
      %v3300 = vunpack.c.h.b16 %v2950
      %v3301 = vunpack.c.l.b16 %v2951
      %v3302 = vunpack.c.h.b16 %v2951
      %v3303 = vunpack.c.l.b16 %v2952
      %v3304 = vunpack.c.h.b16 %v2952
      %v3305 = vunpack.c.l.b16 %v2953
      %v3306 = vunpack.c.h.b16 %v2953
      %v3307 = vunpack.c.l.b16 %v2954
      %v3308 = vunpack.c.h.b16 %v2954
      %v3309 = vunpack.c.l.b16 %v2955
      %v3310 = vunpack.c.h.b16 %v2955
      %v3311 = vunpack.c.l.b16 %v2956
      %v3312 = vunpack.c.h.b16 %v2956
      %v3313 = vunpack.c.l.b16 %v2957
      %v3314 = vunpack.c.h.b16 %v2957
      %v3315 = vunpack.c.l.b16 %v2958
      %v3316 = vunpack.c.h.b16 %v2958
      %v3317 = vunpack.c.l.b16 %v2959
      %v3318 = vunpack.c.h.b16 %v2959
      %v3319 = vunpack.c.l.b16 %v2960
      %v3320 = vunpack.c.h.b16 %v2960
      %v3321 = vunpack.c.l.b16 %v2961
      %v3322 = vunpack.c.h.b16 %v2961
      %v3323 = vunpack.c.l.b16 %v2962
      %v3324 = vunpack.c.h.b16 %v2962
      %v3325 = vunpack.c.l.b16 %v2963
      %v3326 = vunpack.c.h.b16 %v2963
      %v3327 = vunpack.c.l.b16 %v2964
      %v3328 = vunpack.c.h.b16 %v2964
      %v3329 = vunpack.c.l.b16 %v2965
      %v3330 = vunpack.c.h.b16 %v2965
      %v3331 = vunpack.c.l.b16 %v2966
      %v3332 = vunpack.c.h.b16 %v2966
      %v3333 = vunpack.c.l.b16 %v2967
      %v3334 = vunpack.c.h.b16 %v2967
      %v3335 = vunpack.c.l.b16 %v2968
      %v3336 = vunpack.c.h.b16 %v2968
      %v3337 = vunpack.c.l.b16 %v2969
      %v3338 = vunpack.c.h.b16 %v2969
      %v3339 = vunpack.c.l.b16 %v2970
      %v3340 = vunpack.c.h.b16 %v2970
      %v3341 = vunpack.c.l.b16 %v2971
      %v3342 = vunpack.c.h.b16 %v2971
      %v3343 = vunpack.c.l.b16 %v2972
      %v3344 = vunpack.c.h.b16 %v2972
      %v3345 = vunpack.c.l.b16 %v2973
      %v3346 = vunpack.c.h.b16 %v2973
      %v3347 = vunpack.c.l.b16 %v2974
      %v3348 = vunpack.c.h.b16 %v2974
      %v3349 = vunpack.c.l.b16 %v2975
      %v3350 = vunpack.c.h.b16 %v2975
      %v3351 = vunpack.c.l.b16 %v2976
      %v3352 = vunpack.c.h.b16 %v2976
      %v3353 = vunpack.c.l.b16 %v2977
      %v3354 = vunpack.c.h.b16 %v2977
      %v3355 = vunpack.c.l.b16 %v2978
      %v3356 = vunpack.c.h.b16 %v2978
      %v3357 = vunpack.c.l.b16 %v2979
      %v3358 = vunpack.c.h.b16 %v2979
      %v3359 = vunpack.c.l.b16 %v2980
      %v3360 = vunpack.c.h.b16 %v2980
      %v3361 = vunpack.c.l.b16 %v2981
      %v3362 = vunpack.c.h.b16 %v2981
      %v3363 = vunpack.c.l.b16 %v2982
      %v3364 = vunpack.c.h.b16 %v2982
      %v3365 = vunpack.c.l.b16 %v2983
      %v3366 = vunpack.c.h.b16 %v2983
      %v3367 = vunpack.c.l.b16 %v2984
      %v3368 = vunpack.c.h.b16 %v2984
      %v3369 = vunpack.c.l.b16 %v2985
      %v3370 = vunpack.c.h.b16 %v2985
      %v3371 = vunpack.c.l.b16 %v2986
      %v3372 = vunpack.c.h.b16 %v2986
      %v3373 = vunpack.c.l.b16 %v2987
      %v3374 = vunpack.c.h.b16 %v2987
      %v3375 = vunpack.c.l.b16 %v2988
      %v3376 = vunpack.c.h.b16 %v2988
      %v3377 = vunpack.c.l.b16 %v2989
      %v3378 = vunpack.c.h.b16 %v2989
      %v3379 = vunpack.c.l.b16 %v2990
      %v3380 = vunpack.c.h.b16 %v2990
      %v3381 = vunpack.c.l.b16 %v2991
      %v3382 = vunpack.c.h.b16 %v2991
      %v3383 = vunpack.c.l.b16 %v2992
      %v3384 = vunpack.c.h.b16 %v2992
      %v3385 = vunpack.c.l.b16 %v2993
      %v3386 = vunpack.c.h.b16 %v2993
      %v3387 = vunpack.c.l.b16 %v2994
      %v3388 = vunpack.c.h.b16 %v2994
      %v3389 = vunpack.c.l.b16 %v2995
      %v3390 = vunpack.c.h.b16 %v2995
      %v3391 = vunpack.c.l.b16 %v2996
      %v3392 = vunpack.c.h.b16 %v2996
      %v3393 = vunpack.c.l.b16 %v2997
      %v3394 = vunpack.c.h.b16 %v2997
      %v3395 = vunpack.c.l.b16 %v2998
      %v3396 = vunpack.c.h.b16 %v2998
      %v3397 = vunpack.c.l.b16 %v2999
      %v3398 = vunpack.c.h.b16 %v2999
      %v3399 = vunpack.c.l.b16 %v3000
      %v3400 = vunpack.c.h.b16 %v3000
      %v3401 = vunpack.c.l.b16 %v3001
      %v3402 = vunpack.c.h.b16 %v3001
      %v3403 = vunpack.c.l.b16 %v3002
      %v3404 = vunpack.c.h.b16 %v3002
      %v3405 = vunpack.c.l.b16 %v3003
      %v3406 = vunpack.c.h.b16 %v3003
      %v3407 = vunpack.c.l.b16 %v3004
      %v3408 = vunpack.c.h.b16 %v3004
      %v3409 = vunpack.c.l.b16 %v3005
      %v3410 = vunpack.c.h.b16 %v3005
      %v3411 = vunpack.c.l.b16 %v3006
      %v3412 = vunpack.c.h.b16 %v3006
      %v3413 = vpack.c.b16 %v3161, %v3157
      %v3414 = vpack.c.b16 %v3162, %v3158
      %v3415 = vpack.c.b16 %v3163, %v3159
      %v3416 = vpack.c.b16 %v3164, %v3160
      %v3417 = vpack.c.b16 %v3169, %v3165
      %v3418 = vpack.c.b16 %v3170, %v3166
      %v3419 = vpack.c.b16 %v3171, %v3167
      %v3420 = vpack.c.b16 %v3172, %v3168
      %v3421 = vpack.c.b16 %v3177, %v3173
      %v3422 = vpack.c.b16 %v3178, %v3174
      %v3423 = vpack.c.b16 %v3179, %v3175
      %v3424 = vpack.c.b16 %v3180, %v3176
      %v3425 = vpack.c.b16 %v3185, %v3181
      %v3426 = vpack.c.b16 %v3186, %v3182
      %v3427 = vpack.c.b16 %v3187, %v3183
      %v3428 = vpack.c.b16 %v3188, %v3184
      %v3429 = vpack.c.b16 %v3193, %v3189
      %v3430 = vpack.c.b16 %v3194, %v3190
      %v3431 = vpack.c.b16 %v3195, %v3191
      %v3432 = vpack.c.b16 %v3196, %v3192
      %v3433 = vpack.c.b16 %v3201, %v3197
      %v3434 = vpack.c.b16 %v3202, %v3198
      %v3435 = vpack.c.b16 %v3203, %v3199
      %v3436 = vpack.c.b16 %v3204, %v3200
      %v3437 = vpack.c.b16 %v3209, %v3205
      %v3438 = vpack.c.b16 %v3210, %v3206
      %v3439 = vpack.c.b16 %v3211, %v3207
      %v3440 = vpack.c.b16 %v3212, %v3208
      %v3441 = vpack.c.b16 %v3217, %v3213
      %v3442 = vpack.c.b16 %v3218, %v3214
      %v3443 = vpack.c.b16 %v3219, %v3215
      %v3444 = vpack.c.b16 %v3220, %v3216
      %v3445 = vpack.c.b16 %v3225, %v3221
      %v3446 = vpack.c.b16 %v3226, %v3222
      %v3447 = vpack.c.b16 %v3227, %v3223
      %v3448 = vpack.c.b16 %v3228, %v3224
      %v3449 = vpack.c.b16 %v3233, %v3229
      %v3450 = vpack.c.b16 %v3234, %v3230
      %v3451 = vpack.c.b16 %v3235, %v3231
      %v3452 = vpack.c.b16 %v3236, %v3232
      %v3453 = vpack.c.b16 %v3241, %v3237
      %v3454 = vpack.c.b16 %v3242, %v3238
      %v3455 = vpack.c.b16 %v3243, %v3239
      %v3456 = vpack.c.b16 %v3244, %v3240
      %v3457 = vpack.c.b16 %v3249, %v3245
      %v3458 = vpack.c.b16 %v3250, %v3246
      %v3459 = vpack.c.b16 %v3251, %v3247
      %v3460 = vpack.c.b16 %v3252, %v3248
      %v3461 = vpack.c.b16 %v3257, %v3253
      %v3462 = vpack.c.b16 %v3258, %v3254
      %v3463 = vpack.c.b16 %v3259, %v3255
      %v3464 = vpack.c.b16 %v3260, %v3256
      %v3465 = vpack.c.b16 %v3265, %v3261
      %v3466 = vpack.c.b16 %v3266, %v3262
      %v3467 = vpack.c.b16 %v3267, %v3263
      %v3468 = vpack.c.b16 %v3268, %v3264
      %v3469 = vpack.c.b16 %v3273, %v3269
      %v3470 = vpack.c.b16 %v3274, %v3270
      %v3471 = vpack.c.b16 %v3275, %v3271
      %v3472 = vpack.c.b16 %v3276, %v3272
      %v3473 = vpack.c.b16 %v3281, %v3277
      %v3474 = vpack.c.b16 %v3282, %v3278
      %v3475 = vpack.c.b16 %v3283, %v3279
      %v3476 = vpack.c.b16 %v3284, %v3280
      %v3477 = vpack.c.b16 %v3289, %v3285
      %v3478 = vpack.c.b16 %v3290, %v3286
      %v3479 = vpack.c.b16 %v3291, %v3287
      %v3480 = vpack.c.b16 %v3292, %v3288
      %v3481 = vpack.c.b16 %v3297, %v3293
      %v3482 = vpack.c.b16 %v3298, %v3294
      %v3483 = vpack.c.b16 %v3299, %v3295
      %v3484 = vpack.c.b16 %v3300, %v3296
      %v3485 = vpack.c.b16 %v3305, %v3301
      %v3486 = vpack.c.b16 %v3306, %v3302
      %v3487 = vpack.c.b16 %v3307, %v3303
      %v3488 = vpack.c.b16 %v3308, %v3304
      %v3489 = vpack.c.b16 %v3313, %v3309
      %v3490 = vpack.c.b16 %v3314, %v3310
      %v3491 = vpack.c.b16 %v3315, %v3311
      %v3492 = vpack.c.b16 %v3316, %v3312
      %v3493 = vpack.c.b16 %v3321, %v3317
      %v3494 = vpack.c.b16 %v3322, %v3318
      %v3495 = vpack.c.b16 %v3323, %v3319
      %v3496 = vpack.c.b16 %v3324, %v3320
      %v3497 = vpack.c.b16 %v3329, %v3325
      %v3498 = vpack.c.b16 %v3330, %v3326
      %v3499 = vpack.c.b16 %v3331, %v3327
      %v3500 = vpack.c.b16 %v3332, %v3328
      %v3501 = vpack.c.b16 %v3337, %v3333
      %v3502 = vpack.c.b16 %v3338, %v3334
      %v3503 = vpack.c.b16 %v3339, %v3335
      %v3504 = vpack.c.b16 %v3340, %v3336
      %v3505 = vpack.c.b16 %v3345, %v3341
      %v3506 = vpack.c.b16 %v3346, %v3342
      %v3507 = vpack.c.b16 %v3347, %v3343
      %v3508 = vpack.c.b16 %v3348, %v3344
      %v3509 = vpack.c.b16 %v3353, %v3349
      %v3510 = vpack.c.b16 %v3354, %v3350
      %v3511 = vpack.c.b16 %v3355, %v3351
      %v3512 = vpack.c.b16 %v3356, %v3352
      %v3513 = vpack.c.b16 %v3361, %v3357
      %v3514 = vpack.c.b16 %v3362, %v3358
      %v3515 = vpack.c.b16 %v3363, %v3359
      %v3516 = vpack.c.b16 %v3364, %v3360
      %v3517 = vpack.c.b16 %v3369, %v3365
      %v3518 = vpack.c.b16 %v3370, %v3366
      %v3519 = vpack.c.b16 %v3371, %v3367
      %v3520 = vpack.c.b16 %v3372, %v3368
      %v3521 = vpack.c.b16 %v3377, %v3373
      %v3522 = vpack.c.b16 %v3378, %v3374
      %v3523 = vpack.c.b16 %v3379, %v3375
      %v3524 = vpack.c.b16 %v3380, %v3376
      %v3525 = vpack.c.b16 %v3385, %v3381
      %v3526 = vpack.c.b16 %v3386, %v3382
      %v3527 = vpack.c.b16 %v3387, %v3383
      %v3528 = vpack.c.b16 %v3388, %v3384
      %v3529 = vpack.c.b16 %v3393, %v3389
      %v3530 = vpack.c.b16 %v3394, %v3390
      %v3531 = vpack.c.b16 %v3395, %v3391
      %v3532 = vpack.c.b16 %v3396, %v3392
      %v3533 = vpack.c.b16 %v3401, %v3397
      %v3534 = vpack.c.b16 %v3402, %v3398
      %v3535 = vpack.c.b16 %v3403, %v3399
      %v3536 = vpack.c.b16 %v3404, %v3400
      %v3537 = vpack.c.b16 %v3409, %v3405
      %v3538 = vpack.c.b16 %v3410, %v3406
      %v3539 = vpack.c.b16 %v3411, %v3407
      %v3540 = vpack.c.b16 %v3412, %v3408
      %3669 = vmatprep.subr.bf16.mxu0 %v3414
      %3670 = vmatpush1.bf16.msra.mxu0 %v3413
      %3671 = vmatprep.subr.bf16.mxu0 %v3418
      %3672 = vmatpush1.bf16.msra.mxu0 %v3417
      %3673 = vmatprep.subr.bf16.mxu0 %v3422
      %3674 = vmatpush1.bf16.msra.mxu0 %v3421
      %3675 = vmatprep.subr.bf16.mxu0 %v3426
      %3676 = vmatpush1.bf16.msra.mxu0 %v3425
      %3677 = vmatprep.subr.bf16.mxu0 %v3430
      %3678 = vmatpush1.bf16.msra.mxu0 %v3429
      %3679 = vmatprep.subr.bf16.mxu0 %v3434
      %3680 = vmatpush1.bf16.msra.mxu0 %v3433
      %3681 = vmatprep.subr.bf16.mxu0 %v3438
      %3682 = vmatpush1.bf16.msra.mxu0 %v3437
      %3683 = vmatprep.subr.bf16.mxu0 %v3442
      %3684 = vmatpush1.bf16.msra.mxu0 %v3441
      %3685 = vmatprep.subr.bf16.mxu0 %v3446
      %3686 = vmatpush1.bf16.msra.mxu0 %v3445
      %3687 = vmatprep.subr.bf16.mxu0 %v3450
      %3688 = vmatpush1.bf16.msra.mxu0 %v3449
      %3689 = vmatprep.subr.bf16.mxu0 %v3454
      %3690 = vmatpush1.bf16.msra.mxu0 %v3453
      %3691 = vmatprep.subr.bf16.mxu0 %v3458
      %3692 = vmatpush1.bf16.msra.mxu0 %v3457
      %3693 = vmatprep.subr.bf16.mxu0 %v3462
      %3694 = vmatpush1.bf16.msra.mxu0 %v3461
      %3695 = vmatprep.subr.bf16.mxu0 %v3466
      %3696 = vmatpush1.bf16.msra.mxu0 %v3465
      %3697 = vmatprep.subr.bf16.mxu0 %v3470
      %3698 = vmatpush1.bf16.msra.mxu0 %v3469
      %3699 = vmatprep.subr.bf16.mxu0 %v3474
      %3700 = vmatpush1.bf16.msra.mxu0 %v3473
      %3701 = vmatprep.mubr.bf16.mxu0 %v2864
      %3702 = vmatmul.mubr.bf16.gmra.mrb[0].mxu0 %v2863
      %v3703 = vpop.f32.mrb[0].mxu0
      %v3704 = vadd.f32 %v3012, %v3703
      %v3705 = vpop.f32.mrb[0].mxu0
      %v3706 = vadd.f32 %v3016, %v3705
      %v3707 = vpop.f32.mrb[0].mxu0
      %v3708 = vadd.f32 %v3012, %v3707
      %v3709 = vpop.f32.mrb[0].mxu0
      %v3710 = vadd.f32 %v3016, %v3709
      %3711 = vmatprep.mubr.bf16.mxu0 %v2868
      %3712 = vmatmul.mubr.bf16.gmra.mrb[0].mxu0 %v2867
      %v3713 = vpop.f32.mrb[0].mxu0
      %v3714 = vadd.f32 %v3012, %v3713
      %v3715 = vpop.f32.mrb[0].mxu0
      %v3716 = vadd.f32 %v3016, %v3715
      %v3717 = vpop.f32.mrb[0].mxu0
      %v3718 = vadd.f32 %v3012, %v3717
      %v3719 = vpop.f32.mrb[0].mxu0
      %v3720 = vadd.f32 %v3016, %v3719
      %3721 = vmatprep.mubr.bf16.mxu0 %v2872
      %3722 = vmatmul.mubr.bf16.gmra.mrb[0].mxu0 %v2871
      %v3723 = vpop.f32.mrb[0].mxu0
      %v3724 = vadd.f32 %v3012, %v3723
      %v3725 = vpop.f32.mrb[0].mxu0
      %v3726 = vadd.f32 %v3016, %v3725
      %v3727 = vpop.f32.mrb[0].mxu0
      %v3728 = vadd.f32 %v3012, %v3727
      %v3729 = vpop.f32.mrb[0].mxu0
      %v3730 = vadd.f32 %v3016, %v3729
      %3731 = vmatprep.mubr.bf16.mxu0 %v2876
      %3732 = vmatmul.mubr.bf16.gmra.mrb[0].mxu0 %v2875
      %v3733 = vpop.f32.mrb[0].mxu0
      %v3734 = vadd.f32 %v3012, %v3733
      %v3735 = vpop.f32.mrb[0].mxu0
      %v3736 = vadd.f32 %v3016, %v3735
      %v3737 = vpop.f32.mrb[0].mxu0
      %v3738 = vadd.f32 %v3012, %v3737
      %v3739 = vpop.f32.mrb[0].mxu0
      %v3740 = vadd.f32 %v3016, %v3739
      %3741 = vdwg.mxu0
      %3742 = vmatprep.subr.bf16.mxu0 %v3478
      %3743 = vmatpush1.bf16.msra.mxu0 %v3477
      %3744 = vmatprep.subr.bf16.mxu0 %v3482
      %3745 = vmatpush1.bf16.msra.mxu0 %v3481
      %3746 = vmatprep.subr.bf16.mxu0 %v3486
      %3747 = vmatpush1.bf16.msra.mxu0 %v3485
      %3748 = vmatprep.subr.bf16.mxu0 %v3490
      %3749 = vmatpush1.bf16.msra.mxu0 %v3489
      %3750 = vmatprep.subr.bf16.mxu0 %v3494
      %3751 = vmatpush1.bf16.msra.mxu0 %v3493
      %3752 = vmatprep.subr.bf16.mxu0 %v3498
      %3753 = vmatpush1.bf16.msra.mxu0 %v3497
      %3754 = vmatprep.subr.bf16.mxu0 %v3502
      %3755 = vmatpush1.bf16.msra.mxu0 %v3501
      %3756 = vmatprep.subr.bf16.mxu0 %v3506
      %3757 = vmatpush1.bf16.msra.mxu0 %v3505
      %3758 = vmatprep.subr.bf16.mxu0 %v3510
      %3759 = vmatpush1.bf16.msra.mxu0 %v3509
      %3760 = vmatprep.subr.bf16.mxu0 %v3514
      %3761 = vmatpush1.bf16.msra.mxu0 %v3513
      %3762 = vmatprep.subr.bf16.mxu0 %v3518
      %3763 = vmatpush1.bf16.msra.mxu0 %v3517
      %3764 = vmatprep.subr.bf16.mxu0 %v3522
      %3765 = vmatpush1.bf16.msra.mxu0 %v3521
      %3766 = vmatprep.subr.bf16.mxu0 %v3526
      %3767 = vmatpush1.bf16.msra.mxu0 %v3525
      %3768 = vmatprep.subr.bf16.mxu0 %v3530
      %3769 = vmatpush1.bf16.msra.mxu0 %v3529
      %3770 = vmatprep.subr.bf16.mxu0 %v3534
      %3771 = vmatpush1.bf16.msra.mxu0 %v3533
      %3772 = vmatprep.subr.bf16.mxu0 %v3538
      %3773 = vmatpush1.bf16.msra.mxu0 %v3537
      %3774 = vmatprep.mubr.bf16.mxu0 %v2866
      %3775 = vmatmul.mubr.bf16.gmra.mrb[0].mxu0 %v2865
      %v3776 = vpop.f32.mrb[0].mxu0
      %v3777 = vadd.f32 %v3704, %v3776
      %v3778 = vpop.f32.mrb[0].mxu0
      %v3779 = vadd.f32 %v3706, %v3778
      %v3780 = vpop.f32.mrb[0].mxu0
      %v3781 = vadd.f32 %v3708, %v3780
      %v3782 = vpop.f32.mrb[0].mxu0
      %v3783 = vadd.f32 %v3710, %v3782
      %3784 = vmatprep.mubr.bf16.mxu0 %v2870
      %3785 = vmatmul.mubr.bf16.gmra.mrb[0].mxu0 %v2869
      %v3786 = vpop.f32.mrb[0].mxu0
      %v3787 = vadd.f32 %v3714, %v3786
      %v3788 = vpop.f32.mrb[0].mxu0
      %v3789 = vadd.f32 %v3716, %v3788
      %v3790 = vpop.f32.mrb[0].mxu0
      %v3791 = vadd.f32 %v3718, %v3790
      %v3792 = vpop.f32.mrb[0].mxu0
      %v3793 = vadd.f32 %v3720, %v3792
      %3794 = vmatprep.mubr.bf16.mxu0 %v2874
      %3795 = vmatmul.mubr.bf16.gmra.mrb[0].mxu0 %v2873
      %v3796 = vpop.f32.mrb[0].mxu0
      %v3797 = vadd.f32 %v3724, %v3796
      %v3798 = vpop.f32.mrb[0].mxu0
      %v3799 = vadd.f32 %v3726, %v3798
      %v3800 = vpop.f32.mrb[0].mxu0
      %v3801 = vadd.f32 %v3728, %v3800
      %v3802 = vpop.f32.mrb[0].mxu0
      %v3803 = vadd.f32 %v3730, %v3802
      %3804 = vmatprep.mubr.bf16.mxu0 %v2878
      %3805 = vmatmul.mubr.bf16.gmra.mrb[0].mxu0 %v2877
      %v3806 = vpop.f32.mrb[0].mxu0
      %v3807 = vadd.f32 %v3734, %v3806
      %v3808 = vpop.f32.mrb[0].mxu0
      %v3809 = vadd.f32 %v3736, %v3808
      %v3810 = vpop.f32.mrb[0].mxu0
      %v3811 = vadd.f32 %v3738, %v3810
      %v3812 = vpop.f32.mrb[0].mxu0
      %v3813 = vadd.f32 %v3740, %v3812
      %3814 = vdwg.mxu0
      %3815 = vmatprep.subr.bf16.mxu0 %v3416
      %3816 = vmatpush1.bf16.msra.mxu0 %v3415
      %3817 = vmatprep.subr.bf16.mxu0 %v3420
      %3818 = vmatpush1.bf16.msra.mxu0 %v3419
      %3819 = vmatprep.subr.bf16.mxu0 %v3424
      %3820 = vmatpush1.bf16.msra.mxu0 %v3423
      %3821 = vmatprep.subr.bf16.mxu0 %v3428
      %3822 = vmatpush1.bf16.msra.mxu0 %v3427
      %3823 = vmatprep.subr.bf16.mxu0 %v3432
      %3824 = vmatpush1.bf16.msra.mxu0 %v3431
      %3825 = vmatprep.subr.bf16.mxu0 %v3436
      %3826 = vmatpush1.bf16.msra.mxu0 %v3435
      %3827 = vmatprep.subr.bf16.mxu0 %v3440
      %3828 = vmatpush1.bf16.msra.mxu0 %v3439
      %3829 = vmatprep.subr.bf16.mxu0 %v3444
      %3830 = vmatpush1.bf16.msra.mxu0 %v3443
      %3831 = vmatprep.subr.bf16.mxu0 %v3448
      %3832 = vmatpush1.bf16.msra.mxu0 %v3447
      %3833 = vmatprep.subr.bf16.mxu0 %v3452
      %3834 = vmatpush1.bf16.msra.mxu0 %v3451
      %3835 = vmatprep.subr.bf16.mxu0 %v3456
      %3836 = vmatpush1.bf16.msra.mxu0 %v3455
      %3837 = vmatprep.subr.bf16.mxu0 %v3460
      %3838 = vmatpush1.bf16.msra.mxu0 %v3459
      %3839 = vmatprep.subr.bf16.mxu0 %v3464
      %3840 = vmatpush1.bf16.msra.mxu0 %v3463
      %3841 = vmatprep.subr.bf16.mxu0 %v3468
      %3842 = vmatpush1.bf16.msra.mxu0 %v3467
      %3843 = vmatprep.subr.bf16.mxu0 %v3472
      %3844 = vmatpush1.bf16.msra.mxu0 %v3471
      %3845 = vmatprep.subr.bf16.mxu0 %v3476
      %3846 = vmatpush1.bf16.msra.mxu0 %v3475
      %3847 = vmatprep.mubr.bf16.mxu0 %v2864
      %3848 = vmatmul.mubr.bf16.gmra.mrb[0].mxu0 %v2863
      %v3849 = vpop.f32.mrb[0].mxu0
      %v3850 = vadd.f32 %v3020, %v3849
      %v3851 = vpop.f32.mrb[0].mxu0
      %v3852 = vadd.f32 %v3024, %v3851
      %v3853 = vpop.f32.mrb[0].mxu0
      %v3854 = vadd.f32 %v3020, %v3853
      %v3855 = vpop.f32.mrb[0].mxu0
      %v3856 = vadd.f32 %v3024, %v3855
      %3857 = vmatprep.mubr.bf16.mxu0 %v2868
      %3858 = vmatmul.mubr.bf16.gmra.mrb[0].mxu0 %v2867
      %v3859 = vpop.f32.mrb[0].mxu0
      %v3860 = vadd.f32 %v3020, %v3859
      %v3861 = vpop.f32.mrb[0].mxu0
      %v3862 = vadd.f32 %v3024, %v3861
      %v3863 = vpop.f32.mrb[0].mxu0
      %v3864 = vadd.f32 %v3020, %v3863
      %v3865 = vpop.f32.mrb[0].mxu0
      %v3866 = vadd.f32 %v3024, %v3865
      %3867 = vmatprep.mubr.bf16.mxu0 %v2872
      %3868 = vmatmul.mubr.bf16.gmra.mrb[0].mxu0 %v2871
      %v3869 = vpop.f32.mrb[0].mxu0
      %v3870 = vadd.f32 %v3020, %v3869
      %v3871 = vpop.f32.mrb[0].mxu0
      %v3872 = vadd.f32 %v3024, %v3871
      %v3873 = vpop.f32.mrb[0].mxu0
      %v3874 = vadd.f32 %v3020, %v3873
      %v3875 = vpop.f32.mrb[0].mxu0
      %v3876 = vadd.f32 %v3024, %v3875
      %3877 = vmatprep.mubr.bf16.mxu0 %v2876
      %3878 = vmatmul.mubr.bf16.gmra.mrb[0].mxu0 %v2875
      %v3879 = vpop.f32.mrb[0].mxu0
      %v3880 = vadd.f32 %v3020, %v3879
      %v3881 = vpop.f32.mrb[0].mxu0
      %v3882 = vadd.f32 %v3024, %v3881
      %v3883 = vpop.f32.mrb[0].mxu0
      %v3884 = vadd.f32 %v3020, %v3883
      %v3885 = vpop.f32.mrb[0].mxu0
      %v3886 = vadd.f32 %v3024, %v3885
      %3887 = vdwg.mxu0
      %3888 = vmatprep.subr.bf16.mxu0 %v3480
      %3889 = vmatpush1.bf16.msra.mxu0 %v3479
      %3890 = vmatprep.subr.bf16.mxu0 %v3484
      %3891 = vmatpush1.bf16.msra.mxu0 %v3483
      %3892 = vmatprep.subr.bf16.mxu0 %v3488
      %3893 = vmatpush1.bf16.msra.mxu0 %v3487
      %3894 = vmatprep.subr.bf16.mxu0 %v3492
      %3895 = vmatpush1.bf16.msra.mxu0 %v3491
      %3896 = vmatprep.subr.bf16.mxu0 %v3496
      %3897 = vmatpush1.bf16.msra.mxu0 %v3495
      %3898 = vmatprep.subr.bf16.mxu0 %v3500
      %3899 = vmatpush1.bf16.msra.mxu0 %v3499
      %3900 = vmatprep.subr.bf16.mxu0 %v3504
      %3901 = vmatpush1.bf16.msra.mxu0 %v3503
      %3902 = vmatprep.subr.bf16.mxu0 %v3508
      %3903 = vmatpush1.bf16.msra.mxu0 %v3507
      %3904 = vmatprep.subr.bf16.mxu0 %v3512
      %3905 = vmatpush1.bf16.msra.mxu0 %v3511
      %3906 = vmatprep.subr.bf16.mxu0 %v3516
      %3907 = vmatpush1.bf16.msra.mxu0 %v3515
      %3908 = vmatprep.subr.bf16.mxu0 %v3520
      %3909 = vmatpush1.bf16.msra.mxu0 %v3519
      %3910 = vmatprep.subr.bf16.mxu0 %v3524
      %3911 = vmatpush1.bf16.msra.mxu0 %v3523
      %3912 = vmatprep.subr.bf16.mxu0 %v3528
      %3913 = vmatpush1.bf16.msra.mxu0 %v3527
      %3914 = vmatprep.subr.bf16.mxu0 %v3532
      %3915 = vmatpush1.bf16.msra.mxu0 %v3531
      %3916 = vmatprep.subr.bf16.mxu0 %v3536
      %3917 = vmatpush1.bf16.msra.mxu0 %v3535
      %3918 = vmatprep.subr.bf16.mxu0 %v3540
      %3919 = vmatpush1.bf16.msra.mxu0 %v3539
      %3920 = vmatprep.mubr.bf16.mxu0 %v2866
      %3921 = vmatmul.mubr.bf16.gmra.mrb[0].mxu0 %v2865
      %v3922 = vpop.f32.mrb[0].mxu0
      %v3923 = vadd.f32 %v3850, %v3922
      %v3924 = vpop.f32.mrb[0].mxu0
      %v3925 = vadd.f32 %v3852, %v3924
      %v3926 = vpop.f32.mrb[0].mxu0
      %v3927 = vadd.f32 %v3854, %v3926
      %v3928 = vpop.f32.mrb[0].mxu0
      %v3929 = vadd.f32 %v3856, %v3928
      %3930 = vmatprep.mubr.bf16.mxu0 %v2870
      %3931 = vmatmul.mubr.bf16.gmra.mrb[0].mxu0 %v2869
      %v3932 = vpop.f32.mrb[0].mxu0
      %v3933 = vadd.f32 %v3860, %v3932
      %v3934 = vpop.f32.mrb[0].mxu0
      %v3935 = vadd.f32 %v3862, %v3934
      %v3936 = vpop.f32.mrb[0].mxu0
      %v3937 = vadd.f32 %v3864, %v3936
      %v3938 = vpop.f32.mrb[0].mxu0
      %v3939 = vadd.f32 %v3866, %v3938
      %3940 = vmatprep.mubr.bf16.mxu0 %v2874
      %3941 = vmatmul.mubr.bf16.gmra.mrb[0].mxu0 %v2873
      %v3942 = vpop.f32.mrb[0].mxu0
      %v3943 = vadd.f32 %v3870, %v3942
      %v3944 = vpop.f32.mrb[0].mxu0
      %v3945 = vadd.f32 %v3872, %v3944
      %v3946 = vpop.f32.mrb[0].mxu0
      %v3947 = vadd.f32 %v3874, %v3946
      %v3948 = vpop.f32.mrb[0].mxu0
      %v3949 = vadd.f32 %v3876, %v3948
      %3950 = vmatprep.mubr.bf16.mxu0 %v2878
      %3951 = vmatmul.mubr.bf16.gmra.mrb[0].mxu0 %v2877
      %v3952 = vpop.f32.mrb[0].mxu0
      %v3953 = vadd.f32 %v3880, %v3952
      %v3954 = vpop.f32.mrb[0].mxu0
      %v3955 = vadd.f32 %v3882, %v3954
      %v3956 = vpop.f32.mrb[0].mxu0
      %v3957 = vadd.f32 %v3884, %v3956
      %v3958 = vpop.f32.mrb[0].mxu0
      %v3959 = vadd.f32 %v3886, %v3958
      %3960 = vdwg.mxu0
      %v3961 = vmax.f32 %v3777, 0.0
      %v3962 = vmax.f32 %v3779, 0.0
      %v3963 = vmax.f32 %v3923, 0.0
      %v3964 = vmax.f32 %v3925, 0.0
      %v3965 = vmax.f32 %v3781, 0.0
      %v3966 = vmax.f32 %v3783, 0.0
      %v3967 = vmax.f32 %v3927, 0.0
      %v3968 = vmax.f32 %v3929, 0.0
      %v3969 = vmax.f32 %v3787, 0.0
      %v3970 = vmax.f32 %v3789, 0.0
      %v3971 = vmax.f32 %v3933, 0.0
      %v3972 = vmax.f32 %v3935, 0.0
      %v3973 = vmax.f32 %v3791, 0.0
      %v3974 = vmax.f32 %v3793, 0.0
      %v3975 = vmax.f32 %v3937, 0.0
      %v3976 = vmax.f32 %v3939, 0.0
      %v3977 = vmax.f32 %v3797, 0.0
      %v3978 = vmax.f32 %v3799, 0.0
      %v3979 = vmax.f32 %v3943, 0.0
      %v3980 = vmax.f32 %v3945, 0.0
      %v3981 = vmax.f32 %v3801, 0.0
      %v3982 = vmax.f32 %v3803, 0.0
      %v3983 = vmax.f32 %v3947, 0.0
      %v3984 = vmax.f32 %v3949, 0.0
      %v3985 = vmax.f32 %v3807, 0.0
      %v3986 = vmax.f32 %v3809, 0.0
      %v3987 = vmax.f32 %v3953, 0.0
      %v3988 = vmax.f32 %v3955, 0.0
      %v3989 = vmax.f32 %v3811, 0.0
      %v3990 = vmax.f32 %v3813, 0.0
      %v3991 = vmax.f32 %v3957, 0.0
      %v3992 = vmax.f32 %v3959, 0.0
      %v3993 = vrot.slane %v3961, 4
      %v3994 = vmax.f32 %v3961, %v3993
      %v3995 = vrot.slane %v3994, 2
      %v3996 = vmax.f32 %v3994, %v3995
      %v3997 = vrot.slane %v3996, 1
      %v3998 = vmax.f32 %v3996, %v3997
      %v3999 = vrot.slane %v3962, 4
      %v4000 = vmax.f32 %v3962, %v3999
      %v4001 = vrot.slane %v4000, 2
      %v4002 = vmax.f32 %v4000, %v4001
      %v4003 = vrot.slane %v4002, 1
      %v4004 = vmax.f32 %v4002, %v4003
      %v4005 = vrot.slane %v3963, 4
      %v4006 = vmax.f32 %v3963, %v4005
      %v4007 = vrot.slane %v4006, 2
      %v4008 = vmax.f32 %v4006, %v4007
      %v4009 = vrot.slane %v4008, 1
      %v4010 = vmax.f32 %v4008, %v4009
      %v4011 = vrot.slane %v3964, 4
      %v4012 = vmax.f32 %v3964, %v4011
      %v4013 = vrot.slane %v4012, 2
      %v4014 = vmax.f32 %v4012, %v4013
      %v4015 = vrot.slane %v4014, 1
      %v4016 = vmax.f32 %v4014, %v4015
      %v4017 = vrot.slane %v3965, 4
      %v4018 = vmax.f32 %v3965, %v4017
      %v4019 = vrot.slane %v4018, 2
      %v4020 = vmax.f32 %v4018, %v4019
      %v4021 = vrot.slane %v4020, 1
      %v4022 = vmax.f32 %v4020, %v4021
      %v4023 = vrot.slane %v3966, 4
      %v4024 = vmax.f32 %v3966, %v4023
      %v4025 = vrot.slane %v4024, 2
      %v4026 = vmax.f32 %v4024, %v4025
      %v4027 = vrot.slane %v4026, 1
      %v4028 = vmax.f32 %v4026, %v4027
      %v4029 = vrot.slane %v3967, 4
      %v4030 = vmax.f32 %v3967, %v4029
      %v4031 = vrot.slane %v4030, 2
      %v4032 = vmax.f32 %v4030, %v4031
      %v4033 = vrot.slane %v4032, 1
      %v4034 = vmax.f32 %v4032, %v4033
      %v4035 = vrot.slane %v3968, 4
      %v4036 = vmax.f32 %v3968, %v4035
      %v4037 = vrot.slane %v4036, 2
      %v4038 = vmax.f32 %v4036, %v4037
      %v4039 = vrot.slane %v4038, 1
      %v4040 = vmax.f32 %v4038, %v4039
      %v4041 = vrot.slane %v3969, 4
      %v4042 = vmax.f32 %v3969, %v4041
      %v4043 = vrot.slane %v4042, 2
      %v4044 = vmax.f32 %v4042, %v4043
      %v4045 = vrot.slane %v4044, 1
      %v4046 = vmax.f32 %v4044, %v4045
      %v4047 = vrot.slane %v3970, 4
      %v4048 = vmax.f32 %v3970, %v4047
      %v4049 = vrot.slane %v4048, 2
      %v4050 = vmax.f32 %v4048, %v4049
      %v4051 = vrot.slane %v4050, 1
      %v4052 = vmax.f32 %v4050, %v4051
      %v4053 = vrot.slane %v3971, 4
      %v4054 = vmax.f32 %v3971, %v4053
      %v4055 = vrot.slane %v4054, 2
      %v4056 = vmax.f32 %v4054, %v4055
      %v4057 = vrot.slane %v4056, 1
      %v4058 = vmax.f32 %v4056, %v4057
      %v4059 = vrot.slane %v3972, 4
      %v4060 = vmax.f32 %v3972, %v4059
      %v4061 = vrot.slane %v4060, 2
      %v4062 = vmax.f32 %v4060, %v4061
      %v4063 = vrot.slane %v4062, 1
      %v4064 = vmax.f32 %v4062, %v4063
      %v4065 = vrot.slane %v3973, 4
      %v4066 = vmax.f32 %v3973, %v4065
      %v4067 = vrot.slane %v4066, 2
      %v4068 = vmax.f32 %v4066, %v4067
      %v4069 = vrot.slane %v4068, 1
      %v4070 = vmax.f32 %v4068, %v4069
      %v4071 = vrot.slane %v3974, 4
      %v4072 = vmax.f32 %v3974, %v4071
      %v4073 = vrot.slane %v4072, 2
      %v4074 = vmax.f32 %v4072, %v4073
      %v4075 = vrot.slane %v4074, 1
      %v4076 = vmax.f32 %v4074, %v4075
      %v4077 = vrot.slane %v3975, 4
      %v4078 = vmax.f32 %v3975, %v4077
      %v4079 = vrot.slane %v4078, 2
      %v4080 = vmax.f32 %v4078, %v4079
      %v4081 = vrot.slane %v4080, 1
      %v4082 = vmax.f32 %v4080, %v4081
      %v4083 = vrot.slane %v3976, 4
      %v4084 = vmax.f32 %v3976, %v4083
      %v4085 = vrot.slane %v4084, 2
      %v4086 = vmax.f32 %v4084, %v4085
      %v4087 = vrot.slane %v4086, 1
      %v4088 = vmax.f32 %v4086, %v4087
      %v4089 = vrot.slane %v3977, 4
      %v4090 = vmax.f32 %v3977, %v4089
      %v4091 = vrot.slane %v4090, 2
      %v4092 = vmax.f32 %v4090, %v4091
      %v4093 = vrot.slane %v4092, 1
      %v4094 = vmax.f32 %v4092, %v4093
      %v4095 = vrot.slane %v3978, 4
      %v4096 = vmax.f32 %v3978, %v4095
      %v4097 = vrot.slane %v4096, 2
      %v4098 = vmax.f32 %v4096, %v4097
      %v4099 = vrot.slane %v4098, 1
      %v4100 = vmax.f32 %v4098, %v4099
      %v4101 = vrot.slane %v3979, 4
      %v4102 = vmax.f32 %v3979, %v4101
      %v4103 = vrot.slane %v4102, 2
      %v4104 = vmax.f32 %v4102, %v4103
      %v4105 = vrot.slane %v4104, 1
      %v4106 = vmax.f32 %v4104, %v4105
      %v4107 = vrot.slane %v3980, 4
      %v4108 = vmax.f32 %v3980, %v4107
      %v4109 = vrot.slane %v4108, 2
      %v4110 = vmax.f32 %v4108, %v4109
      %v4111 = vrot.slane %v4110, 1
      %v4112 = vmax.f32 %v4110, %v4111
      %v4113 = vrot.slane %v3981, 4
      %v4114 = vmax.f32 %v3981, %v4113
      %v4115 = vrot.slane %v4114, 2
      %v4116 = vmax.f32 %v4114, %v4115
      %v4117 = vrot.slane %v4116, 1
      %v4118 = vmax.f32 %v4116, %v4117
      %v4119 = vrot.slane %v3982, 4
      %v4120 = vmax.f32 %v3982, %v4119
      %v4121 = vrot.slane %v4120, 2
      %v4122 = vmax.f32 %v4120, %v4121
      %v4123 = vrot.slane %v4122, 1
      %v4124 = vmax.f32 %v4122, %v4123
      %v4125 = vrot.slane %v3983, 4
      %v4126 = vmax.f32 %v3983, %v4125
      %v4127 = vrot.slane %v4126, 2
      %v4128 = vmax.f32 %v4126, %v4127
      %v4129 = vrot.slane %v4128, 1
      %v4130 = vmax.f32 %v4128, %v4129
      %v4131 = vrot.slane %v3984, 4
      %v4132 = vmax.f32 %v3984, %v4131
      %v4133 = vrot.slane %v4132, 2
      %v4134 = vmax.f32 %v4132, %v4133
      %v4135 = vrot.slane %v4134, 1
      %v4136 = vmax.f32 %v4134, %v4135
      %v4137 = vrot.slane %v3985, 4
      %v4138 = vmax.f32 %v3985, %v4137
      %v4139 = vrot.slane %v4138, 2
      %v4140 = vmax.f32 %v4138, %v4139
      %v4141 = vrot.slane %v4140, 1
      %v4142 = vmax.f32 %v4140, %v4141
      %v4143 = vrot.slane %v3986, 4
      %v4144 = vmax.f32 %v3986, %v4143
      %v4145 = vrot.slane %v4144, 2
      %v4146 = vmax.f32 %v4144, %v4145
      %v4147 = vrot.slane %v4146, 1
      %v4148 = vmax.f32 %v4146, %v4147
      %v4149 = vrot.slane %v3987, 4
      %v4150 = vmax.f32 %v3987, %v4149
      %v4151 = vrot.slane %v4150, 2
      %v4152 = vmax.f32 %v4150, %v4151
      %v4153 = vrot.slane %v4152, 1
      %v4154 = vmax.f32 %v4152, %v4153
      %v4155 = vrot.slane %v3988, 4
      %v4156 = vmax.f32 %v3988, %v4155
      %v4157 = vrot.slane %v4156, 2
      %v4158 = vmax.f32 %v4156, %v4157
      %v4159 = vrot.slane %v4158, 1
      %v4160 = vmax.f32 %v4158, %v4159
      %v4161 = vrot.slane %v3989, 4
      %v4162 = vmax.f32 %v3989, %v4161
      %v4163 = vrot.slane %v4162, 2
      %v4164 = vmax.f32 %v4162, %v4163
      %v4165 = vrot.slane %v4164, 1
      %v4166 = vmax.f32 %v4164, %v4165
      %v4167 = vrot.slane %v3990, 4
      %v4168 = vmax.f32 %v3990, %v4167
      %v4169 = vrot.slane %v4168, 2
      %v4170 = vmax.f32 %v4168, %v4169
      %v4171 = vrot.slane %v4170, 1
      %v4172 = vmax.f32 %v4170, %v4171
      %v4173 = vrot.slane %v3991, 4
      %v4174 = vmax.f32 %v3991, %v4173
      %v4175 = vrot.slane %v4174, 2
      %v4176 = vmax.f32 %v4174, %v4175
      %v4177 = vrot.slane %v4176, 1
      %v4178 = vmax.f32 %v4176, %v4177
      %v4179 = vrot.slane %v3992, 4
      %v4180 = vmax.f32 %v3992, %v4179
      %v4181 = vrot.slane %v4180, 2
      %v4182 = vmax.f32 %v4180, %v4181
      %v4183 = vrot.slane %v4182, 1
      %v4184 = vmax.f32 %v4182, %v4183
      %v4185 = vpack.c.bf16 %v3998, %v3998
      %v4186 = vpack.c.bf16 %v4004, %v4004
      %v4187 = vpack.c.bf16 %v4010, %v4010
      %v4188 = vpack.c.bf16 %v4016, %v4016
      %v4189 = vpack.c.bf16 %v4022, %v4022
      %v4190 = vpack.c.bf16 %v4028, %v4028
      %v4191 = vpack.c.bf16 %v4034, %v4034
      %v4192 = vpack.c.bf16 %v4040, %v4040
      %v4193 = vpack.c.bf16 %v4046, %v4046
      %v4194 = vpack.c.bf16 %v4052, %v4052
      %v4195 = vpack.c.bf16 %v4058, %v4058
      %v4196 = vpack.c.bf16 %v4064, %v4064
      %v4197 = vpack.c.bf16 %v4070, %v4070
      %v4198 = vpack.c.bf16 %v4076, %v4076
      %v4199 = vpack.c.bf16 %v4082, %v4082
      %v4200 = vpack.c.bf16 %v4088, %v4088
      %v4201 = vpack.c.bf16 %v4094, %v4094
      %v4202 = vpack.c.bf16 %v4100, %v4100
      %v4203 = vpack.c.bf16 %v4106, %v4106
      %v4204 = vpack.c.bf16 %v4112, %v4112
      %v4205 = vpack.c.bf16 %v4118, %v4118
      %v4206 = vpack.c.bf16 %v4124, %v4124
      %v4207 = vpack.c.bf16 %v4130, %v4130
      %v4208 = vpack.c.bf16 %v4136, %v4136
      %v4209 = vpack.c.bf16 %v4142, %v4142
      %v4210 = vpack.c.bf16 %v4148, %v4148
      %v4211 = vpack.c.bf16 %v4154, %v4154
      %v4212 = vpack.c.bf16 %v4160, %v4160
      %v4213 = vpack.c.bf16 %v4166, %v4166
      %v4214 = vpack.c.bf16 %v4172, %v4172
      %v4215 = vpack.c.bf16 %v4178, %v4178
      %v4216 = vpack.c.bf16 %v4184, %v4184
      %v4249 = vunpack.c.l.b16 %v4185
      %v4250 = vunpack.c.l.b16 %v4186
      %v4251 = vunpack.c.l.b16 %v4187
      %v4252 = vunpack.c.l.b16 %v4188
      %v4253 = vunpack.c.l.b16 %v4189
      %v4254 = vunpack.c.l.b16 %v4190
      %v4255 = vunpack.c.l.b16 %v4191
      %v4256 = vunpack.c.l.b16 %v4192
      %v4257 = vunpack.c.l.b16 %v4193
      %v4258 = vunpack.c.l.b16 %v4194
      %v4259 = vunpack.c.l.b16 %v4195
      %v4260 = vunpack.c.l.b16 %v4196
      %v4261 = vunpack.c.l.b16 %v4197
      %v4262 = vunpack.c.l.b16 %v4198
      %v4263 = vunpack.c.l.b16 %v4199
      %v4264 = vunpack.c.l.b16 %v4200
      %v4265 = vunpack.c.l.b16 %v4201
      %v4266 = vunpack.c.l.b16 %v4202
      %v4267 = vunpack.c.l.b16 %v4203
      %v4268 = vunpack.c.l.b16 %v4204
      %v4269 = vunpack.c.l.b16 %v4205
      %v4270 = vunpack.c.l.b16 %v4206
      %v4271 = vunpack.c.l.b16 %v4207
      %v4272 = vunpack.c.l.b16 %v4208
      %v4273 = vunpack.c.l.b16 %v4209
      %v4274 = vunpack.c.l.b16 %v4210
      %v4275 = vunpack.c.l.b16 %v4211
      %v4276 = vunpack.c.l.b16 %v4212
      %v4277 = vunpack.c.l.b16 %v4213
      %v4278 = vunpack.c.l.b16 %v4214
      %v4279 = vunpack.c.l.b16 %v4215
      %v4280 = vunpack.c.l.b16 %v4216
      %v4281 = vpack.c.b16 %v4250, %v4249
      %v4282 = vpack.c.b16 %v4252, %v4251
      %v4283 = vpack.c.b16 %v4254, %v4253
      %v4284 = vpack.c.b16 %v4256, %v4255
      %v4285 = vpack.c.b16 %v4258, %v4257
      %v4286 = vpack.c.b16 %v4260, %v4259
      %v4287 = vpack.c.b16 %v4262, %v4261
      %v4288 = vpack.c.b16 %v4264, %v4263
      %v4289 = vpack.c.b16 %v4266, %v4265
      %v4290 = vpack.c.b16 %v4268, %v4267
      %v4291 = vpack.c.b16 %v4270, %v4269
      %v4292 = vpack.c.b16 %v4272, %v4271
      %v4293 = vpack.c.b16 %v4274, %v4273
      %v4294 = vpack.c.b16 %v4276, %v4275
      %v4295 = vpack.c.b16 %v4278, %v4277
      %v4296 = vpack.c.b16 %v4280, %v4279
      %v4297 = vunpack.c.l.b16 %v4281
      %v4298 = vunpack.c.h.b16 %v4281
      %v4299 = vunpack.c.l.b16 %v4282
      %v4300 = vunpack.c.h.b16 %v4282
      %v4301 = vunpack.c.l.b16 %v4283
      %v4302 = vunpack.c.h.b16 %v4283
      %v4303 = vunpack.c.l.b16 %v4284
      %v4304 = vunpack.c.h.b16 %v4284
      %v4305 = vunpack.c.l.b16 %v4285
      %v4306 = vunpack.c.h.b16 %v4285
      %v4307 = vunpack.c.l.b16 %v4286
      %v4308 = vunpack.c.h.b16 %v4286
      %v4309 = vunpack.c.l.b16 %v4287
      %v4310 = vunpack.c.h.b16 %v4287
      %v4311 = vunpack.c.l.b16 %v4288
      %v4312 = vunpack.c.h.b16 %v4288
      %v4313 = vunpack.c.l.b16 %v4289
      %v4314 = vunpack.c.h.b16 %v4289
      %v4315 = vunpack.c.l.b16 %v4290
      %v4316 = vunpack.c.h.b16 %v4290
      %v4317 = vunpack.c.l.b16 %v4291
      %v4318 = vunpack.c.h.b16 %v4291
      %v4319 = vunpack.c.l.b16 %v4292
      %v4320 = vunpack.c.h.b16 %v4292
      %v4321 = vunpack.c.l.b16 %v4293
      %v4322 = vunpack.c.h.b16 %v4293
      %v4323 = vunpack.c.l.b16 %v4294
      %v4324 = vunpack.c.h.b16 %v4294
      %v4325 = vunpack.c.l.b16 %v4295
      %v4326 = vunpack.c.h.b16 %v4295
      %v4327 = vunpack.c.l.b16 %v4296
      %v4328 = vunpack.c.h.b16 %v4296
      %vm4329 = vcmask 1041409
      %v4330 = vsel %vm4329, %v4301, %v4297
      %vm4331 = vcmask 1042434
      %v4332 = vsel %vm4331, %v4305, %v4330
      %vm4333 = vcmask 1043459
      %v4334 = vsel %vm4333, %v4309, %v4332
      %vm4335 = vcmask 1044484
      %v4336 = vsel %vm4335, %v4313, %v4334
      %vm4337 = vcmask 1045509
      %v4338 = vsel %vm4337, %v4317, %v4336
      %vm4339 = vcmask 1046534
      %v4340 = vsel %vm4339, %v4321, %v4338
      %vm4341 = vcmask 1047559
      %v4342 = vsel %vm4341, %v4325, %v4340
      %v4343 = vsel %vm4329, %v4302, %v4298
      %v4344 = vsel %vm4331, %v4306, %v4343
      %v4345 = vsel %vm4333, %v4310, %v4344
      %v4346 = vsel %vm4335, %v4314, %v4345
      %v4347 = vsel %vm4337, %v4318, %v4346
      %v4348 = vsel %vm4339, %v4322, %v4347
      %v4349 = vsel %vm4341, %v4326, %v4348
      %v4350 = vsel %vm4329, %v4303, %v4299
      %v4351 = vsel %vm4331, %v4307, %v4350
      %v4352 = vsel %vm4333, %v4311, %v4351
      %v4353 = vsel %vm4335, %v4315, %v4352
      %v4354 = vsel %vm4337, %v4319, %v4353
      %v4355 = vsel %vm4339, %v4323, %v4354
      %v4356 = vsel %vm4341, %v4327, %v4355
      %v4357 = vsel %vm4329, %v4304, %v4300
      %v4358 = vsel %vm4331, %v4308, %v4357
      %v4359 = vsel %vm4333, %v4312, %v4358
      %v4360 = vsel %vm4335, %v4316, %v4359
      %v4361 = vsel %vm4337, %v4320, %v4360
      %v4362 = vsel %vm4339, %v4324, %v4361
      %v4363 = vsel %vm4341, %v4328, %v4362
      %v4364 = vpack.c.b16 %v4349, %v4342
      %v4365 = vpack.c.b16 %v4363, %v4356
      %4368 = vst [vmem:[%s332] sm:$0xff] %v4364
      %4369 = vst [vmem:[%s332 + $0x8] sm:$0xff] %v4365
      %p4370 = scmp.lt.s32.totalorder %s19, 1
      %s4371 = scalar_select %p4370, %s19, 1
      %s4372 = smul.addr %s4371, 4
      %s4373 = smul.addr %s4372, 4
      %s4374 = scalar_lea.vmem %s8, %s4373
      // Predicated region
      $region53: #{pointnet2_encoder_forward.7} parent=51 // pred_check
        %p4375 = pneg %p215
      $region54: #{pointnet2_encoder_forward.7} parent=51 // pred_check_branch
        %4377 = sbr.rel (%p4375) target = $region56
      $region55: #{pointnet2_encoder_forward.7} parent=51 // pred_region
        _
      $region56: #{pointnet2_encoder_forward.7} parent=51 // pred_fallthru
        _
    $region52: #{pointnet2_encoder_forward.7} parent=5 // pred_fallthru
      _
    %p4378 = scmp.le.s32.totalorder 2, %s14
    // Predicated region
    $region57: #{pointnet2_encoder_forward.7} parent=5 // pred_check
      %p4379 = pneg %p4378
    $region58: #{pointnet2_encoder_forward.7} parent=5 // pred_check_branch
      %4381 = sbr.rel (%p4379) target = $region60
    $region59: #{pointnet2_encoder_forward.7} parent=5 // pred_region
      %s4382 = ssub.s32 %s14, 2
      // Predicated region
      $region61: #{pointnet2_encoder_forward.7} parent=59 // pred_check
        %p4383 = pneg %p221
      $region62: #{pointnet2_encoder_forward.7} parent=59 // pred_check_branch
        %4385 = sbr.rel (%p4383) target = $region64
      $region63: #{pointnet2_encoder_forward.7} parent=59 // pred_region
        %p4386 = scmp.lt.s32.totalorder %s20, 1
        %s4387 = scalar_select %p4386, %s20, 1
        %s4388 = smul.addr %s4387, 4
        %s4389 = smul.addr %s4388, 4
        %s4390 = scalar_lea.vmem %s8, %s4389
      $region64: #{pointnet2_encoder_forward.7} parent=59 // pred_fallthru
        _
    $region60: #{pointnet2_encoder_forward.7} parent=5 // pred_fallthru
      _
  $region6: #{pointnet2_encoder_forward.7} parent=0 // loop_footer
    %s18 = sadd.s32 1, %s14
  $region7: #{pointnet2_encoder_forward.7} parent=0 // loop_footer_branch
    %13 = sbr.rel target = $region3
  $region8: #{pointnet2_encoder_forward.7} parent=0 // loop_exit
    _

</llo_original>
